<compile_context>
chip_gen: v5e
topology: v5e:2x2
jax: 0.10.0
libtpu: 0.0.40
codegen_flags: <defaults>
</compile_context>

<pallas_src>
import jax
import jax.numpy as jnp
from jax.experimental import pallas as pl
from jax.experimental.pallas import tpu as pltpu

_INV_LN2 = 1.4426950408889634
_EPS = 1e-9

# Perf-review tunables.
_TARGET_BLOCK_BYTES = 4 * 1024 * 1024    # ~4 MiB per pipelined buffer
_VMEM_LIMIT_BYTES = 32 * 1024 * 1024     # explicit scoped-VMEM limit (safe on v5e/v6e/v7x)
_MIN_PALLAS_BYTES = 1 * 1024 * 1024      # below this, fused XLA op wins


def _log2_kernel(x_ref, o_ref):
    # Elementwise: log2(x + eps) = ln(x + eps) * (1/ln 2)  (EUP transcendental)
    v = x_ref[...].astype(jnp.float32) + jnp.float32(_EPS)
    o_ref[...] = (jnp.log(v) * jnp.float32(_INV_LN2)).astype(o_ref.dtype)


def _sublane_multiple(itemsize):
    # Sub-32-bit dtypes pack along sublanes: keep block rows a multiple of this.
    return {4: 8, 2: 16, 1: 32}.get(itemsize, 8)


def _pick_lane_dim(n, sub):
    """Widest multiple of 128 dividing n whose row count keeps full sublane
    occupancy (rows % sub == 0); fall back to any divisor with rows >= sub."""
    fallback = None
    for cand in (2048, 1024, 512, 256, 128):
        if n % cand:
            continue
        rows = n // cand
        if rows % sub == 0:
            return cand
        if fallback is None and rows >= sub:
            fallback = cand
    return fallback


def _pick_block_rows(rows, lane_dim, itemsize, sub):
    """Divisor of `rows` (multiple of `sub`) closest to the ~4 MiB byte target,
    so every grid step is a full, unmasked tile."""
    target = max(sub, (_TARGET_BLOCK_BYTES // (lane_dim * itemsize)) // sub * sub)
    if rows <= target:
        return rows  # full-extent block along rows: always legal
    best = None
    cap = min(rows, 2 * target)
    for d in range(sub, cap + 1, sub):
        if rows % d == 0 and (best is None or abs(d - target) < abs(best - target)):
            best = d
    # No exact divisor near the target: accept a ragged (masked) tail.
    return best if best is not None else target


def _xla_fallback(x, out_dtype):
    return jnp.log2(x.astype(jnp.float32) + _EPS).astype(out_dtype)


def log2_transform(x):
    """Elementwise log2(x + 1e-9); semantics identical to the torch module."""
    orig_shape = x.shape
    out_dtype = x.dtype if jnp.issubdtype(x.dtype, jnp.floating) else jnp.float32
    n = x.size
    itemsize = jnp.dtype(x.dtype).itemsize

    # Small-input fast path: kernel launch + pipeline prologue is not worth it.
    if n == 0 or n * itemsize < _MIN_PALLAS_BYTES:
        return _xla_fallback(x, out_dtype).reshape(orig_shape)

    sub = _sublane_multiple(itemsize)
    lane_dim = _pick_lane_dim(n, sub)
    if lane_dim is None:
        # Element count not a multiple of 128: a single fused XLA elementwise
        # pass is already HBM-bound; avoids a padding copy of the whole input.
        return _xla_fallback(x, out_dtype).reshape(orig_shape)

    rows = n // lane_dim
    block_rows = _pick_block_rows(rows, lane_dim, itemsize, sub)
    grid = (pl.cdiv(rows, block_rows),)

    slab = x.reshape(rows, lane_dim)

    out_itemsize = jnp.dtype(out_dtype).itemsize
    cost = pl.CostEstimate(
        flops=2 * n,
        transcendentals=n,
        bytes_accessed=n * itemsize + n * out_itemsize,
    )

    # TODO(synk): on v7x, verify the "parallel" axis is sharded across both
    # TensorCores; if not, switch to pltpu.CORE_PARALLEL on this axis.
    out = pl.pallas_call(
        _log2_kernel,
        out_shape=jax.ShapeDtypeStruct((rows, lane_dim), out_dtype),
        grid_spec=pltpu.PrefetchScalarGridSpec(
            num_scalar_prefetch=0,
            grid=grid,
            in_specs=[pl.BlockSpec((block_rows, lane_dim), lambda i: (i, 0))],
            out_specs=pl.BlockSpec((block_rows, lane_dim), lambda i: (i, 0)),
        ),
        compiler_params=pltpu.CompilerParams(
            dimension_semantics=("parallel",),
            vmem_limit_bytes=_VMEM_LIMIT_BYTES,
        ),
        cost_estimate=cost,
    )(slab)

    return out.reshape(orig_shape)


if __name__ == "__main__":
    key = jax.random.PRNGKey(0)
    k1, k2 = jax.random.split(key)

    # 1) Tiny spectrogram-like input, consistent with the module's usage.
    #    (Exercises the small-input XLA fast path.)
    x_small = jax.random.uniform(k1, (2, 4, 16, 16), dtype=jnp.float32,
                                 minval=0.0, maxval=10.0)
    y_small = log2_transform(x_small)
    jax.block_until_ready(y_small)
    ref_small = jnp.log2(x_small + 1e-9)
    assert y_small.shape == x_small.shape and y_small.dtype == x_small.dtype
    assert jnp.max(jnp.abs(y_small - ref_small)) < 1e-4

    # 2) Medium spectrogram batch (8 MiB f32) — exercises the Pallas streaming
    #    kernel with a multi-step grid (lane_dim=2048, block_rows=512, grid=2).
    x_big = jax.random.uniform(k2, (8, 1, 256, 1024), dtype=jnp.float32,
                               minval=0.0, maxval=10.0)
    y_big = log2_transform(x_big)
    jax.block_until_ready(y_big)
    ref_big = jnp.log2(x_big + 1e-9)
    assert y_big.shape == x_big.shape and y_big.dtype == x_big.dtype
    assert jnp.max(jnp.abs(y_big - ref_big)) < 1e-4

    print("KERNEL_OK")
</pallas_src>

<mosaic_0001>
module attributes {stable_mosaic.version = 11 : i64} {
  func.func @_log2_kernel(%arg0: i32, %arg1: memref<512x2048xf32, #tpu.memory_space<vmem>>, %arg2: memref<512x2048xf32, #tpu.memory_space<vmem>>) attributes {dimension_semantics = [#tpu.dimension_semantics<parallel>], iteration_bounds = array<i64: 2>, scalar_prefetch = 0 : i64, scratch_operands = 0 : i64, tpu.core_type = #tpu.core_type<tc>, window_params = [{transform_indices = @transform_0, window_bounds = array<i64: 512, 2048>}, {transform_indices = @transform_1, window_bounds = array<i64: 512, 2048>}]} {
    %c0 = arith.constant 0 : index
    %c0_0 = arith.constant 0 : index
    %0 = vector.load %arg1[%c0, %c0_0] : memref<512x2048xf32, #tpu.memory_space<vmem>>, vector<512x2048xf32>
    %cst = arith.constant 9.99999971E-10 : f32
    %1 = vector.broadcast %cst : f32 to vector<512x2048xf32>
    %2 = arith.addf %0, %1 : vector<512x2048xf32>
    %3 = math.log %2 : vector<512x2048xf32>
    %cst_1 = arith.constant 1.44269502 : f32
    %4 = vector.broadcast %cst_1 : f32 to vector<512x2048xf32>
    %5 = arith.mulf %3, %4 : vector<512x2048xf32>
    %c0_2 = arith.constant 0 : index
    %c0_3 = arith.constant 0 : index
    %6 = vector.load %arg2[%c0_2, %c0_3] : memref<512x2048xf32, #tpu.memory_space<vmem>>, vector<512x2048xf32>
    tpu.vector_store %arg2[%c0_2, %c0_3], %5 {strides = array<i32>} : memref<512x2048xf32, #tpu.memory_space<vmem>>, vector<512x2048xf32>,
    return
  }
  func.func @transform_0(%arg0: i32) -> (i32, i32) {
    %c0_i32 = arith.constant 0 : i32
    %c0_i32_0 = arith.constant 0 : i32
    return %arg0, %c0_i32 : i32, i32
  }
  func.func @transform_1(%arg0: i32) -> (i32, i32) {
    %c0_i32 = arith.constant 0 : i32
    %c0_i32_0 = arith.constant 0 : i32
    return %arg0, %c0_i32 : i32, i32
  }
}

</mosaic_0001>

<llo_original>
// kernel: tpu_custom_call.1
$region0: #{tpu_custom_call.1}
  #allocation0 [shape = 'u32[]', space=smem, size = 0x4, offset = 0x4, fixed_abs, tag = 'smem constant byte address 0x4 - core index']
  #allocation1 [shape = 'u32[72,128]{1,0:T(1,128)}', space=vmem, size = 0x9000, scoped, tag = 'internal scratch']
  %s0 = inlined_call_operand.hbm [shape: f32[1024,2048], index: 0, kind: input, shape index: {}]
  %s1 = inlined_call_operand.hbm [shape: f32[1024,2048], index: 1, kind: output, shape index: {}]
  %s2 = sld [smem:[#allocation0]]
  $region41: #{tpu_custom_call.1} parent=0
    _
  %s4 = ssub.s32 1, %s2
  %s5 = scalar_select 0, %s4, %s2
  $region1: #{tpu_custom_call.1} parent=0
    #allocation2 [shape = 'u8[8388608]{0}', space=vmem, size = 0x800000, scoped, tag = 'input window, operand 0']
    #allocation3 [shape = 's32[2]{0}', space=sflag, size = 0x8, scoped, tag = 'scoped memory for tpu_custom_call.1']
    #allocation4 [shape = 's32[2]{0}', space=sflag, size = 0x8, scoped, tag = 'scoped memory for tpu_custom_call.1']
    #allocation5 [shape = 'u8[8388608]{0}', space=vmem, size = 0x800000, scoped, tag = 'output window, operand 0']
    %6 = vsyncpa [#allocation3], 0
    %s7 = scalar_lea.sflag [#allocation3], 1
    %8 = vsyncpa %s7, 0
    %9 = vsyncpa [#allocation4], 0
    %s10 = scalar_lea.sflag [#allocation4], 1
    %11 = vsyncpa %s10, 0
    loop: start=0, step=1, limit=4
    $region2: #{tpu_custom_call.1} parent=1 // loop_pre_header
      _
    $region3: #{tpu_custom_call.1} parent=1 // loop_header
      %s13 = sphi 0, %s17
      %p14 = scmp.ge.s32.totalorder %s13, 4
      %s23 = sphi 0, %s25
      %s26 = sphi 0, %s23
      %s27 = sphi 0, %s26
      %s43 = sphi 0, %s27
      %s49 = sphi 0, %s51
      %s52 = sphi 0, %s49
      %s53 = sphi 0, %s52
      %s69 = sphi 0, %s53
    $region4: #{tpu_custom_call.1} parent=1 // loop_header_branch
      %16 = sbr.rel (%p14) target = $region8
    $region5: #{tpu_custom_call.1} parent=1 // loop_body
      %s18 = ssub.s32 %s13, 1
      %s19 = ssub.s32 %s13, 2
      %s20 = sadd.s32 %s13, 1
      %s21 = ssub.s32 %s13, %s20
      %p22 = scmp.eq.s32.totalorder %s21, 0
      %s24 = sadd.s32 %s23, 1
      %s25 = scalar_select %p22, %s23, %s24
      %p28 = pneg %p22
      %p29 = scmp.eq.s32.totalorder %s13, 1
      %p30 = por %p28, %p29
      %p31 = scmp.ne.s32.totalorder %s23, %s26
      %p32 = scmp.eq.s32.totalorder %s13, 0
      %p33 = por %p31, %p32
      %p34 = scmp.ne.s32.totalorder %s23, %s26
      %p35 = scmp.eq.s32.totalorder %s18, 1
      %p36 = por %p34, %p35
      %p37 = scmp.ne.s32.totalorder %s26, %s27
      %p38 = scmp.eq.s32.totalorder %s18, 0
      %p39 = por %p37, %p38
      %p40 = scmp.ne.s32.totalorder %s26, %s27
      %p41 = scmp.eq.s32.totalorder %s19, 1
      %p42 = por %p40, %p41
      %p44 = scmp.ne.s32.totalorder %s27, %s43
      %p45 = scmp.eq.s32.totalorder %s19, 0
      %p46 = por %p44, %p45
      %s47 = ssub.s32 %s13, %s20
      %p48 = scmp.eq.s32.totalorder %s47, 0
      %s50 = sadd.s32 %s49, 1
      %s51 = scalar_select %p48, %s49, %s50
      %p54 = pneg %p48
      %p55 = scmp.eq.s32.totalorder %s13, 1
      %p56 = por %p54, %p55
      %p57 = scmp.ne.s32.totalorder %s49, %s52
      %p58 = scmp.eq.s32.totalorder %s13, 0
      %p59 = por %p57, %p58
      %p60 = scmp.ne.s32.totalorder %s49, %s52
      %p61 = scmp.eq.s32.totalorder %s18, 1
      %p62 = por %p60, %p61
      %p63 = scmp.ne.s32.totalorder %s52, %s53
      %p64 = scmp.eq.s32.totalorder %s18, 0
      %p65 = por %p63, %p64
      %p66 = scmp.ne.s32.totalorder %s52, %s53
      %p67 = scmp.eq.s32.totalorder %s19, 1
      %p68 = por %p66, %p67
      %p70 = scmp.ne.s32.totalorder %s53, %s69
      %p71 = scmp.eq.s32.totalorder %s19, 0
      %p72 = por %p70, %p71
      %p73 = scmp.le.s32.totalorder 1, %s13
      %p74 = scmp.lt.s32.totalorder %s13, 3
      %p75 = pnand %p73, %p74
      %p76 = pneg %p75
      // Predicated region
      $region9: #{tpu_custom_call.1} parent=5 // pred_check
        _
      $region10: #{tpu_custom_call.1} parent=5 // pred_check_branch
        %78 = sbr.rel (%p75) target = $region12
      $region11: #{tpu_custom_call.1} parent=5 // pred_region
        %s79 = ssub.s32 %s13, 1
      $region12: #{tpu_custom_call.1} parent=5 // pred_fallthru
        _
      %p80 = scmp.lt.s32.totalorder %s13, 2
      // Predicated region
      $region13: #{tpu_custom_call.1} parent=5 // pred_check
        %p81 = pneg %p80
      $region14: #{tpu_custom_call.1} parent=5 // pred_check_branch
        %83 = sbr.rel (%p81) target = $region16
      $region15: #{tpu_custom_call.1} parent=5 // pred_region
        // Predicated region
        $region17: #{tpu_custom_call.1} parent=15 // pred_check
          %p84 = pneg %p33
        $region18: #{tpu_custom_call.1} parent=15 // pred_check_branch
          %86 = sbr.rel (%p84) target = $region20
        $region19: #{tpu_custom_call.1} parent=15 // pred_region
          %s87 = sand.u32 %s23, 1
          %s88 = scalar_lea.sflag [#allocation3], %s87
          %s89 = sand.u32 %s23, 1
          %s90 = smul.addr %s89, 8192
          %s91 = scalar_lea.vmem [#allocation2], %s90
          %s92 = smul.u32 64, %s13
          %94 = vsyncadd %s88, 0
          %s95 = smul.addr %s92, 16
          %s96 = smul.addr %s95, 8
          %s97 = scalar_lea.hbm %s0, %s96
          %s98 = sshll.u32 %s97, 4
          %s99 = int_to_ptr.hbm [resolvable:$true] %s98
          %s100 = sshll.u32 %s91, 4
          %s101 = int_to_ptr.vmem [resolvable:$true] %s100
          %106 = dma.hbm_to_vmem [thread:$0]  %s99, 131072, %s101, %s88, 2048, 2048, 128
        $region20: #{tpu_custom_call.1} parent=15 // pred_fallthru
          _
      $region16: #{tpu_custom_call.1} parent=5 // pred_fallthru
        _
      %p107 = scmp.le.s32.totalorder 1, %s13
      %p108 = scmp.lt.s32.totalorder %s13, 3
      %p109 = pnand %p107, %p108
      %p110 = pneg %p109
      // Predicated region
      $region21: #{tpu_custom_call.1} parent=5 // pred_check
        _
      $region22: #{tpu_custom_call.1} parent=5 // pred_check_branch
        %112 = sbr.rel (%p109) target = $region24
      $region23: #{tpu_custom_call.1} parent=5 // pred_region
        %s113 = ssub.s32 %s13, 1
        %s114 = sand.u32 %s26, 1
        %s115 = scalar_lea.sflag [#allocation3], %s114
        %s116 = sand.u32 %s26, 1
        %s117 = smul.addr %s116, 8192
        %s118 = scalar_lea.vmem [#allocation2], %s117
        // Predicated region
        $region25: #{tpu_custom_call.1} parent=23 // pred_check
          %p119 = pneg %p39
        $region26: #{tpu_custom_call.1} parent=23 // pred_check_branch
          %121 = sbr.rel (%p119) target = $region28
        $region27: #{tpu_custom_call.1} parent=23 // pred_region
          %123 = dma.done %s115, 131072
        $region28: #{tpu_custom_call.1} parent=23 // pred_fallthru
          _
        %s124 = sand.u32 %s26, 1
        %s125 = scalar_lea.sflag [#allocation3], %s124
        %s126 = sand.u32 %s26, 1
        %s127 = smul.addr %s126, 8192
        %s128 = scalar_lea.vmem [#allocation2], %s127
        %p129 = pneg %p39
        %p130 = pneg %p36
        %p131 = pneg %p65
        %p132 = pneg %p62
        %s133 = sand.u32 %s52, 1
        %s134 = scalar_lea.sflag [#allocation4], %s133
        %s135 = sand.u32 %s52, 1
        %s136 = smul.addr %s135, 8192
        %s137 = scalar_lea.vmem [#allocation5], %s136
        %s138 = smul.u32 64, %s18
        %s139 = smul.u32 64, %s18
        %v140 = vld [vmem:[%s118] sm:$0xff]
        %v141 = vld [vmem:[%s118 + $0x8] sm:$0xff]
        %v142 = vld [vmem:[%s118 + $0x10] sm:$0xff]
        %v143 = vld [vmem:[%s118 + $0x18] sm:$0xff]
        %v144 = vld [vmem:[%s118 + $0x20] sm:$0xff]
        %v145 = vld [vmem:[%s118 + $0x28] sm:$0xff]
        %v146 = vld [vmem:[%s118 + $0x30] sm:$0xff]
        %v147 = vld [vmem:[%s118 + $0x38] sm:$0xff]
        %v148 = vld [vmem:[%s118 + $0x40] sm:$0xff]
        %v149 = vld [vmem:[%s118 + $0x48] sm:$0xff]
        %v150 = vld [vmem:[%s118 + $0x50] sm:$0xff]
        %v151 = vld [vmem:[%s118 + $0x58] sm:$0xff]
        %v152 = vld [vmem:[%s118 + $0x60] sm:$0xff]
        %v153 = vld [vmem:[%s118 + $0x68] sm:$0xff]
        %v154 = vld [vmem:[%s118 + $0x70] sm:$0xff]
        %v155 = vld [vmem:[%s118 + $0x78] sm:$0xff]
        %v156 = vld [vmem:[%s118 + $0x80] sm:$0xff]
        %v157 = vld [vmem:[%s118 + $0x88] sm:$0xff]
        %v158 = vld [vmem:[%s118 + $0x90] sm:$0xff]
        %v159 = vld [vmem:[%s118 + $0x98] sm:$0xff]
        %v160 = vld [vmem:[%s118 + $0xa0] sm:$0xff]
        %v161 = vld [vmem:[%s118 + $0xa8] sm:$0xff]
        %v162 = vld [vmem:[%s118 + $0xb0] sm:$0xff]
        %v163 = vld [vmem:[%s118 + $0xb8] sm:$0xff]
        %v164 = vld [vmem:[%s118 + $0xc0] sm:$0xff]
        %v165 = vld [vmem:[%s118 + $0xc8] sm:$0xff]
        %v166 = vld [vmem:[%s118 + $0xd0] sm:$0xff]
        %v167 = vld [vmem:[%s118 + $0xd8] sm:$0xff]
        %v168 = vld [vmem:[%s118 + $0xe0] sm:$0xff]
        %v169 = vld [vmem:[%s118 + $0xe8] sm:$0xff]
        %v170 = vld [vmem:[%s118 + $0xf0] sm:$0xff]
        %v171 = vld [vmem:[%s118 + $0xf8] sm:$0xff]
        %v172 = vld [vmem:[%s118 + $0x100] sm:$0xff]
        %v173 = vld [vmem:[%s118 + $0x108] sm:$0xff]
        %v174 = vld [vmem:[%s118 + $0x110] sm:$0xff]
        %v175 = vld [vmem:[%s118 + $0x118] sm:$0xff]
        %v176 = vld [vmem:[%s118 + $0x120] sm:$0xff]
        %v177 = vld [vmem:[%s118 + $0x128] sm:$0xff]
        %v178 = vld [vmem:[%s118 + $0x130] sm:$0xff]
        %v179 = vld [vmem:[%s118 + $0x138] sm:$0xff]
        %v180 = vld [vmem:[%s118 + $0x140] sm:$0xff]
        %v181 = vld [vmem:[%s118 + $0x148] sm:$0xff]
        %v182 = vld [vmem:[%s118 + $0x150] sm:$0xff]
        %v183 = vld [vmem:[%s118 + $0x158] sm:$0xff]
        %v184 = vld [vmem:[%s118 + $0x160] sm:$0xff]
        %v185 = vld [vmem:[%s118 + $0x168] sm:$0xff]
        %v186 = vld [vmem:[%s118 + $0x170] sm:$0xff]
        %v187 = vld [vmem:[%s118 + $0x178] sm:$0xff]
        %v188 = vld [vmem:[%s118 + $0x180] sm:$0xff]
        %v189 = vld [vmem:[%s118 + $0x188] sm:$0xff]
        %v190 = vld [vmem:[%s118 + $0x190] sm:$0xff]
        %v191 = vld [vmem:[%s118 + $0x198] sm:$0xff]
        %v192 = vld [vmem:[%s118 + $0x1a0] sm:$0xff]
        %v193 = vld [vmem:[%s118 + $0x1a8] sm:$0xff]
        %v194 = vld [vmem:[%s118 + $0x1b0] sm:$0xff]
        %v195 = vld [vmem:[%s118 + $0x1b8] sm:$0xff]
        %v196 = vld [vmem:[%s118 + $0x1c0] sm:$0xff]
        %v197 = vld [vmem:[%s118 + $0x1c8] sm:$0xff]
        %v198 = vld [vmem:[%s118 + $0x1d0] sm:$0xff]
        %v199 = vld [vmem:[%s118 + $0x1d8] sm:$0xff]
        %v200 = vld [vmem:[%s118 + $0x1e0] sm:$0xff]
        %v201 = vld [vmem:[%s118 + $0x1e8] sm:$0xff]
        %v202 = vld [vmem:[%s118 + $0x1f0] sm:$0xff]
        %v203 = vld [vmem:[%s118 + $0x1f8] sm:$0xff]
        %v204 = vld [vmem:[%s118 + $0x200] sm:$0xff]
        %v205 = vld [vmem:[%s118 + $0x208] sm:$0xff]
        %v206 = vld [vmem:[%s118 + $0x210] sm:$0xff]
        %v207 = vld [vmem:[%s118 + $0x218] sm:$0xff]
        %v208 = vld [vmem:[%s118 + $0x220] sm:$0xff]
        %v209 = vld [vmem:[%s118 + $0x228] sm:$0xff]
        %v210 = vld [vmem:[%s118 + $0x230] sm:$0xff]
        %v211 = vld [vmem:[%s118 + $0x238] sm:$0xff]
        %v212 = vld [vmem:[%s118 + $0x240] sm:$0xff]
        %v213 = vld [vmem:[%s118 + $0x248] sm:$0xff]
        %v214 = vld [vmem:[%s118 + $0x250] sm:$0xff]
        %v215 = vld [vmem:[%s118 + $0x258] sm:$0xff]
        %v216 = vld [vmem:[%s118 + $0x260] sm:$0xff]
        %v217 = vld [vmem:[%s118 + $0x268] sm:$0xff]
        %v218 = vld [vmem:[%s118 + $0x270] sm:$0xff]
        %v219 = vld [vmem:[%s118 + $0x278] sm:$0xff]
        %v220 = vld [vmem:[%s118 + $0x280] sm:$0xff]
        %v221 = vld [vmem:[%s118 + $0x288] sm:$0xff]
        %v222 = vld [vmem:[%s118 + $0x290] sm:$0xff]
        %v223 = vld [vmem:[%s118 + $0x298] sm:$0xff]
        %v224 = vld [vmem:[%s118 + $0x2a0] sm:$0xff]
        %v225 = vld [vmem:[%s118 + $0x2a8] sm:$0xff]
        %v226 = vld [vmem:[%s118 + $0x2b0] sm:$0xff]
        %v227 = vld [vmem:[%s118 + $0x2b8] sm:$0xff]
        %v228 = vld [vmem:[%s118 + $0x2c0] sm:$0xff]
        %v229 = vld [vmem:[%s118 + $0x2c8] sm:$0xff]
        %v230 = vld [vmem:[%s118 + $0x2d0] sm:$0xff]
        %v231 = vld [vmem:[%s118 + $0x2d8] sm:$0xff]
        %v232 = vld [vmem:[%s118 + $0x2e0] sm:$0xff]
        %v233 = vld [vmem:[%s118 + $0x2e8] sm:$0xff]
        %v234 = vld [vmem:[%s118 + $0x2f0] sm:$0xff]
        %v235 = vld [vmem:[%s118 + $0x2f8] sm:$0xff]
        %v236 = vld [vmem:[%s118 + $0x300] sm:$0xff]
        %v237 = vld [vmem:[%s118 + $0x308] sm:$0xff]
        %v238 = vld [vmem:[%s118 + $0x310] sm:$0xff]
        %v239 = vld [vmem:[%s118 + $0x318] sm:$0xff]
        %v240 = vld [vmem:[%s118 + $0x320] sm:$0xff]
        %v241 = vld [vmem:[%s118 + $0x328] sm:$0xff]
        %v242 = vld [vmem:[%s118 + $0x330] sm:$0xff]
        %v243 = vld [vmem:[%s118 + $0x338] sm:$0xff]
        %v244 = vld [vmem:[%s118 + $0x340] sm:$0xff]
        %v245 = vld [vmem:[%s118 + $0x348] sm:$0xff]
        %v246 = vld [vmem:[%s118 + $0x350] sm:$0xff]
        %v247 = vld [vmem:[%s118 + $0x358] sm:$0xff]
        %v248 = vld [vmem:[%s118 + $0x360] sm:$0xff]
        %v249 = vld [vmem:[%s118 + $0x368] sm:$0xff]
        %v250 = vld [vmem:[%s118 + $0x370] sm:$0xff]
        %v251 = vld [vmem:[%s118 + $0x378] sm:$0xff]
        %v252 = vld [vmem:[%s118 + $0x380] sm:$0xff]
        %v253 = vld [vmem:[%s118 + $0x388] sm:$0xff]
        %v254 = vld [vmem:[%s118 + $0x390] sm:$0xff]
        %v255 = vld [vmem:[%s118 + $0x398] sm:$0xff]
        %v256 = vld [vmem:[%s118 + $0x3a0] sm:$0xff]
        %v257 = vld [vmem:[%s118 + $0x3a8] sm:$0xff]
        %v258 = vld [vmem:[%s118 + $0x3b0] sm:$0xff]
        %v259 = vld [vmem:[%s118 + $0x3b8] sm:$0xff]
        %v260 = vld [vmem:[%s118 + $0x3c0] sm:$0xff]
        %v261 = vld [vmem:[%s118 + $0x3c8] sm:$0xff]
        %v262 = vld [vmem:[%s118 + $0x3d0] sm:$0xff]
        %v263 = vld [vmem:[%s118 + $0x3d8] sm:$0xff]
        %v264 = vld [vmem:[%s118 + $0x3e0] sm:$0xff]
        %v265 = vld [vmem:[%s118 + $0x3e8] sm:$0xff]
        %v266 = vld [vmem:[%s118 + $0x3f0] sm:$0xff]
        %v267 = vld [vmem:[%s118 + $0x3f8] sm:$0xff]
        %v268 = vld [vmem:[%s118 + $0x400] sm:$0xff]
        %v269 = vld [vmem:[%s118 + $0x408] sm:$0xff]
        %v270 = vld [vmem:[%s118 + $0x410] sm:$0xff]
        %v271 = vld [vmem:[%s118 + $0x418] sm:$0xff]
        %v272 = vld [vmem:[%s118 + $0x420] sm:$0xff]
        %v273 = vld [vmem:[%s118 + $0x428] sm:$0xff]
        %v274 = vld [vmem:[%s118 + $0x430] sm:$0xff]
        %v275 = vld [vmem:[%s118 + $0x438] sm:$0xff]
        %v276 = vld [vmem:[%s118 + $0x440] sm:$0xff]
        %v277 = vld [vmem:[%s118 + $0x448] sm:$0xff]
        %v278 = vld [vmem:[%s118 + $0x450] sm:$0xff]
        %v279 = vld [vmem:[%s118 + $0x458] sm:$0xff]
        %v280 = vld [vmem:[%s118 + $0x460] sm:$0xff]
        %v281 = vld [vmem:[%s118 + $0x468] sm:$0xff]
        %v282 = vld [vmem:[%s118 + $0x470] sm:$0xff]
        %v283 = vld [vmem:[%s118 + $0x478] sm:$0xff]
        %v284 = vld [vmem:[%s118 + $0x480] sm:$0xff]
        %v285 = vld [vmem:[%s118 + $0x488] sm:$0xff]
        %v286 = vld [vmem:[%s118 + $0x490] sm:$0xff]
        %v287 = vld [vmem:[%s118 + $0x498] sm:$0xff]
        %v288 = vld [vmem:[%s118 + $0x4a0] sm:$0xff]
        %v289 = vld [vmem:[%s118 + $0x4a8] sm:$0xff]
        %v290 = vld [vmem:[%s118 + $0x4b0] sm:$0xff]
        %v291 = vld [vmem:[%s118 + $0x4b8] sm:$0xff]
        %v292 = vld [vmem:[%s118 + $0x4c0] sm:$0xff]
        %v293 = vld [vmem:[%s118 + $0x4c8] sm:$0xff]
        %v294 = vld [vmem:[%s118 + $0x4d0] sm:$0xff]
        %v295 = vld [vmem:[%s118 + $0x4d8] sm:$0xff]
        %v296 = vld [vmem:[%s118 + $0x4e0] sm:$0xff]
        %v297 = vld [vmem:[%s118 + $0x4e8] sm:$0xff]
        %v298 = vld [vmem:[%s118 + $0x4f0] sm:$0xff]
        %v299 = vld [vmem:[%s118 + $0x4f8] sm:$0xff]
        %v300 = vld [vmem:[%s118 + $0x500] sm:$0xff]
        %v301 = vld [vmem:[%s118 + $0x508] sm:$0xff]
        %v302 = vld [vmem:[%s118 + $0x510] sm:$0xff]
        %v303 = vld [vmem:[%s118 + $0x518] sm:$0xff]
        %v304 = vld [vmem:[%s118 + $0x520] sm:$0xff]
        %v305 = vld [vmem:[%s118 + $0x528] sm:$0xff]
        %v306 = vld [vmem:[%s118 + $0x530] sm:$0xff]
        %v307 = vld [vmem:[%s118 + $0x538] sm:$0xff]
        %v308 = vld [vmem:[%s118 + $0x540] sm:$0xff]
        %v309 = vld [vmem:[%s118 + $0x548] sm:$0xff]
        %v310 = vld [vmem:[%s118 + $0x550] sm:$0xff]
        %v311 = vld [vmem:[%s118 + $0x558] sm:$0xff]
        %v312 = vld [vmem:[%s118 + $0x560] sm:$0xff]
        %v313 = vld [vmem:[%s118 + $0x568] sm:$0xff]
        %v314 = vld [vmem:[%s118 + $0x570] sm:$0xff]
        %v315 = vld [vmem:[%s118 + $0x578] sm:$0xff]
        %v316 = vld [vmem:[%s118 + $0x580] sm:$0xff]
        %v317 = vld [vmem:[%s118 + $0x588] sm:$0xff]
        %v318 = vld [vmem:[%s118 + $0x590] sm:$0xff]
        %v319 = vld [vmem:[%s118 + $0x598] sm:$0xff]
        %v320 = vld [vmem:[%s118 + $0x5a0] sm:$0xff]
        %v321 = vld [vmem:[%s118 + $0x5a8] sm:$0xff]
        %v322 = vld [vmem:[%s118 + $0x5b0] sm:$0xff]
        %v323 = vld [vmem:[%s118 + $0x5b8] sm:$0xff]
        %v324 = vld [vmem:[%s118 + $0x5c0] sm:$0xff]
        %v325 = vld [vmem:[%s118 + $0x5c8] sm:$0xff]
        %v326 = vld [vmem:[%s118 + $0x5d0] sm:$0xff]
        %v327 = vld [vmem:[%s118 + $0x5d8] sm:$0xff]
        %v328 = vld [vmem:[%s118 + $0x5e0] sm:$0xff]
        %v329 = vld [vmem:[%s118 + $0x5e8] sm:$0xff]
        %v330 = vld [vmem:[%s118 + $0x5f0] sm:$0xff]
        %v331 = vld [vmem:[%s118 + $0x5f8] sm:$0xff]
        %v332 = vld [vmem:[%s118 + $0x600] sm:$0xff]
        %v333 = vld [vmem:[%s118 + $0x608] sm:$0xff]
        %v334 = vld [vmem:[%s118 + $0x610] sm:$0xff]
        %v335 = vld [vmem:[%s118 + $0x618] sm:$0xff]
        %v336 = vld [vmem:[%s118 + $0x620] sm:$0xff]
        %v337 = vld [vmem:[%s118 + $0x628] sm:$0xff]
        %v338 = vld [vmem:[%s118 + $0x630] sm:$0xff]
        %v339 = vld [vmem:[%s118 + $0x638] sm:$0xff]
        %v340 = vld [vmem:[%s118 + $0x640] sm:$0xff]
        %v341 = vld [vmem:[%s118 + $0x648] sm:$0xff]
        %v342 = vld [vmem:[%s118 + $0x650] sm:$0xff]
        %v343 = vld [vmem:[%s118 + $0x658] sm:$0xff]
        %v344 = vld [vmem:[%s118 + $0x660] sm:$0xff]
        %v345 = vld [vmem:[%s118 + $0x668] sm:$0xff]
        %v346 = vld [vmem:[%s118 + $0x670] sm:$0xff]
        %v347 = vld [vmem:[%s118 + $0x678] sm:$0xff]
        %v348 = vld [vmem:[%s118 + $0x680] sm:$0xff]
        %v349 = vld [vmem:[%s118 + $0x688] sm:$0xff]
        %v350 = vld [vmem:[%s118 + $0x690] sm:$0xff]
        %v351 = vld [vmem:[%s118 + $0x698] sm:$0xff]
        %v352 = vld [vmem:[%s118 + $0x6a0] sm:$0xff]
        %v353 = vld [vmem:[%s118 + $0x6a8] sm:$0xff]
        %v354 = vld [vmem:[%s118 + $0x6b0] sm:$0xff]
        %v355 = vld [vmem:[%s118 + $0x6b8] sm:$0xff]
        %v356 = vld [vmem:[%s118 + $0x6c0] sm:$0xff]
        %v357 = vld [vmem:[%s118 + $0x6c8] sm:$0xff]
        %v358 = vld [vmem:[%s118 + $0x6d0] sm:$0xff]
        %v359 = vld [vmem:[%s118 + $0x6d8] sm:$0xff]
        %v360 = vld [vmem:[%s118 + $0x6e0] sm:$0xff]
        %v361 = vld [vmem:[%s118 + $0x6e8] sm:$0xff]
        %v362 = vld [vmem:[%s118 + $0x6f0] sm:$0xff]
        %v363 = vld [vmem:[%s118 + $0x6f8] sm:$0xff]
        %v364 = vld [vmem:[%s118 + $0x700] sm:$0xff]
        %v365 = vld [vmem:[%s118 + $0x708] sm:$0xff]
        %v366 = vld [vmem:[%s118 + $0x710] sm:$0xff]
        %v367 = vld [vmem:[%s118 + $0x718] sm:$0xff]
        %v368 = vld [vmem:[%s118 + $0x720] sm:$0xff]
        %v369 = vld [vmem:[%s118 + $0x728] sm:$0xff]
        %v370 = vld [vmem:[%s118 + $0x730] sm:$0xff]
        %v371 = vld [vmem:[%s118 + $0x738] sm:$0xff]
        %v372 = vld [vmem:[%s118 + $0x740] sm:$0xff]
        %v373 = vld [vmem:[%s118 + $0x748] sm:$0xff]
        %v374 = vld [vmem:[%s118 + $0x750] sm:$0xff]
        %v375 = vld [vmem:[%s118 + $0x758] sm:$0xff]
        %v376 = vld [vmem:[%s118 + $0x760] sm:$0xff]
        %v377 = vld [vmem:[%s118 + $0x768] sm:$0xff]
        %v378 = vld [vmem:[%s118 + $0x770] sm:$0xff]
        %v379 = vld [vmem:[%s118 + $0x778] sm:$0xff]
        %v380 = vld [vmem:[%s118 + $0x780] sm:$0xff]
        %v381 = vld [vmem:[%s118 + $0x788] sm:$0xff]
        %v382 = vld [vmem:[%s118 + $0x790] sm:$0xff]
        %v383 = vld [vmem:[%s118 + $0x798] sm:$0xff]
        %v384 = vld [vmem:[%s118 + $0x7a0] sm:$0xff]
        %v385 = vld [vmem:[%s118 + $0x7a8] sm:$0xff]
        %v386 = vld [vmem:[%s118 + $0x7b0] sm:$0xff]
        %v387 = vld [vmem:[%s118 + $0x7b8] sm:$0xff]
        %v388 = vld [vmem:[%s118 + $0x7c0] sm:$0xff]
        %v389 = vld [vmem:[%s118 + $0x7c8] sm:$0xff]
        %v390 = vld [vmem:[%s118 + $0x7d0] sm:$0xff]
        %v391 = vld [vmem:[%s118 + $0x7d8] sm:$0xff]
        %v392 = vld [vmem:[%s118 + $0x7e0] sm:$0xff]
        %v393 = vld [vmem:[%s118 + $0x7e8] sm:$0xff]
        %v394 = vld [vmem:[%s118 + $0x7f0] sm:$0xff]
        %v395 = vld [vmem:[%s118 + $0x7f8] sm:$0xff]
        %v396 = vld [vmem:[%s118 + $0x800] sm:$0xff]
        %v397 = vld [vmem:[%s118 + $0x808] sm:$0xff]
        %v398 = vld [vmem:[%s118 + $0x810] sm:$0xff]
        %v399 = vld [vmem:[%s118 + $0x818] sm:$0xff]
        %v400 = vld [vmem:[%s118 + $0x820] sm:$0xff]
        %v401 = vld [vmem:[%s118 + $0x828] sm:$0xff]
        %v402 = vld [vmem:[%s118 + $0x830] sm:$0xff]
        %v403 = vld [vmem:[%s118 + $0x838] sm:$0xff]
        %v404 = vld [vmem:[%s118 + $0x840] sm:$0xff]
        %v405 = vld [vmem:[%s118 + $0x848] sm:$0xff]
        %v406 = vld [vmem:[%s118 + $0x850] sm:$0xff]
        %v407 = vld [vmem:[%s118 + $0x858] sm:$0xff]
        %v408 = vld [vmem:[%s118 + $0x860] sm:$0xff]
        %v409 = vld [vmem:[%s118 + $0x868] sm:$0xff]
        %v410 = vld [vmem:[%s118 + $0x870] sm:$0xff]
        %v411 = vld [vmem:[%s118 + $0x878] sm:$0xff]
        %v412 = vld [vmem:[%s118 + $0x880] sm:$0xff]
        %v413 = vld [vmem:[%s118 + $0x888] sm:$0xff]
        %v414 = vld [vmem:[%s118 + $0x890] sm:$0xff]
        %v415 = vld [vmem:[%s118 + $0x898] sm:$0xff]
        %v416 = vld [vmem:[%s118 + $0x8a0] sm:$0xff]
        %v417 = vld [vmem:[%s118 + $0x8a8] sm:$0xff]
        %v418 = vld [vmem:[%s118 + $0x8b0] sm:$0xff]
        %v419 = vld [vmem:[%s118 + $0x8b8] sm:$0xff]
        %v420 = vld [vmem:[%s118 + $0x8c0] sm:$0xff]
        %v421 = vld [vmem:[%s118 + $0x8c8] sm:$0xff]
        %v422 = vld [vmem:[%s118 + $0x8d0] sm:$0xff]
        %v423 = vld [vmem:[%s118 + $0x8d8] sm:$0xff]
        %v424 = vld [vmem:[%s118 + $0x8e0] sm:$0xff]
        %v425 = vld [vmem:[%s118 + $0x8e8] sm:$0xff]
        %v426 = vld [vmem:[%s118 + $0x8f0] sm:$0xff]
        %v427 = vld [vmem:[%s118 + $0x8f8] sm:$0xff]
        %v428 = vld [vmem:[%s118 + $0x900] sm:$0xff]
        %v429 = vld [vmem:[%s118 + $0x908] sm:$0xff]
        %v430 = vld [vmem:[%s118 + $0x910] sm:$0xff]
        %v431 = vld [vmem:[%s118 + $0x918] sm:$0xff]
        %v432 = vld [vmem:[%s118 + $0x920] sm:$0xff]
        %v433 = vld [vmem:[%s118 + $0x928] sm:$0xff]
        %v434 = vld [vmem:[%s118 + $0x930] sm:$0xff]
        %v435 = vld [vmem:[%s118 + $0x938] sm:$0xff]
        %v436 = vld [vmem:[%s118 + $0x940] sm:$0xff]
        %v437 = vld [vmem:[%s118 + $0x948] sm:$0xff]
        %v438 = vld [vmem:[%s118 + $0x950] sm:$0xff]
        %v439 = vld [vmem:[%s118 + $0x958] sm:$0xff]
        %v440 = vld [vmem:[%s118 + $0x960] sm:$0xff]
        %v441 = vld [vmem:[%s118 + $0x968] sm:$0xff]
        %v442 = vld [vmem:[%s118 + $0x970] sm:$0xff]
        %v443 = vld [vmem:[%s118 + $0x978] sm:$0xff]
        %v444 = vld [vmem:[%s118 + $0x980] sm:$0xff]
        %v445 = vld [vmem:[%s118 + $0x988] sm:$0xff]
        %v446 = vld [vmem:[%s118 + $0x990] sm:$0xff]
        %v447 = vld [vmem:[%s118 + $0x998] sm:$0xff]
        %v448 = vld [vmem:[%s118 + $0x9a0] sm:$0xff]
        %v449 = vld [vmem:[%s118 + $0x9a8] sm:$0xff]
        %v450 = vld [vmem:[%s118 + $0x9b0] sm:$0xff]
        %v451 = vld [vmem:[%s118 + $0x9b8] sm:$0xff]
        %v452 = vld [vmem:[%s118 + $0x9c0] sm:$0xff]
        %v453 = vld [vmem:[%s118 + $0x9c8] sm:$0xff]
        %v454 = vld [vmem:[%s118 + $0x9d0] sm:$0xff]
        %v455 = vld [vmem:[%s118 + $0x9d8] sm:$0xff]
        %v456 = vld [vmem:[%s118 + $0x9e0] sm:$0xff]
        %v457 = vld [vmem:[%s118 + $0x9e8] sm:$0xff]
        %v458 = vld [vmem:[%s118 + $0x9f0] sm:$0xff]
        %v459 = vld [vmem:[%s118 + $0x9f8] sm:$0xff]
        %v460 = vld [vmem:[%s118 + $0xa00] sm:$0xff]
        %v461 = vld [vmem:[%s118 + $0xa08] sm:$0xff]
        %v462 = vld [vmem:[%s118 + $0xa10] sm:$0xff]
        %v463 = vld [vmem:[%s118 + $0xa18] sm:$0xff]
        %v464 = vld [vmem:[%s118 + $0xa20] sm:$0xff]
        %v465 = vld [vmem:[%s118 + $0xa28] sm:$0xff]
        %v466 = vld [vmem:[%s118 + $0xa30] sm:$0xff]
        %v467 = vld [vmem:[%s118 + $0xa38] sm:$0xff]
        %v468 = vld [vmem:[%s118 + $0xa40] sm:$0xff]
        %v469 = vld [vmem:[%s118 + $0xa48] sm:$0xff]
        %v470 = vld [vmem:[%s118 + $0xa50] sm:$0xff]
        %v471 = vld [vmem:[%s118 + $0xa58] sm:$0xff]
        %v472 = vld [vmem:[%s118 + $0xa60] sm:$0xff]
        %v473 = vld [vmem:[%s118 + $0xa68] sm:$0xff]
        %v474 = vld [vmem:[%s118 + $0xa70] sm:$0xff]
        %v475 = vld [vmem:[%s118 + $0xa78] sm:$0xff]
        %v476 = vld [vmem:[%s118 + $0xa80] sm:$0xff]
        %v477 = vld [vmem:[%s118 + $0xa88] sm:$0xff]
        %v478 = vld [vmem:[%s118 + $0xa90] sm:$0xff]
        %v479 = vld [vmem:[%s118 + $0xa98] sm:$0xff]
        %v480 = vld [vmem:[%s118 + $0xaa0] sm:$0xff]
        %v481 = vld [vmem:[%s118 + $0xaa8] sm:$0xff]
        %v482 = vld [vmem:[%s118 + $0xab0] sm:$0xff]
        %v483 = vld [vmem:[%s118 + $0xab8] sm:$0xff]
        %v484 = vld [vmem:[%s118 + $0xac0] sm:$0xff]
        %v485 = vld [vmem:[%s118 + $0xac8] sm:$0xff]
        %v486 = vld [vmem:[%s118 + $0xad0] sm:$0xff]
        %v487 = vld [vmem:[%s118 + $0xad8] sm:$0xff]
        %v488 = vld [vmem:[%s118 + $0xae0] sm:$0xff]
        %v489 = vld [vmem:[%s118 + $0xae8] sm:$0xff]
        %v490 = vld [vmem:[%s118 + $0xaf0] sm:$0xff]
        %v491 = vld [vmem:[%s118 + $0xaf8] sm:$0xff]
        %v492 = vld [vmem:[%s118 + $0xb00] sm:$0xff]
        %v493 = vld [vmem:[%s118 + $0xb08] sm:$0xff]
        %v494 = vld [vmem:[%s118 + $0xb10] sm:$0xff]
        %v495 = vld [vmem:[%s118 + $0xb18] sm:$0xff]
        %v496 = vld [vmem:[%s118 + $0xb20] sm:$0xff]
        %v497 = vld [vmem:[%s118 + $0xb28] sm:$0xff]
        %v498 = vld [vmem:[%s118 + $0xb30] sm:$0xff]
        %v499 = vld [vmem:[%s118 + $0xb38] sm:$0xff]
        %v500 = vld [vmem:[%s118 + $0xb40] sm:$0xff]
        %v501 = vld [vmem:[%s118 + $0xb48] sm:$0xff]
        %v502 = vld [vmem:[%s118 + $0xb50] sm:$0xff]
        %v503 = vld [vmem:[%s118 + $0xb58] sm:$0xff]
        %v504 = vld [vmem:[%s118 + $0xb60] sm:$0xff]
        %v505 = vld [vmem:[%s118 + $0xb68] sm:$0xff]
        %v506 = vld [vmem:[%s118 + $0xb70] sm:$0xff]
        %v507 = vld [vmem:[%s118 + $0xb78] sm:$0xff]
        %v508 = vld [vmem:[%s118 + $0xb80] sm:$0xff]
        %v509 = vld [vmem:[%s118 + $0xb88] sm:$0xff]
        %v510 = vld [vmem:[%s118 + $0xb90] sm:$0xff]
        %v511 = vld [vmem:[%s118 + $0xb98] sm:$0xff]
        %v512 = vld [vmem:[%s118 + $0xba0] sm:$0xff]
        %v513 = vld [vmem:[%s118 + $0xba8] sm:$0xff]
        %v514 = vld [vmem:[%s118 + $0xbb0] sm:$0xff]
        %v515 = vld [vmem:[%s118 + $0xbb8] sm:$0xff]
        %v516 = vld [vmem:[%s118 + $0xbc0] sm:$0xff]
        %v517 = vld [vmem:[%s118 + $0xbc8] sm:$0xff]
        %v518 = vld [vmem:[%s118 + $0xbd0] sm:$0xff]
        %v519 = vld [vmem:[%s118 + $0xbd8] sm:$0xff]
        %v520 = vld [vmem:[%s118 + $0xbe0] sm:$0xff]
        %v521 = vld [vmem:[%s118 + $0xbe8] sm:$0xff]
        %v522 = vld [vmem:[%s118 + $0xbf0] sm:$0xff]
        %v523 = vld [vmem:[%s118 + $0xbf8] sm:$0xff]
        %v524 = vld [vmem:[%s118 + $0xc00] sm:$0xff]
        %v525 = vld [vmem:[%s118 + $0xc08] sm:$0xff]
        %v526 = vld [vmem:[%s118 + $0xc10] sm:$0xff]
        %v527 = vld [vmem:[%s118 + $0xc18] sm:$0xff]
        %v528 = vld [vmem:[%s118 + $0xc20] sm:$0xff]
        %v529 = vld [vmem:[%s118 + $0xc28] sm:$0xff]
        %v530 = vld [vmem:[%s118 + $0xc30] sm:$0xff]
        %v531 = vld [vmem:[%s118 + $0xc38] sm:$0xff]
        %v532 = vld [vmem:[%s118 + $0xc40] sm:$0xff]
        %v533 = vld [vmem:[%s118 + $0xc48] sm:$0xff]
        %v534 = vld [vmem:[%s118 + $0xc50] sm:$0xff]
        %v535 = vld [vmem:[%s118 + $0xc58] sm:$0xff]
        %v536 = vld [vmem:[%s118 + $0xc60] sm:$0xff]
        %v537 = vld [vmem:[%s118 + $0xc68] sm:$0xff]
        %v538 = vld [vmem:[%s118 + $0xc70] sm:$0xff]
        %v539 = vld [vmem:[%s118 + $0xc78] sm:$0xff]
        %v540 = vld [vmem:[%s118 + $0xc80] sm:$0xff]
        %v541 = vld [vmem:[%s118 + $0xc88] sm:$0xff]
        %v542 = vld [vmem:[%s118 + $0xc90] sm:$0xff]
        %v543 = vld [vmem:[%s118 + $0xc98] sm:$0xff]
        %v544 = vld [vmem:[%s118 + $0xca0] sm:$0xff]
        %v545 = vld [vmem:[%s118 + $0xca8] sm:$0xff]
        %v546 = vld [vmem:[%s118 + $0xcb0] sm:$0xff]
        %v547 = vld [vmem:[%s118 + $0xcb8] sm:$0xff]
        %v548 = vld [vmem:[%s118 + $0xcc0] sm:$0xff]
        %v549 = vld [vmem:[%s118 + $0xcc8] sm:$0xff]
        %v550 = vld [vmem:[%s118 + $0xcd0] sm:$0xff]
        %v551 = vld [vmem:[%s118 + $0xcd8] sm:$0xff]
        %v552 = vld [vmem:[%s118 + $0xce0] sm:$0xff]
        %v553 = vld [vmem:[%s118 + $0xce8] sm:$0xff]
        %v554 = vld [vmem:[%s118 + $0xcf0] sm:$0xff]
        %v555 = vld [vmem:[%s118 + $0xcf8] sm:$0xff]
        %v556 = vld [vmem:[%s118 + $0xd00] sm:$0xff]
        %v557 = vld [vmem:[%s118 + $0xd08] sm:$0xff]
        %v558 = vld [vmem:[%s118 + $0xd10] sm:$0xff]
        %v559 = vld [vmem:[%s118 + $0xd18] sm:$0xff]
        %v560 = vld [vmem:[%s118 + $0xd20] sm:$0xff]
        %v561 = vld [vmem:[%s118 + $0xd28] sm:$0xff]
        %v562 = vld [vmem:[%s118 + $0xd30] sm:$0xff]
        %v563 = vld [vmem:[%s118 + $0xd38] sm:$0xff]
        %v564 = vld [vmem:[%s118 + $0xd40] sm:$0xff]
        %v565 = vld [vmem:[%s118 + $0xd48] sm:$0xff]
        %v566 = vld [vmem:[%s118 + $0xd50] sm:$0xff]
        %v567 = vld [vmem:[%s118 + $0xd58] sm:$0xff]
        %v568 = vld [vmem:[%s118 + $0xd60] sm:$0xff]
        %v569 = vld [vmem:[%s118 + $0xd68] sm:$0xff]
        %v570 = vld [vmem:[%s118 + $0xd70] sm:$0xff]
        %v571 = vld [vmem:[%s118 + $0xd78] sm:$0xff]
        %v572 = vld [vmem:[%s118 + $0xd80] sm:$0xff]
        %v573 = vld [vmem:[%s118 + $0xd88] sm:$0xff]
        %v574 = vld [vmem:[%s118 + $0xd90] sm:$0xff]
        %v575 = vld [vmem:[%s118 + $0xd98] sm:$0xff]
        %v576 = vld [vmem:[%s118 + $0xda0] sm:$0xff]
        %v577 = vld [vmem:[%s118 + $0xda8] sm:$0xff]
        %v578 = vld [vmem:[%s118 + $0xdb0] sm:$0xff]
        %v579 = vld [vmem:[%s118 + $0xdb8] sm:$0xff]
        %v580 = vld [vmem:[%s118 + $0xdc0] sm:$0xff]
        %v581 = vld [vmem:[%s118 + $0xdc8] sm:$0xff]
        %v582 = vld [vmem:[%s118 + $0xdd0] sm:$0xff]
        %v583 = vld [vmem:[%s118 + $0xdd8] sm:$0xff]
        %v584 = vld [vmem:[%s118 + $0xde0] sm:$0xff]
        %v585 = vld [vmem:[%s118 + $0xde8] sm:$0xff]
        %v586 = vld [vmem:[%s118 + $0xdf0] sm:$0xff]
        %v587 = vld [vmem:[%s118 + $0xdf8] sm:$0xff]
        %v588 = vld [vmem:[%s118 + $0xe00] sm:$0xff]
        %v589 = vld [vmem:[%s118 + $0xe08] sm:$0xff]
        %v590 = vld [vmem:[%s118 + $0xe10] sm:$0xff]
        %v591 = vld [vmem:[%s118 + $0xe18] sm:$0xff]
        %v592 = vld [vmem:[%s118 + $0xe20] sm:$0xff]
        %v593 = vld [vmem:[%s118 + $0xe28] sm:$0xff]
        %v594 = vld [vmem:[%s118 + $0xe30] sm:$0xff]
        %v595 = vld [vmem:[%s118 + $0xe38] sm:$0xff]
        %v596 = vld [vmem:[%s118 + $0xe40] sm:$0xff]
        %v597 = vld [vmem:[%s118 + $0xe48] sm:$0xff]
        %v598 = vld [vmem:[%s118 + $0xe50] sm:$0xff]
        %v599 = vld [vmem:[%s118 + $0xe58] sm:$0xff]
        %v600 = vld [vmem:[%s118 + $0xe60] sm:$0xff]
        %v601 = vld [vmem:[%s118 + $0xe68] sm:$0xff]
        %v602 = vld [vmem:[%s118 + $0xe70] sm:$0xff]
        %v603 = vld [vmem:[%s118 + $0xe78] sm:$0xff]
        %v604 = vld [vmem:[%s118 + $0xe80] sm:$0xff]
        %v605 = vld [vmem:[%s118 + $0xe88] sm:$0xff]
        %v606 = vld [vmem:[%s118 + $0xe90] sm:$0xff]
        %v607 = vld [vmem:[%s118 + $0xe98] sm:$0xff]
        %v608 = vld [vmem:[%s118 + $0xea0] sm:$0xff]
        %v609 = vld [vmem:[%s118 + $0xea8] sm:$0xff]
        %v610 = vld [vmem:[%s118 + $0xeb0] sm:$0xff]
        %v611 = vld [vmem:[%s118 + $0xeb8] sm:$0xff]
        %v612 = vld [vmem:[%s118 + $0xec0] sm:$0xff]
        %v613 = vld [vmem:[%s118 + $0xec8] sm:$0xff]
        %v614 = vld [vmem:[%s118 + $0xed0] sm:$0xff]
        %v615 = vld [vmem:[%s118 + $0xed8] sm:$0xff]
        %v616 = vld [vmem:[%s118 + $0xee0] sm:$0xff]
        %v617 = vld [vmem:[%s118 + $0xee8] sm:$0xff]
        %v618 = vld [vmem:[%s118 + $0xef0] sm:$0xff]
        %v619 = vld [vmem:[%s118 + $0xef8] sm:$0xff]
        %v620 = vld [vmem:[%s118 + $0xf00] sm:$0xff]
        %v621 = vld [vmem:[%s118 + $0xf08] sm:$0xff]
        %v622 = vld [vmem:[%s118 + $0xf10] sm:$0xff]
        %v623 = vld [vmem:[%s118 + $0xf18] sm:$0xff]
        %v624 = vld [vmem:[%s118 + $0xf20] sm:$0xff]
        %v625 = vld [vmem:[%s118 + $0xf28] sm:$0xff]
        %v626 = vld [vmem:[%s118 + $0xf30] sm:$0xff]
        %v627 = vld [vmem:[%s118 + $0xf38] sm:$0xff]
        %v628 = vld [vmem:[%s118 + $0xf40] sm:$0xff]
        %v629 = vld [vmem:[%s118 + $0xf48] sm:$0xff]
        %v630 = vld [vmem:[%s118 + $0xf50] sm:$0xff]
        %v631 = vld [vmem:[%s118 + $0xf58] sm:$0xff]
        %v632 = vld [vmem:[%s118 + $0xf60] sm:$0xff]
        %v633 = vld [vmem:[%s118 + $0xf68] sm:$0xff]
        %v634 = vld [vmem:[%s118 + $0xf70] sm:$0xff]
        %v635 = vld [vmem:[%s118 + $0xf78] sm:$0xff]
        %v636 = vld [vmem:[%s118 + $0xf80] sm:$0xff]
        %v637 = vld [vmem:[%s118 + $0xf88] sm:$0xff]
        %v638 = vld [vmem:[%s118 + $0xf90] sm:$0xff]
        %v639 = vld [vmem:[%s118 + $0xf98] sm:$0xff]
        %v640 = vld [vmem:[%s118 + $0xfa0] sm:$0xff]
        %v641 = vld [vmem:[%s118 + $0xfa8] sm:$0xff]
        %v642 = vld [vmem:[%s118 + $0xfb0] sm:$0xff]
        %v643 = vld [vmem:[%s118 + $0xfb8] sm:$0xff]
        %v644 = vld [vmem:[%s118 + $0xfc0] sm:$0xff]
        %v645 = vld [vmem:[%s118 + $0xfc8] sm:$0xff]
        %v646 = vld [vmem:[%s118 + $0xfd0] sm:$0xff]
        %v647 = vld [vmem:[%s118 + $0xfd8] sm:$0xff]
        %v648 = vld [vmem:[%s118 + $0xfe0] sm:$0xff]
        %v649 = vld [vmem:[%s118 + $0xfe8] sm:$0xff]
        %v650 = vld [vmem:[%s118 + $0xff0] sm:$0xff]
        %v651 = vld [vmem:[%s118 + $0xff8] sm:$0xff]
        %v652 = vld [vmem:[%s118 + $0x1000] sm:$0xff]
        %v653 = vld [vmem:[%s118 + $0x1008] sm:$0xff]
        %v654 = vld [vmem:[%s118 + $0x1010] sm:$0xff]
        %v655 = vld [vmem:[%s118 + $0x1018] sm:$0xff]
        %v656 = vld [vmem:[%s118 + $0x1020] sm:$0xff]
        %v657 = vld [vmem:[%s118 + $0x1028] sm:$0xff]
        %v658 = vld [vmem:[%s118 + $0x1030] sm:$0xff]
        %v659 = vld [vmem:[%s118 + $0x1038] sm:$0xff]
        %v660 = vld [vmem:[%s118 + $0x1040] sm:$0xff]
        %v661 = vld [vmem:[%s118 + $0x1048] sm:$0xff]
        %v662 = vld [vmem:[%s118 + $0x1050] sm:$0xff]
        %v663 = vld [vmem:[%s118 + $0x1058] sm:$0xff]
        %v664 = vld [vmem:[%s118 + $0x1060] sm:$0xff]
        %v665 = vld [vmem:[%s118 + $0x1068] sm:$0xff]
        %v666 = vld [vmem:[%s118 + $0x1070] sm:$0xff]
        %v667 = vld [vmem:[%s118 + $0x1078] sm:$0xff]
        %v668 = vld [vmem:[%s118 + $0x1080] sm:$0xff]
        %v669 = vld [vmem:[%s118 + $0x1088] sm:$0xff]
        %v670 = vld [vmem:[%s118 + $0x1090] sm:$0xff]
        %v671 = vld [vmem:[%s118 + $0x1098] sm:$0xff]
        %v672 = vld [vmem:[%s118 + $0x10a0] sm:$0xff]
        %v673 = vld [vmem:[%s118 + $0x10a8] sm:$0xff]
        %v674 = vld [vmem:[%s118 + $0x10b0] sm:$0xff]
        %v675 = vld [vmem:[%s118 + $0x10b8] sm:$0xff]
        %v676 = vld [vmem:[%s118 + $0x10c0] sm:$0xff]
        %v677 = vld [vmem:[%s118 + $0x10c8] sm:$0xff]
        %v678 = vld [vmem:[%s118 + $0x10d0] sm:$0xff]
        %v679 = vld [vmem:[%s118 + $0x10d8] sm:$0xff]
        %v680 = vld [vmem:[%s118 + $0x10e0] sm:$0xff]
        %v681 = vld [vmem:[%s118 + $0x10e8] sm:$0xff]
        %v682 = vld [vmem:[%s118 + $0x10f0] sm:$0xff]
        %v683 = vld [vmem:[%s118 + $0x10f8] sm:$0xff]
        %v684 = vld [vmem:[%s118 + $0x1100] sm:$0xff]
        %v685 = vld [vmem:[%s118 + $0x1108] sm:$0xff]
        %v686 = vld [vmem:[%s118 + $0x1110] sm:$0xff]
        %v687 = vld [vmem:[%s118 + $0x1118] sm:$0xff]
        %v688 = vld [vmem:[%s118 + $0x1120] sm:$0xff]
        %v689 = vld [vmem:[%s118 + $0x1128] sm:$0xff]
        %v690 = vld [vmem:[%s118 + $0x1130] sm:$0xff]
        %v691 = vld [vmem:[%s118 + $0x1138] sm:$0xff]
        %v692 = vld [vmem:[%s118 + $0x1140] sm:$0xff]
        %v693 = vld [vmem:[%s118 + $0x1148] sm:$0xff]
        %v694 = vld [vmem:[%s118 + $0x1150] sm:$0xff]
        %v695 = vld [vmem:[%s118 + $0x1158] sm:$0xff]
        %v696 = vld [vmem:[%s118 + $0x1160] sm:$0xff]
        %v697 = vld [vmem:[%s118 + $0x1168] sm:$0xff]
        %v698 = vld [vmem:[%s118 + $0x1170] sm:$0xff]
        %v699 = vld [vmem:[%s118 + $0x1178] sm:$0xff]
        %v700 = vld [vmem:[%s118 + $0x1180] sm:$0xff]
        %v701 = vld [vmem:[%s118 + $0x1188] sm:$0xff]
        %v702 = vld [vmem:[%s118 + $0x1190] sm:$0xff]
        %v703 = vld [vmem:[%s118 + $0x1198] sm:$0xff]
        %v704 = vld [vmem:[%s118 + $0x11a0] sm:$0xff]
        %v705 = vld [vmem:[%s118 + $0x11a8] sm:$0xff]
        %v706 = vld [vmem:[%s118 + $0x11b0] sm:$0xff]
        %v707 = vld [vmem:[%s118 + $0x11b8] sm:$0xff]
        %v708 = vld [vmem:[%s118 + $0x11c0] sm:$0xff]
        %v709 = vld [vmem:[%s118 + $0x11c8] sm:$0xff]
        %v710 = vld [vmem:[%s118 + $0x11d0] sm:$0xff]
        %v711 = vld [vmem:[%s118 + $0x11d8] sm:$0xff]
        %v712 = vld [vmem:[%s118 + $0x11e0] sm:$0xff]
        %v713 = vld [vmem:[%s118 + $0x11e8] sm:$0xff]
        %v714 = vld [vmem:[%s118 + $0x11f0] sm:$0xff]
        %v715 = vld [vmem:[%s118 + $0x11f8] sm:$0xff]
        %v716 = vld [vmem:[%s118 + $0x1200] sm:$0xff]
        %v717 = vld [vmem:[%s118 + $0x1208] sm:$0xff]
        %v718 = vld [vmem:[%s118 + $0x1210] sm:$0xff]
        %v719 = vld [vmem:[%s118 + $0x1218] sm:$0xff]
        %v720 = vld [vmem:[%s118 + $0x1220] sm:$0xff]
        %v721 = vld [vmem:[%s118 + $0x1228] sm:$0xff]
        %v722 = vld [vmem:[%s118 + $0x1230] sm:$0xff]
        %v723 = vld [vmem:[%s118 + $0x1238] sm:$0xff]
        %v724 = vld [vmem:[%s118 + $0x1240] sm:$0xff]
        %v725 = vld [vmem:[%s118 + $0x1248] sm:$0xff]
        %v726 = vld [vmem:[%s118 + $0x1250] sm:$0xff]
        %v727 = vld [vmem:[%s118 + $0x1258] sm:$0xff]
        %v728 = vld [vmem:[%s118 + $0x1260] sm:$0xff]
        %v729 = vld [vmem:[%s118 + $0x1268] sm:$0xff]
        %v730 = vld [vmem:[%s118 + $0x1270] sm:$0xff]
        %v731 = vld [vmem:[%s118 + $0x1278] sm:$0xff]
        %v732 = vld [vmem:[%s118 + $0x1280] sm:$0xff]
        %v733 = vld [vmem:[%s118 + $0x1288] sm:$0xff]
        %v734 = vld [vmem:[%s118 + $0x1290] sm:$0xff]
        %v735 = vld [vmem:[%s118 + $0x1298] sm:$0xff]
        %v736 = vld [vmem:[%s118 + $0x12a0] sm:$0xff]
        %v737 = vld [vmem:[%s118 + $0x12a8] sm:$0xff]
        %v738 = vld [vmem:[%s118 + $0x12b0] sm:$0xff]
        %v739 = vld [vmem:[%s118 + $0x12b8] sm:$0xff]
        %v740 = vld [vmem:[%s118 + $0x12c0] sm:$0xff]
        %v741 = vld [vmem:[%s118 + $0x12c8] sm:$0xff]
        %v742 = vld [vmem:[%s118 + $0x12d0] sm:$0xff]
        %v743 = vld [vmem:[%s118 + $0x12d8] sm:$0xff]
        %v744 = vld [vmem:[%s118 + $0x12e0] sm:$0xff]
        %v745 = vld [vmem:[%s118 + $0x12e8] sm:$0xff]
        %v746 = vld [vmem:[%s118 + $0x12f0] sm:$0xff]
        %v747 = vld [vmem:[%s118 + $0x12f8] sm:$0xff]
        %v748 = vld [vmem:[%s118 + $0x1300] sm:$0xff]
        %v749 = vld [vmem:[%s118 + $0x1308] sm:$0xff]
        %v750 = vld [vmem:[%s118 + $0x1310] sm:$0xff]
        %v751 = vld [vmem:[%s118 + $0x1318] sm:$0xff]
        %v752 = vld [vmem:[%s118 + $0x1320] sm:$0xff]
        %v753 = vld [vmem:[%s118 + $0x1328] sm:$0xff]
        %v754 = vld [vmem:[%s118 + $0x1330] sm:$0xff]
        %v755 = vld [vmem:[%s118 + $0x1338] sm:$0xff]
        %v756 = vld [vmem:[%s118 + $0x1340] sm:$0xff]
        %v757 = vld [vmem:[%s118 + $0x1348] sm:$0xff]
        %v758 = vld [vmem:[%s118 + $0x1350] sm:$0xff]
        %v759 = vld [vmem:[%s118 + $0x1358] sm:$0xff]
        %v760 = vld [vmem:[%s118 + $0x1360] sm:$0xff]
        %v761 = vld [vmem:[%s118 + $0x1368] sm:$0xff]
        %v762 = vld [vmem:[%s118 + $0x1370] sm:$0xff]
        %v763 = vld [vmem:[%s118 + $0x1378] sm:$0xff]
        %v764 = vld [vmem:[%s118 + $0x1380] sm:$0xff]
        %v765 = vld [vmem:[%s118 + $0x1388] sm:$0xff]
        %v766 = vld [vmem:[%s118 + $0x1390] sm:$0xff]
        %v767 = vld [vmem:[%s118 + $0x1398] sm:$0xff]
        %v768 = vld [vmem:[%s118 + $0x13a0] sm:$0xff]
        %v769 = vld [vmem:[%s118 + $0x13a8] sm:$0xff]
        %v770 = vld [vmem:[%s118 + $0x13b0] sm:$0xff]
        %v771 = vld [vmem:[%s118 + $0x13b8] sm:$0xff]
        %v772 = vld [vmem:[%s118 + $0x13c0] sm:$0xff]
        %v773 = vld [vmem:[%s118 + $0x13c8] sm:$0xff]
        %v774 = vld [vmem:[%s118 + $0x13d0] sm:$0xff]
        %v775 = vld [vmem:[%s118 + $0x13d8] sm:$0xff]
        %v776 = vld [vmem:[%s118 + $0x13e0] sm:$0xff]
        %v777 = vld [vmem:[%s118 + $0x13e8] sm:$0xff]
        %v778 = vld [vmem:[%s118 + $0x13f0] sm:$0xff]
        %v779 = vld [vmem:[%s118 + $0x13f8] sm:$0xff]
        %v780 = vld [vmem:[%s118 + $0x1400] sm:$0xff]
        %v781 = vld [vmem:[%s118 + $0x1408] sm:$0xff]
        %v782 = vld [vmem:[%s118 + $0x1410] sm:$0xff]
        %v783 = vld [vmem:[%s118 + $0x1418] sm:$0xff]
        %v784 = vld [vmem:[%s118 + $0x1420] sm:$0xff]
        %v785 = vld [vmem:[%s118 + $0x1428] sm:$0xff]
        %v786 = vld [vmem:[%s118 + $0x1430] sm:$0xff]
        %v787 = vld [vmem:[%s118 + $0x1438] sm:$0xff]
        %v788 = vld [vmem:[%s118 + $0x1440] sm:$0xff]
        %v789 = vld [vmem:[%s118 + $0x1448] sm:$0xff]
        %v790 = vld [vmem:[%s118 + $0x1450] sm:$0xff]
        %v791 = vld [vmem:[%s118 + $0x1458] sm:$0xff]
        %v792 = vld [vmem:[%s118 + $0x1460] sm:$0xff]
        %v793 = vld [vmem:[%s118 + $0x1468] sm:$0xff]
        %v794 = vld [vmem:[%s118 + $0x1470] sm:$0xff]
        %v795 = vld [vmem:[%s118 + $0x1478] sm:$0xff]
        %v796 = vld [vmem:[%s118 + $0x1480] sm:$0xff]
        %v797 = vld [vmem:[%s118 + $0x1488] sm:$0xff]
        %v798 = vld [vmem:[%s118 + $0x1490] sm:$0xff]
        %v799 = vld [vmem:[%s118 + $0x1498] sm:$0xff]
        %v800 = vld [vmem:[%s118 + $0x14a0] sm:$0xff]
        %v801 = vld [vmem:[%s118 + $0x14a8] sm:$0xff]
        %v802 = vld [vmem:[%s118 + $0x14b0] sm:$0xff]
        %v803 = vld [vmem:[%s118 + $0x14b8] sm:$0xff]
        %v804 = vld [vmem:[%s118 + $0x14c0] sm:$0xff]
        %v805 = vld [vmem:[%s118 + $0x14c8] sm:$0xff]
        %v806 = vld [vmem:[%s118 + $0x14d0] sm:$0xff]
        %v807 = vld [vmem:[%s118 + $0x14d8] sm:$0xff]
        %v808 = vld [vmem:[%s118 + $0x14e0] sm:$0xff]
        %v809 = vld [vmem:[%s118 + $0x14e8] sm:$0xff]
        %v810 = vld [vmem:[%s118 + $0x14f0] sm:$0xff]
        %v811 = vld [vmem:[%s118 + $0x14f8] sm:$0xff]
        %v812 = vld [vmem:[%s118 + $0x1500] sm:$0xff]
        %v813 = vld [vmem:[%s118 + $0x1508] sm:$0xff]
        %v814 = vld [vmem:[%s118 + $0x1510] sm:$0xff]
        %v815 = vld [vmem:[%s118 + $0x1518] sm:$0xff]
        %v816 = vld [vmem:[%s118 + $0x1520] sm:$0xff]
        %v817 = vld [vmem:[%s118 + $0x1528] sm:$0xff]
        %v818 = vld [vmem:[%s118 + $0x1530] sm:$0xff]
        %v819 = vld [vmem:[%s118 + $0x1538] sm:$0xff]
        %v820 = vld [vmem:[%s118 + $0x1540] sm:$0xff]
        %v821 = vld [vmem:[%s118 + $0x1548] sm:$0xff]
        %v822 = vld [vmem:[%s118 + $0x1550] sm:$0xff]
        %v823 = vld [vmem:[%s118 + $0x1558] sm:$0xff]
        %v824 = vld [vmem:[%s118 + $0x1560] sm:$0xff]
        %v825 = vld [vmem:[%s118 + $0x1568] sm:$0xff]
        %v826 = vld [vmem:[%s118 + $0x1570] sm:$0xff]
        %v827 = vld [vmem:[%s118 + $0x1578] sm:$0xff]
        %v828 = vld [vmem:[%s118 + $0x1580] sm:$0xff]
        %v829 = vld [vmem:[%s118 + $0x1588] sm:$0xff]
        %v830 = vld [vmem:[%s118 + $0x1590] sm:$0xff]
        %v831 = vld [vmem:[%s118 + $0x1598] sm:$0xff]
        %v832 = vld [vmem:[%s118 + $0x15a0] sm:$0xff]
        %v833 = vld [vmem:[%s118 + $0x15a8] sm:$0xff]
        %v834 = vld [vmem:[%s118 + $0x15b0] sm:$0xff]
        %v835 = vld [vmem:[%s118 + $0x15b8] sm:$0xff]
        %v836 = vld [vmem:[%s118 + $0x15c0] sm:$0xff]
        %v837 = vld [vmem:[%s118 + $0x15c8] sm:$0xff]
        %v838 = vld [vmem:[%s118 + $0x15d0] sm:$0xff]
        %v839 = vld [vmem:[%s118 + $0x15d8] sm:$0xff]
        %v840 = vld [vmem:[%s118 + $0x15e0] sm:$0xff]
        %v841 = vld [vmem:[%s118 + $0x15e8] sm:$0xff]
        %v842 = vld [vmem:[%s118 + $0x15f0] sm:$0xff]
        %v843 = vld [vmem:[%s118 + $0x15f8] sm:$0xff]
        %v844 = vld [vmem:[%s118 + $0x1600] sm:$0xff]
        %v845 = vld [vmem:[%s118 + $0x1608] sm:$0xff]
        %v846 = vld [vmem:[%s118 + $0x1610] sm:$0xff]
        %v847 = vld [vmem:[%s118 + $0x1618] sm:$0xff]
        %v848 = vld [vmem:[%s118 + $0x1620] sm:$0xff]
        %v849 = vld [vmem:[%s118 + $0x1628] sm:$0xff]
        %v850 = vld [vmem:[%s118 + $0x1630] sm:$0xff]
        %v851 = vld [vmem:[%s118 + $0x1638] sm:$0xff]
        %v852 = vld [vmem:[%s118 + $0x1640] sm:$0xff]
        %v853 = vld [vmem:[%s118 + $0x1648] sm:$0xff]
        %v854 = vld [vmem:[%s118 + $0x1650] sm:$0xff]
        %v855 = vld [vmem:[%s118 + $0x1658] sm:$0xff]
        %v856 = vld [vmem:[%s118 + $0x1660] sm:$0xff]
        %v857 = vld [vmem:[%s118 + $0x1668] sm:$0xff]
        %v858 = vld [vmem:[%s118 + $0x1670] sm:$0xff]
        %v859 = vld [vmem:[%s118 + $0x1678] sm:$0xff]
        %v860 = vld [vmem:[%s118 + $0x1680] sm:$0xff]
        %v861 = vld [vmem:[%s118 + $0x1688] sm:$0xff]
        %v862 = vld [vmem:[%s118 + $0x1690] sm:$0xff]
        %v863 = vld [vmem:[%s118 + $0x1698] sm:$0xff]
        %v864 = vld [vmem:[%s118 + $0x16a0] sm:$0xff]
        %v865 = vld [vmem:[%s118 + $0x16a8] sm:$0xff]
        %v866 = vld [vmem:[%s118 + $0x16b0] sm:$0xff]
        %v867 = vld [vmem:[%s118 + $0x16b8] sm:$0xff]
        %v868 = vld [vmem:[%s118 + $0x16c0] sm:$0xff]
        %v869 = vld [vmem:[%s118 + $0x16c8] sm:$0xff]
        %v870 = vld [vmem:[%s118 + $0x16d0] sm:$0xff]
        %v871 = vld [vmem:[%s118 + $0x16d8] sm:$0xff]
        %v872 = vld [vmem:[%s118 + $0x16e0] sm:$0xff]
        %v873 = vld [vmem:[%s118 + $0x16e8] sm:$0xff]
        %v874 = vld [vmem:[%s118 + $0x16f0] sm:$0xff]
        %v875 = vld [vmem:[%s118 + $0x16f8] sm:$0xff]
        %v876 = vld [vmem:[%s118 + $0x1700] sm:$0xff]
        %v877 = vld [vmem:[%s118 + $0x1708] sm:$0xff]
        %v878 = vld [vmem:[%s118 + $0x1710] sm:$0xff]
        %v879 = vld [vmem:[%s118 + $0x1718] sm:$0xff]
        %v880 = vld [vmem:[%s118 + $0x1720] sm:$0xff]
        %v881 = vld [vmem:[%s118 + $0x1728] sm:$0xff]
        %v882 = vld [vmem:[%s118 + $0x1730] sm:$0xff]
        %v883 = vld [vmem:[%s118 + $0x1738] sm:$0xff]
        %v884 = vld [vmem:[%s118 + $0x1740] sm:$0xff]
        %v885 = vld [vmem:[%s118 + $0x1748] sm:$0xff]
        %v886 = vld [vmem:[%s118 + $0x1750] sm:$0xff]
        %v887 = vld [vmem:[%s118 + $0x1758] sm:$0xff]
        %v888 = vld [vmem:[%s118 + $0x1760] sm:$0xff]
        %v889 = vld [vmem:[%s118 + $0x1768] sm:$0xff]
        %v890 = vld [vmem:[%s118 + $0x1770] sm:$0xff]
        %v891 = vld [vmem:[%s118 + $0x1778] sm:$0xff]
        %v892 = vld [vmem:[%s118 + $0x1780] sm:$0xff]
        %v893 = vld [vmem:[%s118 + $0x1788] sm:$0xff]
        %v894 = vld [vmem:[%s118 + $0x1790] sm:$0xff]
        %v895 = vld [vmem:[%s118 + $0x1798] sm:$0xff]
        %v896 = vld [vmem:[%s118 + $0x17a0] sm:$0xff]
        %v897 = vld [vmem:[%s118 + $0x17a8] sm:$0xff]
        %v898 = vld [vmem:[%s118 + $0x17b0] sm:$0xff]
        %v899 = vld [vmem:[%s118 + $0x17b8] sm:$0xff]
        %v900 = vld [vmem:[%s118 + $0x17c0] sm:$0xff]
        %v901 = vld [vmem:[%s118 + $0x17c8] sm:$0xff]
        %v902 = vld [vmem:[%s118 + $0x17d0] sm:$0xff]
        %v903 = vld [vmem:[%s118 + $0x17d8] sm:$0xff]
        %v904 = vld [vmem:[%s118 + $0x17e0] sm:$0xff]
        %v905 = vld [vmem:[%s118 + $0x17e8] sm:$0xff]
        %v906 = vld [vmem:[%s118 + $0x17f0] sm:$0xff]
        %v907 = vld [vmem:[%s118 + $0x17f8] sm:$0xff]
        %v908 = vld [vmem:[%s118 + $0x1800] sm:$0xff]
        %v909 = vld [vmem:[%s118 + $0x1808] sm:$0xff]
        %v910 = vld [vmem:[%s118 + $0x1810] sm:$0xff]
        %v911 = vld [vmem:[%s118 + $0x1818] sm:$0xff]
        %v912 = vld [vmem:[%s118 + $0x1820] sm:$0xff]
        %v913 = vld [vmem:[%s118 + $0x1828] sm:$0xff]
        %v914 = vld [vmem:[%s118 + $0x1830] sm:$0xff]
        %v915 = vld [vmem:[%s118 + $0x1838] sm:$0xff]
        %v916 = vld [vmem:[%s118 + $0x1840] sm:$0xff]
        %v917 = vld [vmem:[%s118 + $0x1848] sm:$0xff]
        %v918 = vld [vmem:[%s118 + $0x1850] sm:$0xff]
        %v919 = vld [vmem:[%s118 + $0x1858] sm:$0xff]
        %v920 = vld [vmem:[%s118 + $0x1860] sm:$0xff]
        %v921 = vld [vmem:[%s118 + $0x1868] sm:$0xff]
        %v922 = vld [vmem:[%s118 + $0x1870] sm:$0xff]
        %v923 = vld [vmem:[%s118 + $0x1878] sm:$0xff]
        %v924 = vld [vmem:[%s118 + $0x1880] sm:$0xff]
        %v925 = vld [vmem:[%s118 + $0x1888] sm:$0xff]
        %v926 = vld [vmem:[%s118 + $0x1890] sm:$0xff]
        %v927 = vld [vmem:[%s118 + $0x1898] sm:$0xff]
        %v928 = vld [vmem:[%s118 + $0x18a0] sm:$0xff]
        %v929 = vld [vmem:[%s118 + $0x18a8] sm:$0xff]
        %v930 = vld [vmem:[%s118 + $0x18b0] sm:$0xff]
        %v931 = vld [vmem:[%s118 + $0x18b8] sm:$0xff]
        %v932 = vld [vmem:[%s118 + $0x18c0] sm:$0xff]
        %v933 = vld [vmem:[%s118 + $0x18c8] sm:$0xff]
        %v934 = vld [vmem:[%s118 + $0x18d0] sm:$0xff]
        %v935 = vld [vmem:[%s118 + $0x18d8] sm:$0xff]
        %v936 = vld [vmem:[%s118 + $0x18e0] sm:$0xff]
        %v937 = vld [vmem:[%s118 + $0x18e8] sm:$0xff]
        %v938 = vld [vmem:[%s118 + $0x18f0] sm:$0xff]
        %v939 = vld [vmem:[%s118 + $0x18f8] sm:$0xff]
        %v940 = vld [vmem:[%s118 + $0x1900] sm:$0xff]
        %v941 = vld [vmem:[%s118 + $0x1908] sm:$0xff]
        %v942 = vld [vmem:[%s118 + $0x1910] sm:$0xff]
        %v943 = vld [vmem:[%s118 + $0x1918] sm:$0xff]
        %v944 = vld [vmem:[%s118 + $0x1920] sm:$0xff]
        %v945 = vld [vmem:[%s118 + $0x1928] sm:$0xff]
        %v946 = vld [vmem:[%s118 + $0x1930] sm:$0xff]
        %v947 = vld [vmem:[%s118 + $0x1938] sm:$0xff]
        %v948 = vld [vmem:[%s118 + $0x1940] sm:$0xff]
        %v949 = vld [vmem:[%s118 + $0x1948] sm:$0xff]
        %v950 = vld [vmem:[%s118 + $0x1950] sm:$0xff]
        %v951 = vld [vmem:[%s118 + $0x1958] sm:$0xff]
        %v952 = vld [vmem:[%s118 + $0x1960] sm:$0xff]
        %v953 = vld [vmem:[%s118 + $0x1968] sm:$0xff]
        %v954 = vld [vmem:[%s118 + $0x1970] sm:$0xff]
        %v955 = vld [vmem:[%s118 + $0x1978] sm:$0xff]
        %v956 = vld [vmem:[%s118 + $0x1980] sm:$0xff]
        %v957 = vld [vmem:[%s118 + $0x1988] sm:$0xff]
        %v958 = vld [vmem:[%s118 + $0x1990] sm:$0xff]
        %v959 = vld [vmem:[%s118 + $0x1998] sm:$0xff]
        %v960 = vld [vmem:[%s118 + $0x19a0] sm:$0xff]
        %v961 = vld [vmem:[%s118 + $0x19a8] sm:$0xff]
        %v962 = vld [vmem:[%s118 + $0x19b0] sm:$0xff]
        %v963 = vld [vmem:[%s118 + $0x19b8] sm:$0xff]
        %v964 = vld [vmem:[%s118 + $0x19c0] sm:$0xff]
        %v965 = vld [vmem:[%s118 + $0x19c8] sm:$0xff]
        %v966 = vld [vmem:[%s118 + $0x19d0] sm:$0xff]
        %v967 = vld [vmem:[%s118 + $0x19d8] sm:$0xff]
        %v968 = vld [vmem:[%s118 + $0x19e0] sm:$0xff]
        %v969 = vld [vmem:[%s118 + $0x19e8] sm:$0xff]
        %v970 = vld [vmem:[%s118 + $0x19f0] sm:$0xff]
        %v971 = vld [vmem:[%s118 + $0x19f8] sm:$0xff]
        %v972 = vld [vmem:[%s118 + $0x1a00] sm:$0xff]
        %v973 = vld [vmem:[%s118 + $0x1a08] sm:$0xff]
        %v974 = vld [vmem:[%s118 + $0x1a10] sm:$0xff]
        %v975 = vld [vmem:[%s118 + $0x1a18] sm:$0xff]
        %v976 = vld [vmem:[%s118 + $0x1a20] sm:$0xff]
        %v977 = vld [vmem:[%s118 + $0x1a28] sm:$0xff]
        %v978 = vld [vmem:[%s118 + $0x1a30] sm:$0xff]
        %v979 = vld [vmem:[%s118 + $0x1a38] sm:$0xff]
        %v980 = vld [vmem:[%s118 + $0x1a40] sm:$0xff]
        %v981 = vld [vmem:[%s118 + $0x1a48] sm:$0xff]
        %v982 = vld [vmem:[%s118 + $0x1a50] sm:$0xff]
        %v983 = vld [vmem:[%s118 + $0x1a58] sm:$0xff]
        %v984 = vld [vmem:[%s118 + $0x1a60] sm:$0xff]
        %v985 = vld [vmem:[%s118 + $0x1a68] sm:$0xff]
        %v986 = vld [vmem:[%s118 + $0x1a70] sm:$0xff]
        %v987 = vld [vmem:[%s118 + $0x1a78] sm:$0xff]
        %v988 = vld [vmem:[%s118 + $0x1a80] sm:$0xff]
        %v989 = vld [vmem:[%s118 + $0x1a88] sm:$0xff]
        %v990 = vld [vmem:[%s118 + $0x1a90] sm:$0xff]
        %v991 = vld [vmem:[%s118 + $0x1a98] sm:$0xff]
        %v992 = vld [vmem:[%s118 + $0x1aa0] sm:$0xff]
        %v993 = vld [vmem:[%s118 + $0x1aa8] sm:$0xff]
        %v994 = vld [vmem:[%s118 + $0x1ab0] sm:$0xff]
        %v995 = vld [vmem:[%s118 + $0x1ab8] sm:$0xff]
        %v996 = vld [vmem:[%s118 + $0x1ac0] sm:$0xff]
        %v997 = vld [vmem:[%s118 + $0x1ac8] sm:$0xff]
        %v998 = vld [vmem:[%s118 + $0x1ad0] sm:$0xff]
        %v999 = vld [vmem:[%s118 + $0x1ad8] sm:$0xff]
        %v1000 = vld [vmem:[%s118 + $0x1ae0] sm:$0xff]
        %v1001 = vld [vmem:[%s118 + $0x1ae8] sm:$0xff]
        %v1002 = vld [vmem:[%s118 + $0x1af0] sm:$0xff]
        %v1003 = vld [vmem:[%s118 + $0x1af8] sm:$0xff]
        %v1004 = vld [vmem:[%s118 + $0x1b00] sm:$0xff]
        %v1005 = vld [vmem:[%s118 + $0x1b08] sm:$0xff]
        %v1006 = vld [vmem:[%s118 + $0x1b10] sm:$0xff]
        %v1007 = vld [vmem:[%s118 + $0x1b18] sm:$0xff]
        %v1008 = vld [vmem:[%s118 + $0x1b20] sm:$0xff]
        %v1009 = vld [vmem:[%s118 + $0x1b28] sm:$0xff]
        %v1010 = vld [vmem:[%s118 + $0x1b30] sm:$0xff]
        %v1011 = vld [vmem:[%s118 + $0x1b38] sm:$0xff]
        %v1012 = vld [vmem:[%s118 + $0x1b40] sm:$0xff]
        %v1013 = vld [vmem:[%s118 + $0x1b48] sm:$0xff]
        %v1014 = vld [vmem:[%s118 + $0x1b50] sm:$0xff]
        %v1015 = vld [vmem:[%s118 + $0x1b58] sm:$0xff]
        %v1016 = vld [vmem:[%s118 + $0x1b60] sm:$0xff]
        %v1017 = vld [vmem:[%s118 + $0x1b68] sm:$0xff]
        %v1018 = vld [vmem:[%s118 + $0x1b70] sm:$0xff]
        %v1019 = vld [vmem:[%s118 + $0x1b78] sm:$0xff]
        %v1020 = vld [vmem:[%s118 + $0x1b80] sm:$0xff]
        %v1021 = vld [vmem:[%s118 + $0x1b88] sm:$0xff]
        %v1022 = vld [vmem:[%s118 + $0x1b90] sm:$0xff]
        %v1023 = vld [vmem:[%s118 + $0x1b98] sm:$0xff]
        %v1024 = vld [vmem:[%s118 + $0x1ba0] sm:$0xff]
        %v1025 = vld [vmem:[%s118 + $0x1ba8] sm:$0xff]
        %v1026 = vld [vmem:[%s118 + $0x1bb0] sm:$0xff]
        %v1027 = vld [vmem:[%s118 + $0x1bb8] sm:$0xff]
        %v1028 = vld [vmem:[%s118 + $0x1bc0] sm:$0xff]
        %v1029 = vld [vmem:[%s118 + $0x1bc8] sm:$0xff]
        %v1030 = vld [vmem:[%s118 + $0x1bd0] sm:$0xff]
        %v1031 = vld [vmem:[%s118 + $0x1bd8] sm:$0xff]
        %v1032 = vld [vmem:[%s118 + $0x1be0] sm:$0xff]
        %v1033 = vld [vmem:[%s118 + $0x1be8] sm:$0xff]
        %v1034 = vld [vmem:[%s118 + $0x1bf0] sm:$0xff]
        %v1035 = vld [vmem:[%s118 + $0x1bf8] sm:$0xff]
        %v1036 = vld [vmem:[%s118 + $0x1c00] sm:$0xff]
        %v1037 = vld [vmem:[%s118 + $0x1c08] sm:$0xff]
        %v1038 = vld [vmem:[%s118 + $0x1c10] sm:$0xff]
        %v1039 = vld [vmem:[%s118 + $0x1c18] sm:$0xff]
        %v1040 = vld [vmem:[%s118 + $0x1c20] sm:$0xff]
        %v1041 = vld [vmem:[%s118 + $0x1c28] sm:$0xff]
        %v1042 = vld [vmem:[%s118 + $0x1c30] sm:$0xff]
        %v1043 = vld [vmem:[%s118 + $0x1c38] sm:$0xff]
        %v1044 = vld [vmem:[%s118 + $0x1c40] sm:$0xff]
        %v1045 = vld [vmem:[%s118 + $0x1c48] sm:$0xff]
        %v1046 = vld [vmem:[%s118 + $0x1c50] sm:$0xff]
        %v1047 = vld [vmem:[%s118 + $0x1c58] sm:$0xff]
        %v1048 = vld [vmem:[%s118 + $0x1c60] sm:$0xff]
        %v1049 = vld [vmem:[%s118 + $0x1c68] sm:$0xff]
        %v1050 = vld [vmem:[%s118 + $0x1c70] sm:$0xff]
        %v1051 = vld [vmem:[%s118 + $0x1c78] sm:$0xff]
        %v1052 = vld [vmem:[%s118 + $0x1c80] sm:$0xff]
        %v1053 = vld [vmem:[%s118 + $0x1c88] sm:$0xff]
        %v1054 = vld [vmem:[%s118 + $0x1c90] sm:$0xff]
        %v1055 = vld [vmem:[%s118 + $0x1c98] sm:$0xff]
        %v1056 = vld [vmem:[%s118 + $0x1ca0] sm:$0xff]
        %v1057 = vld [vmem:[%s118 + $0x1ca8] sm:$0xff]
        %v1058 = vld [vmem:[%s118 + $0x1cb0] sm:$0xff]
        %v1059 = vld [vmem:[%s118 + $0x1cb8] sm:$0xff]
        %v1060 = vld [vmem:[%s118 + $0x1cc0] sm:$0xff]
        %v1061 = vld [vmem:[%s118 + $0x1cc8] sm:$0xff]
        %v1062 = vld [vmem:[%s118 + $0x1cd0] sm:$0xff]
        %v1063 = vld [vmem:[%s118 + $0x1cd8] sm:$0xff]
        %v1064 = vld [vmem:[%s118 + $0x1ce0] sm:$0xff]
        %v1065 = vld [vmem:[%s118 + $0x1ce8] sm:$0xff]
        %v1066 = vld [vmem:[%s118 + $0x1cf0] sm:$0xff]
        %v1067 = vld [vmem:[%s118 + $0x1cf8] sm:$0xff]
        %v1068 = vld [vmem:[%s118 + $0x1d00] sm:$0xff]
        %v1069 = vld [vmem:[%s118 + $0x1d08] sm:$0xff]
        %v1070 = vld [vmem:[%s118 + $0x1d10] sm:$0xff]
        %v1071 = vld [vmem:[%s118 + $0x1d18] sm:$0xff]
        %v1072 = vld [vmem:[%s118 + $0x1d20] sm:$0xff]
        %v1073 = vld [vmem:[%s118 + $0x1d28] sm:$0xff]
        %v1074 = vld [vmem:[%s118 + $0x1d30] sm:$0xff]
        %v1075 = vld [vmem:[%s118 + $0x1d38] sm:$0xff]
        %v1076 = vld [vmem:[%s118 + $0x1d40] sm:$0xff]
        %v1077 = vld [vmem:[%s118 + $0x1d48] sm:$0xff]
        %v1078 = vld [vmem:[%s118 + $0x1d50] sm:$0xff]
        %v1079 = vld [vmem:[%s118 + $0x1d58] sm:$0xff]
        %v1080 = vld [vmem:[%s118 + $0x1d60] sm:$0xff]
        %v1081 = vld [vmem:[%s118 + $0x1d68] sm:$0xff]
        %v1082 = vld [vmem:[%s118 + $0x1d70] sm:$0xff]
        %v1083 = vld [vmem:[%s118 + $0x1d78] sm:$0xff]
        %v1084 = vld [vmem:[%s118 + $0x1d80] sm:$0xff]
        %v1085 = vld [vmem:[%s118 + $0x1d88] sm:$0xff]
        %v1086 = vld [vmem:[%s118 + $0x1d90] sm:$0xff]
        %v1087 = vld [vmem:[%s118 + $0x1d98] sm:$0xff]
        %v1088 = vld [vmem:[%s118 + $0x1da0] sm:$0xff]
        %v1089 = vld [vmem:[%s118 + $0x1da8] sm:$0xff]
        %v1090 = vld [vmem:[%s118 + $0x1db0] sm:$0xff]
        %v1091 = vld [vmem:[%s118 + $0x1db8] sm:$0xff]
        %v1092 = vld [vmem:[%s118 + $0x1dc0] sm:$0xff]
        %v1093 = vld [vmem:[%s118 + $0x1dc8] sm:$0xff]
        %v1094 = vld [vmem:[%s118 + $0x1dd0] sm:$0xff]
        %v1095 = vld [vmem:[%s118 + $0x1dd8] sm:$0xff]
        %v1096 = vld [vmem:[%s118 + $0x1de0] sm:$0xff]
        %v1097 = vld [vmem:[%s118 + $0x1de8] sm:$0xff]
        %v1098 = vld [vmem:[%s118 + $0x1df0] sm:$0xff]
        %v1099 = vld [vmem:[%s118 + $0x1df8] sm:$0xff]
        %v1100 = vld [vmem:[%s118 + $0x1e00] sm:$0xff]
        %v1101 = vld [vmem:[%s118 + $0x1e08] sm:$0xff]
        %v1102 = vld [vmem:[%s118 + $0x1e10] sm:$0xff]
        %v1103 = vld [vmem:[%s118 + $0x1e18] sm:$0xff]
        %v1104 = vld [vmem:[%s118 + $0x1e20] sm:$0xff]
        %v1105 = vld [vmem:[%s118 + $0x1e28] sm:$0xff]
        %v1106 = vld [vmem:[%s118 + $0x1e30] sm:$0xff]
        %v1107 = vld [vmem:[%s118 + $0x1e38] sm:$0xff]
        %v1108 = vld [vmem:[%s118 + $0x1e40] sm:$0xff]
        %v1109 = vld [vmem:[%s118 + $0x1e48] sm:$0xff]
        %v1110 = vld [vmem:[%s118 + $0x1e50] sm:$0xff]
        %v1111 = vld [vmem:[%s118 + $0x1e58] sm:$0xff]
        %v1112 = vld [vmem:[%s118 + $0x1e60] sm:$0xff]
        %v1113 = vld [vmem:[%s118 + $0x1e68] sm:$0xff]
        %v1114 = vld [vmem:[%s118 + $0x1e70] sm:$0xff]
        %v1115 = vld [vmem:[%s118 + $0x1e78] sm:$0xff]
        %v1116 = vld [vmem:[%s118 + $0x1e80] sm:$0xff]
        %v1117 = vld [vmem:[%s118 + $0x1e88] sm:$0xff]
        %v1118 = vld [vmem:[%s118 + $0x1e90] sm:$0xff]
        %v1119 = vld [vmem:[%s118 + $0x1e98] sm:$0xff]
        %v1120 = vld [vmem:[%s118 + $0x1ea0] sm:$0xff]
        %v1121 = vld [vmem:[%s118 + $0x1ea8] sm:$0xff]
        %v1122 = vld [vmem:[%s118 + $0x1eb0] sm:$0xff]
        %v1123 = vld [vmem:[%s118 + $0x1eb8] sm:$0xff]
        %v1124 = vld [vmem:[%s118 + $0x1ec0] sm:$0xff]
        %v1125 = vld [vmem:[%s118 + $0x1ec8] sm:$0xff]
        %v1126 = vld [vmem:[%s118 + $0x1ed0] sm:$0xff]
        %v1127 = vld [vmem:[%s118 + $0x1ed8] sm:$0xff]
        %v1128 = vld [vmem:[%s118 + $0x1ee0] sm:$0xff]
        %v1129 = vld [vmem:[%s118 + $0x1ee8] sm:$0xff]
        %v1130 = vld [vmem:[%s118 + $0x1ef0] sm:$0xff]
        %v1131 = vld [vmem:[%s118 + $0x1ef8] sm:$0xff]
        %v1132 = vld [vmem:[%s118 + $0x1f00] sm:$0xff]
        %v1133 = vld [vmem:[%s118 + $0x1f08] sm:$0xff]
        %v1134 = vld [vmem:[%s118 + $0x1f10] sm:$0xff]
        %v1135 = vld [vmem:[%s118 + $0x1f18] sm:$0xff]
        %v1136 = vld [vmem:[%s118 + $0x1f20] sm:$0xff]
        %v1137 = vld [vmem:[%s118 + $0x1f28] sm:$0xff]
        %v1138 = vld [vmem:[%s118 + $0x1f30] sm:$0xff]
        %v1139 = vld [vmem:[%s118 + $0x1f38] sm:$0xff]
        %v1140 = vld [vmem:[%s118 + $0x1f40] sm:$0xff]
        %v1141 = vld [vmem:[%s118 + $0x1f48] sm:$0xff]
        %v1142 = vld [vmem:[%s118 + $0x1f50] sm:$0xff]
        %v1143 = vld [vmem:[%s118 + $0x1f58] sm:$0xff]
        %v1144 = vld [vmem:[%s118 + $0x1f60] sm:$0xff]
        %v1145 = vld [vmem:[%s118 + $0x1f68] sm:$0xff]
        %v1146 = vld [vmem:[%s118 + $0x1f70] sm:$0xff]
        %v1147 = vld [vmem:[%s118 + $0x1f78] sm:$0xff]
        %v1148 = vld [vmem:[%s118 + $0x1f80] sm:$0xff]
        %v1149 = vld [vmem:[%s118 + $0x1f88] sm:$0xff]
        %v1150 = vld [vmem:[%s118 + $0x1f90] sm:$0xff]
        %v1151 = vld [vmem:[%s118 + $0x1f98] sm:$0xff]
        %v1152 = vld [vmem:[%s118 + $0x1fa0] sm:$0xff]
        %v1153 = vld [vmem:[%s118 + $0x1fa8] sm:$0xff]
        %v1154 = vld [vmem:[%s118 + $0x1fb0] sm:$0xff]
        %v1155 = vld [vmem:[%s118 + $0x1fb8] sm:$0xff]
        %v1156 = vld [vmem:[%s118 + $0x1fc0] sm:$0xff]
        %v1157 = vld [vmem:[%s118 + $0x1fc8] sm:$0xff]
        %v1158 = vld [vmem:[%s118 + $0x1fd0] sm:$0xff]
        %v1159 = vld [vmem:[%s118 + $0x1fd8] sm:$0xff]
        %v1160 = vld [vmem:[%s118 + $0x1fe0] sm:$0xff]
        %v1161 = vld [vmem:[%s118 + $0x1fe8] sm:$0xff]
        %v1162 = vld [vmem:[%s118 + $0x1ff0] sm:$0xff]
        %v1163 = vld [vmem:[%s118 + $0x1ff8] sm:$0xff]
        %v1164 = vadd.f32 %v140, 1e-09
        %v1165 = vadd.f32 %v141, 1e-09
        %v1166 = vadd.f32 %v142, 1e-09
        %v1167 = vadd.f32 %v143, 1e-09
        %v1168 = vadd.f32 %v144, 1e-09
        %v1169 = vadd.f32 %v145, 1e-09
        %v1170 = vadd.f32 %v146, 1e-09
        %v1171 = vadd.f32 %v147, 1e-09
        %v1172 = vadd.f32 %v148, 1e-09
        %v1173 = vadd.f32 %v149, 1e-09
        %v1174 = vadd.f32 %v150, 1e-09
        %v1175 = vadd.f32 %v151, 1e-09
        %v1176 = vadd.f32 %v152, 1e-09
        %v1177 = vadd.f32 %v153, 1e-09
        %v1178 = vadd.f32 %v154, 1e-09
        %v1179 = vadd.f32 %v155, 1e-09
        %v1180 = vadd.f32 %v156, 1e-09
        %v1181 = vadd.f32 %v157, 1e-09
        %v1182 = vadd.f32 %v158, 1e-09
        %v1183 = vadd.f32 %v159, 1e-09
        %v1184 = vadd.f32 %v160, 1e-09
        %v1185 = vadd.f32 %v161, 1e-09
        %v1186 = vadd.f32 %v162, 1e-09
        %v1187 = vadd.f32 %v163, 1e-09
        %v1188 = vadd.f32 %v164, 1e-09
        %v1189 = vadd.f32 %v165, 1e-09
        %v1190 = vadd.f32 %v166, 1e-09
        %v1191 = vadd.f32 %v167, 1e-09
        %v1192 = vadd.f32 %v168, 1e-09
        %v1193 = vadd.f32 %v169, 1e-09
        %v1194 = vadd.f32 %v170, 1e-09
        %v1195 = vadd.f32 %v171, 1e-09
        %v1196 = vadd.f32 %v172, 1e-09
        %v1197 = vadd.f32 %v173, 1e-09
        %v1198 = vadd.f32 %v174, 1e-09
        %v1199 = vadd.f32 %v175, 1e-09
        %v1200 = vadd.f32 %v176, 1e-09
        %v1201 = vadd.f32 %v177, 1e-09
        %v1202 = vadd.f32 %v178, 1e-09
        %v1203 = vadd.f32 %v179, 1e-09
        %v1204 = vadd.f32 %v180, 1e-09
        %v1205 = vadd.f32 %v181, 1e-09
        %v1206 = vadd.f32 %v182, 1e-09
        %v1207 = vadd.f32 %v183, 1e-09
        %v1208 = vadd.f32 %v184, 1e-09
        %v1209 = vadd.f32 %v185, 1e-09
        %v1210 = vadd.f32 %v186, 1e-09
        %v1211 = vadd.f32 %v187, 1e-09
        %v1212 = vadd.f32 %v188, 1e-09
        %v1213 = vadd.f32 %v189, 1e-09
        %v1214 = vadd.f32 %v190, 1e-09
        %v1215 = vadd.f32 %v191, 1e-09
        %v1216 = vadd.f32 %v192, 1e-09
        %v1217 = vadd.f32 %v193, 1e-09
        %v1218 = vadd.f32 %v194, 1e-09
        %v1219 = vadd.f32 %v195, 1e-09
        %v1220 = vadd.f32 %v196, 1e-09
        %v1221 = vadd.f32 %v197, 1e-09
        %v1222 = vadd.f32 %v198, 1e-09
        %v1223 = vadd.f32 %v199, 1e-09
        %v1224 = vadd.f32 %v200, 1e-09
        %v1225 = vadd.f32 %v201, 1e-09
        %v1226 = vadd.f32 %v202, 1e-09
        %v1227 = vadd.f32 %v203, 1e-09
        %v1228 = vadd.f32 %v204, 1e-09
        %v1229 = vadd.f32 %v205, 1e-09
        %v1230 = vadd.f32 %v206, 1e-09
        %v1231 = vadd.f32 %v207, 1e-09
        %v1232 = vadd.f32 %v208, 1e-09
        %v1233 = vadd.f32 %v209, 1e-09
        %v1234 = vadd.f32 %v210, 1e-09
        %v1235 = vadd.f32 %v211, 1e-09
        %v1236 = vadd.f32 %v212, 1e-09
        %v1237 = vadd.f32 %v213, 1e-09
        %v1238 = vadd.f32 %v214, 1e-09
        %v1239 = vadd.f32 %v215, 1e-09
        %v1240 = vadd.f32 %v216, 1e-09
        %v1241 = vadd.f32 %v217, 1e-09
        %v1242 = vadd.f32 %v218, 1e-09
        %v1243 = vadd.f32 %v219, 1e-09
        %v1244 = vadd.f32 %v220, 1e-09
        %v1245 = vadd.f32 %v221, 1e-09
        %v1246 = vadd.f32 %v222, 1e-09
        %v1247 = vadd.f32 %v223, 1e-09
        %v1248 = vadd.f32 %v224, 1e-09
        %v1249 = vadd.f32 %v225, 1e-09
        %v1250 = vadd.f32 %v226, 1e-09
        %v1251 = vadd.f32 %v227, 1e-09
        %v1252 = vadd.f32 %v228, 1e-09
        %v1253 = vadd.f32 %v229, 1e-09
        %v1254 = vadd.f32 %v230, 1e-09
        %v1255 = vadd.f32 %v231, 1e-09
        %v1256 = vadd.f32 %v232, 1e-09
        %v1257 = vadd.f32 %v233, 1e-09
        %v1258 = vadd.f32 %v234, 1e-09
        %v1259 = vadd.f32 %v235, 1e-09
        %v1260 = vadd.f32 %v236, 1e-09
        %v1261 = vadd.f32 %v237, 1e-09
        %v1262 = vadd.f32 %v238, 1e-09
        %v1263 = vadd.f32 %v239, 1e-09
        %v1264 = vadd.f32 %v240, 1e-09
        %v1265 = vadd.f32 %v241, 1e-09
        %v1266 = vadd.f32 %v242, 1e-09
        %v1267 = vadd.f32 %v243, 1e-09
        %v1268 = vadd.f32 %v244, 1e-09
        %v1269 = vadd.f32 %v245, 1e-09
        %v1270 = vadd.f32 %v246, 1e-09
        %v1271 = vadd.f32 %v247, 1e-09
        %v1272 = vadd.f32 %v248, 1e-09
        %v1273 = vadd.f32 %v249, 1e-09
        %v1274 = vadd.f32 %v250, 1e-09
        %v1275 = vadd.f32 %v251, 1e-09
        %v1276 = vadd.f32 %v252, 1e-09
        %v1277 = vadd.f32 %v253, 1e-09
        %v1278 = vadd.f32 %v254, 1e-09
        %v1279 = vadd.f32 %v255, 1e-09
        %v1280 = vadd.f32 %v256, 1e-09
        %v1281 = vadd.f32 %v257, 1e-09
        %v1282 = vadd.f32 %v258, 1e-09
        %v1283 = vadd.f32 %v259, 1e-09
        %v1284 = vadd.f32 %v260, 1e-09
        %v1285 = vadd.f32 %v261, 1e-09
        %v1286 = vadd.f32 %v262, 1e-09
        %v1287 = vadd.f32 %v263, 1e-09
        %v1288 = vadd.f32 %v264, 1e-09
        %v1289 = vadd.f32 %v265, 1e-09
        %v1290 = vadd.f32 %v266, 1e-09
        %v1291 = vadd.f32 %v267, 1e-09
        %v1292 = vadd.f32 %v268, 1e-09
        %v1293 = vadd.f32 %v269, 1e-09
        %v1294 = vadd.f32 %v270, 1e-09
        %v1295 = vadd.f32 %v271, 1e-09
        %v1296 = vadd.f32 %v272, 1e-09
        %v1297 = vadd.f32 %v273, 1e-09
        %v1298 = vadd.f32 %v274, 1e-09
        %v1299 = vadd.f32 %v275, 1e-09
        %v1300 = vadd.f32 %v276, 1e-09
        %v1301 = vadd.f32 %v277, 1e-09
        %v1302 = vadd.f32 %v278, 1e-09
        %v1303 = vadd.f32 %v279, 1e-09
        %v1304 = vadd.f32 %v280, 1e-09
        %v1305 = vadd.f32 %v281, 1e-09
        %v1306 = vadd.f32 %v282, 1e-09
        %v1307 = vadd.f32 %v283, 1e-09
        %v1308 = vadd.f32 %v284, 1e-09
        %v1309 = vadd.f32 %v285, 1e-09
        %v1310 = vadd.f32 %v286, 1e-09
        %v1311 = vadd.f32 %v287, 1e-09
        %v1312 = vadd.f32 %v288, 1e-09
        %v1313 = vadd.f32 %v289, 1e-09
        %v1314 = vadd.f32 %v290, 1e-09
        %v1315 = vadd.f32 %v291, 1e-09
        %v1316 = vadd.f32 %v292, 1e-09
        %v1317 = vadd.f32 %v293, 1e-09
        %v1318 = vadd.f32 %v294, 1e-09
        %v1319 = vadd.f32 %v295, 1e-09
        %v1320 = vadd.f32 %v296, 1e-09
        %v1321 = vadd.f32 %v297, 1e-09
        %v1322 = vadd.f32 %v298, 1e-09
        %v1323 = vadd.f32 %v299, 1e-09
        %v1324 = vadd.f32 %v300, 1e-09
        %v1325 = vadd.f32 %v301, 1e-09
        %v1326 = vadd.f32 %v302, 1e-09
        %v1327 = vadd.f32 %v303, 1e-09
        %v1328 = vadd.f32 %v304, 1e-09
        %v1329 = vadd.f32 %v305, 1e-09
        %v1330 = vadd.f32 %v306, 1e-09
        %v1331 = vadd.f32 %v307, 1e-09
        %v1332 = vadd.f32 %v308, 1e-09
        %v1333 = vadd.f32 %v309, 1e-09
        %v1334 = vadd.f32 %v310, 1e-09
        %v1335 = vadd.f32 %v311, 1e-09
        %v1336 = vadd.f32 %v312, 1e-09
        %v1337 = vadd.f32 %v313, 1e-09
        %v1338 = vadd.f32 %v314, 1e-09
        %v1339 = vadd.f32 %v315, 1e-09
        %v1340 = vadd.f32 %v316, 1e-09
        %v1341 = vadd.f32 %v317, 1e-09
        %v1342 = vadd.f32 %v318, 1e-09
        %v1343 = vadd.f32 %v319, 1e-09
        %v1344 = vadd.f32 %v320, 1e-09
        %v1345 = vadd.f32 %v321, 1e-09
        %v1346 = vadd.f32 %v322, 1e-09
        %v1347 = vadd.f32 %v323, 1e-09
        %v1348 = vadd.f32 %v324, 1e-09
        %v1349 = vadd.f32 %v325, 1e-09
        %v1350 = vadd.f32 %v326, 1e-09
        %v1351 = vadd.f32 %v327, 1e-09
        %v1352 = vadd.f32 %v328, 1e-09
        %v1353 = vadd.f32 %v329, 1e-09
        %v1354 = vadd.f32 %v330, 1e-09
        %v1355 = vadd.f32 %v331, 1e-09
        %v1356 = vadd.f32 %v332, 1e-09
        %v1357 = vadd.f32 %v333, 1e-09
        %v1358 = vadd.f32 %v334, 1e-09
        %v1359 = vadd.f32 %v335, 1e-09
        %v1360 = vadd.f32 %v336, 1e-09
        %v1361 = vadd.f32 %v337, 1e-09
        %v1362 = vadd.f32 %v338, 1e-09
        %v1363 = vadd.f32 %v339, 1e-09
        %v1364 = vadd.f32 %v340, 1e-09
        %v1365 = vadd.f32 %v341, 1e-09
        %v1366 = vadd.f32 %v342, 1e-09
        %v1367 = vadd.f32 %v343, 1e-09
        %v1368 = vadd.f32 %v344, 1e-09
        %v1369 = vadd.f32 %v345, 1e-09
        %v1370 = vadd.f32 %v346, 1e-09
        %v1371 = vadd.f32 %v347, 1e-09
        %v1372 = vadd.f32 %v348, 1e-09
        %v1373 = vadd.f32 %v349, 1e-09
        %v1374 = vadd.f32 %v350, 1e-09
        %v1375 = vadd.f32 %v351, 1e-09
        %v1376 = vadd.f32 %v352, 1e-09
        %v1377 = vadd.f32 %v353, 1e-09
        %v1378 = vadd.f32 %v354, 1e-09
        %v1379 = vadd.f32 %v355, 1e-09
        %v1380 = vadd.f32 %v356, 1e-09
        %v1381 = vadd.f32 %v357, 1e-09
        %v1382 = vadd.f32 %v358, 1e-09
        %v1383 = vadd.f32 %v359, 1e-09
        %v1384 = vadd.f32 %v360, 1e-09
        %v1385 = vadd.f32 %v361, 1e-09
        %v1386 = vadd.f32 %v362, 1e-09
        %v1387 = vadd.f32 %v363, 1e-09
        %v1388 = vadd.f32 %v364, 1e-09
        %v1389 = vadd.f32 %v365, 1e-09
        %v1390 = vadd.f32 %v366, 1e-09
        %v1391 = vadd.f32 %v367, 1e-09
        %v1392 = vadd.f32 %v368, 1e-09
        %v1393 = vadd.f32 %v369, 1e-09
        %v1394 = vadd.f32 %v370, 1e-09
        %v1395 = vadd.f32 %v371, 1e-09
        %v1396 = vadd.f32 %v372, 1e-09
        %v1397 = vadd.f32 %v373, 1e-09
        %v1398 = vadd.f32 %v374, 1e-09
        %v1399 = vadd.f32 %v375, 1e-09
        %v1400 = vadd.f32 %v376, 1e-09
        %v1401 = vadd.f32 %v377, 1e-09
        %v1402 = vadd.f32 %v378, 1e-09
        %v1403 = vadd.f32 %v379, 1e-09
        %v1404 = vadd.f32 %v380, 1e-09
        %v1405 = vadd.f32 %v381, 1e-09
        %v1406 = vadd.f32 %v382, 1e-09
        %v1407 = vadd.f32 %v383, 1e-09
        %v1408 = vadd.f32 %v384, 1e-09
        %v1409 = vadd.f32 %v385, 1e-09
        %v1410 = vadd.f32 %v386, 1e-09
        %v1411 = vadd.f32 %v387, 1e-09
        %v1412 = vadd.f32 %v388, 1e-09
        %v1413 = vadd.f32 %v389, 1e-09
        %v1414 = vadd.f32 %v390, 1e-09
        %v1415 = vadd.f32 %v391, 1e-09
        %v1416 = vadd.f32 %v392, 1e-09
        %v1417 = vadd.f32 %v393, 1e-09
        %v1418 = vadd.f32 %v394, 1e-09
        %v1419 = vadd.f32 %v395, 1e-09
        %v1420 = vadd.f32 %v396, 1e-09
        %v1421 = vadd.f32 %v397, 1e-09
        %v1422 = vadd.f32 %v398, 1e-09
        %v1423 = vadd.f32 %v399, 1e-09
        %v1424 = vadd.f32 %v400, 1e-09
        %v1425 = vadd.f32 %v401, 1e-09
        %v1426 = vadd.f32 %v402, 1e-09
        %v1427 = vadd.f32 %v403, 1e-09
        %v1428 = vadd.f32 %v404, 1e-09
        %v1429 = vadd.f32 %v405, 1e-09
        %v1430 = vadd.f32 %v406, 1e-09
        %v1431 = vadd.f32 %v407, 1e-09
        %v1432 = vadd.f32 %v408, 1e-09
        %v1433 = vadd.f32 %v409, 1e-09
        %v1434 = vadd.f32 %v410, 1e-09
        %v1435 = vadd.f32 %v411, 1e-09
        %v1436 = vadd.f32 %v412, 1e-09
        %v1437 = vadd.f32 %v413, 1e-09
        %v1438 = vadd.f32 %v414, 1e-09
        %v1439 = vadd.f32 %v415, 1e-09
        %v1440 = vadd.f32 %v416, 1e-09
        %v1441 = vadd.f32 %v417, 1e-09
        %v1442 = vadd.f32 %v418, 1e-09
        %v1443 = vadd.f32 %v419, 1e-09
        %v1444 = vadd.f32 %v420, 1e-09
        %v1445 = vadd.f32 %v421, 1e-09
        %v1446 = vadd.f32 %v422, 1e-09
        %v1447 = vadd.f32 %v423, 1e-09
        %v1448 = vadd.f32 %v424, 1e-09
        %v1449 = vadd.f32 %v425, 1e-09
        %v1450 = vadd.f32 %v426, 1e-09
        %v1451 = vadd.f32 %v427, 1e-09
        %v1452 = vadd.f32 %v428, 1e-09
        %v1453 = vadd.f32 %v429, 1e-09
        %v1454 = vadd.f32 %v430, 1e-09
        %v1455 = vadd.f32 %v431, 1e-09
        %v1456 = vadd.f32 %v432, 1e-09
        %v1457 = vadd.f32 %v433, 1e-09
        %v1458 = vadd.f32 %v434, 1e-09
        %v1459 = vadd.f32 %v435, 1e-09
        %v1460 = vadd.f32 %v436, 1e-09
        %v1461 = vadd.f32 %v437, 1e-09
        %v1462 = vadd.f32 %v438, 1e-09
        %v1463 = vadd.f32 %v439, 1e-09
        %v1464 = vadd.f32 %v440, 1e-09
        %v1465 = vadd.f32 %v441, 1e-09
        %v1466 = vadd.f32 %v442, 1e-09
        %v1467 = vadd.f32 %v443, 1e-09
        %v1468 = vadd.f32 %v444, 1e-09
        %v1469 = vadd.f32 %v445, 1e-09
        %v1470 = vadd.f32 %v446, 1e-09
        %v1471 = vadd.f32 %v447, 1e-09
        %v1472 = vadd.f32 %v448, 1e-09
        %v1473 = vadd.f32 %v449, 1e-09
        %v1474 = vadd.f32 %v450, 1e-09
        %v1475 = vadd.f32 %v451, 1e-09
        %v1476 = vadd.f32 %v452, 1e-09
        %v1477 = vadd.f32 %v453, 1e-09
        %v1478 = vadd.f32 %v454, 1e-09
        %v1479 = vadd.f32 %v455, 1e-09
        %v1480 = vadd.f32 %v456, 1e-09
        %v1481 = vadd.f32 %v457, 1e-09
        %v1482 = vadd.f32 %v458, 1e-09
        %v1483 = vadd.f32 %v459, 1e-09
        %v1484 = vadd.f32 %v460, 1e-09
        %v1485 = vadd.f32 %v461, 1e-09
        %v1486 = vadd.f32 %v462, 1e-09
        %v1487 = vadd.f32 %v463, 1e-09
        %v1488 = vadd.f32 %v464, 1e-09
        %v1489 = vadd.f32 %v465, 1e-09
        %v1490 = vadd.f32 %v466, 1e-09
        %v1491 = vadd.f32 %v467, 1e-09
        %v1492 = vadd.f32 %v468, 1e-09
        %v1493 = vadd.f32 %v469, 1e-09
        %v1494 = vadd.f32 %v470, 1e-09
        %v1495 = vadd.f32 %v471, 1e-09
        %v1496 = vadd.f32 %v472, 1e-09
        %v1497 = vadd.f32 %v473, 1e-09
        %v1498 = vadd.f32 %v474, 1e-09
        %v1499 = vadd.f32 %v475, 1e-09
        %v1500 = vadd.f32 %v476, 1e-09
        %v1501 = vadd.f32 %v477, 1e-09
        %v1502 = vadd.f32 %v478, 1e-09
        %v1503 = vadd.f32 %v479, 1e-09
        %v1504 = vadd.f32 %v480, 1e-09
        %v1505 = vadd.f32 %v481, 1e-09
        %v1506 = vadd.f32 %v482, 1e-09
        %v1507 = vadd.f32 %v483, 1e-09
        %v1508 = vadd.f32 %v484, 1e-09
        %v1509 = vadd.f32 %v485, 1e-09
        %v1510 = vadd.f32 %v486, 1e-09
        %v1511 = vadd.f32 %v487, 1e-09
        %v1512 = vadd.f32 %v488, 1e-09
        %v1513 = vadd.f32 %v489, 1e-09
        %v1514 = vadd.f32 %v490, 1e-09
        %v1515 = vadd.f32 %v491, 1e-09
        %v1516 = vadd.f32 %v492, 1e-09
        %v1517 = vadd.f32 %v493, 1e-09
        %v1518 = vadd.f32 %v494, 1e-09
        %v1519 = vadd.f32 %v495, 1e-09
        %v1520 = vadd.f32 %v496, 1e-09
        %v1521 = vadd.f32 %v497, 1e-09
        %v1522 = vadd.f32 %v498, 1e-09
        %v1523 = vadd.f32 %v499, 1e-09
        %v1524 = vadd.f32 %v500, 1e-09
        %v1525 = vadd.f32 %v501, 1e-09
        %v1526 = vadd.f32 %v502, 1e-09
        %v1527 = vadd.f32 %v503, 1e-09
        %v1528 = vadd.f32 %v504, 1e-09
        %v1529 = vadd.f32 %v505, 1e-09
        %v1530 = vadd.f32 %v506, 1e-09
        %v1531 = vadd.f32 %v507, 1e-09
        %v1532 = vadd.f32 %v508, 1e-09
        %v1533 = vadd.f32 %v509, 1e-09
        %v1534 = vadd.f32 %v510, 1e-09
        %v1535 = vadd.f32 %v511, 1e-09
        %v1536 = vadd.f32 %v512, 1e-09
        %v1537 = vadd.f32 %v513, 1e-09
        %v1538 = vadd.f32 %v514, 1e-09
        %v1539 = vadd.f32 %v515, 1e-09
        %v1540 = vadd.f32 %v516, 1e-09
        %v1541 = vadd.f32 %v517, 1e-09
        %v1542 = vadd.f32 %v518, 1e-09
        %v1543 = vadd.f32 %v519, 1e-09
        %v1544 = vadd.f32 %v520, 1e-09
        %v1545 = vadd.f32 %v521, 1e-09
        %v1546 = vadd.f32 %v522, 1e-09
        %v1547 = vadd.f32 %v523, 1e-09
        %v1548 = vadd.f32 %v524, 1e-09
        %v1549 = vadd.f32 %v525, 1e-09
        %v1550 = vadd.f32 %v526, 1e-09
        %v1551 = vadd.f32 %v527, 1e-09
        %v1552 = vadd.f32 %v528, 1e-09
        %v1553 = vadd.f32 %v529, 1e-09
        %v1554 = vadd.f32 %v530, 1e-09
        %v1555 = vadd.f32 %v531, 1e-09
        %v1556 = vadd.f32 %v532, 1e-09
        %v1557 = vadd.f32 %v533, 1e-09
        %v1558 = vadd.f32 %v534, 1e-09
        %v1559 = vadd.f32 %v535, 1e-09
        %v1560 = vadd.f32 %v536, 1e-09
        %v1561 = vadd.f32 %v537, 1e-09
        %v1562 = vadd.f32 %v538, 1e-09
        %v1563 = vadd.f32 %v539, 1e-09
        %v1564 = vadd.f32 %v540, 1e-09
        %v1565 = vadd.f32 %v541, 1e-09
        %v1566 = vadd.f32 %v542, 1e-09
        %v1567 = vadd.f32 %v543, 1e-09
        %v1568 = vadd.f32 %v544, 1e-09
        %v1569 = vadd.f32 %v545, 1e-09
        %v1570 = vadd.f32 %v546, 1e-09
        %v1571 = vadd.f32 %v547, 1e-09
        %v1572 = vadd.f32 %v548, 1e-09
        %v1573 = vadd.f32 %v549, 1e-09
        %v1574 = vadd.f32 %v550, 1e-09
        %v1575 = vadd.f32 %v551, 1e-09
        %v1576 = vadd.f32 %v552, 1e-09
        %v1577 = vadd.f32 %v553, 1e-09
        %v1578 = vadd.f32 %v554, 1e-09
        %v1579 = vadd.f32 %v555, 1e-09
        %v1580 = vadd.f32 %v556, 1e-09
        %v1581 = vadd.f32 %v557, 1e-09
        %v1582 = vadd.f32 %v558, 1e-09
        %v1583 = vadd.f32 %v559, 1e-09
        %v1584 = vadd.f32 %v560, 1e-09
        %v1585 = vadd.f32 %v561, 1e-09
        %v1586 = vadd.f32 %v562, 1e-09
        %v1587 = vadd.f32 %v563, 1e-09
        %v1588 = vadd.f32 %v564, 1e-09
        %v1589 = vadd.f32 %v565, 1e-09
        %v1590 = vadd.f32 %v566, 1e-09
        %v1591 = vadd.f32 %v567, 1e-09
        %v1592 = vadd.f32 %v568, 1e-09
        %v1593 = vadd.f32 %v569, 1e-09
        %v1594 = vadd.f32 %v570, 1e-09
        %v1595 = vadd.f32 %v571, 1e-09
        %v1596 = vadd.f32 %v572, 1e-09
        %v1597 = vadd.f32 %v573, 1e-09
        %v1598 = vadd.f32 %v574, 1e-09
        %v1599 = vadd.f32 %v575, 1e-09
        %v1600 = vadd.f32 %v576, 1e-09
        %v1601 = vadd.f32 %v577, 1e-09
        %v1602 = vadd.f32 %v578, 1e-09
        %v1603 = vadd.f32 %v579, 1e-09
        %v1604 = vadd.f32 %v580, 1e-09
        %v1605 = vadd.f32 %v581, 1e-09
        %v1606 = vadd.f32 %v582, 1e-09
        %v1607 = vadd.f32 %v583, 1e-09
        %v1608 = vadd.f32 %v584, 1e-09
        %v1609 = vadd.f32 %v585, 1e-09
        %v1610 = vadd.f32 %v586, 1e-09
        %v1611 = vadd.f32 %v587, 1e-09
        %v1612 = vadd.f32 %v588, 1e-09
        %v1613 = vadd.f32 %v589, 1e-09
        %v1614 = vadd.f32 %v590, 1e-09
        %v1615 = vadd.f32 %v591, 1e-09
        %v1616 = vadd.f32 %v592, 1e-09
        %v1617 = vadd.f32 %v593, 1e-09
        %v1618 = vadd.f32 %v594, 1e-09
        %v1619 = vadd.f32 %v595, 1e-09
        %v1620 = vadd.f32 %v596, 1e-09
        %v1621 = vadd.f32 %v597, 1e-09
        %v1622 = vadd.f32 %v598, 1e-09
        %v1623 = vadd.f32 %v599, 1e-09
        %v1624 = vadd.f32 %v600, 1e-09
        %v1625 = vadd.f32 %v601, 1e-09
        %v1626 = vadd.f32 %v602, 1e-09
        %v1627 = vadd.f32 %v603, 1e-09
        %v1628 = vadd.f32 %v604, 1e-09
        %v1629 = vadd.f32 %v605, 1e-09
        %v1630 = vadd.f32 %v606, 1e-09
        %v1631 = vadd.f32 %v607, 1e-09
        %v1632 = vadd.f32 %v608, 1e-09
        %v1633 = vadd.f32 %v609, 1e-09
        %v1634 = vadd.f32 %v610, 1e-09
        %v1635 = vadd.f32 %v611, 1e-09
        %v1636 = vadd.f32 %v612, 1e-09
        %v1637 = vadd.f32 %v613, 1e-09
        %v1638 = vadd.f32 %v614, 1e-09
        %v1639 = vadd.f32 %v615, 1e-09
        %v1640 = vadd.f32 %v616, 1e-09
        %v1641 = vadd.f32 %v617, 1e-09
        %v1642 = vadd.f32 %v618, 1e-09
        %v1643 = vadd.f32 %v619, 1e-09
        %v1644 = vadd.f32 %v620, 1e-09
        %v1645 = vadd.f32 %v621, 1e-09
        %v1646 = vadd.f32 %v622, 1e-09
        %v1647 = vadd.f32 %v623, 1e-09
        %v1648 = vadd.f32 %v624, 1e-09
        %v1649 = vadd.f32 %v625, 1e-09
        %v1650 = vadd.f32 %v626, 1e-09
        %v1651 = vadd.f32 %v627, 1e-09
        %v1652 = vadd.f32 %v628, 1e-09
        %v1653 = vadd.f32 %v629, 1e-09
        %v1654 = vadd.f32 %v630, 1e-09
        %v1655 = vadd.f32 %v631, 1e-09
        %v1656 = vadd.f32 %v632, 1e-09
        %v1657 = vadd.f32 %v633, 1e-09
        %v1658 = vadd.f32 %v634, 1e-09
        %v1659 = vadd.f32 %v635, 1e-09
        %v1660 = vadd.f32 %v636, 1e-09
        %v1661 = vadd.f32 %v637, 1e-09
        %v1662 = vadd.f32 %v638, 1e-09
        %v1663 = vadd.f32 %v639, 1e-09
        %v1664 = vadd.f32 %v640, 1e-09
        %v1665 = vadd.f32 %v641, 1e-09
        %v1666 = vadd.f32 %v642, 1e-09
        %v1667 = vadd.f32 %v643, 1e-09
        %v1668 = vadd.f32 %v644, 1e-09
        %v1669 = vadd.f32 %v645, 1e-09
        %v1670 = vadd.f32 %v646, 1e-09
        %v1671 = vadd.f32 %v647, 1e-09
        %v1672 = vadd.f32 %v648, 1e-09
        %v1673 = vadd.f32 %v649, 1e-09
        %v1674 = vadd.f32 %v650, 1e-09
        %v1675 = vadd.f32 %v651, 1e-09
        %v1676 = vadd.f32 %v652, 1e-09
        %v1677 = vadd.f32 %v653, 1e-09
        %v1678 = vadd.f32 %v654, 1e-09
        %v1679 = vadd.f32 %v655, 1e-09
        %v1680 = vadd.f32 %v656, 1e-09
        %v1681 = vadd.f32 %v657, 1e-09
        %v1682 = vadd.f32 %v658, 1e-09
        %v1683 = vadd.f32 %v659, 1e-09
        %v1684 = vadd.f32 %v660, 1e-09
        %v1685 = vadd.f32 %v661, 1e-09
        %v1686 = vadd.f32 %v662, 1e-09
        %v1687 = vadd.f32 %v663, 1e-09
        %v1688 = vadd.f32 %v664, 1e-09
        %v1689 = vadd.f32 %v665, 1e-09
        %v1690 = vadd.f32 %v666, 1e-09
        %v1691 = vadd.f32 %v667, 1e-09
        %v1692 = vadd.f32 %v668, 1e-09
        %v1693 = vadd.f32 %v669, 1e-09
        %v1694 = vadd.f32 %v670, 1e-09
        %v1695 = vadd.f32 %v671, 1e-09
        %v1696 = vadd.f32 %v672, 1e-09
        %v1697 = vadd.f32 %v673, 1e-09
        %v1698 = vadd.f32 %v674, 1e-09
        %v1699 = vadd.f32 %v675, 1e-09
        %v1700 = vadd.f32 %v676, 1e-09
        %v1701 = vadd.f32 %v677, 1e-09
        %v1702 = vadd.f32 %v678, 1e-09
        %v1703 = vadd.f32 %v679, 1e-09
        %v1704 = vadd.f32 %v680, 1e-09
        %v1705 = vadd.f32 %v681, 1e-09
        %v1706 = vadd.f32 %v682, 1e-09
        %v1707 = vadd.f32 %v683, 1e-09
        %v1708 = vadd.f32 %v684, 1e-09
        %v1709 = vadd.f32 %v685, 1e-09
        %v1710 = vadd.f32 %v686, 1e-09
        %v1711 = vadd.f32 %v687, 1e-09
        %v1712 = vadd.f32 %v688, 1e-09
        %v1713 = vadd.f32 %v689, 1e-09
        %v1714 = vadd.f32 %v690, 1e-09
        %v1715 = vadd.f32 %v691, 1e-09
        %v1716 = vadd.f32 %v692, 1e-09
        %v1717 = vadd.f32 %v693, 1e-09
        %v1718 = vadd.f32 %v694, 1e-09
        %v1719 = vadd.f32 %v695, 1e-09
        %v1720 = vadd.f32 %v696, 1e-09
        %v1721 = vadd.f32 %v697, 1e-09
        %v1722 = vadd.f32 %v698, 1e-09
        %v1723 = vadd.f32 %v699, 1e-09
        %v1724 = vadd.f32 %v700, 1e-09
        %v1725 = vadd.f32 %v701, 1e-09
        %v1726 = vadd.f32 %v702, 1e-09
        %v1727 = vadd.f32 %v703, 1e-09
        %v1728 = vadd.f32 %v704, 1e-09
        %v1729 = vadd.f32 %v705, 1e-09
        %v1730 = vadd.f32 %v706, 1e-09
        %v1731 = vadd.f32 %v707, 1e-09
        %v1732 = vadd.f32 %v708, 1e-09
        %v1733 = vadd.f32 %v709, 1e-09
        %v1734 = vadd.f32 %v710, 1e-09
        %v1735 = vadd.f32 %v711, 1e-09
        %v1736 = vadd.f32 %v712, 1e-09
        %v1737 = vadd.f32 %v713, 1e-09
        %v1738 = vadd.f32 %v714, 1e-09
        %v1739 = vadd.f32 %v715, 1e-09
        %v1740 = vadd.f32 %v716, 1e-09
        %v1741 = vadd.f32 %v717, 1e-09
        %v1742 = vadd.f32 %v718, 1e-09
        %v1743 = vadd.f32 %v719, 1e-09
        %v1744 = vadd.f32 %v720, 1e-09
        %v1745 = vadd.f32 %v721, 1e-09
        %v1746 = vadd.f32 %v722, 1e-09
        %v1747 = vadd.f32 %v723, 1e-09
        %v1748 = vadd.f32 %v724, 1e-09
        %v1749 = vadd.f32 %v725, 1e-09
        %v1750 = vadd.f32 %v726, 1e-09
        %v1751 = vadd.f32 %v727, 1e-09
        %v1752 = vadd.f32 %v728, 1e-09
        %v1753 = vadd.f32 %v729, 1e-09
        %v1754 = vadd.f32 %v730, 1e-09
        %v1755 = vadd.f32 %v731, 1e-09
        %v1756 = vadd.f32 %v732, 1e-09
        %v1757 = vadd.f32 %v733, 1e-09
        %v1758 = vadd.f32 %v734, 1e-09
        %v1759 = vadd.f32 %v735, 1e-09
        %v1760 = vadd.f32 %v736, 1e-09
        %v1761 = vadd.f32 %v737, 1e-09
        %v1762 = vadd.f32 %v738, 1e-09
        %v1763 = vadd.f32 %v739, 1e-09
        %v1764 = vadd.f32 %v740, 1e-09
        %v1765 = vadd.f32 %v741, 1e-09
        %v1766 = vadd.f32 %v742, 1e-09
        %v1767 = vadd.f32 %v743, 1e-09
        %v1768 = vadd.f32 %v744, 1e-09
        %v1769 = vadd.f32 %v745, 1e-09
        %v1770 = vadd.f32 %v746, 1e-09
        %v1771 = vadd.f32 %v747, 1e-09
        %v1772 = vadd.f32 %v748, 1e-09
        %v1773 = vadd.f32 %v749, 1e-09
        %v1774 = vadd.f32 %v750, 1e-09
        %v1775 = vadd.f32 %v751, 1e-09
        %v1776 = vadd.f32 %v752, 1e-09
        %v1777 = vadd.f32 %v753, 1e-09
        %v1778 = vadd.f32 %v754, 1e-09
        %v1779 = vadd.f32 %v755, 1e-09
        %v1780 = vadd.f32 %v756, 1e-09
        %v1781 = vadd.f32 %v757, 1e-09
        %v1782 = vadd.f32 %v758, 1e-09
        %v1783 = vadd.f32 %v759, 1e-09
        %v1784 = vadd.f32 %v760, 1e-09
        %v1785 = vadd.f32 %v761, 1e-09
        %v1786 = vadd.f32 %v762, 1e-09
        %v1787 = vadd.f32 %v763, 1e-09
        %v1788 = vadd.f32 %v764, 1e-09
        %v1789 = vadd.f32 %v765, 1e-09
        %v1790 = vadd.f32 %v766, 1e-09
        %v1791 = vadd.f32 %v767, 1e-09
        %v1792 = vadd.f32 %v768, 1e-09
        %v1793 = vadd.f32 %v769, 1e-09
        %v1794 = vadd.f32 %v770, 1e-09
        %v1795 = vadd.f32 %v771, 1e-09
        %v1796 = vadd.f32 %v772, 1e-09
        %v1797 = vadd.f32 %v773, 1e-09
        %v1798 = vadd.f32 %v774, 1e-09
        %v1799 = vadd.f32 %v775, 1e-09
        %v1800 = vadd.f32 %v776, 1e-09
        %v1801 = vadd.f32 %v777, 1e-09
        %v1802 = vadd.f32 %v778, 1e-09
        %v1803 = vadd.f32 %v779, 1e-09
        %v1804 = vadd.f32 %v780, 1e-09
        %v1805 = vadd.f32 %v781, 1e-09
        %v1806 = vadd.f32 %v782, 1e-09
        %v1807 = vadd.f32 %v783, 1e-09
        %v1808 = vadd.f32 %v784, 1e-09
        %v1809 = vadd.f32 %v785, 1e-09
        %v1810 = vadd.f32 %v786, 1e-09
        %v1811 = vadd.f32 %v787, 1e-09
        %v1812 = vadd.f32 %v788, 1e-09
        %v1813 = vadd.f32 %v789, 1e-09
        %v1814 = vadd.f32 %v790, 1e-09
        %v1815 = vadd.f32 %v791, 1e-09
        %v1816 = vadd.f32 %v792, 1e-09
        %v1817 = vadd.f32 %v793, 1e-09
        %v1818 = vadd.f32 %v794, 1e-09
        %v1819 = vadd.f32 %v795, 1e-09
        %v1820 = vadd.f32 %v796, 1e-09
        %v1821 = vadd.f32 %v797, 1e-09
        %v1822 = vadd.f32 %v798, 1e-09
        %v1823 = vadd.f32 %v799, 1e-09
        %v1824 = vadd.f32 %v800, 1e-09
        %v1825 = vadd.f32 %v801, 1e-09
        %v1826 = vadd.f32 %v802, 1e-09
        %v1827 = vadd.f32 %v803, 1e-09
        %v1828 = vadd.f32 %v804, 1e-09
        %v1829 = vadd.f32 %v805, 1e-09
        %v1830 = vadd.f32 %v806, 1e-09
        %v1831 = vadd.f32 %v807, 1e-09
        %v1832 = vadd.f32 %v808, 1e-09
        %v1833 = vadd.f32 %v809, 1e-09
        %v1834 = vadd.f32 %v810, 1e-09
        %v1835 = vadd.f32 %v811, 1e-09
        %v1836 = vadd.f32 %v812, 1e-09
        %v1837 = vadd.f32 %v813, 1e-09
        %v1838 = vadd.f32 %v814, 1e-09
        %v1839 = vadd.f32 %v815, 1e-09
        %v1840 = vadd.f32 %v816, 1e-09
        %v1841 = vadd.f32 %v817, 1e-09
        %v1842 = vadd.f32 %v818, 1e-09
        %v1843 = vadd.f32 %v819, 1e-09
        %v1844 = vadd.f32 %v820, 1e-09
        %v1845 = vadd.f32 %v821, 1e-09
        %v1846 = vadd.f32 %v822, 1e-09
        %v1847 = vadd.f32 %v823, 1e-09
        %v1848 = vadd.f32 %v824, 1e-09
        %v1849 = vadd.f32 %v825, 1e-09
        %v1850 = vadd.f32 %v826, 1e-09
        %v1851 = vadd.f32 %v827, 1e-09
        %v1852 = vadd.f32 %v828, 1e-09
        %v1853 = vadd.f32 %v829, 1e-09
        %v1854 = vadd.f32 %v830, 1e-09
        %v1855 = vadd.f32 %v831, 1e-09
        %v1856 = vadd.f32 %v832, 1e-09
        %v1857 = vadd.f32 %v833, 1e-09
        %v1858 = vadd.f32 %v834, 1e-09
        %v1859 = vadd.f32 %v835, 1e-09
        %v1860 = vadd.f32 %v836, 1e-09
        %v1861 = vadd.f32 %v837, 1e-09
        %v1862 = vadd.f32 %v838, 1e-09
        %v1863 = vadd.f32 %v839, 1e-09
        %v1864 = vadd.f32 %v840, 1e-09
        %v1865 = vadd.f32 %v841, 1e-09
        %v1866 = vadd.f32 %v842, 1e-09
        %v1867 = vadd.f32 %v843, 1e-09
        %v1868 = vadd.f32 %v844, 1e-09
        %v1869 = vadd.f32 %v845, 1e-09
        %v1870 = vadd.f32 %v846, 1e-09
        %v1871 = vadd.f32 %v847, 1e-09
        %v1872 = vadd.f32 %v848, 1e-09
        %v1873 = vadd.f32 %v849, 1e-09
        %v1874 = vadd.f32 %v850, 1e-09
        %v1875 = vadd.f32 %v851, 1e-09
        %v1876 = vadd.f32 %v852, 1e-09
        %v1877 = vadd.f32 %v853, 1e-09
        %v1878 = vadd.f32 %v854, 1e-09
        %v1879 = vadd.f32 %v855, 1e-09
        %v1880 = vadd.f32 %v856, 1e-09
        %v1881 = vadd.f32 %v857, 1e-09
        %v1882 = vadd.f32 %v858, 1e-09
        %v1883 = vadd.f32 %v859, 1e-09
        %v1884 = vadd.f32 %v860, 1e-09
        %v1885 = vadd.f32 %v861, 1e-09
        %v1886 = vadd.f32 %v862, 1e-09
        %v1887 = vadd.f32 %v863, 1e-09
        %v1888 = vadd.f32 %v864, 1e-09
        %v1889 = vadd.f32 %v865, 1e-09
        %v1890 = vadd.f32 %v866, 1e-09
        %v1891 = vadd.f32 %v867, 1e-09
        %v1892 = vadd.f32 %v868, 1e-09
        %v1893 = vadd.f32 %v869, 1e-09
        %v1894 = vadd.f32 %v870, 1e-09
        %v1895 = vadd.f32 %v871, 1e-09
        %v1896 = vadd.f32 %v872, 1e-09
        %v1897 = vadd.f32 %v873, 1e-09
        %v1898 = vadd.f32 %v874, 1e-09
        %v1899 = vadd.f32 %v875, 1e-09
        %v1900 = vadd.f32 %v876, 1e-09
        %v1901 = vadd.f32 %v877, 1e-09
        %v1902 = vadd.f32 %v878, 1e-09
        %v1903 = vadd.f32 %v879, 1e-09
        %v1904 = vadd.f32 %v880, 1e-09
        %v1905 = vadd.f32 %v881, 1e-09
        %v1906 = vadd.f32 %v882, 1e-09
        %v1907 = vadd.f32 %v883, 1e-09
        %v1908 = vadd.f32 %v884, 1e-09
        %v1909 = vadd.f32 %v885, 1e-09
        %v1910 = vadd.f32 %v886, 1e-09
        %v1911 = vadd.f32 %v887, 1e-09
        %v1912 = vadd.f32 %v888, 1e-09
        %v1913 = vadd.f32 %v889, 1e-09
        %v1914 = vadd.f32 %v890, 1e-09
        %v1915 = vadd.f32 %v891, 1e-09
        %v1916 = vadd.f32 %v892, 1e-09
        %v1917 = vadd.f32 %v893, 1e-09
        %v1918 = vadd.f32 %v894, 1e-09
        %v1919 = vadd.f32 %v895, 1e-09
        %v1920 = vadd.f32 %v896, 1e-09
        %v1921 = vadd.f32 %v897, 1e-09
        %v1922 = vadd.f32 %v898, 1e-09
        %v1923 = vadd.f32 %v899, 1e-09
        %v1924 = vadd.f32 %v900, 1e-09
        %v1925 = vadd.f32 %v901, 1e-09
        %v1926 = vadd.f32 %v902, 1e-09
        %v1927 = vadd.f32 %v903, 1e-09
        %v1928 = vadd.f32 %v904, 1e-09
        %v1929 = vadd.f32 %v905, 1e-09
        %v1930 = vadd.f32 %v906, 1e-09
        %v1931 = vadd.f32 %v907, 1e-09
        %v1932 = vadd.f32 %v908, 1e-09
        %v1933 = vadd.f32 %v909, 1e-09
        %v1934 = vadd.f32 %v910, 1e-09
        %v1935 = vadd.f32 %v911, 1e-09
        %v1936 = vadd.f32 %v912, 1e-09
        %v1937 = vadd.f32 %v913, 1e-09
        %v1938 = vadd.f32 %v914, 1e-09
        %v1939 = vadd.f32 %v915, 1e-09
        %v1940 = vadd.f32 %v916, 1e-09
        %v1941 = vadd.f32 %v917, 1e-09
        %v1942 = vadd.f32 %v918, 1e-09
        %v1943 = vadd.f32 %v919, 1e-09
        %v1944 = vadd.f32 %v920, 1e-09
        %v1945 = vadd.f32 %v921, 1e-09
        %v1946 = vadd.f32 %v922, 1e-09
        %v1947 = vadd.f32 %v923, 1e-09
        %v1948 = vadd.f32 %v924, 1e-09
        %v1949 = vadd.f32 %v925, 1e-09
        %v1950 = vadd.f32 %v926, 1e-09
        %v1951 = vadd.f32 %v927, 1e-09
        %v1952 = vadd.f32 %v928, 1e-09
        %v1953 = vadd.f32 %v929, 1e-09
        %v1954 = vadd.f32 %v930, 1e-09
        %v1955 = vadd.f32 %v931, 1e-09
        %v1956 = vadd.f32 %v932, 1e-09
        %v1957 = vadd.f32 %v933, 1e-09
        %v1958 = vadd.f32 %v934, 1e-09
        %v1959 = vadd.f32 %v935, 1e-09
        %v1960 = vadd.f32 %v936, 1e-09
        %v1961 = vadd.f32 %v937, 1e-09
        %v1962 = vadd.f32 %v938, 1e-09
        %v1963 = vadd.f32 %v939, 1e-09
        %v1964 = vadd.f32 %v940, 1e-09
        %v1965 = vadd.f32 %v941, 1e-09
        %v1966 = vadd.f32 %v942, 1e-09
        %v1967 = vadd.f32 %v943, 1e-09
        %v1968 = vadd.f32 %v944, 1e-09
        %v1969 = vadd.f32 %v945, 1e-09
        %v1970 = vadd.f32 %v946, 1e-09
        %v1971 = vadd.f32 %v947, 1e-09
        %v1972 = vadd.f32 %v948, 1e-09
        %v1973 = vadd.f32 %v949, 1e-09
        %v1974 = vadd.f32 %v950, 1e-09
        %v1975 = vadd.f32 %v951, 1e-09
        %v1976 = vadd.f32 %v952, 1e-09
        %v1977 = vadd.f32 %v953, 1e-09
        %v1978 = vadd.f32 %v954, 1e-09
        %v1979 = vadd.f32 %v955, 1e-09
        %v1980 = vadd.f32 %v956, 1e-09
        %v1981 = vadd.f32 %v957, 1e-09
        %v1982 = vadd.f32 %v958, 1e-09
        %v1983 = vadd.f32 %v959, 1e-09
        %v1984 = vadd.f32 %v960, 1e-09
        %v1985 = vadd.f32 %v961, 1e-09
        %v1986 = vadd.f32 %v962, 1e-09
        %v1987 = vadd.f32 %v963, 1e-09
        %v1988 = vadd.f32 %v964, 1e-09
        %v1989 = vadd.f32 %v965, 1e-09
        %v1990 = vadd.f32 %v966, 1e-09
        %v1991 = vadd.f32 %v967, 1e-09
        %v1992 = vadd.f32 %v968, 1e-09
        %v1993 = vadd.f32 %v969, 1e-09
        %v1994 = vadd.f32 %v970, 1e-09
        %v1995 = vadd.f32 %v971, 1e-09
        %v1996 = vadd.f32 %v972, 1e-09
        %v1997 = vadd.f32 %v973, 1e-09
        %v1998 = vadd.f32 %v974, 1e-09
        %v1999 = vadd.f32 %v975, 1e-09
        %v2000 = vadd.f32 %v976, 1e-09
        %v2001 = vadd.f32 %v977, 1e-09
        %v2002 = vadd.f32 %v978, 1e-09
        %v2003 = vadd.f32 %v979, 1e-09
        %v2004 = vadd.f32 %v980, 1e-09
        %v2005 = vadd.f32 %v981, 1e-09
        %v2006 = vadd.f32 %v982, 1e-09
        %v2007 = vadd.f32 %v983, 1e-09
        %v2008 = vadd.f32 %v984, 1e-09
        %v2009 = vadd.f32 %v985, 1e-09
        %v2010 = vadd.f32 %v986, 1e-09
        %v2011 = vadd.f32 %v987, 1e-09
        %v2012 = vadd.f32 %v988, 1e-09
        %v2013 = vadd.f32 %v989, 1e-09
        %v2014 = vadd.f32 %v990, 1e-09
        %v2015 = vadd.f32 %v991, 1e-09
        %v2016 = vadd.f32 %v992, 1e-09
        %v2017 = vadd.f32 %v993, 1e-09
        %v2018 = vadd.f32 %v994, 1e-09
        %v2019 = vadd.f32 %v995, 1e-09
        %v2020 = vadd.f32 %v996, 1e-09
        %v2021 = vadd.f32 %v997, 1e-09
        %v2022 = vadd.f32 %v998, 1e-09
        %v2023 = vadd.f32 %v999, 1e-09
        %v2024 = vadd.f32 %v1000, 1e-09
        %v2025 = vadd.f32 %v1001, 1e-09
        %v2026 = vadd.f32 %v1002, 1e-09
        %v2027 = vadd.f32 %v1003, 1e-09
        %v2028 = vadd.f32 %v1004, 1e-09
        %v2029 = vadd.f32 %v1005, 1e-09
        %v2030 = vadd.f32 %v1006, 1e-09
        %v2031 = vadd.f32 %v1007, 1e-09
        %v2032 = vadd.f32 %v1008, 1e-09
        %v2033 = vadd.f32 %v1009, 1e-09
        %v2034 = vadd.f32 %v1010, 1e-09
        %v2035 = vadd.f32 %v1011, 1e-09
        %v2036 = vadd.f32 %v1012, 1e-09
        %v2037 = vadd.f32 %v1013, 1e-09
        %v2038 = vadd.f32 %v1014, 1e-09
        %v2039 = vadd.f32 %v1015, 1e-09
        %v2040 = vadd.f32 %v1016, 1e-09
        %v2041 = vadd.f32 %v1017, 1e-09
        %v2042 = vadd.f32 %v1018, 1e-09
        %v2043 = vadd.f32 %v1019, 1e-09
        %v2044 = vadd.f32 %v1020, 1e-09
        %v2045 = vadd.f32 %v1021, 1e-09
        %v2046 = vadd.f32 %v1022, 1e-09
        %v2047 = vadd.f32 %v1023, 1e-09
        %v2048 = vadd.f32 %v1024, 1e-09
        %v2049 = vadd.f32 %v1025, 1e-09
        %v2050 = vadd.f32 %v1026, 1e-09
        %v2051 = vadd.f32 %v1027, 1e-09
        %v2052 = vadd.f32 %v1028, 1e-09
        %v2053 = vadd.f32 %v1029, 1e-09
        %v2054 = vadd.f32 %v1030, 1e-09
        %v2055 = vadd.f32 %v1031, 1e-09
        %v2056 = vadd.f32 %v1032, 1e-09
        %v2057 = vadd.f32 %v1033, 1e-09
        %v2058 = vadd.f32 %v1034, 1e-09
        %v2059 = vadd.f32 %v1035, 1e-09
        %v2060 = vadd.f32 %v1036, 1e-09
        %v2061 = vadd.f32 %v1037, 1e-09
        %v2062 = vadd.f32 %v1038, 1e-09
        %v2063 = vadd.f32 %v1039, 1e-09
        %v2064 = vadd.f32 %v1040, 1e-09
        %v2065 = vadd.f32 %v1041, 1e-09
        %v2066 = vadd.f32 %v1042, 1e-09
        %v2067 = vadd.f32 %v1043, 1e-09
        %v2068 = vadd.f32 %v1044, 1e-09
        %v2069 = vadd.f32 %v1045, 1e-09
        %v2070 = vadd.f32 %v1046, 1e-09
        %v2071 = vadd.f32 %v1047, 1e-09
        %v2072 = vadd.f32 %v1048, 1e-09
        %v2073 = vadd.f32 %v1049, 1e-09
        %v2074 = vadd.f32 %v1050, 1e-09
        %v2075 = vadd.f32 %v1051, 1e-09
        %v2076 = vadd.f32 %v1052, 1e-09
        %v2077 = vadd.f32 %v1053, 1e-09
        %v2078 = vadd.f32 %v1054, 1e-09
        %v2079 = vadd.f32 %v1055, 1e-09
        %v2080 = vadd.f32 %v1056, 1e-09
        %v2081 = vadd.f32 %v1057, 1e-09
        %v2082 = vadd.f32 %v1058, 1e-09
        %v2083 = vadd.f32 %v1059, 1e-09
        %v2084 = vadd.f32 %v1060, 1e-09
        %v2085 = vadd.f32 %v1061, 1e-09
        %v2086 = vadd.f32 %v1062, 1e-09
        %v2087 = vadd.f32 %v1063, 1e-09
        %v2088 = vadd.f32 %v1064, 1e-09
        %v2089 = vadd.f32 %v1065, 1e-09
        %v2090 = vadd.f32 %v1066, 1e-09
        %v2091 = vadd.f32 %v1067, 1e-09
        %v2092 = vadd.f32 %v1068, 1e-09
        %v2093 = vadd.f32 %v1069, 1e-09
        %v2094 = vadd.f32 %v1070, 1e-09
        %v2095 = vadd.f32 %v1071, 1e-09
        %v2096 = vadd.f32 %v1072, 1e-09
        %v2097 = vadd.f32 %v1073, 1e-09
        %v2098 = vadd.f32 %v1074, 1e-09
        %v2099 = vadd.f32 %v1075, 1e-09
        %v2100 = vadd.f32 %v1076, 1e-09
        %v2101 = vadd.f32 %v1077, 1e-09
        %v2102 = vadd.f32 %v1078, 1e-09
        %v2103 = vadd.f32 %v1079, 1e-09
        %v2104 = vadd.f32 %v1080, 1e-09
        %v2105 = vadd.f32 %v1081, 1e-09
        %v2106 = vadd.f32 %v1082, 1e-09
        %v2107 = vadd.f32 %v1083, 1e-09
        %v2108 = vadd.f32 %v1084, 1e-09
        %v2109 = vadd.f32 %v1085, 1e-09
        %v2110 = vadd.f32 %v1086, 1e-09
        %v2111 = vadd.f32 %v1087, 1e-09
        %v2112 = vadd.f32 %v1088, 1e-09
        %v2113 = vadd.f32 %v1089, 1e-09
        %v2114 = vadd.f32 %v1090, 1e-09
        %v2115 = vadd.f32 %v1091, 1e-09
        %v2116 = vadd.f32 %v1092, 1e-09
        %v2117 = vadd.f32 %v1093, 1e-09
        %v2118 = vadd.f32 %v1094, 1e-09
        %v2119 = vadd.f32 %v1095, 1e-09
        %v2120 = vadd.f32 %v1096, 1e-09
        %v2121 = vadd.f32 %v1097, 1e-09
        %v2122 = vadd.f32 %v1098, 1e-09
        %v2123 = vadd.f32 %v1099, 1e-09
        %v2124 = vadd.f32 %v1100, 1e-09
        %v2125 = vadd.f32 %v1101, 1e-09
        %v2126 = vadd.f32 %v1102, 1e-09
        %v2127 = vadd.f32 %v1103, 1e-09
        %v2128 = vadd.f32 %v1104, 1e-09
        %v2129 = vadd.f32 %v1105, 1e-09
        %v2130 = vadd.f32 %v1106, 1e-09
        %v2131 = vadd.f32 %v1107, 1e-09
        %v2132 = vadd.f32 %v1108, 1e-09
        %v2133 = vadd.f32 %v1109, 1e-09
        %v2134 = vadd.f32 %v1110, 1e-09
        %v2135 = vadd.f32 %v1111, 1e-09
        %v2136 = vadd.f32 %v1112, 1e-09
        %v2137 = vadd.f32 %v1113, 1e-09
        %v2138 = vadd.f32 %v1114, 1e-09
        %v2139 = vadd.f32 %v1115, 1e-09
        %v2140 = vadd.f32 %v1116, 1e-09
        %v2141 = vadd.f32 %v1117, 1e-09
        %v2142 = vadd.f32 %v1118, 1e-09
        %v2143 = vadd.f32 %v1119, 1e-09
        %v2144 = vadd.f32 %v1120, 1e-09
        %v2145 = vadd.f32 %v1121, 1e-09
        %v2146 = vadd.f32 %v1122, 1e-09
        %v2147 = vadd.f32 %v1123, 1e-09
        %v2148 = vadd.f32 %v1124, 1e-09
        %v2149 = vadd.f32 %v1125, 1e-09
        %v2150 = vadd.f32 %v1126, 1e-09
        %v2151 = vadd.f32 %v1127, 1e-09
        %v2152 = vadd.f32 %v1128, 1e-09
        %v2153 = vadd.f32 %v1129, 1e-09
        %v2154 = vadd.f32 %v1130, 1e-09
        %v2155 = vadd.f32 %v1131, 1e-09
        %v2156 = vadd.f32 %v1132, 1e-09
        %v2157 = vadd.f32 %v1133, 1e-09
        %v2158 = vadd.f32 %v1134, 1e-09
        %v2159 = vadd.f32 %v1135, 1e-09
        %v2160 = vadd.f32 %v1136, 1e-09
        %v2161 = vadd.f32 %v1137, 1e-09
        %v2162 = vadd.f32 %v1138, 1e-09
        %v2163 = vadd.f32 %v1139, 1e-09
        %v2164 = vadd.f32 %v1140, 1e-09
        %v2165 = vadd.f32 %v1141, 1e-09
        %v2166 = vadd.f32 %v1142, 1e-09
        %v2167 = vadd.f32 %v1143, 1e-09
        %v2168 = vadd.f32 %v1144, 1e-09
        %v2169 = vadd.f32 %v1145, 1e-09
        %v2170 = vadd.f32 %v1146, 1e-09
        %v2171 = vadd.f32 %v1147, 1e-09
        %v2172 = vadd.f32 %v1148, 1e-09
        %v2173 = vadd.f32 %v1149, 1e-09
        %v2174 = vadd.f32 %v1150, 1e-09
        %v2175 = vadd.f32 %v1151, 1e-09
        %v2176 = vadd.f32 %v1152, 1e-09
        %v2177 = vadd.f32 %v1153, 1e-09
        %v2178 = vadd.f32 %v1154, 1e-09
        %v2179 = vadd.f32 %v1155, 1e-09
        %v2180 = vadd.f32 %v1156, 1e-09
        %v2181 = vadd.f32 %v1157, 1e-09
        %v2182 = vadd.f32 %v1158, 1e-09
        %v2183 = vadd.f32 %v1159, 1e-09
        %v2184 = vadd.f32 %v1160, 1e-09
        %v2185 = vadd.f32 %v1161, 1e-09
        %v2186 = vadd.f32 %v1162, 1e-09
        %v2187 = vadd.f32 %v1163, 1e-09
        %v2188 = vlog2.pop %v1164
        %v2189 = vmul.f32 %v2188, 0.6931472
        %v2190 = vlog2.pop %v1165
        %v2191 = vmul.f32 %v2190, 0.6931472
        %v2192 = vlog2.pop %v1166
        %v2193 = vmul.f32 %v2192, 0.6931472
        %v2194 = vlog2.pop %v1167
        %v2195 = vmul.f32 %v2194, 0.6931472
        %v2196 = vlog2.pop %v1168
        %v2197 = vmul.f32 %v2196, 0.6931472
        %v2198 = vlog2.pop %v1169
        %v2199 = vmul.f32 %v2198, 0.6931472
        %v2200 = vlog2.pop %v1170
        %v2201 = vmul.f32 %v2200, 0.6931472
        %v2202 = vlog2.pop %v1171
        %v2203 = vmul.f32 %v2202, 0.6931472
        %v2204 = vlog2.pop %v1172
        %v2205 = vmul.f32 %v2204, 0.6931472
        %v2206 = vlog2.pop %v1173
        %v2207 = vmul.f32 %v2206, 0.6931472
        %v2208 = vlog2.pop %v1174
        %v2209 = vmul.f32 %v2208, 0.6931472
        %v2210 = vlog2.pop %v1175
        %v2211 = vmul.f32 %v2210, 0.6931472
        %v2212 = vlog2.pop %v1176
        %v2213 = vmul.f32 %v2212, 0.6931472
        %v2214 = vlog2.pop %v1177
        %v2215 = vmul.f32 %v2214, 0.6931472
        %v2216 = vlog2.pop %v1178
        %v2217 = vmul.f32 %v2216, 0.6931472
        %v2218 = vlog2.pop %v1179
        %v2219 = vmul.f32 %v2218, 0.6931472
        %v2220 = vlog2.pop %v1180
        %v2221 = vmul.f32 %v2220, 0.6931472
        %v2222 = vlog2.pop %v1181
        %v2223 = vmul.f32 %v2222, 0.6931472
        %v2224 = vlog2.pop %v1182
        %v2225 = vmul.f32 %v2224, 0.6931472
        %v2226 = vlog2.pop %v1183
        %v2227 = vmul.f32 %v2226, 0.6931472
        %v2228 = vlog2.pop %v1184
        %v2229 = vmul.f32 %v2228, 0.6931472
        %v2230 = vlog2.pop %v1185
        %v2231 = vmul.f32 %v2230, 0.6931472
        %v2232 = vlog2.pop %v1186
        %v2233 = vmul.f32 %v2232, 0.6931472
        %v2234 = vlog2.pop %v1187
        %v2235 = vmul.f32 %v2234, 0.6931472
        %v2236 = vlog2.pop %v1188
        %v2237 = vmul.f32 %v2236, 0.6931472
        %v2238 = vlog2.pop %v1189
        %v2239 = vmul.f32 %v2238, 0.6931472
        %v2240 = vlog2.pop %v1190
        %v2241 = vmul.f32 %v2240, 0.6931472
        %v2242 = vlog2.pop %v1191
        %v2243 = vmul.f32 %v2242, 0.6931472
        %v2244 = vlog2.pop %v1192
        %v2245 = vmul.f32 %v2244, 0.6931472
        %v2246 = vlog2.pop %v1193
        %v2247 = vmul.f32 %v2246, 0.6931472
        %v2248 = vlog2.pop %v1194
        %v2249 = vmul.f32 %v2248, 0.6931472
        %v2250 = vlog2.pop %v1195
        %v2251 = vmul.f32 %v2250, 0.6931472
        %v2252 = vlog2.pop %v1196
        %v2253 = vmul.f32 %v2252, 0.6931472
        %v2254 = vlog2.pop %v1197
        %v2255 = vmul.f32 %v2254, 0.6931472
        %v2256 = vlog2.pop %v1198
        %v2257 = vmul.f32 %v2256, 0.6931472
        %v2258 = vlog2.pop %v1199
        %v2259 = vmul.f32 %v2258, 0.6931472
        %v2260 = vlog2.pop %v1200
        %v2261 = vmul.f32 %v2260, 0.6931472
        %v2262 = vlog2.pop %v1201
        %v2263 = vmul.f32 %v2262, 0.6931472
        %v2264 = vlog2.pop %v1202
        %v2265 = vmul.f32 %v2264, 0.6931472
        %v2266 = vlog2.pop %v1203
        %v2267 = vmul.f32 %v2266, 0.6931472
        %v2268 = vlog2.pop %v1204
        %v2269 = vmul.f32 %v2268, 0.6931472
        %v2270 = vlog2.pop %v1205
        %v2271 = vmul.f32 %v2270, 0.6931472
        %v2272 = vlog2.pop %v1206
        %v2273 = vmul.f32 %v2272, 0.6931472
        %v2274 = vlog2.pop %v1207
        %v2275 = vmul.f32 %v2274, 0.6931472
        %v2276 = vlog2.pop %v1208
        %v2277 = vmul.f32 %v2276, 0.6931472
        %v2278 = vlog2.pop %v1209
        %v2279 = vmul.f32 %v2278, 0.6931472
        %v2280 = vlog2.pop %v1210
        %v2281 = vmul.f32 %v2280, 0.6931472
        %v2282 = vlog2.pop %v1211
        %v2283 = vmul.f32 %v2282, 0.6931472
        %v2284 = vlog2.pop %v1212
        %v2285 = vmul.f32 %v2284, 0.6931472
        %v2286 = vlog2.pop %v1213
        %v2287 = vmul.f32 %v2286, 0.6931472
        %v2288 = vlog2.pop %v1214
        %v2289 = vmul.f32 %v2288, 0.6931472
        %v2290 = vlog2.pop %v1215
        %v2291 = vmul.f32 %v2290, 0.6931472
        %v2292 = vlog2.pop %v1216
        %v2293 = vmul.f32 %v2292, 0.6931472
        %v2294 = vlog2.pop %v1217
        %v2295 = vmul.f32 %v2294, 0.6931472
        %v2296 = vlog2.pop %v1218
        %v2297 = vmul.f32 %v2296, 0.6931472
        %v2298 = vlog2.pop %v1219
        %v2299 = vmul.f32 %v2298, 0.6931472
        %v2300 = vlog2.pop %v1220
        %v2301 = vmul.f32 %v2300, 0.6931472
        %v2302 = vlog2.pop %v1221
        %v2303 = vmul.f32 %v2302, 0.6931472
        %v2304 = vlog2.pop %v1222
        %v2305 = vmul.f32 %v2304, 0.6931472
        %v2306 = vlog2.pop %v1223
        %v2307 = vmul.f32 %v2306, 0.6931472
        %v2308 = vlog2.pop %v1224
        %v2309 = vmul.f32 %v2308, 0.6931472
        %v2310 = vlog2.pop %v1225
        %v2311 = vmul.f32 %v2310, 0.6931472
        %v2312 = vlog2.pop %v1226
        %v2313 = vmul.f32 %v2312, 0.6931472
        %v2314 = vlog2.pop %v1227
        %v2315 = vmul.f32 %v2314, 0.6931472
        %v2316 = vlog2.pop %v1228
        %v2317 = vmul.f32 %v2316, 0.6931472
        %v2318 = vlog2.pop %v1229
        %v2319 = vmul.f32 %v2318, 0.6931472
        %v2320 = vlog2.pop %v1230
        %v2321 = vmul.f32 %v2320, 0.6931472
        %v2322 = vlog2.pop %v1231
        %v2323 = vmul.f32 %v2322, 0.6931472
        %v2324 = vlog2.pop %v1232
        %v2325 = vmul.f32 %v2324, 0.6931472
        %v2326 = vlog2.pop %v1233
        %v2327 = vmul.f32 %v2326, 0.6931472
        %v2328 = vlog2.pop %v1234
        %v2329 = vmul.f32 %v2328, 0.6931472
        %v2330 = vlog2.pop %v1235
        %v2331 = vmul.f32 %v2330, 0.6931472
        %v2332 = vlog2.pop %v1236
        %v2333 = vmul.f32 %v2332, 0.6931472
        %v2334 = vlog2.pop %v1237
        %v2335 = vmul.f32 %v2334, 0.6931472
        %v2336 = vlog2.pop %v1238
        %v2337 = vmul.f32 %v2336, 0.6931472
        %v2338 = vlog2.pop %v1239
        %v2339 = vmul.f32 %v2338, 0.6931472
        %v2340 = vlog2.pop %v1240
        %v2341 = vmul.f32 %v2340, 0.6931472
        %v2342 = vlog2.pop %v1241
        %v2343 = vmul.f32 %v2342, 0.6931472
        %v2344 = vlog2.pop %v1242
        %v2345 = vmul.f32 %v2344, 0.6931472
        %v2346 = vlog2.pop %v1243
        %v2347 = vmul.f32 %v2346, 0.6931472
        %v2348 = vlog2.pop %v1244
        %v2349 = vmul.f32 %v2348, 0.6931472
        %v2350 = vlog2.pop %v1245
        %v2351 = vmul.f32 %v2350, 0.6931472
        %v2352 = vlog2.pop %v1246
        %v2353 = vmul.f32 %v2352, 0.6931472
        %v2354 = vlog2.pop %v1247
        %v2355 = vmul.f32 %v2354, 0.6931472
        %v2356 = vlog2.pop %v1248
        %v2357 = vmul.f32 %v2356, 0.6931472
        %v2358 = vlog2.pop %v1249
        %v2359 = vmul.f32 %v2358, 0.6931472
        %v2360 = vlog2.pop %v1250
        %v2361 = vmul.f32 %v2360, 0.6931472
        %v2362 = vlog2.pop %v1251
        %v2363 = vmul.f32 %v2362, 0.6931472
        %v2364 = vlog2.pop %v1252
        %v2365 = vmul.f32 %v2364, 0.6931472
        %v2366 = vlog2.pop %v1253
        %v2367 = vmul.f32 %v2366, 0.6931472
        %v2368 = vlog2.pop %v1254
        %v2369 = vmul.f32 %v2368, 0.6931472
        %v2370 = vlog2.pop %v1255
        %v2371 = vmul.f32 %v2370, 0.6931472
        %v2372 = vlog2.pop %v1256
        %v2373 = vmul.f32 %v2372, 0.6931472
        %v2374 = vlog2.pop %v1257
        %v2375 = vmul.f32 %v2374, 0.6931472
        %v2376 = vlog2.pop %v1258
        %v2377 = vmul.f32 %v2376, 0.6931472
        %v2378 = vlog2.pop %v1259
        %v2379 = vmul.f32 %v2378, 0.6931472
        %v2380 = vlog2.pop %v1260
        %v2381 = vmul.f32 %v2380, 0.6931472
        %v2382 = vlog2.pop %v1261
        %v2383 = vmul.f32 %v2382, 0.6931472
        %v2384 = vlog2.pop %v1262
        %v2385 = vmul.f32 %v2384, 0.6931472
        %v2386 = vlog2.pop %v1263
        %v2387 = vmul.f32 %v2386, 0.6931472
        %v2388 = vlog2.pop %v1264
        %v2389 = vmul.f32 %v2388, 0.6931472
        %v2390 = vlog2.pop %v1265
        %v2391 = vmul.f32 %v2390, 0.6931472
        %v2392 = vlog2.pop %v1266
        %v2393 = vmul.f32 %v2392, 0.6931472
        %v2394 = vlog2.pop %v1267
        %v2395 = vmul.f32 %v2394, 0.6931472
        %v2396 = vlog2.pop %v1268
        %v2397 = vmul.f32 %v2396, 0.6931472
        %v2398 = vlog2.pop %v1269
        %v2399 = vmul.f32 %v2398, 0.6931472
        %v2400 = vlog2.pop %v1270
        %v2401 = vmul.f32 %v2400, 0.6931472
        %v2402 = vlog2.pop %v1271
        %v2403 = vmul.f32 %v2402, 0.6931472
        %v2404 = vlog2.pop %v1272
        %v2405 = vmul.f32 %v2404, 0.6931472
        %v2406 = vlog2.pop %v1273
        %v2407 = vmul.f32 %v2406, 0.6931472
        %v2408 = vlog2.pop %v1274
        %v2409 = vmul.f32 %v2408, 0.6931472
        %v2410 = vlog2.pop %v1275
        %v2411 = vmul.f32 %v2410, 0.6931472
        %v2412 = vlog2.pop %v1276
        %v2413 = vmul.f32 %v2412, 0.6931472
        %v2414 = vlog2.pop %v1277
        %v2415 = vmul.f32 %v2414, 0.6931472
        %v2416 = vlog2.pop %v1278
        %v2417 = vmul.f32 %v2416, 0.6931472
        %v2418 = vlog2.pop %v1279
        %v2419 = vmul.f32 %v2418, 0.6931472
        %v2420 = vlog2.pop %v1280
        %v2421 = vmul.f32 %v2420, 0.6931472
        %v2422 = vlog2.pop %v1281
        %v2423 = vmul.f32 %v2422, 0.6931472
        %v2424 = vlog2.pop %v1282
        %v2425 = vmul.f32 %v2424, 0.6931472
        %v2426 = vlog2.pop %v1283
        %v2427 = vmul.f32 %v2426, 0.6931472
        %v2428 = vlog2.pop %v1284
        %v2429 = vmul.f32 %v2428, 0.6931472
        %v2430 = vlog2.pop %v1285
        %v2431 = vmul.f32 %v2430, 0.6931472
        %v2432 = vlog2.pop %v1286
        %v2433 = vmul.f32 %v2432, 0.6931472
        %v2434 = vlog2.pop %v1287
        %v2435 = vmul.f32 %v2434, 0.6931472
        %v2436 = vlog2.pop %v1288
        %v2437 = vmul.f32 %v2436, 0.6931472
        %v2438 = vlog2.pop %v1289
        %v2439 = vmul.f32 %v2438, 0.6931472
        %v2440 = vlog2.pop %v1290
        %v2441 = vmul.f32 %v2440, 0.6931472
        %v2442 = vlog2.pop %v1291
        %v2443 = vmul.f32 %v2442, 0.6931472
        %v2444 = vlog2.pop %v1292
        %v2445 = vmul.f32 %v2444, 0.6931472
        %v2446 = vlog2.pop %v1293
        %v2447 = vmul.f32 %v2446, 0.6931472
        %v2448 = vlog2.pop %v1294
        %v2449 = vmul.f32 %v2448, 0.6931472
        %v2450 = vlog2.pop %v1295
        %v2451 = vmul.f32 %v2450, 0.6931472
        %v2452 = vlog2.pop %v1296
        %v2453 = vmul.f32 %v2452, 0.6931472
        %v2454 = vlog2.pop %v1297
        %v2455 = vmul.f32 %v2454, 0.6931472
        %v2456 = vlog2.pop %v1298
        %v2457 = vmul.f32 %v2456, 0.6931472
        %v2458 = vlog2.pop %v1299
        %v2459 = vmul.f32 %v2458, 0.6931472
        %v2460 = vlog2.pop %v1300
        %v2461 = vmul.f32 %v2460, 0.6931472
        %v2462 = vlog2.pop %v1301
        %v2463 = vmul.f32 %v2462, 0.6931472
        %v2464 = vlog2.pop %v1302
        %v2465 = vmul.f32 %v2464, 0.6931472
        %v2466 = vlog2.pop %v1303
        %v2467 = vmul.f32 %v2466, 0.6931472
        %v2468 = vlog2.pop %v1304
        %v2469 = vmul.f32 %v2468, 0.6931472
        %v2470 = vlog2.pop %v1305
        %v2471 = vmul.f32 %v2470, 0.6931472
        %v2472 = vlog2.pop %v1306
        %v2473 = vmul.f32 %v2472, 0.6931472
        %v2474 = vlog2.pop %v1307
        %v2475 = vmul.f32 %v2474, 0.6931472
        %v2476 = vlog2.pop %v1308
        %v2477 = vmul.f32 %v2476, 0.6931472
        %v2478 = vlog2.pop %v1309
        %v2479 = vmul.f32 %v2478, 0.6931472
        %v2480 = vlog2.pop %v1310
        %v2481 = vmul.f32 %v2480, 0.6931472
        %v2482 = vlog2.pop %v1311
        %v2483 = vmul.f32 %v2482, 0.6931472
        %v2484 = vlog2.pop %v1312
        %v2485 = vmul.f32 %v2484, 0.6931472
        %v2486 = vlog2.pop %v1313
        %v2487 = vmul.f32 %v2486, 0.6931472
        %v2488 = vlog2.pop %v1314
        %v2489 = vmul.f32 %v2488, 0.6931472
        %v2490 = vlog2.pop %v1315
        %v2491 = vmul.f32 %v2490, 0.6931472
        %v2492 = vlog2.pop %v1316
        %v2493 = vmul.f32 %v2492, 0.6931472
        %v2494 = vlog2.pop %v1317
        %v2495 = vmul.f32 %v2494, 0.6931472
        %v2496 = vlog2.pop %v1318
        %v2497 = vmul.f32 %v2496, 0.6931472
        %v2498 = vlog2.pop %v1319
        %v2499 = vmul.f32 %v2498, 0.6931472
        %v2500 = vlog2.pop %v1320
        %v2501 = vmul.f32 %v2500, 0.6931472
        %v2502 = vlog2.pop %v1321
        %v2503 = vmul.f32 %v2502, 0.6931472
        %v2504 = vlog2.pop %v1322
        %v2505 = vmul.f32 %v2504, 0.6931472
        %v2506 = vlog2.pop %v1323
        %v2507 = vmul.f32 %v2506, 0.6931472
        %v2508 = vlog2.pop %v1324
        %v2509 = vmul.f32 %v2508, 0.6931472
        %v2510 = vlog2.pop %v1325
        %v2511 = vmul.f32 %v2510, 0.6931472
        %v2512 = vlog2.pop %v1326
        %v2513 = vmul.f32 %v2512, 0.6931472
        %v2514 = vlog2.pop %v1327
        %v2515 = vmul.f32 %v2514, 0.6931472
        %v2516 = vlog2.pop %v1328
        %v2517 = vmul.f32 %v2516, 0.6931472
        %v2518 = vlog2.pop %v1329
        %v2519 = vmul.f32 %v2518, 0.6931472
        %v2520 = vlog2.pop %v1330
        %v2521 = vmul.f32 %v2520, 0.6931472
        %v2522 = vlog2.pop %v1331
        %v2523 = vmul.f32 %v2522, 0.6931472
        %v2524 = vlog2.pop %v1332
        %v2525 = vmul.f32 %v2524, 0.6931472
        %v2526 = vlog2.pop %v1333
        %v2527 = vmul.f32 %v2526, 0.6931472
        %v2528 = vlog2.pop %v1334
        %v2529 = vmul.f32 %v2528, 0.6931472
        %v2530 = vlog2.pop %v1335
        %v2531 = vmul.f32 %v2530, 0.6931472
        %v2532 = vlog2.pop %v1336
        %v2533 = vmul.f32 %v2532, 0.6931472
        %v2534 = vlog2.pop %v1337
        %v2535 = vmul.f32 %v2534, 0.6931472
        %v2536 = vlog2.pop %v1338
        %v2537 = vmul.f32 %v2536, 0.6931472
        %v2538 = vlog2.pop %v1339
        %v2539 = vmul.f32 %v2538, 0.6931472
        %v2540 = vlog2.pop %v1340
        %v2541 = vmul.f32 %v2540, 0.6931472
        %v2542 = vlog2.pop %v1341
        %v2543 = vmul.f32 %v2542, 0.6931472
        %v2544 = vlog2.pop %v1342
        %v2545 = vmul.f32 %v2544, 0.6931472
        %v2546 = vlog2.pop %v1343
        %v2547 = vmul.f32 %v2546, 0.6931472
        %v2548 = vlog2.pop %v1344
        %v2549 = vmul.f32 %v2548, 0.6931472
        %v2550 = vlog2.pop %v1345
        %v2551 = vmul.f32 %v2550, 0.6931472
        %v2552 = vlog2.pop %v1346
        %v2553 = vmul.f32 %v2552, 0.6931472
        %v2554 = vlog2.pop %v1347
        %v2555 = vmul.f32 %v2554, 0.6931472
        %v2556 = vlog2.pop %v1348
        %v2557 = vmul.f32 %v2556, 0.6931472
        %v2558 = vlog2.pop %v1349
        %v2559 = vmul.f32 %v2558, 0.6931472
        %v2560 = vlog2.pop %v1350
        %v2561 = vmul.f32 %v2560, 0.6931472
        %v2562 = vlog2.pop %v1351
        %v2563 = vmul.f32 %v2562, 0.6931472
        %v2564 = vlog2.pop %v1352
        %v2565 = vmul.f32 %v2564, 0.6931472
        %v2566 = vlog2.pop %v1353
        %v2567 = vmul.f32 %v2566, 0.6931472
        %v2568 = vlog2.pop %v1354
        %v2569 = vmul.f32 %v2568, 0.6931472
        %v2570 = vlog2.pop %v1355
        %v2571 = vmul.f32 %v2570, 0.6931472
        %v2572 = vlog2.pop %v1356
        %v2573 = vmul.f32 %v2572, 0.6931472
        %v2574 = vlog2.pop %v1357
        %v2575 = vmul.f32 %v2574, 0.6931472
        %v2576 = vlog2.pop %v1358
        %v2577 = vmul.f32 %v2576, 0.6931472
        %v2578 = vlog2.pop %v1359
        %v2579 = vmul.f32 %v2578, 0.6931472
        %v2580 = vlog2.pop %v1360
        %v2581 = vmul.f32 %v2580, 0.6931472
        %v2582 = vlog2.pop %v1361
        %v2583 = vmul.f32 %v2582, 0.6931472
        %v2584 = vlog2.pop %v1362
        %v2585 = vmul.f32 %v2584, 0.6931472
        %v2586 = vlog2.pop %v1363
        %v2587 = vmul.f32 %v2586, 0.6931472
        %v2588 = vlog2.pop %v1364
        %v2589 = vmul.f32 %v2588, 0.6931472
        %v2590 = vlog2.pop %v1365
        %v2591 = vmul.f32 %v2590, 0.6931472
        %v2592 = vlog2.pop %v1366
        %v2593 = vmul.f32 %v2592, 0.6931472
        %v2594 = vlog2.pop %v1367
        %v2595 = vmul.f32 %v2594, 0.6931472
        %v2596 = vlog2.pop %v1368
        %v2597 = vmul.f32 %v2596, 0.6931472
        %v2598 = vlog2.pop %v1369
        %v2599 = vmul.f32 %v2598, 0.6931472
        %v2600 = vlog2.pop %v1370
        %v2601 = vmul.f32 %v2600, 0.6931472
        %v2602 = vlog2.pop %v1371
        %v2603 = vmul.f32 %v2602, 0.6931472
        %v2604 = vlog2.pop %v1372
        %v2605 = vmul.f32 %v2604, 0.6931472
        %v2606 = vlog2.pop %v1373
        %v2607 = vmul.f32 %v2606, 0.6931472
        %v2608 = vlog2.pop %v1374
        %v2609 = vmul.f32 %v2608, 0.6931472
        %v2610 = vlog2.pop %v1375
        %v2611 = vmul.f32 %v2610, 0.6931472
        %v2612 = vlog2.pop %v1376
        %v2613 = vmul.f32 %v2612, 0.6931472
        %v2614 = vlog2.pop %v1377
        %v2615 = vmul.f32 %v2614, 0.6931472
        %v2616 = vlog2.pop %v1378
        %v2617 = vmul.f32 %v2616, 0.6931472
        %v2618 = vlog2.pop %v1379
        %v2619 = vmul.f32 %v2618, 0.6931472
        %v2620 = vlog2.pop %v1380
        %v2621 = vmul.f32 %v2620, 0.6931472
        %v2622 = vlog2.pop %v1381
        %v2623 = vmul.f32 %v2622, 0.6931472
        %v2624 = vlog2.pop %v1382
        %v2625 = vmul.f32 %v2624, 0.6931472
        %v2626 = vlog2.pop %v1383
        %v2627 = vmul.f32 %v2626, 0.6931472
        %v2628 = vlog2.pop %v1384
        %v2629 = vmul.f32 %v2628, 0.6931472
        %v2630 = vlog2.pop %v1385
        %v2631 = vmul.f32 %v2630, 0.6931472
        %v2632 = vlog2.pop %v1386
        %v2633 = vmul.f32 %v2632, 0.6931472
        %v2634 = vlog2.pop %v1387
        %v2635 = vmul.f32 %v2634, 0.6931472
        %v2636 = vlog2.pop %v1388
        %v2637 = vmul.f32 %v2636, 0.6931472
        %v2638 = vlog2.pop %v1389
        %v2639 = vmul.f32 %v2638, 0.6931472
        %v2640 = vlog2.pop %v1390
        %v2641 = vmul.f32 %v2640, 0.6931472
        %v2642 = vlog2.pop %v1391
        %v2643 = vmul.f32 %v2642, 0.6931472
        %v2644 = vlog2.pop %v1392
        %v2645 = vmul.f32 %v2644, 0.6931472
        %v2646 = vlog2.pop %v1393
        %v2647 = vmul.f32 %v2646, 0.6931472
        %v2648 = vlog2.pop %v1394
        %v2649 = vmul.f32 %v2648, 0.6931472
        %v2650 = vlog2.pop %v1395
        %v2651 = vmul.f32 %v2650, 0.6931472
        %v2652 = vlog2.pop %v1396
        %v2653 = vmul.f32 %v2652, 0.6931472
        %v2654 = vlog2.pop %v1397
        %v2655 = vmul.f32 %v2654, 0.6931472
        %v2656 = vlog2.pop %v1398
        %v2657 = vmul.f32 %v2656, 0.6931472
        %v2658 = vlog2.pop %v1399
        %v2659 = vmul.f32 %v2658, 0.6931472
        %v2660 = vlog2.pop %v1400
        %v2661 = vmul.f32 %v2660, 0.6931472
        %v2662 = vlog2.pop %v1401
        %v2663 = vmul.f32 %v2662, 0.6931472
        %v2664 = vlog2.pop %v1402
        %v2665 = vmul.f32 %v2664, 0.6931472
        %v2666 = vlog2.pop %v1403
        %v2667 = vmul.f32 %v2666, 0.6931472
        %v2668 = vlog2.pop %v1404
        %v2669 = vmul.f32 %v2668, 0.6931472
        %v2670 = vlog2.pop %v1405
        %v2671 = vmul.f32 %v2670, 0.6931472
        %v2672 = vlog2.pop %v1406
        %v2673 = vmul.f32 %v2672, 0.6931472
        %v2674 = vlog2.pop %v1407
        %v2675 = vmul.f32 %v2674, 0.6931472
        %v2676 = vlog2.pop %v1408
        %v2677 = vmul.f32 %v2676, 0.6931472
        %v2678 = vlog2.pop %v1409
        %v2679 = vmul.f32 %v2678, 0.6931472
        %v2680 = vlog2.pop %v1410
        %v2681 = vmul.f32 %v2680, 0.6931472
        %v2682 = vlog2.pop %v1411
        %v2683 = vmul.f32 %v2682, 0.6931472
        %v2684 = vlog2.pop %v1412
        %v2685 = vmul.f32 %v2684, 0.6931472
        %v2686 = vlog2.pop %v1413
        %v2687 = vmul.f32 %v2686, 0.6931472
        %v2688 = vlog2.pop %v1414
        %v2689 = vmul.f32 %v2688, 0.6931472
        %v2690 = vlog2.pop %v1415
        %v2691 = vmul.f32 %v2690, 0.6931472
        %v2692 = vlog2.pop %v1416
        %v2693 = vmul.f32 %v2692, 0.6931472
        %v2694 = vlog2.pop %v1417
        %v2695 = vmul.f32 %v2694, 0.6931472
        %v2696 = vlog2.pop %v1418
        %v2697 = vmul.f32 %v2696, 0.6931472
        %v2698 = vlog2.pop %v1419
        %v2699 = vmul.f32 %v2698, 0.6931472
        %v2700 = vlog2.pop %v1420
        %v2701 = vmul.f32 %v2700, 0.6931472
        %v2702 = vlog2.pop %v1421
        %v2703 = vmul.f32 %v2702, 0.6931472
        %v2704 = vlog2.pop %v1422
        %v2705 = vmul.f32 %v2704, 0.6931472
        %v2706 = vlog2.pop %v1423
        %v2707 = vmul.f32 %v2706, 0.6931472
        %v2708 = vlog2.pop %v1424
        %v2709 = vmul.f32 %v2708, 0.6931472
        %v2710 = vlog2.pop %v1425
        %v2711 = vmul.f32 %v2710, 0.6931472
        %v2712 = vlog2.pop %v1426
        %v2713 = vmul.f32 %v2712, 0.6931472
        %v2714 = vlog2.pop %v1427
        %v2715 = vmul.f32 %v2714, 0.6931472
        %v2716 = vlog2.pop %v1428
        %v2717 = vmul.f32 %v2716, 0.6931472
        %v2718 = vlog2.pop %v1429
        %v2719 = vmul.f32 %v2718, 0.6931472
        %v2720 = vlog2.pop %v1430
        %v2721 = vmul.f32 %v2720, 0.6931472
        %v2722 = vlog2.pop %v1431
        %v2723 = vmul.f32 %v2722, 0.6931472
        %v2724 = vlog2.pop %v1432
        %v2725 = vmul.f32 %v2724, 0.6931472
        %v2726 = vlog2.pop %v1433
        %v2727 = vmul.f32 %v2726, 0.6931472
        %v2728 = vlog2.pop %v1434
        %v2729 = vmul.f32 %v2728, 0.6931472
        %v2730 = vlog2.pop %v1435
        %v2731 = vmul.f32 %v2730, 0.6931472
        %v2732 = vlog2.pop %v1436
        %v2733 = vmul.f32 %v2732, 0.6931472
        %v2734 = vlog2.pop %v1437
        %v2735 = vmul.f32 %v2734, 0.6931472
        %v2736 = vlog2.pop %v1438
        %v2737 = vmul.f32 %v2736, 0.6931472
        %v2738 = vlog2.pop %v1439
        %v2739 = vmul.f32 %v2738, 0.6931472
        %v2740 = vlog2.pop %v1440
        %v2741 = vmul.f32 %v2740, 0.6931472
        %v2742 = vlog2.pop %v1441
        %v2743 = vmul.f32 %v2742, 0.6931472
        %v2744 = vlog2.pop %v1442
        %v2745 = vmul.f32 %v2744, 0.6931472
        %v2746 = vlog2.pop %v1443
        %v2747 = vmul.f32 %v2746, 0.6931472
        %v2748 = vlog2.pop %v1444
        %v2749 = vmul.f32 %v2748, 0.6931472
        %v2750 = vlog2.pop %v1445
        %v2751 = vmul.f32 %v2750, 0.6931472
        %v2752 = vlog2.pop %v1446
        %v2753 = vmul.f32 %v2752, 0.6931472
        %v2754 = vlog2.pop %v1447
        %v2755 = vmul.f32 %v2754, 0.6931472
        %v2756 = vlog2.pop %v1448
        %v2757 = vmul.f32 %v2756, 0.6931472
        %v2758 = vlog2.pop %v1449
        %v2759 = vmul.f32 %v2758, 0.6931472
        %v2760 = vlog2.pop %v1450
        %v2761 = vmul.f32 %v2760, 0.6931472
        %v2762 = vlog2.pop %v1451
        %v2763 = vmul.f32 %v2762, 0.6931472
        %v2764 = vlog2.pop %v1452
        %v2765 = vmul.f32 %v2764, 0.6931472
        %v2766 = vlog2.pop %v1453
        %v2767 = vmul.f32 %v2766, 0.6931472
        %v2768 = vlog2.pop %v1454
        %v2769 = vmul.f32 %v2768, 0.6931472
        %v2770 = vlog2.pop %v1455
        %v2771 = vmul.f32 %v2770, 0.6931472
        %v2772 = vlog2.pop %v1456
        %v2773 = vmul.f32 %v2772, 0.6931472
        %v2774 = vlog2.pop %v1457
        %v2775 = vmul.f32 %v2774, 0.6931472
        %v2776 = vlog2.pop %v1458
        %v2777 = vmul.f32 %v2776, 0.6931472
        %v2778 = vlog2.pop %v1459
        %v2779 = vmul.f32 %v2778, 0.6931472
        %v2780 = vlog2.pop %v1460
        %v2781 = vmul.f32 %v2780, 0.6931472
        %v2782 = vlog2.pop %v1461
        %v2783 = vmul.f32 %v2782, 0.6931472
        %v2784 = vlog2.pop %v1462
        %v2785 = vmul.f32 %v2784, 0.6931472
        %v2786 = vlog2.pop %v1463
        %v2787 = vmul.f32 %v2786, 0.6931472
        %v2788 = vlog2.pop %v1464
        %v2789 = vmul.f32 %v2788, 0.6931472
        %v2790 = vlog2.pop %v1465
        %v2791 = vmul.f32 %v2790, 0.6931472
        %v2792 = vlog2.pop %v1466
        %v2793 = vmul.f32 %v2792, 0.6931472
        %v2794 = vlog2.pop %v1467
        %v2795 = vmul.f32 %v2794, 0.6931472
        %v2796 = vlog2.pop %v1468
        %v2797 = vmul.f32 %v2796, 0.6931472
        %v2798 = vlog2.pop %v1469
        %v2799 = vmul.f32 %v2798, 0.6931472
        %v2800 = vlog2.pop %v1470
        %v2801 = vmul.f32 %v2800, 0.6931472
        %v2802 = vlog2.pop %v1471
        %v2803 = vmul.f32 %v2802, 0.6931472
        %v2804 = vlog2.pop %v1472
        %v2805 = vmul.f32 %v2804, 0.6931472
        %v2806 = vlog2.pop %v1473
        %v2807 = vmul.f32 %v2806, 0.6931472
        %v2808 = vlog2.pop %v1474
        %v2809 = vmul.f32 %v2808, 0.6931472
        %v2810 = vlog2.pop %v1475
        %v2811 = vmul.f32 %v2810, 0.6931472
        %v2812 = vlog2.pop %v1476
        %v2813 = vmul.f32 %v2812, 0.6931472
        %v2814 = vlog2.pop %v1477
        %v2815 = vmul.f32 %v2814, 0.6931472
        %v2816 = vlog2.pop %v1478
        %v2817 = vmul.f32 %v2816, 0.6931472
        %v2818 = vlog2.pop %v1479
        %v2819 = vmul.f32 %v2818, 0.6931472
        %v2820 = vlog2.pop %v1480
        %v2821 = vmul.f32 %v2820, 0.6931472
        %v2822 = vlog2.pop %v1481
        %v2823 = vmul.f32 %v2822, 0.6931472
        %v2824 = vlog2.pop %v1482
        %v2825 = vmul.f32 %v2824, 0.6931472
        %v2826 = vlog2.pop %v1483
        %v2827 = vmul.f32 %v2826, 0.6931472
        %v2828 = vlog2.pop %v1484
        %v2829 = vmul.f32 %v2828, 0.6931472
        %v2830 = vlog2.pop %v1485
        %v2831 = vmul.f32 %v2830, 0.6931472
        %v2832 = vlog2.pop %v1486
        %v2833 = vmul.f32 %v2832, 0.6931472
        %v2834 = vlog2.pop %v1487
        %v2835 = vmul.f32 %v2834, 0.6931472
        %v2836 = vlog2.pop %v1488
        %v2837 = vmul.f32 %v2836, 0.6931472
        %v2838 = vlog2.pop %v1489
        %v2839 = vmul.f32 %v2838, 0.6931472
        %v2840 = vlog2.pop %v1490
        %v2841 = vmul.f32 %v2840, 0.6931472
        %v2842 = vlog2.pop %v1491
        %v2843 = vmul.f32 %v2842, 0.6931472
        %v2844 = vlog2.pop %v1492
        %v2845 = vmul.f32 %v2844, 0.6931472
        %v2846 = vlog2.pop %v1493
        %v2847 = vmul.f32 %v2846, 0.6931472
        %v2848 = vlog2.pop %v1494
        %v2849 = vmul.f32 %v2848, 0.6931472
        %v2850 = vlog2.pop %v1495
        %v2851 = vmul.f32 %v2850, 0.6931472
        %v2852 = vlog2.pop %v1496
        %v2853 = vmul.f32 %v2852, 0.6931472
        %v2854 = vlog2.pop %v1497
        %v2855 = vmul.f32 %v2854, 0.6931472
        %v2856 = vlog2.pop %v1498
        %v2857 = vmul.f32 %v2856, 0.6931472
        %v2858 = vlog2.pop %v1499
        %v2859 = vmul.f32 %v2858, 0.6931472
        %v2860 = vlog2.pop %v1500
        %v2861 = vmul.f32 %v2860, 0.6931472
        %v2862 = vlog2.pop %v1501
        %v2863 = vmul.f32 %v2862, 0.6931472
        %v2864 = vlog2.pop %v1502
        %v2865 = vmul.f32 %v2864, 0.6931472
        %v2866 = vlog2.pop %v1503
        %v2867 = vmul.f32 %v2866, 0.6931472
        %v2868 = vlog2.pop %v1504
        %v2869 = vmul.f32 %v2868, 0.6931472
        %v2870 = vlog2.pop %v1505
        %v2871 = vmul.f32 %v2870, 0.6931472
        %v2872 = vlog2.pop %v1506
        %v2873 = vmul.f32 %v2872, 0.6931472
        %v2874 = vlog2.pop %v1507
        %v2875 = vmul.f32 %v2874, 0.6931472
        %v2876 = vlog2.pop %v1508
        %v2877 = vmul.f32 %v2876, 0.6931472
        %v2878 = vlog2.pop %v1509
        %v2879 = vmul.f32 %v2878, 0.6931472
        %v2880 = vlog2.pop %v1510
        %v2881 = vmul.f32 %v2880, 0.6931472
        %v2882 = vlog2.pop %v1511
        %v2883 = vmul.f32 %v2882, 0.6931472
        %v2884 = vlog2.pop %v1512
        %v2885 = vmul.f32 %v2884, 0.6931472
        %v2886 = vlog2.pop %v1513
        %v2887 = vmul.f32 %v2886, 0.6931472
        %v2888 = vlog2.pop %v1514
        %v2889 = vmul.f32 %v2888, 0.6931472
        %v2890 = vlog2.pop %v1515
        %v2891 = vmul.f32 %v2890, 0.6931472
        %v2892 = vlog2.pop %v1516
        %v2893 = vmul.f32 %v2892, 0.6931472
        %v2894 = vlog2.pop %v1517
        %v2895 = vmul.f32 %v2894, 0.6931472
        %v2896 = vlog2.pop %v1518
        %v2897 = vmul.f32 %v2896, 0.6931472
        %v2898 = vlog2.pop %v1519
        %v2899 = vmul.f32 %v2898, 0.6931472
        %v2900 = vlog2.pop %v1520
        %v2901 = vmul.f32 %v2900, 0.6931472
        %v2902 = vlog2.pop %v1521
        %v2903 = vmul.f32 %v2902, 0.6931472
        %v2904 = vlog2.pop %v1522
        %v2905 = vmul.f32 %v2904, 0.6931472
        %v2906 = vlog2.pop %v1523
        %v2907 = vmul.f32 %v2906, 0.6931472
        %v2908 = vlog2.pop %v1524
        %v2909 = vmul.f32 %v2908, 0.6931472
        %v2910 = vlog2.pop %v1525
        %v2911 = vmul.f32 %v2910, 0.6931472
        %v2912 = vlog2.pop %v1526
        %v2913 = vmul.f32 %v2912, 0.6931472
        %v2914 = vlog2.pop %v1527
        %v2915 = vmul.f32 %v2914, 0.6931472
        %v2916 = vlog2.pop %v1528
        %v2917 = vmul.f32 %v2916, 0.6931472
        %v2918 = vlog2.pop %v1529
        %v2919 = vmul.f32 %v2918, 0.6931472
        %v2920 = vlog2.pop %v1530
        %v2921 = vmul.f32 %v2920, 0.6931472
        %v2922 = vlog2.pop %v1531
        %v2923 = vmul.f32 %v2922, 0.6931472
        %v2924 = vlog2.pop %v1532
        %v2925 = vmul.f32 %v2924, 0.6931472
        %v2926 = vlog2.pop %v1533
        %v2927 = vmul.f32 %v2926, 0.6931472
        %v2928 = vlog2.pop %v1534
        %v2929 = vmul.f32 %v2928, 0.6931472
        %v2930 = vlog2.pop %v1535
        %v2931 = vmul.f32 %v2930, 0.6931472
        %v2932 = vlog2.pop %v1536
        %v2933 = vmul.f32 %v2932, 0.6931472
        %v2934 = vlog2.pop %v1537
        %v2935 = vmul.f32 %v2934, 0.6931472
        %v2936 = vlog2.pop %v1538
        %v2937 = vmul.f32 %v2936, 0.6931472
        %v2938 = vlog2.pop %v1539
        %v2939 = vmul.f32 %v2938, 0.6931472
        %v2940 = vlog2.pop %v1540
        %v2941 = vmul.f32 %v2940, 0.6931472
        %v2942 = vlog2.pop %v1541
        %v2943 = vmul.f32 %v2942, 0.6931472
        %v2944 = vlog2.pop %v1542
        %v2945 = vmul.f32 %v2944, 0.6931472
        %v2946 = vlog2.pop %v1543
        %v2947 = vmul.f32 %v2946, 0.6931472
        %v2948 = vlog2.pop %v1544
        %v2949 = vmul.f32 %v2948, 0.6931472
        %v2950 = vlog2.pop %v1545
        %v2951 = vmul.f32 %v2950, 0.6931472
        %v2952 = vlog2.pop %v1546
        %v2953 = vmul.f32 %v2952, 0.6931472
        %v2954 = vlog2.pop %v1547
        %v2955 = vmul.f32 %v2954, 0.6931472
        %v2956 = vlog2.pop %v1548
        %v2957 = vmul.f32 %v2956, 0.6931472
        %v2958 = vlog2.pop %v1549
        %v2959 = vmul.f32 %v2958, 0.6931472
        %v2960 = vlog2.pop %v1550
        %v2961 = vmul.f32 %v2960, 0.6931472
        %v2962 = vlog2.pop %v1551
        %v2963 = vmul.f32 %v2962, 0.6931472
        %v2964 = vlog2.pop %v1552
        %v2965 = vmul.f32 %v2964, 0.6931472
        %v2966 = vlog2.pop %v1553
        %v2967 = vmul.f32 %v2966, 0.6931472
        %v2968 = vlog2.pop %v1554
        %v2969 = vmul.f32 %v2968, 0.6931472
        %v2970 = vlog2.pop %v1555
        %v2971 = vmul.f32 %v2970, 0.6931472
        %v2972 = vlog2.pop %v1556
        %v2973 = vmul.f32 %v2972, 0.6931472
        %v2974 = vlog2.pop %v1557
        %v2975 = vmul.f32 %v2974, 0.6931472
        %v2976 = vlog2.pop %v1558
        %v2977 = vmul.f32 %v2976, 0.6931472
        %v2978 = vlog2.pop %v1559
        %v2979 = vmul.f32 %v2978, 0.6931472
        %v2980 = vlog2.pop %v1560
        %v2981 = vmul.f32 %v2980, 0.6931472
        %v2982 = vlog2.pop %v1561
        %v2983 = vmul.f32 %v2982, 0.6931472
        %v2984 = vlog2.pop %v1562
        %v2985 = vmul.f32 %v2984, 0.6931472
        %v2986 = vlog2.pop %v1563
        %v2987 = vmul.f32 %v2986, 0.6931472
        %v2988 = vlog2.pop %v1564
        %v2989 = vmul.f32 %v2988, 0.6931472
        %v2990 = vlog2.pop %v1565
        %v2991 = vmul.f32 %v2990, 0.6931472
        %v2992 = vlog2.pop %v1566
        %v2993 = vmul.f32 %v2992, 0.6931472
        %v2994 = vlog2.pop %v1567
        %v2995 = vmul.f32 %v2994, 0.6931472
        %v2996 = vlog2.pop %v1568
        %v2997 = vmul.f32 %v2996, 0.6931472
        %v2998 = vlog2.pop %v1569
        %v2999 = vmul.f32 %v2998, 0.6931472
        %v3000 = vlog2.pop %v1570
        %v3001 = vmul.f32 %v3000, 0.6931472
        %v3002 = vlog2.pop %v1571
        %v3003 = vmul.f32 %v3002, 0.6931472
        %v3004 = vlog2.pop %v1572
        %v3005 = vmul.f32 %v3004, 0.6931472
        %v3006 = vlog2.pop %v1573
        %v3007 = vmul.f32 %v3006, 0.6931472
        %v3008 = vlog2.pop %v1574
        %v3009 = vmul.f32 %v3008, 0.6931472
        %v3010 = vlog2.pop %v1575
        %v3011 = vmul.f32 %v3010, 0.6931472
        %v3012 = vlog2.pop %v1576
        %v3013 = vmul.f32 %v3012, 0.6931472
        %v3014 = vlog2.pop %v1577
        %v3015 = vmul.f32 %v3014, 0.6931472
        %v3016 = vlog2.pop %v1578
        %v3017 = vmul.f32 %v3016, 0.6931472
        %v3018 = vlog2.pop %v1579
        %v3019 = vmul.f32 %v3018, 0.6931472
        %v3020 = vlog2.pop %v1580
        %v3021 = vmul.f32 %v3020, 0.6931472
        %v3022 = vlog2.pop %v1581
        %v3023 = vmul.f32 %v3022, 0.6931472
        %v3024 = vlog2.pop %v1582
        %v3025 = vmul.f32 %v3024, 0.6931472
        %v3026 = vlog2.pop %v1583
        %v3027 = vmul.f32 %v3026, 0.6931472
        %v3028 = vlog2.pop %v1584
        %v3029 = vmul.f32 %v3028, 0.6931472
        %v3030 = vlog2.pop %v1585
        %v3031 = vmul.f32 %v3030, 0.6931472
        %v3032 = vlog2.pop %v1586
        %v3033 = vmul.f32 %v3032, 0.6931472
        %v3034 = vlog2.pop %v1587
        %v3035 = vmul.f32 %v3034, 0.6931472
        %v3036 = vlog2.pop %v1588
        %v3037 = vmul.f32 %v3036, 0.6931472
        %v3038 = vlog2.pop %v1589
        %v3039 = vmul.f32 %v3038, 0.6931472
        %v3040 = vlog2.pop %v1590
        %v3041 = vmul.f32 %v3040, 0.6931472
        %v3042 = vlog2.pop %v1591
        %v3043 = vmul.f32 %v3042, 0.6931472
        %v3044 = vlog2.pop %v1592
        %v3045 = vmul.f32 %v3044, 0.6931472
        %v3046 = vlog2.pop %v1593
        %v3047 = vmul.f32 %v3046, 0.6931472
        %v3048 = vlog2.pop %v1594
        %v3049 = vmul.f32 %v3048, 0.6931472
        %v3050 = vlog2.pop %v1595
        %v3051 = vmul.f32 %v3050, 0.6931472
        %v3052 = vlog2.pop %v1596
        %v3053 = vmul.f32 %v3052, 0.6931472
        %v3054 = vlog2.pop %v1597
        %v3055 = vmul.f32 %v3054, 0.6931472
        %v3056 = vlog2.pop %v1598
        %v3057 = vmul.f32 %v3056, 0.6931472
        %v3058 = vlog2.pop %v1599
        %v3059 = vmul.f32 %v3058, 0.6931472
        %v3060 = vlog2.pop %v1600
        %v3061 = vmul.f32 %v3060, 0.6931472
        %v3062 = vlog2.pop %v1601
        %v3063 = vmul.f32 %v3062, 0.6931472
        %v3064 = vlog2.pop %v1602
        %v3065 = vmul.f32 %v3064, 0.6931472
        %v3066 = vlog2.pop %v1603
        %v3067 = vmul.f32 %v3066, 0.6931472
        %v3068 = vlog2.pop %v1604
        %v3069 = vmul.f32 %v3068, 0.6931472
        %v3070 = vlog2.pop %v1605
        %v3071 = vmul.f32 %v3070, 0.6931472
        %v3072 = vlog2.pop %v1606
        %v3073 = vmul.f32 %v3072, 0.6931472
        %v3074 = vlog2.pop %v1607
        %v3075 = vmul.f32 %v3074, 0.6931472
        %v3076 = vlog2.pop %v1608
        %v3077 = vmul.f32 %v3076, 0.6931472
        %v3078 = vlog2.pop %v1609
        %v3079 = vmul.f32 %v3078, 0.6931472
        %v3080 = vlog2.pop %v1610
        %v3081 = vmul.f32 %v3080, 0.6931472
        %v3082 = vlog2.pop %v1611
        %v3083 = vmul.f32 %v3082, 0.6931472
        %v3084 = vlog2.pop %v1612
        %v3085 = vmul.f32 %v3084, 0.6931472
        %v3086 = vlog2.pop %v1613
        %v3087 = vmul.f32 %v3086, 0.6931472
        %v3088 = vlog2.pop %v1614
        %v3089 = vmul.f32 %v3088, 0.6931472
        %v3090 = vlog2.pop %v1615
        %v3091 = vmul.f32 %v3090, 0.6931472
        %v3092 = vlog2.pop %v1616
        %v3093 = vmul.f32 %v3092, 0.6931472
        %v3094 = vlog2.pop %v1617
        %v3095 = vmul.f32 %v3094, 0.6931472
        %v3096 = vlog2.pop %v1618
        %v3097 = vmul.f32 %v3096, 0.6931472
        %v3098 = vlog2.pop %v1619
        %v3099 = vmul.f32 %v3098, 0.6931472
        %v3100 = vlog2.pop %v1620
        %v3101 = vmul.f32 %v3100, 0.6931472
        %v3102 = vlog2.pop %v1621
        %v3103 = vmul.f32 %v3102, 0.6931472
        %v3104 = vlog2.pop %v1622
        %v3105 = vmul.f32 %v3104, 0.6931472
        %v3106 = vlog2.pop %v1623
        %v3107 = vmul.f32 %v3106, 0.6931472
        %v3108 = vlog2.pop %v1624
        %v3109 = vmul.f32 %v3108, 0.6931472
        %v3110 = vlog2.pop %v1625
        %v3111 = vmul.f32 %v3110, 0.6931472
        %v3112 = vlog2.pop %v1626
        %v3113 = vmul.f32 %v3112, 0.6931472
        %v3114 = vlog2.pop %v1627
        %v3115 = vmul.f32 %v3114, 0.6931472
        %v3116 = vlog2.pop %v1628
        %v3117 = vmul.f32 %v3116, 0.6931472
        %v3118 = vlog2.pop %v1629
        %v3119 = vmul.f32 %v3118, 0.6931472
        %v3120 = vlog2.pop %v1630
        %v3121 = vmul.f32 %v3120, 0.6931472
        %v3122 = vlog2.pop %v1631
        %v3123 = vmul.f32 %v3122, 0.6931472
        %v3124 = vlog2.pop %v1632
        %v3125 = vmul.f32 %v3124, 0.6931472
        %v3126 = vlog2.pop %v1633
        %v3127 = vmul.f32 %v3126, 0.6931472
        %v3128 = vlog2.pop %v1634
        %v3129 = vmul.f32 %v3128, 0.6931472
        %v3130 = vlog2.pop %v1635
        %v3131 = vmul.f32 %v3130, 0.6931472
        %v3132 = vlog2.pop %v1636
        %v3133 = vmul.f32 %v3132, 0.6931472
        %v3134 = vlog2.pop %v1637
        %v3135 = vmul.f32 %v3134, 0.6931472
        %v3136 = vlog2.pop %v1638
        %v3137 = vmul.f32 %v3136, 0.6931472
        %v3138 = vlog2.pop %v1639
        %v3139 = vmul.f32 %v3138, 0.6931472
        %v3140 = vlog2.pop %v1640
        %v3141 = vmul.f32 %v3140, 0.6931472
        %v3142 = vlog2.pop %v1641
        %v3143 = vmul.f32 %v3142, 0.6931472
        %v3144 = vlog2.pop %v1642
        %v3145 = vmul.f32 %v3144, 0.6931472
        %v3146 = vlog2.pop %v1643
        %v3147 = vmul.f32 %v3146, 0.6931472
        %v3148 = vlog2.pop %v1644
        %v3149 = vmul.f32 %v3148, 0.6931472
        %v3150 = vlog2.pop %v1645
        %v3151 = vmul.f32 %v3150, 0.6931472
        %v3152 = vlog2.pop %v1646
        %v3153 = vmul.f32 %v3152, 0.6931472
        %v3154 = vlog2.pop %v1647
        %v3155 = vmul.f32 %v3154, 0.6931472
        %v3156 = vlog2.pop %v1648
        %v3157 = vmul.f32 %v3156, 0.6931472
        %v3158 = vlog2.pop %v1649
        %v3159 = vmul.f32 %v3158, 0.6931472
        %v3160 = vlog2.pop %v1650
        %v3161 = vmul.f32 %v3160, 0.6931472
        %v3162 = vlog2.pop %v1651
        %v3163 = vmul.f32 %v3162, 0.6931472
        %v3164 = vlog2.pop %v1652
        %v3165 = vmul.f32 %v3164, 0.6931472
        %v3166 = vlog2.pop %v1653
        %v3167 = vmul.f32 %v3166, 0.6931472
        %v3168 = vlog2.pop %v1654
        %v3169 = vmul.f32 %v3168, 0.6931472
        %v3170 = vlog2.pop %v1655
        %v3171 = vmul.f32 %v3170, 0.6931472
        %v3172 = vlog2.pop %v1656
        %v3173 = vmul.f32 %v3172, 0.6931472
        %v3174 = vlog2.pop %v1657
        %v3175 = vmul.f32 %v3174, 0.6931472
        %v3176 = vlog2.pop %v1658
        %v3177 = vmul.f32 %v3176, 0.6931472
        %v3178 = vlog2.pop %v1659
        %v3179 = vmul.f32 %v3178, 0.6931472
        %v3180 = vlog2.pop %v1660
        %v3181 = vmul.f32 %v3180, 0.6931472
        %v3182 = vlog2.pop %v1661
        %v3183 = vmul.f32 %v3182, 0.6931472
        %v3184 = vlog2.pop %v1662
        %v3185 = vmul.f32 %v3184, 0.6931472
        %v3186 = vlog2.pop %v1663
        %v3187 = vmul.f32 %v3186, 0.6931472
        %v3188 = vlog2.pop %v1664
        %v3189 = vmul.f32 %v3188, 0.6931472
        %v3190 = vlog2.pop %v1665
        %v3191 = vmul.f32 %v3190, 0.6931472
        %v3192 = vlog2.pop %v1666
        %v3193 = vmul.f32 %v3192, 0.6931472
        %v3194 = vlog2.pop %v1667
        %v3195 = vmul.f32 %v3194, 0.6931472
        %v3196 = vlog2.pop %v1668
        %v3197 = vmul.f32 %v3196, 0.6931472
        %v3198 = vlog2.pop %v1669
        %v3199 = vmul.f32 %v3198, 0.6931472
        %v3200 = vlog2.pop %v1670
        %v3201 = vmul.f32 %v3200, 0.6931472
        %v3202 = vlog2.pop %v1671
        %v3203 = vmul.f32 %v3202, 0.6931472
        %v3204 = vlog2.pop %v1672
        %v3205 = vmul.f32 %v3204, 0.6931472
        %v3206 = vlog2.pop %v1673
        %v3207 = vmul.f32 %v3206, 0.6931472
        %v3208 = vlog2.pop %v1674
        %v3209 = vmul.f32 %v3208, 0.6931472
        %v3210 = vlog2.pop %v1675
        %v3211 = vmul.f32 %v3210, 0.6931472
        %v3212 = vlog2.pop %v1676
        %v3213 = vmul.f32 %v3212, 0.6931472
        %v3214 = vlog2.pop %v1677
        %v3215 = vmul.f32 %v3214, 0.6931472
        %v3216 = vlog2.pop %v1678
        %v3217 = vmul.f32 %v3216, 0.6931472
        %v3218 = vlog2.pop %v1679
        %v3219 = vmul.f32 %v3218, 0.6931472
        %v3220 = vlog2.pop %v1680
        %v3221 = vmul.f32 %v3220, 0.6931472
        %v3222 = vlog2.pop %v1681
        %v3223 = vmul.f32 %v3222, 0.6931472
        %v3224 = vlog2.pop %v1682
        %v3225 = vmul.f32 %v3224, 0.6931472
        %v3226 = vlog2.pop %v1683
        %v3227 = vmul.f32 %v3226, 0.6931472
        %v3228 = vlog2.pop %v1684
        %v3229 = vmul.f32 %v3228, 0.6931472
        %v3230 = vlog2.pop %v1685
        %v3231 = vmul.f32 %v3230, 0.6931472
        %v3232 = vlog2.pop %v1686
        %v3233 = vmul.f32 %v3232, 0.6931472
        %v3234 = vlog2.pop %v1687
        %v3235 = vmul.f32 %v3234, 0.6931472
        %v3236 = vlog2.pop %v1688
        %v3237 = vmul.f32 %v3236, 0.6931472
        %v3238 = vlog2.pop %v1689
        %v3239 = vmul.f32 %v3238, 0.6931472
        %v3240 = vlog2.pop %v1690
        %v3241 = vmul.f32 %v3240, 0.6931472
        %v3242 = vlog2.pop %v1691
        %v3243 = vmul.f32 %v3242, 0.6931472
        %v3244 = vlog2.pop %v1692
        %v3245 = vmul.f32 %v3244, 0.6931472
        %v3246 = vlog2.pop %v1693
        %v3247 = vmul.f32 %v3246, 0.6931472
        %v3248 = vlog2.pop %v1694
        %v3249 = vmul.f32 %v3248, 0.6931472
        %v3250 = vlog2.pop %v1695
        %v3251 = vmul.f32 %v3250, 0.6931472
        %v3252 = vlog2.pop %v1696
        %v3253 = vmul.f32 %v3252, 0.6931472
        %v3254 = vlog2.pop %v1697
        %v3255 = vmul.f32 %v3254, 0.6931472
        %v3256 = vlog2.pop %v1698
        %v3257 = vmul.f32 %v3256, 0.6931472
        %v3258 = vlog2.pop %v1699
        %v3259 = vmul.f32 %v3258, 0.6931472
        %v3260 = vlog2.pop %v1700
        %v3261 = vmul.f32 %v3260, 0.6931472
        %v3262 = vlog2.pop %v1701
        %v3263 = vmul.f32 %v3262, 0.6931472
        %v3264 = vlog2.pop %v1702
        %v3265 = vmul.f32 %v3264, 0.6931472
        %v3266 = vlog2.pop %v1703
        %v3267 = vmul.f32 %v3266, 0.6931472
        %v3268 = vlog2.pop %v1704
        %v3269 = vmul.f32 %v3268, 0.6931472
        %v3270 = vlog2.pop %v1705
        %v3271 = vmul.f32 %v3270, 0.6931472
        %v3272 = vlog2.pop %v1706
        %v3273 = vmul.f32 %v3272, 0.6931472
        %v3274 = vlog2.pop %v1707
        %v3275 = vmul.f32 %v3274, 0.6931472
        %v3276 = vlog2.pop %v1708
        %v3277 = vmul.f32 %v3276, 0.6931472
        %v3278 = vlog2.pop %v1709
        %v3279 = vmul.f32 %v3278, 0.6931472
        %v3280 = vlog2.pop %v1710
        %v3281 = vmul.f32 %v3280, 0.6931472
        %v3282 = vlog2.pop %v1711
        %v3283 = vmul.f32 %v3282, 0.6931472
        %v3284 = vlog2.pop %v1712
        %v3285 = vmul.f32 %v3284, 0.6931472
        %v3286 = vlog2.pop %v1713
        %v3287 = vmul.f32 %v3286, 0.6931472
        %v3288 = vlog2.pop %v1714
        %v3289 = vmul.f32 %v3288, 0.6931472
        %v3290 = vlog2.pop %v1715
        %v3291 = vmul.f32 %v3290, 0.6931472
        %v3292 = vlog2.pop %v1716
        %v3293 = vmul.f32 %v3292, 0.6931472
        %v3294 = vlog2.pop %v1717
        %v3295 = vmul.f32 %v3294, 0.6931472
        %v3296 = vlog2.pop %v1718
        %v3297 = vmul.f32 %v3296, 0.6931472
        %v3298 = vlog2.pop %v1719
        %v3299 = vmul.f32 %v3298, 0.6931472
        %v3300 = vlog2.pop %v1720
        %v3301 = vmul.f32 %v3300, 0.6931472
        %v3302 = vlog2.pop %v1721
        %v3303 = vmul.f32 %v3302, 0.6931472
        %v3304 = vlog2.pop %v1722
        %v3305 = vmul.f32 %v3304, 0.6931472
        %v3306 = vlog2.pop %v1723
        %v3307 = vmul.f32 %v3306, 0.6931472
        %v3308 = vlog2.pop %v1724
        %v3309 = vmul.f32 %v3308, 0.6931472
        %v3310 = vlog2.pop %v1725
        %v3311 = vmul.f32 %v3310, 0.6931472
        %v3312 = vlog2.pop %v1726
        %v3313 = vmul.f32 %v3312, 0.6931472
        %v3314 = vlog2.pop %v1727
        %v3315 = vmul.f32 %v3314, 0.6931472
        %v3316 = vlog2.pop %v1728
        %v3317 = vmul.f32 %v3316, 0.6931472
        %v3318 = vlog2.pop %v1729
        %v3319 = vmul.f32 %v3318, 0.6931472
        %v3320 = vlog2.pop %v1730
        %v3321 = vmul.f32 %v3320, 0.6931472
        %v3322 = vlog2.pop %v1731
        %v3323 = vmul.f32 %v3322, 0.6931472
        %v3324 = vlog2.pop %v1732
        %v3325 = vmul.f32 %v3324, 0.6931472
        %v3326 = vlog2.pop %v1733
        %v3327 = vmul.f32 %v3326, 0.6931472
        %v3328 = vlog2.pop %v1734
        %v3329 = vmul.f32 %v3328, 0.6931472
        %v3330 = vlog2.pop %v1735
        %v3331 = vmul.f32 %v3330, 0.6931472
        %v3332 = vlog2.pop %v1736
        %v3333 = vmul.f32 %v3332, 0.6931472
        %v3334 = vlog2.pop %v1737
        %v3335 = vmul.f32 %v3334, 0.6931472
        %v3336 = vlog2.pop %v1738
        %v3337 = vmul.f32 %v3336, 0.6931472
        %v3338 = vlog2.pop %v1739
        %v3339 = vmul.f32 %v3338, 0.6931472
        %v3340 = vlog2.pop %v1740
        %v3341 = vmul.f32 %v3340, 0.6931472
        %v3342 = vlog2.pop %v1741
        %v3343 = vmul.f32 %v3342, 0.6931472
        %v3344 = vlog2.pop %v1742
        %v3345 = vmul.f32 %v3344, 0.6931472
        %v3346 = vlog2.pop %v1743
        %v3347 = vmul.f32 %v3346, 0.6931472
        %v3348 = vlog2.pop %v1744
        %v3349 = vmul.f32 %v3348, 0.6931472
        %v3350 = vlog2.pop %v1745
        %v3351 = vmul.f32 %v3350, 0.6931472
        %v3352 = vlog2.pop %v1746
        %v3353 = vmul.f32 %v3352, 0.6931472
        %v3354 = vlog2.pop %v1747
        %v3355 = vmul.f32 %v3354, 0.6931472
        %v3356 = vlog2.pop %v1748
        %v3357 = vmul.f32 %v3356, 0.6931472
        %v3358 = vlog2.pop %v1749
        %v3359 = vmul.f32 %v3358, 0.6931472
        %v3360 = vlog2.pop %v1750
        %v3361 = vmul.f32 %v3360, 0.6931472
        %v3362 = vlog2.pop %v1751
        %v3363 = vmul.f32 %v3362, 0.6931472
        %v3364 = vlog2.pop %v1752
        %v3365 = vmul.f32 %v3364, 0.6931472
        %v3366 = vlog2.pop %v1753
        %v3367 = vmul.f32 %v3366, 0.6931472
        %v3368 = vlog2.pop %v1754
        %v3369 = vmul.f32 %v3368, 0.6931472
        %v3370 = vlog2.pop %v1755
        %v3371 = vmul.f32 %v3370, 0.6931472
        %v3372 = vlog2.pop %v1756
        %v3373 = vmul.f32 %v3372, 0.6931472
        %v3374 = vlog2.pop %v1757
        %v3375 = vmul.f32 %v3374, 0.6931472
        %v3376 = vlog2.pop %v1758
        %v3377 = vmul.f32 %v3376, 0.6931472
        %v3378 = vlog2.pop %v1759
        %v3379 = vmul.f32 %v3378, 0.6931472
        %v3380 = vlog2.pop %v1760
        %v3381 = vmul.f32 %v3380, 0.6931472
        %v3382 = vlog2.pop %v1761
        %v3383 = vmul.f32 %v3382, 0.6931472
        %v3384 = vlog2.pop %v1762
        %v3385 = vmul.f32 %v3384, 0.6931472
        %v3386 = vlog2.pop %v1763
        %v3387 = vmul.f32 %v3386, 0.6931472
        %v3388 = vlog2.pop %v1764
        %v3389 = vmul.f32 %v3388, 0.6931472
        %v3390 = vlog2.pop %v1765
        %v3391 = vmul.f32 %v3390, 0.6931472
        %v3392 = vlog2.pop %v1766
        %v3393 = vmul.f32 %v3392, 0.6931472
        %v3394 = vlog2.pop %v1767
        %v3395 = vmul.f32 %v3394, 0.6931472
        %v3396 = vlog2.pop %v1768
        %v3397 = vmul.f32 %v3396, 0.6931472
        %v3398 = vlog2.pop %v1769
        %v3399 = vmul.f32 %v3398, 0.6931472
        %v3400 = vlog2.pop %v1770
        %v3401 = vmul.f32 %v3400, 0.6931472
        %v3402 = vlog2.pop %v1771
        %v3403 = vmul.f32 %v3402, 0.6931472
        %v3404 = vlog2.pop %v1772
        %v3405 = vmul.f32 %v3404, 0.6931472
        %v3406 = vlog2.pop %v1773
        %v3407 = vmul.f32 %v3406, 0.6931472
        %v3408 = vlog2.pop %v1774
        %v3409 = vmul.f32 %v3408, 0.6931472
        %v3410 = vlog2.pop %v1775
        %v3411 = vmul.f32 %v3410, 0.6931472
        %v3412 = vlog2.pop %v1776
        %v3413 = vmul.f32 %v3412, 0.6931472
        %v3414 = vlog2.pop %v1777
        %v3415 = vmul.f32 %v3414, 0.6931472
        %v3416 = vlog2.pop %v1778
        %v3417 = vmul.f32 %v3416, 0.6931472
        %v3418 = vlog2.pop %v1779
        %v3419 = vmul.f32 %v3418, 0.6931472
        %v3420 = vlog2.pop %v1780
        %v3421 = vmul.f32 %v3420, 0.6931472
        %v3422 = vlog2.pop %v1781
        %v3423 = vmul.f32 %v3422, 0.6931472
        %v3424 = vlog2.pop %v1782
        %v3425 = vmul.f32 %v3424, 0.6931472
        %v3426 = vlog2.pop %v1783
        %v3427 = vmul.f32 %v3426, 0.6931472
        %v3428 = vlog2.pop %v1784
        %v3429 = vmul.f32 %v3428, 0.6931472
        %v3430 = vlog2.pop %v1785
        %v3431 = vmul.f32 %v3430, 0.6931472
        %v3432 = vlog2.pop %v1786
        %v3433 = vmul.f32 %v3432, 0.6931472
        %v3434 = vlog2.pop %v1787
        %v3435 = vmul.f32 %v3434, 0.6931472
        %v3436 = vlog2.pop %v1788
        %v3437 = vmul.f32 %v3436, 0.6931472
        %v3438 = vlog2.pop %v1789
        %v3439 = vmul.f32 %v3438, 0.6931472
        %v3440 = vlog2.pop %v1790
        %v3441 = vmul.f32 %v3440, 0.6931472
        %v3442 = vlog2.pop %v1791
        %v3443 = vmul.f32 %v3442, 0.6931472
        %v3444 = vlog2.pop %v1792
        %v3445 = vmul.f32 %v3444, 0.6931472
        %v3446 = vlog2.pop %v1793
        %v3447 = vmul.f32 %v3446, 0.6931472
        %v3448 = vlog2.pop %v1794
        %v3449 = vmul.f32 %v3448, 0.6931472
        %v3450 = vlog2.pop %v1795
        %v3451 = vmul.f32 %v3450, 0.6931472
        %v3452 = vlog2.pop %v1796
        %v3453 = vmul.f32 %v3452, 0.6931472
        %v3454 = vlog2.pop %v1797
        %v3455 = vmul.f32 %v3454, 0.6931472
        %v3456 = vlog2.pop %v1798
        %v3457 = vmul.f32 %v3456, 0.6931472
        %v3458 = vlog2.pop %v1799
        %v3459 = vmul.f32 %v3458, 0.6931472
        %v3460 = vlog2.pop %v1800
        %v3461 = vmul.f32 %v3460, 0.6931472
        %v3462 = vlog2.pop %v1801
        %v3463 = vmul.f32 %v3462, 0.6931472
        %v3464 = vlog2.pop %v1802
        %v3465 = vmul.f32 %v3464, 0.6931472
        %v3466 = vlog2.pop %v1803
        %v3467 = vmul.f32 %v3466, 0.6931472
        %v3468 = vlog2.pop %v1804
        %v3469 = vmul.f32 %v3468, 0.6931472
        %v3470 = vlog2.pop %v1805
        %v3471 = vmul.f32 %v3470, 0.6931472
        %v3472 = vlog2.pop %v1806
        %v3473 = vmul.f32 %v3472, 0.6931472
        %v3474 = vlog2.pop %v1807
        %v3475 = vmul.f32 %v3474, 0.6931472
        %v3476 = vlog2.pop %v1808
        %v3477 = vmul.f32 %v3476, 0.6931472
        %v3478 = vlog2.pop %v1809
        %v3479 = vmul.f32 %v3478, 0.6931472
        %v3480 = vlog2.pop %v1810
        %v3481 = vmul.f32 %v3480, 0.6931472
        %v3482 = vlog2.pop %v1811
        %v3483 = vmul.f32 %v3482, 0.6931472
        %v3484 = vlog2.pop %v1812
        %v3485 = vmul.f32 %v3484, 0.6931472
        %v3486 = vlog2.pop %v1813
        %v3487 = vmul.f32 %v3486, 0.6931472
        %v3488 = vlog2.pop %v1814
        %v3489 = vmul.f32 %v3488, 0.6931472
        %v3490 = vlog2.pop %v1815
        %v3491 = vmul.f32 %v3490, 0.6931472
        %v3492 = vlog2.pop %v1816
        %v3493 = vmul.f32 %v3492, 0.6931472
        %v3494 = vlog2.pop %v1817
        %v3495 = vmul.f32 %v3494, 0.6931472
        %v3496 = vlog2.pop %v1818
        %v3497 = vmul.f32 %v3496, 0.6931472
        %v3498 = vlog2.pop %v1819
        %v3499 = vmul.f32 %v3498, 0.6931472
        %v3500 = vlog2.pop %v1820
        %v3501 = vmul.f32 %v3500, 0.6931472
        %v3502 = vlog2.pop %v1821
        %v3503 = vmul.f32 %v3502, 0.6931472
        %v3504 = vlog2.pop %v1822
        %v3505 = vmul.f32 %v3504, 0.6931472
        %v3506 = vlog2.pop %v1823
        %v3507 = vmul.f32 %v3506, 0.6931472
        %v3508 = vlog2.pop %v1824
        %v3509 = vmul.f32 %v3508, 0.6931472
        %v3510 = vlog2.pop %v1825
        %v3511 = vmul.f32 %v3510, 0.6931472
        %v3512 = vlog2.pop %v1826
        %v3513 = vmul.f32 %v3512, 0.6931472
        %v3514 = vlog2.pop %v1827
        %v3515 = vmul.f32 %v3514, 0.6931472
        %v3516 = vlog2.pop %v1828
        %v3517 = vmul.f32 %v3516, 0.6931472
        %v3518 = vlog2.pop %v1829
        %v3519 = vmul.f32 %v3518, 0.6931472
        %v3520 = vlog2.pop %v1830
        %v3521 = vmul.f32 %v3520, 0.6931472
        %v3522 = vlog2.pop %v1831
        %v3523 = vmul.f32 %v3522, 0.6931472
        %v3524 = vlog2.pop %v1832
        %v3525 = vmul.f32 %v3524, 0.6931472
        %v3526 = vlog2.pop %v1833
        %v3527 = vmul.f32 %v3526, 0.6931472
        %v3528 = vlog2.pop %v1834
        %v3529 = vmul.f32 %v3528, 0.6931472
        %v3530 = vlog2.pop %v1835
        %v3531 = vmul.f32 %v3530, 0.6931472
        %v3532 = vlog2.pop %v1836
        %v3533 = vmul.f32 %v3532, 0.6931472
        %v3534 = vlog2.pop %v1837
        %v3535 = vmul.f32 %v3534, 0.6931472
        %v3536 = vlog2.pop %v1838
        %v3537 = vmul.f32 %v3536, 0.6931472
        %v3538 = vlog2.pop %v1839
        %v3539 = vmul.f32 %v3538, 0.6931472
        %v3540 = vlog2.pop %v1840
        %v3541 = vmul.f32 %v3540, 0.6931472
        %v3542 = vlog2.pop %v1841
        %v3543 = vmul.f32 %v3542, 0.6931472
        %v3544 = vlog2.pop %v1842
        %v3545 = vmul.f32 %v3544, 0.6931472
        %v3546 = vlog2.pop %v1843
        %v3547 = vmul.f32 %v3546, 0.6931472
        %v3548 = vlog2.pop %v1844
        %v3549 = vmul.f32 %v3548, 0.6931472
        %v3550 = vlog2.pop %v1845
        %v3551 = vmul.f32 %v3550, 0.6931472
        %v3552 = vlog2.pop %v1846
        %v3553 = vmul.f32 %v3552, 0.6931472
        %v3554 = vlog2.pop %v1847
        %v3555 = vmul.f32 %v3554, 0.6931472
        %v3556 = vlog2.pop %v1848
        %v3557 = vmul.f32 %v3556, 0.6931472
        %v3558 = vlog2.pop %v1849
        %v3559 = vmul.f32 %v3558, 0.6931472
        %v3560 = vlog2.pop %v1850
        %v3561 = vmul.f32 %v3560, 0.6931472
        %v3562 = vlog2.pop %v1851
        %v3563 = vmul.f32 %v3562, 0.6931472
        %v3564 = vlog2.pop %v1852
        %v3565 = vmul.f32 %v3564, 0.6931472
        %v3566 = vlog2.pop %v1853
        %v3567 = vmul.f32 %v3566, 0.6931472
        %v3568 = vlog2.pop %v1854
        %v3569 = vmul.f32 %v3568, 0.6931472
        %v3570 = vlog2.pop %v1855
        %v3571 = vmul.f32 %v3570, 0.6931472
        %v3572 = vlog2.pop %v1856
        %v3573 = vmul.f32 %v3572, 0.6931472
        %v3574 = vlog2.pop %v1857
        %v3575 = vmul.f32 %v3574, 0.6931472
        %v3576 = vlog2.pop %v1858
        %v3577 = vmul.f32 %v3576, 0.6931472
        %v3578 = vlog2.pop %v1859
        %v3579 = vmul.f32 %v3578, 0.6931472
        %v3580 = vlog2.pop %v1860
        %v3581 = vmul.f32 %v3580, 0.6931472
        %v3582 = vlog2.pop %v1861
        %v3583 = vmul.f32 %v3582, 0.6931472
        %v3584 = vlog2.pop %v1862
        %v3585 = vmul.f32 %v3584, 0.6931472
        %v3586 = vlog2.pop %v1863
        %v3587 = vmul.f32 %v3586, 0.6931472
        %v3588 = vlog2.pop %v1864
        %v3589 = vmul.f32 %v3588, 0.6931472
        %v3590 = vlog2.pop %v1865
        %v3591 = vmul.f32 %v3590, 0.6931472
        %v3592 = vlog2.pop %v1866
        %v3593 = vmul.f32 %v3592, 0.6931472
        %v3594 = vlog2.pop %v1867
        %v3595 = vmul.f32 %v3594, 0.6931472
        %v3596 = vlog2.pop %v1868
        %v3597 = vmul.f32 %v3596, 0.6931472
        %v3598 = vlog2.pop %v1869
        %v3599 = vmul.f32 %v3598, 0.6931472
        %v3600 = vlog2.pop %v1870
        %v3601 = vmul.f32 %v3600, 0.6931472
        %v3602 = vlog2.pop %v1871
        %v3603 = vmul.f32 %v3602, 0.6931472
        %v3604 = vlog2.pop %v1872
        %v3605 = vmul.f32 %v3604, 0.6931472
        %v3606 = vlog2.pop %v1873
        %v3607 = vmul.f32 %v3606, 0.6931472
        %v3608 = vlog2.pop %v1874
        %v3609 = vmul.f32 %v3608, 0.6931472
        %v3610 = vlog2.pop %v1875
        %v3611 = vmul.f32 %v3610, 0.6931472
        %v3612 = vlog2.pop %v1876
        %v3613 = vmul.f32 %v3612, 0.6931472
        %v3614 = vlog2.pop %v1877
        %v3615 = vmul.f32 %v3614, 0.6931472
        %v3616 = vlog2.pop %v1878
        %v3617 = vmul.f32 %v3616, 0.6931472
        %v3618 = vlog2.pop %v1879
        %v3619 = vmul.f32 %v3618, 0.6931472
        %v3620 = vlog2.pop %v1880
        %v3621 = vmul.f32 %v3620, 0.6931472
        %v3622 = vlog2.pop %v1881
        %v3623 = vmul.f32 %v3622, 0.6931472
        %v3624 = vlog2.pop %v1882
        %v3625 = vmul.f32 %v3624, 0.6931472
        %v3626 = vlog2.pop %v1883
        %v3627 = vmul.f32 %v3626, 0.6931472
        %v3628 = vlog2.pop %v1884
        %v3629 = vmul.f32 %v3628, 0.6931472
        %v3630 = vlog2.pop %v1885
        %v3631 = vmul.f32 %v3630, 0.6931472
        %v3632 = vlog2.pop %v1886
        %v3633 = vmul.f32 %v3632, 0.6931472
        %v3634 = vlog2.pop %v1887
        %v3635 = vmul.f32 %v3634, 0.6931472
        %v3636 = vlog2.pop %v1888
        %v3637 = vmul.f32 %v3636, 0.6931472
        %v3638 = vlog2.pop %v1889
        %v3639 = vmul.f32 %v3638, 0.6931472
        %v3640 = vlog2.pop %v1890
        %v3641 = vmul.f32 %v3640, 0.6931472
        %v3642 = vlog2.pop %v1891
        %v3643 = vmul.f32 %v3642, 0.6931472
        %v3644 = vlog2.pop %v1892
        %v3645 = vmul.f32 %v3644, 0.6931472
        %v3646 = vlog2.pop %v1893
        %v3647 = vmul.f32 %v3646, 0.6931472
        %v3648 = vlog2.pop %v1894
        %v3649 = vmul.f32 %v3648, 0.6931472
        %v3650 = vlog2.pop %v1895
        %v3651 = vmul.f32 %v3650, 0.6931472
        %v3652 = vlog2.pop %v1896
        %v3653 = vmul.f32 %v3652, 0.6931472
        %v3654 = vlog2.pop %v1897
        %v3655 = vmul.f32 %v3654, 0.6931472
        %v3656 = vlog2.pop %v1898
        %v3657 = vmul.f32 %v3656, 0.6931472
        %v3658 = vlog2.pop %v1899
        %v3659 = vmul.f32 %v3658, 0.6931472
        %v3660 = vlog2.pop %v1900
        %v3661 = vmul.f32 %v3660, 0.6931472
        %v3662 = vlog2.pop %v1901
        %v3663 = vmul.f32 %v3662, 0.6931472
        %v3664 = vlog2.pop %v1902
        %v3665 = vmul.f32 %v3664, 0.6931472
        %v3666 = vlog2.pop %v1903
        %v3667 = vmul.f32 %v3666, 0.6931472
        %v3668 = vlog2.pop %v1904
        %v3669 = vmul.f32 %v3668, 0.6931472
        %v3670 = vlog2.pop %v1905
        %v3671 = vmul.f32 %v3670, 0.6931472
        %v3672 = vlog2.pop %v1906
        %v3673 = vmul.f32 %v3672, 0.6931472
        %v3674 = vlog2.pop %v1907
        %v3675 = vmul.f32 %v3674, 0.6931472
        %v3676 = vlog2.pop %v1908
        %v3677 = vmul.f32 %v3676, 0.6931472
        %v3678 = vlog2.pop %v1909
        %v3679 = vmul.f32 %v3678, 0.6931472
        %v3680 = vlog2.pop %v1910
        %v3681 = vmul.f32 %v3680, 0.6931472
        %v3682 = vlog2.pop %v1911
        %v3683 = vmul.f32 %v3682, 0.6931472
        %v3684 = vlog2.pop %v1912
        %v3685 = vmul.f32 %v3684, 0.6931472
        %v3686 = vlog2.pop %v1913
        %v3687 = vmul.f32 %v3686, 0.6931472
        %v3688 = vlog2.pop %v1914
        %v3689 = vmul.f32 %v3688, 0.6931472
        %v3690 = vlog2.pop %v1915
        %v3691 = vmul.f32 %v3690, 0.6931472
        %v3692 = vlog2.pop %v1916
        %v3693 = vmul.f32 %v3692, 0.6931472
        %v3694 = vlog2.pop %v1917
        %v3695 = vmul.f32 %v3694, 0.6931472
        %v3696 = vlog2.pop %v1918
        %v3697 = vmul.f32 %v3696, 0.6931472
        %v3698 = vlog2.pop %v1919
        %v3699 = vmul.f32 %v3698, 0.6931472
        %v3700 = vlog2.pop %v1920
        %v3701 = vmul.f32 %v3700, 0.6931472
        %v3702 = vlog2.pop %v1921
        %v3703 = vmul.f32 %v3702, 0.6931472
        %v3704 = vlog2.pop %v1922
        %v3705 = vmul.f32 %v3704, 0.6931472
        %v3706 = vlog2.pop %v1923
        %v3707 = vmul.f32 %v3706, 0.6931472
        %v3708 = vlog2.pop %v1924
        %v3709 = vmul.f32 %v3708, 0.6931472
        %v3710 = vlog2.pop %v1925
        %v3711 = vmul.f32 %v3710, 0.6931472
        %v3712 = vlog2.pop %v1926
        %v3713 = vmul.f32 %v3712, 0.6931472
        %v3714 = vlog2.pop %v1927
        %v3715 = vmul.f32 %v3714, 0.6931472
        %v3716 = vlog2.pop %v1928
        %v3717 = vmul.f32 %v3716, 0.6931472
        %v3718 = vlog2.pop %v1929
        %v3719 = vmul.f32 %v3718, 0.6931472
        %v3720 = vlog2.pop %v1930
        %v3721 = vmul.f32 %v3720, 0.6931472
        %v3722 = vlog2.pop %v1931
        %v3723 = vmul.f32 %v3722, 0.6931472
        %v3724 = vlog2.pop %v1932
        %v3725 = vmul.f32 %v3724, 0.6931472
        %v3726 = vlog2.pop %v1933
        %v3727 = vmul.f32 %v3726, 0.6931472
        %v3728 = vlog2.pop %v1934
        %v3729 = vmul.f32 %v3728, 0.6931472
        %v3730 = vlog2.pop %v1935
        %v3731 = vmul.f32 %v3730, 0.6931472
        %v3732 = vlog2.pop %v1936
        %v3733 = vmul.f32 %v3732, 0.6931472
        %v3734 = vlog2.pop %v1937
        %v3735 = vmul.f32 %v3734, 0.6931472
        %v3736 = vlog2.pop %v1938
        %v3737 = vmul.f32 %v3736, 0.6931472
        %v3738 = vlog2.pop %v1939
        %v3739 = vmul.f32 %v3738, 0.6931472
        %v3740 = vlog2.pop %v1940
        %v3741 = vmul.f32 %v3740, 0.6931472
        %v3742 = vlog2.pop %v1941
        %v3743 = vmul.f32 %v3742, 0.6931472
        %v3744 = vlog2.pop %v1942
        %v3745 = vmul.f32 %v3744, 0.6931472
        %v3746 = vlog2.pop %v1943
        %v3747 = vmul.f32 %v3746, 0.6931472
        %v3748 = vlog2.pop %v1944
        %v3749 = vmul.f32 %v3748, 0.6931472
        %v3750 = vlog2.pop %v1945
        %v3751 = vmul.f32 %v3750, 0.6931472
        %v3752 = vlog2.pop %v1946
        %v3753 = vmul.f32 %v3752, 0.6931472
        %v3754 = vlog2.pop %v1947
        %v3755 = vmul.f32 %v3754, 0.6931472
        %v3756 = vlog2.pop %v1948
        %v3757 = vmul.f32 %v3756, 0.6931472
        %v3758 = vlog2.pop %v1949
        %v3759 = vmul.f32 %v3758, 0.6931472
        %v3760 = vlog2.pop %v1950
        %v3761 = vmul.f32 %v3760, 0.6931472
        %v3762 = vlog2.pop %v1951
        %v3763 = vmul.f32 %v3762, 0.6931472
        %v3764 = vlog2.pop %v1952
        %v3765 = vmul.f32 %v3764, 0.6931472
        %v3766 = vlog2.pop %v1953
        %v3767 = vmul.f32 %v3766, 0.6931472
        %v3768 = vlog2.pop %v1954
        %v3769 = vmul.f32 %v3768, 0.6931472
        %v3770 = vlog2.pop %v1955
        %v3771 = vmul.f32 %v3770, 0.6931472
        %v3772 = vlog2.pop %v1956
        %v3773 = vmul.f32 %v3772, 0.6931472
        %v3774 = vlog2.pop %v1957
        %v3775 = vmul.f32 %v3774, 0.6931472
        %v3776 = vlog2.pop %v1958
        %v3777 = vmul.f32 %v3776, 0.6931472
        %v3778 = vlog2.pop %v1959
        %v3779 = vmul.f32 %v3778, 0.6931472
        %v3780 = vlog2.pop %v1960
        %v3781 = vmul.f32 %v3780, 0.6931472
        %v3782 = vlog2.pop %v1961
        %v3783 = vmul.f32 %v3782, 0.6931472
        %v3784 = vlog2.pop %v1962
        %v3785 = vmul.f32 %v3784, 0.6931472
        %v3786 = vlog2.pop %v1963
        %v3787 = vmul.f32 %v3786, 0.6931472
        %v3788 = vlog2.pop %v1964
        %v3789 = vmul.f32 %v3788, 0.6931472
        %v3790 = vlog2.pop %v1965
        %v3791 = vmul.f32 %v3790, 0.6931472
        %v3792 = vlog2.pop %v1966
        %v3793 = vmul.f32 %v3792, 0.6931472
        %v3794 = vlog2.pop %v1967
        %v3795 = vmul.f32 %v3794, 0.6931472
        %v3796 = vlog2.pop %v1968
        %v3797 = vmul.f32 %v3796, 0.6931472
        %v3798 = vlog2.pop %v1969
        %v3799 = vmul.f32 %v3798, 0.6931472
        %v3800 = vlog2.pop %v1970
        %v3801 = vmul.f32 %v3800, 0.6931472
        %v3802 = vlog2.pop %v1971
        %v3803 = vmul.f32 %v3802, 0.6931472
        %v3804 = vlog2.pop %v1972
        %v3805 = vmul.f32 %v3804, 0.6931472
        %v3806 = vlog2.pop %v1973
        %v3807 = vmul.f32 %v3806, 0.6931472
        %v3808 = vlog2.pop %v1974
        %v3809 = vmul.f32 %v3808, 0.6931472
        %v3810 = vlog2.pop %v1975
        %v3811 = vmul.f32 %v3810, 0.6931472
        %v3812 = vlog2.pop %v1976
        %v3813 = vmul.f32 %v3812, 0.6931472
        %v3814 = vlog2.pop %v1977
        %v3815 = vmul.f32 %v3814, 0.6931472
        %v3816 = vlog2.pop %v1978
        %v3817 = vmul.f32 %v3816, 0.6931472
        %v3818 = vlog2.pop %v1979
        %v3819 = vmul.f32 %v3818, 0.6931472
        %v3820 = vlog2.pop %v1980
        %v3821 = vmul.f32 %v3820, 0.6931472
        %v3822 = vlog2.pop %v1981
        %v3823 = vmul.f32 %v3822, 0.6931472
        %v3824 = vlog2.pop %v1982
        %v3825 = vmul.f32 %v3824, 0.6931472
        %v3826 = vlog2.pop %v1983
        %v3827 = vmul.f32 %v3826, 0.6931472
        %v3828 = vlog2.pop %v1984
        %v3829 = vmul.f32 %v3828, 0.6931472
        %v3830 = vlog2.pop %v1985
        %v3831 = vmul.f32 %v3830, 0.6931472
        %v3832 = vlog2.pop %v1986
        %v3833 = vmul.f32 %v3832, 0.6931472
        %v3834 = vlog2.pop %v1987
        %v3835 = vmul.f32 %v3834, 0.6931472
        %v3836 = vlog2.pop %v1988
        %v3837 = vmul.f32 %v3836, 0.6931472
        %v3838 = vlog2.pop %v1989
        %v3839 = vmul.f32 %v3838, 0.6931472
        %v3840 = vlog2.pop %v1990
        %v3841 = vmul.f32 %v3840, 0.6931472
        %v3842 = vlog2.pop %v1991
        %v3843 = vmul.f32 %v3842, 0.6931472
        %v3844 = vlog2.pop %v1992
        %v3845 = vmul.f32 %v3844, 0.6931472
        %v3846 = vlog2.pop %v1993
        %v3847 = vmul.f32 %v3846, 0.6931472
        %v3848 = vlog2.pop %v1994
        %v3849 = vmul.f32 %v3848, 0.6931472
        %v3850 = vlog2.pop %v1995
        %v3851 = vmul.f32 %v3850, 0.6931472
        %v3852 = vlog2.pop %v1996
        %v3853 = vmul.f32 %v3852, 0.6931472
        %v3854 = vlog2.pop %v1997
        %v3855 = vmul.f32 %v3854, 0.6931472
        %v3856 = vlog2.pop %v1998
        %v3857 = vmul.f32 %v3856, 0.6931472
        %v3858 = vlog2.pop %v1999
        %v3859 = vmul.f32 %v3858, 0.6931472
        %v3860 = vlog2.pop %v2000
        %v3861 = vmul.f32 %v3860, 0.6931472
        %v3862 = vlog2.pop %v2001
        %v3863 = vmul.f32 %v3862, 0.6931472
        %v3864 = vlog2.pop %v2002
        %v3865 = vmul.f32 %v3864, 0.6931472
        %v3866 = vlog2.pop %v2003
        %v3867 = vmul.f32 %v3866, 0.6931472
        %v3868 = vlog2.pop %v2004
        %v3869 = vmul.f32 %v3868, 0.6931472
        %v3870 = vlog2.pop %v2005
        %v3871 = vmul.f32 %v3870, 0.6931472
        %v3872 = vlog2.pop %v2006
        %v3873 = vmul.f32 %v3872, 0.6931472
        %v3874 = vlog2.pop %v2007
        %v3875 = vmul.f32 %v3874, 0.6931472
        %v3876 = vlog2.pop %v2008
        %v3877 = vmul.f32 %v3876, 0.6931472
        %v3878 = vlog2.pop %v2009
        %v3879 = vmul.f32 %v3878, 0.6931472
        %v3880 = vlog2.pop %v2010
        %v3881 = vmul.f32 %v3880, 0.6931472
        %v3882 = vlog2.pop %v2011
        %v3883 = vmul.f32 %v3882, 0.6931472
        %v3884 = vlog2.pop %v2012
        %v3885 = vmul.f32 %v3884, 0.6931472
        %v3886 = vlog2.pop %v2013
        %v3887 = vmul.f32 %v3886, 0.6931472
        %v3888 = vlog2.pop %v2014
        %v3889 = vmul.f32 %v3888, 0.6931472
        %v3890 = vlog2.pop %v2015
        %v3891 = vmul.f32 %v3890, 0.6931472
        %v3892 = vlog2.pop %v2016
        %v3893 = vmul.f32 %v3892, 0.6931472
        %v3894 = vlog2.pop %v2017
        %v3895 = vmul.f32 %v3894, 0.6931472
        %v3896 = vlog2.pop %v2018
        %v3897 = vmul.f32 %v3896, 0.6931472
        %v3898 = vlog2.pop %v2019
        %v3899 = vmul.f32 %v3898, 0.6931472
        %v3900 = vlog2.pop %v2020
        %v3901 = vmul.f32 %v3900, 0.6931472
        %v3902 = vlog2.pop %v2021
        %v3903 = vmul.f32 %v3902, 0.6931472
        %v3904 = vlog2.pop %v2022
        %v3905 = vmul.f32 %v3904, 0.6931472
        %v3906 = vlog2.pop %v2023
        %v3907 = vmul.f32 %v3906, 0.6931472
        %v3908 = vlog2.pop %v2024
        %v3909 = vmul.f32 %v3908, 0.6931472
        %v3910 = vlog2.pop %v2025
        %v3911 = vmul.f32 %v3910, 0.6931472
        %v3912 = vlog2.pop %v2026
        %v3913 = vmul.f32 %v3912, 0.6931472
        %v3914 = vlog2.pop %v2027
        %v3915 = vmul.f32 %v3914, 0.6931472
        %v3916 = vlog2.pop %v2028
        %v3917 = vmul.f32 %v3916, 0.6931472
        %v3918 = vlog2.pop %v2029
        %v3919 = vmul.f32 %v3918, 0.6931472
        %v3920 = vlog2.pop %v2030
        %v3921 = vmul.f32 %v3920, 0.6931472
        %v3922 = vlog2.pop %v2031
        %v3923 = vmul.f32 %v3922, 0.6931472
        %v3924 = vlog2.pop %v2032
        %v3925 = vmul.f32 %v3924, 0.6931472
        %v3926 = vlog2.pop %v2033
        %v3927 = vmul.f32 %v3926, 0.6931472
        %v3928 = vlog2.pop %v2034
        %v3929 = vmul.f32 %v3928, 0.6931472
        %v3930 = vlog2.pop %v2035
        %v3931 = vmul.f32 %v3930, 0.6931472
        %v3932 = vlog2.pop %v2036
        %v3933 = vmul.f32 %v3932, 0.6931472
        %v3934 = vlog2.pop %v2037
        %v3935 = vmul.f32 %v3934, 0.6931472
        %v3936 = vlog2.pop %v2038
        %v3937 = vmul.f32 %v3936, 0.6931472
        %v3938 = vlog2.pop %v2039
        %v3939 = vmul.f32 %v3938, 0.6931472
        %v3940 = vlog2.pop %v2040
        %v3941 = vmul.f32 %v3940, 0.6931472
        %v3942 = vlog2.pop %v2041
        %v3943 = vmul.f32 %v3942, 0.6931472
        %v3944 = vlog2.pop %v2042
        %v3945 = vmul.f32 %v3944, 0.6931472
        %v3946 = vlog2.pop %v2043
        %v3947 = vmul.f32 %v3946, 0.6931472
        %v3948 = vlog2.pop %v2044
        %v3949 = vmul.f32 %v3948, 0.6931472
        %v3950 = vlog2.pop %v2045
        %v3951 = vmul.f32 %v3950, 0.6931472
        %v3952 = vlog2.pop %v2046
        %v3953 = vmul.f32 %v3952, 0.6931472
        %v3954 = vlog2.pop %v2047
        %v3955 = vmul.f32 %v3954, 0.6931472
        %v3956 = vlog2.pop %v2048
        %v3957 = vmul.f32 %v3956, 0.6931472
        %v3958 = vlog2.pop %v2049
        %v3959 = vmul.f32 %v3958, 0.6931472
        %v3960 = vlog2.pop %v2050
        %v3961 = vmul.f32 %v3960, 0.6931472
        %v3962 = vlog2.pop %v2051
        %v3963 = vmul.f32 %v3962, 0.6931472
        %v3964 = vlog2.pop %v2052
        %v3965 = vmul.f32 %v3964, 0.6931472
        %v3966 = vlog2.pop %v2053
        %v3967 = vmul.f32 %v3966, 0.6931472
        %v3968 = vlog2.pop %v2054
        %v3969 = vmul.f32 %v3968, 0.6931472
        %v3970 = vlog2.pop %v2055
        %v3971 = vmul.f32 %v3970, 0.6931472
        %v3972 = vlog2.pop %v2056
        %v3973 = vmul.f32 %v3972, 0.6931472
        %v3974 = vlog2.pop %v2057
        %v3975 = vmul.f32 %v3974, 0.6931472
        %v3976 = vlog2.pop %v2058
        %v3977 = vmul.f32 %v3976, 0.6931472
        %v3978 = vlog2.pop %v2059
        %v3979 = vmul.f32 %v3978, 0.6931472
        %v3980 = vlog2.pop %v2060
        %v3981 = vmul.f32 %v3980, 0.6931472
        %v3982 = vlog2.pop %v2061
        %v3983 = vmul.f32 %v3982, 0.6931472
        %v3984 = vlog2.pop %v2062
        %v3985 = vmul.f32 %v3984, 0.6931472
        %v3986 = vlog2.pop %v2063
        %v3987 = vmul.f32 %v3986, 0.6931472
        %v3988 = vlog2.pop %v2064
        %v3989 = vmul.f32 %v3988, 0.6931472
        %v3990 = vlog2.pop %v2065
        %v3991 = vmul.f32 %v3990, 0.6931472
        %v3992 = vlog2.pop %v2066
        %v3993 = vmul.f32 %v3992, 0.6931472
        %v3994 = vlog2.pop %v2067
        %v3995 = vmul.f32 %v3994, 0.6931472
        %v3996 = vlog2.pop %v2068
        %v3997 = vmul.f32 %v3996, 0.6931472
        %v3998 = vlog2.pop %v2069
        %v3999 = vmul.f32 %v3998, 0.6931472
        %v4000 = vlog2.pop %v2070
        %v4001 = vmul.f32 %v4000, 0.6931472
        %v4002 = vlog2.pop %v2071
        %v4003 = vmul.f32 %v4002, 0.6931472
        %v4004 = vlog2.pop %v2072
        %v4005 = vmul.f32 %v4004, 0.6931472
        %v4006 = vlog2.pop %v2073
        %v4007 = vmul.f32 %v4006, 0.6931472
        %v4008 = vlog2.pop %v2074
        %v4009 = vmul.f32 %v4008, 0.6931472
        %v4010 = vlog2.pop %v2075
        %v4011 = vmul.f32 %v4010, 0.6931472
        %v4012 = vlog2.pop %v2076
        %v4013 = vmul.f32 %v4012, 0.6931472
        %v4014 = vlog2.pop %v2077
        %v4015 = vmul.f32 %v4014, 0.6931472
        %v4016 = vlog2.pop %v2078
        %v4017 = vmul.f32 %v4016, 0.6931472
        %v4018 = vlog2.pop %v2079
        %v4019 = vmul.f32 %v4018, 0.6931472
        %v4020 = vlog2.pop %v2080
        %v4021 = vmul.f32 %v4020, 0.6931472
        %v4022 = vlog2.pop %v2081
        %v4023 = vmul.f32 %v4022, 0.6931472
        %v4024 = vlog2.pop %v2082
        %v4025 = vmul.f32 %v4024, 0.6931472
        %v4026 = vlog2.pop %v2083
        %v4027 = vmul.f32 %v4026, 0.6931472
        %v4028 = vlog2.pop %v2084
        %v4029 = vmul.f32 %v4028, 0.6931472
        %v4030 = vlog2.pop %v2085
        %v4031 = vmul.f32 %v4030, 0.6931472
        %v4032 = vlog2.pop %v2086
        %v4033 = vmul.f32 %v4032, 0.6931472
        %v4034 = vlog2.pop %v2087
        %v4035 = vmul.f32 %v4034, 0.6931472
        %v4036 = vlog2.pop %v2088
        %v4037 = vmul.f32 %v4036, 0.6931472
        %v4038 = vlog2.pop %v2089
        %v4039 = vmul.f32 %v4038, 0.6931472
        %v4040 = vlog2.pop %v2090
        %v4041 = vmul.f32 %v4040, 0.6931472
        %v4042 = vlog2.pop %v2091
        %v4043 = vmul.f32 %v4042, 0.6931472
        %v4044 = vlog2.pop %v2092
        %v4045 = vmul.f32 %v4044, 0.6931472
        %v4046 = vlog2.pop %v2093
        %v4047 = vmul.f32 %v4046, 0.6931472
        %v4048 = vlog2.pop %v2094
        %v4049 = vmul.f32 %v4048, 0.6931472
        %v4050 = vlog2.pop %v2095
        %v4051 = vmul.f32 %v4050, 0.6931472
        %v4052 = vlog2.pop %v2096
        %v4053 = vmul.f32 %v4052, 0.6931472
        %v4054 = vlog2.pop %v2097
        %v4055 = vmul.f32 %v4054, 0.6931472
        %v4056 = vlog2.pop %v2098
        %v4057 = vmul.f32 %v4056, 0.6931472
        %v4058 = vlog2.pop %v2099
        %v4059 = vmul.f32 %v4058, 0.6931472
        %v4060 = vlog2.pop %v2100
        %v4061 = vmul.f32 %v4060, 0.6931472
        %v4062 = vlog2.pop %v2101
        %v4063 = vmul.f32 %v4062, 0.6931472
        %v4064 = vlog2.pop %v2102
        %v4065 = vmul.f32 %v4064, 0.6931472
        %v4066 = vlog2.pop %v2103
        %v4067 = vmul.f32 %v4066, 0.6931472
        %v4068 = vlog2.pop %v2104
        %v4069 = vmul.f32 %v4068, 0.6931472
        %v4070 = vlog2.pop %v2105
        %v4071 = vmul.f32 %v4070, 0.6931472
        %v4072 = vlog2.pop %v2106
        %v4073 = vmul.f32 %v4072, 0.6931472
        %v4074 = vlog2.pop %v2107
        %v4075 = vmul.f32 %v4074, 0.6931472
        %v4076 = vlog2.pop %v2108
        %v4077 = vmul.f32 %v4076, 0.6931472
        %v4078 = vlog2.pop %v2109
        %v4079 = vmul.f32 %v4078, 0.6931472
        %v4080 = vlog2.pop %v2110
        %v4081 = vmul.f32 %v4080, 0.6931472
        %v4082 = vlog2.pop %v2111
        %v4083 = vmul.f32 %v4082, 0.6931472
        %v4084 = vlog2.pop %v2112
        %v4085 = vmul.f32 %v4084, 0.6931472
        %v4086 = vlog2.pop %v2113
        %v4087 = vmul.f32 %v4086, 0.6931472
        %v4088 = vlog2.pop %v2114
        %v4089 = vmul.f32 %v4088, 0.6931472
        %v4090 = vlog2.pop %v2115
        %v4091 = vmul.f32 %v4090, 0.6931472
        %v4092 = vlog2.pop %v2116
        %v4093 = vmul.f32 %v4092, 0.6931472
        %v4094 = vlog2.pop %v2117
        %v4095 = vmul.f32 %v4094, 0.6931472
        %v4096 = vlog2.pop %v2118
        %v4097 = vmul.f32 %v4096, 0.6931472
        %v4098 = vlog2.pop %v2119
        %v4099 = vmul.f32 %v4098, 0.6931472
        %v4100 = vlog2.pop %v2120
        %v4101 = vmul.f32 %v4100, 0.6931472
        %v4102 = vlog2.pop %v2121
        %v4103 = vmul.f32 %v4102, 0.6931472
        %v4104 = vlog2.pop %v2122
        %v4105 = vmul.f32 %v4104, 0.6931472
        %v4106 = vlog2.pop %v2123
        %v4107 = vmul.f32 %v4106, 0.6931472
        %v4108 = vlog2.pop %v2124
        %v4109 = vmul.f32 %v4108, 0.6931472
        %v4110 = vlog2.pop %v2125
        %v4111 = vmul.f32 %v4110, 0.6931472
        %v4112 = vlog2.pop %v2126
        %v4113 = vmul.f32 %v4112, 0.6931472
        %v4114 = vlog2.pop %v2127
        %v4115 = vmul.f32 %v4114, 0.6931472
        %v4116 = vlog2.pop %v2128
        %v4117 = vmul.f32 %v4116, 0.6931472
        %v4118 = vlog2.pop %v2129
        %v4119 = vmul.f32 %v4118, 0.6931472
        %v4120 = vlog2.pop %v2130
        %v4121 = vmul.f32 %v4120, 0.6931472
        %v4122 = vlog2.pop %v2131
        %v4123 = vmul.f32 %v4122, 0.6931472
        %v4124 = vlog2.pop %v2132
        %v4125 = vmul.f32 %v4124, 0.6931472
        %v4126 = vlog2.pop %v2133
        %v4127 = vmul.f32 %v4126, 0.6931472
        %v4128 = vlog2.pop %v2134
        %v4129 = vmul.f32 %v4128, 0.6931472
        %v4130 = vlog2.pop %v2135
        %v4131 = vmul.f32 %v4130, 0.6931472
        %v4132 = vlog2.pop %v2136
        %v4133 = vmul.f32 %v4132, 0.6931472
        %v4134 = vlog2.pop %v2137
        %v4135 = vmul.f32 %v4134, 0.6931472
        %v4136 = vlog2.pop %v2138
        %v4137 = vmul.f32 %v4136, 0.6931472
        %v4138 = vlog2.pop %v2139
        %v4139 = vmul.f32 %v4138, 0.6931472
        %v4140 = vlog2.pop %v2140
        %v4141 = vmul.f32 %v4140, 0.6931472
        %v4142 = vlog2.pop %v2141
        %v4143 = vmul.f32 %v4142, 0.6931472
        %v4144 = vlog2.pop %v2142
        %v4145 = vmul.f32 %v4144, 0.6931472
        %v4146 = vlog2.pop %v2143
        %v4147 = vmul.f32 %v4146, 0.6931472
        %v4148 = vlog2.pop %v2144
        %v4149 = vmul.f32 %v4148, 0.6931472
        %v4150 = vlog2.pop %v2145
        %v4151 = vmul.f32 %v4150, 0.6931472
        %v4152 = vlog2.pop %v2146
        %v4153 = vmul.f32 %v4152, 0.6931472
        %v4154 = vlog2.pop %v2147
        %v4155 = vmul.f32 %v4154, 0.6931472
        %v4156 = vlog2.pop %v2148
        %v4157 = vmul.f32 %v4156, 0.6931472
        %v4158 = vlog2.pop %v2149
        %v4159 = vmul.f32 %v4158, 0.6931472
        %v4160 = vlog2.pop %v2150
        %v4161 = vmul.f32 %v4160, 0.6931472
        %v4162 = vlog2.pop %v2151
        %v4163 = vmul.f32 %v4162, 0.6931472
        %v4164 = vlog2.pop %v2152
        %v4165 = vmul.f32 %v4164, 0.6931472
        %v4166 = vlog2.pop %v2153
        %v4167 = vmul.f32 %v4166, 0.6931472
        %v4168 = vlog2.pop %v2154
        %v4169 = vmul.f32 %v4168, 0.6931472
        %v4170 = vlog2.pop %v2155
        %v4171 = vmul.f32 %v4170, 0.6931472
        %v4172 = vlog2.pop %v2156
        %v4173 = vmul.f32 %v4172, 0.6931472
        %v4174 = vlog2.pop %v2157
        %v4175 = vmul.f32 %v4174, 0.6931472
        %v4176 = vlog2.pop %v2158
        %v4177 = vmul.f32 %v4176, 0.6931472
        %v4178 = vlog2.pop %v2159
        %v4179 = vmul.f32 %v4178, 0.6931472
        %v4180 = vlog2.pop %v2160
        %v4181 = vmul.f32 %v4180, 0.6931472
        %v4182 = vlog2.pop %v2161
        %v4183 = vmul.f32 %v4182, 0.6931472
        %v4184 = vlog2.pop %v2162
        %v4185 = vmul.f32 %v4184, 0.6931472
        %v4186 = vlog2.pop %v2163
        %v4187 = vmul.f32 %v4186, 0.6931472
        %v4188 = vlog2.pop %v2164
        %v4189 = vmul.f32 %v4188, 0.6931472
        %v4190 = vlog2.pop %v2165
        %v4191 = vmul.f32 %v4190, 0.6931472
        %v4192 = vlog2.pop %v2166
        %v4193 = vmul.f32 %v4192, 0.6931472
        %v4194 = vlog2.pop %v2167
        %v4195 = vmul.f32 %v4194, 0.6931472
        %v4196 = vlog2.pop %v2168
        %v4197 = vmul.f32 %v4196, 0.6931472
        %v4198 = vlog2.pop %v2169
        %v4199 = vmul.f32 %v4198, 0.6931472
        %v4200 = vlog2.pop %v2170
        %v4201 = vmul.f32 %v4200, 0.6931472
        %v4202 = vlog2.pop %v2171
        %v4203 = vmul.f32 %v4202, 0.6931472
        %v4204 = vlog2.pop %v2172
        %v4205 = vmul.f32 %v4204, 0.6931472
        %v4206 = vlog2.pop %v2173
        %v4207 = vmul.f32 %v4206, 0.6931472
        %v4208 = vlog2.pop %v2174
        %v4209 = vmul.f32 %v4208, 0.6931472
        %v4210 = vlog2.pop %v2175
        %v4211 = vmul.f32 %v4210, 0.6931472
        %v4212 = vlog2.pop %v2176
        %v4213 = vmul.f32 %v4212, 0.6931472
        %v4214 = vlog2.pop %v2177
        %v4215 = vmul.f32 %v4214, 0.6931472
        %v4216 = vlog2.pop %v2178
        %v4217 = vmul.f32 %v4216, 0.6931472
        %v4218 = vlog2.pop %v2179
        %v4219 = vmul.f32 %v4218, 0.6931472
        %v4220 = vlog2.pop %v2180
        %v4221 = vmul.f32 %v4220, 0.6931472
        %v4222 = vlog2.pop %v2181
        %v4223 = vmul.f32 %v4222, 0.6931472
        %v4224 = vlog2.pop %v2182
        %v4225 = vmul.f32 %v4224, 0.6931472
        %v4226 = vlog2.pop %v2183
        %v4227 = vmul.f32 %v4226, 0.6931472
        %v4228 = vlog2.pop %v2184
        %v4229 = vmul.f32 %v4228, 0.6931472
        %v4230 = vlog2.pop %v2185
        %v4231 = vmul.f32 %v4230, 0.6931472
        %v4232 = vlog2.pop %v2186
        %v4233 = vmul.f32 %v4232, 0.6931472
        %v4234 = vlog2.pop %v2187
        %v4235 = vmul.f32 %v4234, 0.6931472
        %v4236 = vmul.f32 %v2189, 1.442695
        %v4237 = vmul.f32 %v2191, 1.442695
        %v4238 = vmul.f32 %v2193, 1.442695
        %v4239 = vmul.f32 %v2195, 1.442695
        %v4240 = vmul.f32 %v2197, 1.442695
        %v4241 = vmul.f32 %v2199, 1.442695
        %v4242 = vmul.f32 %v2201, 1.442695
        %v4243 = vmul.f32 %v2203, 1.442695
        %v4244 = vmul.f32 %v2205, 1.442695
        %v4245 = vmul.f32 %v2207, 1.442695
        %v4246 = vmul.f32 %v2209, 1.442695
        %v4247 = vmul.f32 %v2211, 1.442695
        %v4248 = vmul.f32 %v2213, 1.442695
        %v4249 = vmul.f32 %v2215, 1.442695
        %v4250 = vmul.f32 %v2217, 1.442695
        %v4251 = vmul.f32 %v2219, 1.442695
        %v4252 = vmul.f32 %v2221, 1.442695
        %v4253 = vmul.f32 %v2223, 1.442695
        %v4254 = vmul.f32 %v2225, 1.442695
        %v4255 = vmul.f32 %v2227, 1.442695
        %v4256 = vmul.f32 %v2229, 1.442695
        %v4257 = vmul.f32 %v2231, 1.442695
        %v4258 = vmul.f32 %v2233, 1.442695
        %v4259 = vmul.f32 %v2235, 1.442695
        %v4260 = vmul.f32 %v2237, 1.442695
        %v4261 = vmul.f32 %v2239, 1.442695
        %v4262 = vmul.f32 %v2241, 1.442695
        %v4263 = vmul.f32 %v2243, 1.442695
        %v4264 = vmul.f32 %v2245, 1.442695
        %v4265 = vmul.f32 %v2247, 1.442695
        %v4266 = vmul.f32 %v2249, 1.442695
        %v4267 = vmul.f32 %v2251, 1.442695
        %v4268 = vmul.f32 %v2253, 1.442695
        %v4269 = vmul.f32 %v2255, 1.442695
        %v4270 = vmul.f32 %v2257, 1.442695
        %v4271 = vmul.f32 %v2259, 1.442695
        %v4272 = vmul.f32 %v2261, 1.442695
        %v4273 = vmul.f32 %v2263, 1.442695
        %v4274 = vmul.f32 %v2265, 1.442695
        %v4275 = vmul.f32 %v2267, 1.442695
        %v4276 = vmul.f32 %v2269, 1.442695
        %v4277 = vmul.f32 %v2271, 1.442695
        %v4278 = vmul.f32 %v2273, 1.442695
        %v4279 = vmul.f32 %v2275, 1.442695
        %v4280 = vmul.f32 %v2277, 1.442695
        %v4281 = vmul.f32 %v2279, 1.442695
        %v4282 = vmul.f32 %v2281, 1.442695
        %v4283 = vmul.f32 %v2283, 1.442695
        %v4284 = vmul.f32 %v2285, 1.442695
        %v4285 = vmul.f32 %v2287, 1.442695
        %v4286 = vmul.f32 %v2289, 1.442695
        %v4287 = vmul.f32 %v2291, 1.442695
        %v4288 = vmul.f32 %v2293, 1.442695
        %v4289 = vmul.f32 %v2295, 1.442695
        %v4290 = vmul.f32 %v2297, 1.442695
        %v4291 = vmul.f32 %v2299, 1.442695
        %v4292 = vmul.f32 %v2301, 1.442695
        %v4293 = vmul.f32 %v2303, 1.442695
        %v4294 = vmul.f32 %v2305, 1.442695
        %v4295 = vmul.f32 %v2307, 1.442695
        %v4296 = vmul.f32 %v2309, 1.442695
        %v4297 = vmul.f32 %v2311, 1.442695
        %v4298 = vmul.f32 %v2313, 1.442695
        %v4299 = vmul.f32 %v2315, 1.442695
        %v4300 = vmul.f32 %v2317, 1.442695
        %v4301 = vmul.f32 %v2319, 1.442695
        %v4302 = vmul.f32 %v2321, 1.442695
        %v4303 = vmul.f32 %v2323, 1.442695
        %v4304 = vmul.f32 %v2325, 1.442695
        %v4305 = vmul.f32 %v2327, 1.442695
        %v4306 = vmul.f32 %v2329, 1.442695
        %v4307 = vmul.f32 %v2331, 1.442695
        %v4308 = vmul.f32 %v2333, 1.442695
        %v4309 = vmul.f32 %v2335, 1.442695
        %v4310 = vmul.f32 %v2337, 1.442695
        %v4311 = vmul.f32 %v2339, 1.442695
        %v4312 = vmul.f32 %v2341, 1.442695
        %v4313 = vmul.f32 %v2343, 1.442695
        %v4314 = vmul.f32 %v2345, 1.442695
        %v4315 = vmul.f32 %v2347, 1.442695
        %v4316 = vmul.f32 %v2349, 1.442695
        %v4317 = vmul.f32 %v2351, 1.442695
        %v4318 = vmul.f32 %v2353, 1.442695
        %v4319 = vmul.f32 %v2355, 1.442695
        %v4320 = vmul.f32 %v2357, 1.442695
        %v4321 = vmul.f32 %v2359, 1.442695
        %v4322 = vmul.f32 %v2361, 1.442695
        %v4323 = vmul.f32 %v2363, 1.442695
        %v4324 = vmul.f32 %v2365, 1.442695
        %v4325 = vmul.f32 %v2367, 1.442695
        %v4326 = vmul.f32 %v2369, 1.442695
        %v4327 = vmul.f32 %v2371, 1.442695
        %v4328 = vmul.f32 %v2373, 1.442695
        %v4329 = vmul.f32 %v2375, 1.442695
        %v4330 = vmul.f32 %v2377, 1.442695
        %v4331 = vmul.f32 %v2379, 1.442695
        %v4332 = vmul.f32 %v2381, 1.442695
        %v4333 = vmul.f32 %v2383, 1.442695
        %v4334 = vmul.f32 %v2385, 1.442695
        %v4335 = vmul.f32 %v2387, 1.442695
        %v4336 = vmul.f32 %v2389, 1.442695
        %v4337 = vmul.f32 %v2391, 1.442695
        %v4338 = vmul.f32 %v2393, 1.442695
        %v4339 = vmul.f32 %v2395, 1.442695
        %v4340 = vmul.f32 %v2397, 1.442695
        %v4341 = vmul.f32 %v2399, 1.442695
        %v4342 = vmul.f32 %v2401, 1.442695
        %v4343 = vmul.f32 %v2403, 1.442695
        %v4344 = vmul.f32 %v2405, 1.442695
        %v4345 = vmul.f32 %v2407, 1.442695
        %v4346 = vmul.f32 %v2409, 1.442695
        %v4347 = vmul.f32 %v2411, 1.442695
        %v4348 = vmul.f32 %v2413, 1.442695
        %v4349 = vmul.f32 %v2415, 1.442695
        %v4350 = vmul.f32 %v2417, 1.442695
        %v4351 = vmul.f32 %v2419, 1.442695
        %v4352 = vmul.f32 %v2421, 1.442695
        %v4353 = vmul.f32 %v2423, 1.442695
        %v4354 = vmul.f32 %v2425, 1.442695
        %v4355 = vmul.f32 %v2427, 1.442695
        %v4356 = vmul.f32 %v2429, 1.442695
        %v4357 = vmul.f32 %v2431, 1.442695
        %v4358 = vmul.f32 %v2433, 1.442695
        %v4359 = vmul.f32 %v2435, 1.442695
        %v4360 = vmul.f32 %v2437, 1.442695
        %v4361 = vmul.f32 %v2439, 1.442695
        %v4362 = vmul.f32 %v2441, 1.442695
        %v4363 = vmul.f32 %v2443, 1.442695
        %v4364 = vmul.f32 %v2445, 1.442695
        %v4365 = vmul.f32 %v2447, 1.442695
        %v4366 = vmul.f32 %v2449, 1.442695
        %v4367 = vmul.f32 %v2451, 1.442695
        %v4368 = vmul.f32 %v2453, 1.442695
        %v4369 = vmul.f32 %v2455, 1.442695
        %v4370 = vmul.f32 %v2457, 1.442695
        %v4371 = vmul.f32 %v2459, 1.442695
        %v4372 = vmul.f32 %v2461, 1.442695
        %v4373 = vmul.f32 %v2463, 1.442695
        %v4374 = vmul.f32 %v2465, 1.442695
        %v4375 = vmul.f32 %v2467, 1.442695
        %v4376 = vmul.f32 %v2469, 1.442695
        %v4377 = vmul.f32 %v2471, 1.442695
        %v4378 = vmul.f32 %v2473, 1.442695
        %v4379 = vmul.f32 %v2475, 1.442695
        %v4380 = vmul.f32 %v2477, 1.442695
        %v4381 = vmul.f32 %v2479, 1.442695
        %v4382 = vmul.f32 %v2481, 1.442695
        %v4383 = vmul.f32 %v2483, 1.442695
        %v4384 = vmul.f32 %v2485, 1.442695
        %v4385 = vmul.f32 %v2487, 1.442695
        %v4386 = vmul.f32 %v2489, 1.442695
        %v4387 = vmul.f32 %v2491, 1.442695
        %v4388 = vmul.f32 %v2493, 1.442695
        %v4389 = vmul.f32 %v2495, 1.442695
        %v4390 = vmul.f32 %v2497, 1.442695
        %v4391 = vmul.f32 %v2499, 1.442695
        %v4392 = vmul.f32 %v2501, 1.442695
        %v4393 = vmul.f32 %v2503, 1.442695
        %v4394 = vmul.f32 %v2505, 1.442695
        %v4395 = vmul.f32 %v2507, 1.442695
        %v4396 = vmul.f32 %v2509, 1.442695
        %v4397 = vmul.f32 %v2511, 1.442695
        %v4398 = vmul.f32 %v2513, 1.442695
        %v4399 = vmul.f32 %v2515, 1.442695
        %v4400 = vmul.f32 %v2517, 1.442695
        %v4401 = vmul.f32 %v2519, 1.442695
        %v4402 = vmul.f32 %v2521, 1.442695
        %v4403 = vmul.f32 %v2523, 1.442695
        %v4404 = vmul.f32 %v2525, 1.442695
        %v4405 = vmul.f32 %v2527, 1.442695
        %v4406 = vmul.f32 %v2529, 1.442695
        %v4407 = vmul.f32 %v2531, 1.442695
        %v4408 = vmul.f32 %v2533, 1.442695
        %v4409 = vmul.f32 %v2535, 1.442695
        %v4410 = vmul.f32 %v2537, 1.442695
        %v4411 = vmul.f32 %v2539, 1.442695
        %v4412 = vmul.f32 %v2541, 1.442695
        %v4413 = vmul.f32 %v2543, 1.442695
        %v4414 = vmul.f32 %v2545, 1.442695
        %v4415 = vmul.f32 %v2547, 1.442695
        %v4416 = vmul.f32 %v2549, 1.442695
        %v4417 = vmul.f32 %v2551, 1.442695
        %v4418 = vmul.f32 %v2553, 1.442695
        %v4419 = vmul.f32 %v2555, 1.442695
        %v4420 = vmul.f32 %v2557, 1.442695
        %v4421 = vmul.f32 %v2559, 1.442695
        %v4422 = vmul.f32 %v2561, 1.442695
        %v4423 = vmul.f32 %v2563, 1.442695
        %v4424 = vmul.f32 %v2565, 1.442695
        %v4425 = vmul.f32 %v2567, 1.442695
        %v4426 = vmul.f32 %v2569, 1.442695
        %v4427 = vmul.f32 %v2571, 1.442695
        %v4428 = vmul.f32 %v2573, 1.442695
        %v4429 = vmul.f32 %v2575, 1.442695
        %v4430 = vmul.f32 %v2577, 1.442695
        %v4431 = vmul.f32 %v2579, 1.442695
        %v4432 = vmul.f32 %v2581, 1.442695
        %v4433 = vmul.f32 %v2583, 1.442695
        %v4434 = vmul.f32 %v2585, 1.442695
        %v4435 = vmul.f32 %v2587, 1.442695
        %v4436 = vmul.f32 %v2589, 1.442695
        %v4437 = vmul.f32 %v2591, 1.442695
        %v4438 = vmul.f32 %v2593, 1.442695
        %v4439 = vmul.f32 %v2595, 1.442695
        %v4440 = vmul.f32 %v2597, 1.442695
        %v4441 = vmul.f32 %v2599, 1.442695
        %v4442 = vmul.f32 %v2601, 1.442695
        %v4443 = vmul.f32 %v2603, 1.442695
        %v4444 = vmul.f32 %v2605, 1.442695
        %v4445 = vmul.f32 %v2607, 1.442695
        %v4446 = vmul.f32 %v2609, 1.442695
        %v4447 = vmul.f32 %v2611, 1.442695
        %v4448 = vmul.f32 %v2613, 1.442695
        %v4449 = vmul.f32 %v2615, 1.442695
        %v4450 = vmul.f32 %v2617, 1.442695
        %v4451 = vmul.f32 %v2619, 1.442695
        %v4452 = vmul.f32 %v2621, 1.442695
        %v4453 = vmul.f32 %v2623, 1.442695
        %v4454 = vmul.f32 %v2625, 1.442695
        %v4455 = vmul.f32 %v2627, 1.442695
        %v4456 = vmul.f32 %v2629, 1.442695
        %v4457 = vmul.f32 %v2631, 1.442695
        %v4458 = vmul.f32 %v2633, 1.442695
        %v4459 = vmul.f32 %v2635, 1.442695
        %v4460 = vmul.f32 %v2637, 1.442695
        %v4461 = vmul.f32 %v2639, 1.442695
        %v4462 = vmul.f32 %v2641, 1.442695
        %v4463 = vmul.f32 %v2643, 1.442695
        %v4464 = vmul.f32 %v2645, 1.442695
        %v4465 = vmul.f32 %v2647, 1.442695
        %v4466 = vmul.f32 %v2649, 1.442695
        %v4467 = vmul.f32 %v2651, 1.442695
        %v4468 = vmul.f32 %v2653, 1.442695
        %v4469 = vmul.f32 %v2655, 1.442695
        %v4470 = vmul.f32 %v2657, 1.442695
        %v4471 = vmul.f32 %v2659, 1.442695
        %v4472 = vmul.f32 %v2661, 1.442695
        %v4473 = vmul.f32 %v2663, 1.442695
        %v4474 = vmul.f32 %v2665, 1.442695
        %v4475 = vmul.f32 %v2667, 1.442695
        %v4476 = vmul.f32 %v2669, 1.442695
        %v4477 = vmul.f32 %v2671, 1.442695
        %v4478 = vmul.f32 %v2673, 1.442695
        %v4479 = vmul.f32 %v2675, 1.442695
        %v4480 = vmul.f32 %v2677, 1.442695
        %v4481 = vmul.f32 %v2679, 1.442695
        %v4482 = vmul.f32 %v2681, 1.442695
        %v4483 = vmul.f32 %v2683, 1.442695
        %v4484 = vmul.f32 %v2685, 1.442695
        %v4485 = vmul.f32 %v2687, 1.442695
        %v4486 = vmul.f32 %v2689, 1.442695
        %v4487 = vmul.f32 %v2691, 1.442695
        %v4488 = vmul.f32 %v2693, 1.442695
        %v4489 = vmul.f32 %v2695, 1.442695
        %v4490 = vmul.f32 %v2697, 1.442695
        %v4491 = vmul.f32 %v2699, 1.442695
        %v4492 = vmul.f32 %v2701, 1.442695
        %v4493 = vmul.f32 %v2703, 1.442695
        %v4494 = vmul.f32 %v2705, 1.442695
        %v4495 = vmul.f32 %v2707, 1.442695
        %v4496 = vmul.f32 %v2709, 1.442695
        %v4497 = vmul.f32 %v2711, 1.442695
        %v4498 = vmul.f32 %v2713, 1.442695
        %v4499 = vmul.f32 %v2715, 1.442695
        %v4500 = vmul.f32 %v2717, 1.442695
        %v4501 = vmul.f32 %v2719, 1.442695
        %v4502 = vmul.f32 %v2721, 1.442695
        %v4503 = vmul.f32 %v2723, 1.442695
        %v4504 = vmul.f32 %v2725, 1.442695
        %v4505 = vmul.f32 %v2727, 1.442695
        %v4506 = vmul.f32 %v2729, 1.442695
        %v4507 = vmul.f32 %v2731, 1.442695
        %v4508 = vmul.f32 %v2733, 1.442695
        %v4509 = vmul.f32 %v2735, 1.442695
        %v4510 = vmul.f32 %v2737, 1.442695
        %v4511 = vmul.f32 %v2739, 1.442695
        %v4512 = vmul.f32 %v2741, 1.442695
        %v4513 = vmul.f32 %v2743, 1.442695
        %v4514 = vmul.f32 %v2745, 1.442695
        %v4515 = vmul.f32 %v2747, 1.442695
        %v4516 = vmul.f32 %v2749, 1.442695
        %v4517 = vmul.f32 %v2751, 1.442695
        %v4518 = vmul.f32 %v2753, 1.442695
        %v4519 = vmul.f32 %v2755, 1.442695
        %v4520 = vmul.f32 %v2757, 1.442695
        %v4521 = vmul.f32 %v2759, 1.442695
        %v4522 = vmul.f32 %v2761, 1.442695
        %v4523 = vmul.f32 %v2763, 1.442695
        %v4524 = vmul.f32 %v2765, 1.442695
        %v4525 = vmul.f32 %v2767, 1.442695
        %v4526 = vmul.f32 %v2769, 1.442695
        %v4527 = vmul.f32 %v2771, 1.442695
        %v4528 = vmul.f32 %v2773, 1.442695
        %v4529 = vmul.f32 %v2775, 1.442695
        %v4530 = vmul.f32 %v2777, 1.442695
        %v4531 = vmul.f32 %v2779, 1.442695
        %v4532 = vmul.f32 %v2781, 1.442695
        %v4533 = vmul.f32 %v2783, 1.442695
        %v4534 = vmul.f32 %v2785, 1.442695
        %v4535 = vmul.f32 %v2787, 1.442695
        %v4536 = vmul.f32 %v2789, 1.442695
        %v4537 = vmul.f32 %v2791, 1.442695
        %v4538 = vmul.f32 %v2793, 1.442695
        %v4539 = vmul.f32 %v2795, 1.442695
        %v4540 = vmul.f32 %v2797, 1.442695
        %v4541 = vmul.f32 %v2799, 1.442695
        %v4542 = vmul.f32 %v2801, 1.442695
        %v4543 = vmul.f32 %v2803, 1.442695
        %v4544 = vmul.f32 %v2805, 1.442695
        %v4545 = vmul.f32 %v2807, 1.442695
        %v4546 = vmul.f32 %v2809, 1.442695
        %v4547 = vmul.f32 %v2811, 1.442695
        %v4548 = vmul.f32 %v2813, 1.442695
        %v4549 = vmul.f32 %v2815, 1.442695
        %v4550 = vmul.f32 %v2817, 1.442695
        %v4551 = vmul.f32 %v2819, 1.442695
        %v4552 = vmul.f32 %v2821, 1.442695
        %v4553 = vmul.f32 %v2823, 1.442695
        %v4554 = vmul.f32 %v2825, 1.442695
        %v4555 = vmul.f32 %v2827, 1.442695
        %v4556 = vmul.f32 %v2829, 1.442695
        %v4557 = vmul.f32 %v2831, 1.442695
        %v4558 = vmul.f32 %v2833, 1.442695
        %v4559 = vmul.f32 %v2835, 1.442695
        %v4560 = vmul.f32 %v2837, 1.442695
        %v4561 = vmul.f32 %v2839, 1.442695
        %v4562 = vmul.f32 %v2841, 1.442695
        %v4563 = vmul.f32 %v2843, 1.442695
        %v4564 = vmul.f32 %v2845, 1.442695
        %v4565 = vmul.f32 %v2847, 1.442695
        %v4566 = vmul.f32 %v2849, 1.442695
        %v4567 = vmul.f32 %v2851, 1.442695
        %v4568 = vmul.f32 %v2853, 1.442695
        %v4569 = vmul.f32 %v2855, 1.442695
        %v4570 = vmul.f32 %v2857, 1.442695
        %v4571 = vmul.f32 %v2859, 1.442695
        %v4572 = vmul.f32 %v2861, 1.442695
        %v4573 = vmul.f32 %v2863, 1.442695
        %v4574 = vmul.f32 %v2865, 1.442695
        %v4575 = vmul.f32 %v2867, 1.442695
        %v4576 = vmul.f32 %v2869, 1.442695
        %v4577 = vmul.f32 %v2871, 1.442695
        %v4578 = vmul.f32 %v2873, 1.442695
        %v4579 = vmul.f32 %v2875, 1.442695
        %v4580 = vmul.f32 %v2877, 1.442695
        %v4581 = vmul.f32 %v2879, 1.442695
        %v4582 = vmul.f32 %v2881, 1.442695
        %v4583 = vmul.f32 %v2883, 1.442695
        %v4584 = vmul.f32 %v2885, 1.442695
        %v4585 = vmul.f32 %v2887, 1.442695
        %v4586 = vmul.f32 %v2889, 1.442695
        %v4587 = vmul.f32 %v2891, 1.442695
        %v4588 = vmul.f32 %v2893, 1.442695
        %v4589 = vmul.f32 %v2895, 1.442695
        %v4590 = vmul.f32 %v2897, 1.442695
        %v4591 = vmul.f32 %v2899, 1.442695
        %v4592 = vmul.f32 %v2901, 1.442695
        %v4593 = vmul.f32 %v2903, 1.442695
        %v4594 = vmul.f32 %v2905, 1.442695
        %v4595 = vmul.f32 %v2907, 1.442695
        %v4596 = vmul.f32 %v2909, 1.442695
        %v4597 = vmul.f32 %v2911, 1.442695
        %v4598 = vmul.f32 %v2913, 1.442695
        %v4599 = vmul.f32 %v2915, 1.442695
        %v4600 = vmul.f32 %v2917, 1.442695
        %v4601 = vmul.f32 %v2919, 1.442695
        %v4602 = vmul.f32 %v2921, 1.442695
        %v4603 = vmul.f32 %v2923, 1.442695
        %v4604 = vmul.f32 %v2925, 1.442695
        %v4605 = vmul.f32 %v2927, 1.442695
        %v4606 = vmul.f32 %v2929, 1.442695
        %v4607 = vmul.f32 %v2931, 1.442695
        %v4608 = vmul.f32 %v2933, 1.442695
        %v4609 = vmul.f32 %v2935, 1.442695
        %v4610 = vmul.f32 %v2937, 1.442695
        %v4611 = vmul.f32 %v2939, 1.442695
        %v4612 = vmul.f32 %v2941, 1.442695
        %v4613 = vmul.f32 %v2943, 1.442695
        %v4614 = vmul.f32 %v2945, 1.442695
        %v4615 = vmul.f32 %v2947, 1.442695
        %v4616 = vmul.f32 %v2949, 1.442695
        %v4617 = vmul.f32 %v2951, 1.442695
        %v4618 = vmul.f32 %v2953, 1.442695
        %v4619 = vmul.f32 %v2955, 1.442695
        %v4620 = vmul.f32 %v2957, 1.442695
        %v4621 = vmul.f32 %v2959, 1.442695
        %v4622 = vmul.f32 %v2961, 1.442695
        %v4623 = vmul.f32 %v2963, 1.442695
        %v4624 = vmul.f32 %v2965, 1.442695
        %v4625 = vmul.f32 %v2967, 1.442695
        %v4626 = vmul.f32 %v2969, 1.442695
        %v4627 = vmul.f32 %v2971, 1.442695
        %v4628 = vmul.f32 %v2973, 1.442695
        %v4629 = vmul.f32 %v2975, 1.442695
        %v4630 = vmul.f32 %v2977, 1.442695
        %v4631 = vmul.f32 %v2979, 1.442695
        %v4632 = vmul.f32 %v2981, 1.442695
        %v4633 = vmul.f32 %v2983, 1.442695
        %v4634 = vmul.f32 %v2985, 1.442695
        %v4635 = vmul.f32 %v2987, 1.442695
        %v4636 = vmul.f32 %v2989, 1.442695
        %v4637 = vmul.f32 %v2991, 1.442695
        %v4638 = vmul.f32 %v2993, 1.442695
        %v4639 = vmul.f32 %v2995, 1.442695
        %v4640 = vmul.f32 %v2997, 1.442695
        %v4641 = vmul.f32 %v2999, 1.442695
        %v4642 = vmul.f32 %v3001, 1.442695
        %v4643 = vmul.f32 %v3003, 1.442695
        %v4644 = vmul.f32 %v3005, 1.442695
        %v4645 = vmul.f32 %v3007, 1.442695
        %v4646 = vmul.f32 %v3009, 1.442695
        %v4647 = vmul.f32 %v3011, 1.442695
        %v4648 = vmul.f32 %v3013, 1.442695
        %v4649 = vmul.f32 %v3015, 1.442695
        %v4650 = vmul.f32 %v3017, 1.442695
        %v4651 = vmul.f32 %v3019, 1.442695
        %v4652 = vmul.f32 %v3021, 1.442695
        %v4653 = vmul.f32 %v3023, 1.442695
        %v4654 = vmul.f32 %v3025, 1.442695
        %v4655 = vmul.f32 %v3027, 1.442695
        %v4656 = vmul.f32 %v3029, 1.442695
        %v4657 = vmul.f32 %v3031, 1.442695
        %v4658 = vmul.f32 %v3033, 1.442695
        %v4659 = vmul.f32 %v3035, 1.442695
        %v4660 = vmul.f32 %v3037, 1.442695
        %v4661 = vmul.f32 %v3039, 1.442695
        %v4662 = vmul.f32 %v3041, 1.442695
        %v4663 = vmul.f32 %v3043, 1.442695
        %v4664 = vmul.f32 %v3045, 1.442695
        %v4665 = vmul.f32 %v3047, 1.442695
        %v4666 = vmul.f32 %v3049, 1.442695
        %v4667 = vmul.f32 %v3051, 1.442695
        %v4668 = vmul.f32 %v3053, 1.442695
        %v4669 = vmul.f32 %v3055, 1.442695
        %v4670 = vmul.f32 %v3057, 1.442695
        %v4671 = vmul.f32 %v3059, 1.442695
        %v4672 = vmul.f32 %v3061, 1.442695
        %v4673 = vmul.f32 %v3063, 1.442695
        %v4674 = vmul.f32 %v3065, 1.442695
        %v4675 = vmul.f32 %v3067, 1.442695
        %v4676 = vmul.f32 %v3069, 1.442695
        %v4677 = vmul.f32 %v3071, 1.442695
        %v4678 = vmul.f32 %v3073, 1.442695
        %v4679 = vmul.f32 %v3075, 1.442695
        %v4680 = vmul.f32 %v3077, 1.442695
        %v4681 = vmul.f32 %v3079, 1.442695
        %v4682 = vmul.f32 %v3081, 1.442695
        %v4683 = vmul.f32 %v3083, 1.442695
        %v4684 = vmul.f32 %v3085, 1.442695
        %v4685 = vmul.f32 %v3087, 1.442695
        %v4686 = vmul.f32 %v3089, 1.442695
        %v4687 = vmul.f32 %v3091, 1.442695
        %v4688 = vmul.f32 %v3093, 1.442695
        %v4689 = vmul.f32 %v3095, 1.442695
        %v4690 = vmul.f32 %v3097, 1.442695
        %v4691 = vmul.f32 %v3099, 1.442695
        %v4692 = vmul.f32 %v3101, 1.442695
        %v4693 = vmul.f32 %v3103, 1.442695
        %v4694 = vmul.f32 %v3105, 1.442695
        %v4695 = vmul.f32 %v3107, 1.442695
        %v4696 = vmul.f32 %v3109, 1.442695
        %v4697 = vmul.f32 %v3111, 1.442695
        %v4698 = vmul.f32 %v3113, 1.442695
        %v4699 = vmul.f32 %v3115, 1.442695
        %v4700 = vmul.f32 %v3117, 1.442695
        %v4701 = vmul.f32 %v3119, 1.442695
        %v4702 = vmul.f32 %v3121, 1.442695
        %v4703 = vmul.f32 %v3123, 1.442695
        %v4704 = vmul.f32 %v3125, 1.442695
        %v4705 = vmul.f32 %v3127, 1.442695
        %v4706 = vmul.f32 %v3129, 1.442695
        %v4707 = vmul.f32 %v3131, 1.442695
        %v4708 = vmul.f32 %v3133, 1.442695
        %v4709 = vmul.f32 %v3135, 1.442695
        %v4710 = vmul.f32 %v3137, 1.442695
        %v4711 = vmul.f32 %v3139, 1.442695
        %v4712 = vmul.f32 %v3141, 1.442695
        %v4713 = vmul.f32 %v3143, 1.442695
        %v4714 = vmul.f32 %v3145, 1.442695
        %v4715 = vmul.f32 %v3147, 1.442695
        %v4716 = vmul.f32 %v3149, 1.442695
        %v4717 = vmul.f32 %v3151, 1.442695
        %v4718 = vmul.f32 %v3153, 1.442695
        %v4719 = vmul.f32 %v3155, 1.442695
        %v4720 = vmul.f32 %v3157, 1.442695
        %v4721 = vmul.f32 %v3159, 1.442695
        %v4722 = vmul.f32 %v3161, 1.442695
        %v4723 = vmul.f32 %v3163, 1.442695
        %v4724 = vmul.f32 %v3165, 1.442695
        %v4725 = vmul.f32 %v3167, 1.442695
        %v4726 = vmul.f32 %v3169, 1.442695
        %v4727 = vmul.f32 %v3171, 1.442695
        %v4728 = vmul.f32 %v3173, 1.442695
        %v4729 = vmul.f32 %v3175, 1.442695
        %v4730 = vmul.f32 %v3177, 1.442695
        %v4731 = vmul.f32 %v3179, 1.442695
        %v4732 = vmul.f32 %v3181, 1.442695
        %v4733 = vmul.f32 %v3183, 1.442695
        %v4734 = vmul.f32 %v3185, 1.442695
        %v4735 = vmul.f32 %v3187, 1.442695
        %v4736 = vmul.f32 %v3189, 1.442695
        %v4737 = vmul.f32 %v3191, 1.442695
        %v4738 = vmul.f32 %v3193, 1.442695
        %v4739 = vmul.f32 %v3195, 1.442695
        %v4740 = vmul.f32 %v3197, 1.442695
        %v4741 = vmul.f32 %v3199, 1.442695
        %v4742 = vmul.f32 %v3201, 1.442695
        %v4743 = vmul.f32 %v3203, 1.442695
        %v4744 = vmul.f32 %v3205, 1.442695
        %v4745 = vmul.f32 %v3207, 1.442695
        %v4746 = vmul.f32 %v3209, 1.442695
        %v4747 = vmul.f32 %v3211, 1.442695
        %v4748 = vmul.f32 %v3213, 1.442695
        %v4749 = vmul.f32 %v3215, 1.442695
        %v4750 = vmul.f32 %v3217, 1.442695
        %v4751 = vmul.f32 %v3219, 1.442695
        %v4752 = vmul.f32 %v3221, 1.442695
        %v4753 = vmul.f32 %v3223, 1.442695
        %v4754 = vmul.f32 %v3225, 1.442695
        %v4755 = vmul.f32 %v3227, 1.442695
        %v4756 = vmul.f32 %v3229, 1.442695
        %v4757 = vmul.f32 %v3231, 1.442695
        %v4758 = vmul.f32 %v3233, 1.442695
        %v4759 = vmul.f32 %v3235, 1.442695
        %v4760 = vmul.f32 %v3237, 1.442695
        %v4761 = vmul.f32 %v3239, 1.442695
        %v4762 = vmul.f32 %v3241, 1.442695
        %v4763 = vmul.f32 %v3243, 1.442695
        %v4764 = vmul.f32 %v3245, 1.442695
        %v4765 = vmul.f32 %v3247, 1.442695
        %v4766 = vmul.f32 %v3249, 1.442695
        %v4767 = vmul.f32 %v3251, 1.442695
        %v4768 = vmul.f32 %v3253, 1.442695
        %v4769 = vmul.f32 %v3255, 1.442695
        %v4770 = vmul.f32 %v3257, 1.442695
        %v4771 = vmul.f32 %v3259, 1.442695
        %v4772 = vmul.f32 %v3261, 1.442695
        %v4773 = vmul.f32 %v3263, 1.442695
        %v4774 = vmul.f32 %v3265, 1.442695
        %v4775 = vmul.f32 %v3267, 1.442695
        %v4776 = vmul.f32 %v3269, 1.442695
        %v4777 = vmul.f32 %v3271, 1.442695
        %v4778 = vmul.f32 %v3273, 1.442695
        %v4779 = vmul.f32 %v3275, 1.442695
        %v4780 = vmul.f32 %v3277, 1.442695
        %v4781 = vmul.f32 %v3279, 1.442695
        %v4782 = vmul.f32 %v3281, 1.442695
        %v4783 = vmul.f32 %v3283, 1.442695
        %v4784 = vmul.f32 %v3285, 1.442695
        %v4785 = vmul.f32 %v3287, 1.442695
        %v4786 = vmul.f32 %v3289, 1.442695
        %v4787 = vmul.f32 %v3291, 1.442695
        %v4788 = vmul.f32 %v3293, 1.442695
        %v4789 = vmul.f32 %v3295, 1.442695
        %v4790 = vmul.f32 %v3297, 1.442695
        %v4791 = vmul.f32 %v3299, 1.442695
        %v4792 = vmul.f32 %v3301, 1.442695
        %v4793 = vmul.f32 %v3303, 1.442695
        %v4794 = vmul.f32 %v3305, 1.442695
        %v4795 = vmul.f32 %v3307, 1.442695
        %v4796 = vmul.f32 %v3309, 1.442695
        %v4797 = vmul.f32 %v3311, 1.442695
        %v4798 = vmul.f32 %v3313, 1.442695
        %v4799 = vmul.f32 %v3315, 1.442695
        %v4800 = vmul.f32 %v3317, 1.442695
        %v4801 = vmul.f32 %v3319, 1.442695
        %v4802 = vmul.f32 %v3321, 1.442695
        %v4803 = vmul.f32 %v3323, 1.442695
        %v4804 = vmul.f32 %v3325, 1.442695
        %v4805 = vmul.f32 %v3327, 1.442695
        %v4806 = vmul.f32 %v3329, 1.442695
        %v4807 = vmul.f32 %v3331, 1.442695
        %v4808 = vmul.f32 %v3333, 1.442695
        %v4809 = vmul.f32 %v3335, 1.442695
        %v4810 = vmul.f32 %v3337, 1.442695
        %v4811 = vmul.f32 %v3339, 1.442695
        %v4812 = vmul.f32 %v3341, 1.442695
        %v4813 = vmul.f32 %v3343, 1.442695
        %v4814 = vmul.f32 %v3345, 1.442695
        %v4815 = vmul.f32 %v3347, 1.442695
        %v4816 = vmul.f32 %v3349, 1.442695
        %v4817 = vmul.f32 %v3351, 1.442695
        %v4818 = vmul.f32 %v3353, 1.442695
        %v4819 = vmul.f32 %v3355, 1.442695
        %v4820 = vmul.f32 %v3357, 1.442695
        %v4821 = vmul.f32 %v3359, 1.442695
        %v4822 = vmul.f32 %v3361, 1.442695
        %v4823 = vmul.f32 %v3363, 1.442695
        %v4824 = vmul.f32 %v3365, 1.442695
        %v4825 = vmul.f32 %v3367, 1.442695
        %v4826 = vmul.f32 %v3369, 1.442695
        %v4827 = vmul.f32 %v3371, 1.442695
        %v4828 = vmul.f32 %v3373, 1.442695
        %v4829 = vmul.f32 %v3375, 1.442695
        %v4830 = vmul.f32 %v3377, 1.442695
        %v4831 = vmul.f32 %v3379, 1.442695
        %v4832 = vmul.f32 %v3381, 1.442695
        %v4833 = vmul.f32 %v3383, 1.442695
        %v4834 = vmul.f32 %v3385, 1.442695
        %v4835 = vmul.f32 %v3387, 1.442695
        %v4836 = vmul.f32 %v3389, 1.442695
        %v4837 = vmul.f32 %v3391, 1.442695
        %v4838 = vmul.f32 %v3393, 1.442695
        %v4839 = vmul.f32 %v3395, 1.442695
        %v4840 = vmul.f32 %v3397, 1.442695
        %v4841 = vmul.f32 %v3399, 1.442695
        %v4842 = vmul.f32 %v3401, 1.442695
        %v4843 = vmul.f32 %v3403, 1.442695
        %v4844 = vmul.f32 %v3405, 1.442695
        %v4845 = vmul.f32 %v3407, 1.442695
        %v4846 = vmul.f32 %v3409, 1.442695
        %v4847 = vmul.f32 %v3411, 1.442695
        %v4848 = vmul.f32 %v3413, 1.442695
        %v4849 = vmul.f32 %v3415, 1.442695
        %v4850 = vmul.f32 %v3417, 1.442695
        %v4851 = vmul.f32 %v3419, 1.442695
        %v4852 = vmul.f32 %v3421, 1.442695
        %v4853 = vmul.f32 %v3423, 1.442695
        %v4854 = vmul.f32 %v3425, 1.442695
        %v4855 = vmul.f32 %v3427, 1.442695
        %v4856 = vmul.f32 %v3429, 1.442695
        %v4857 = vmul.f32 %v3431, 1.442695
        %v4858 = vmul.f32 %v3433, 1.442695
        %v4859 = vmul.f32 %v3435, 1.442695
        %v4860 = vmul.f32 %v3437, 1.442695
        %v4861 = vmul.f32 %v3439, 1.442695
        %v4862 = vmul.f32 %v3441, 1.442695
        %v4863 = vmul.f32 %v3443, 1.442695
        %v4864 = vmul.f32 %v3445, 1.442695
        %v4865 = vmul.f32 %v3447, 1.442695
        %v4866 = vmul.f32 %v3449, 1.442695
        %v4867 = vmul.f32 %v3451, 1.442695
        %v4868 = vmul.f32 %v3453, 1.442695
        %v4869 = vmul.f32 %v3455, 1.442695
        %v4870 = vmul.f32 %v3457, 1.442695
        %v4871 = vmul.f32 %v3459, 1.442695
        %v4872 = vmul.f32 %v3461, 1.442695
        %v4873 = vmul.f32 %v3463, 1.442695
        %v4874 = vmul.f32 %v3465, 1.442695
        %v4875 = vmul.f32 %v3467, 1.442695
        %v4876 = vmul.f32 %v3469, 1.442695
        %v4877 = vmul.f32 %v3471, 1.442695
        %v4878 = vmul.f32 %v3473, 1.442695
        %v4879 = vmul.f32 %v3475, 1.442695
        %v4880 = vmul.f32 %v3477, 1.442695
        %v4881 = vmul.f32 %v3479, 1.442695
        %v4882 = vmul.f32 %v3481, 1.442695
        %v4883 = vmul.f32 %v3483, 1.442695
        %v4884 = vmul.f32 %v3485, 1.442695
        %v4885 = vmul.f32 %v3487, 1.442695
        %v4886 = vmul.f32 %v3489, 1.442695
        %v4887 = vmul.f32 %v3491, 1.442695
        %v4888 = vmul.f32 %v3493, 1.442695
        %v4889 = vmul.f32 %v3495, 1.442695
        %v4890 = vmul.f32 %v3497, 1.442695
        %v4891 = vmul.f32 %v3499, 1.442695
        %v4892 = vmul.f32 %v3501, 1.442695
        %v4893 = vmul.f32 %v3503, 1.442695
        %v4894 = vmul.f32 %v3505, 1.442695
        %v4895 = vmul.f32 %v3507, 1.442695
        %v4896 = vmul.f32 %v3509, 1.442695
        %v4897 = vmul.f32 %v3511, 1.442695
        %v4898 = vmul.f32 %v3513, 1.442695
        %v4899 = vmul.f32 %v3515, 1.442695
        %v4900 = vmul.f32 %v3517, 1.442695
        %v4901 = vmul.f32 %v3519, 1.442695
        %v4902 = vmul.f32 %v3521, 1.442695
        %v4903 = vmul.f32 %v3523, 1.442695
        %v4904 = vmul.f32 %v3525, 1.442695
        %v4905 = vmul.f32 %v3527, 1.442695
        %v4906 = vmul.f32 %v3529, 1.442695
        %v4907 = vmul.f32 %v3531, 1.442695
        %v4908 = vmul.f32 %v3533, 1.442695
        %v4909 = vmul.f32 %v3535, 1.442695
        %v4910 = vmul.f32 %v3537, 1.442695
        %v4911 = vmul.f32 %v3539, 1.442695
        %v4912 = vmul.f32 %v3541, 1.442695
        %v4913 = vmul.f32 %v3543, 1.442695
        %v4914 = vmul.f32 %v3545, 1.442695
        %v4915 = vmul.f32 %v3547, 1.442695
        %v4916 = vmul.f32 %v3549, 1.442695
        %v4917 = vmul.f32 %v3551, 1.442695
        %v4918 = vmul.f32 %v3553, 1.442695
        %v4919 = vmul.f32 %v3555, 1.442695
        %v4920 = vmul.f32 %v3557, 1.442695
        %v4921 = vmul.f32 %v3559, 1.442695
        %v4922 = vmul.f32 %v3561, 1.442695
        %v4923 = vmul.f32 %v3563, 1.442695
        %v4924 = vmul.f32 %v3565, 1.442695
        %v4925 = vmul.f32 %v3567, 1.442695
        %v4926 = vmul.f32 %v3569, 1.442695
        %v4927 = vmul.f32 %v3571, 1.442695
        %v4928 = vmul.f32 %v3573, 1.442695
        %v4929 = vmul.f32 %v3575, 1.442695
        %v4930 = vmul.f32 %v3577, 1.442695
        %v4931 = vmul.f32 %v3579, 1.442695
        %v4932 = vmul.f32 %v3581, 1.442695
        %v4933 = vmul.f32 %v3583, 1.442695
        %v4934 = vmul.f32 %v3585, 1.442695
        %v4935 = vmul.f32 %v3587, 1.442695
        %v4936 = vmul.f32 %v3589, 1.442695
        %v4937 = vmul.f32 %v3591, 1.442695
        %v4938 = vmul.f32 %v3593, 1.442695
        %v4939 = vmul.f32 %v3595, 1.442695
        %v4940 = vmul.f32 %v3597, 1.442695
        %v4941 = vmul.f32 %v3599, 1.442695
        %v4942 = vmul.f32 %v3601, 1.442695
        %v4943 = vmul.f32 %v3603, 1.442695
        %v4944 = vmul.f32 %v3605, 1.442695
        %v4945 = vmul.f32 %v3607, 1.442695
        %v4946 = vmul.f32 %v3609, 1.442695
        %v4947 = vmul.f32 %v3611, 1.442695
        %v4948 = vmul.f32 %v3613, 1.442695
        %v4949 = vmul.f32 %v3615, 1.442695
        %v4950 = vmul.f32 %v3617, 1.442695
        %v4951 = vmul.f32 %v3619, 1.442695
        %v4952 = vmul.f32 %v3621, 1.442695
        %v4953 = vmul.f32 %v3623, 1.442695
        %v4954 = vmul.f32 %v3625, 1.442695
        %v4955 = vmul.f32 %v3627, 1.442695
        %v4956 = vmul.f32 %v3629, 1.442695
        %v4957 = vmul.f32 %v3631, 1.442695
        %v4958 = vmul.f32 %v3633, 1.442695
        %v4959 = vmul.f32 %v3635, 1.442695
        %v4960 = vmul.f32 %v3637, 1.442695
        %v4961 = vmul.f32 %v3639, 1.442695
        %v4962 = vmul.f32 %v3641, 1.442695
        %v4963 = vmul.f32 %v3643, 1.442695
        %v4964 = vmul.f32 %v3645, 1.442695
        %v4965 = vmul.f32 %v3647, 1.442695
        %v4966 = vmul.f32 %v3649, 1.442695
        %v4967 = vmul.f32 %v3651, 1.442695
        %v4968 = vmul.f32 %v3653, 1.442695
        %v4969 = vmul.f32 %v3655, 1.442695
        %v4970 = vmul.f32 %v3657, 1.442695
        %v4971 = vmul.f32 %v3659, 1.442695
        %v4972 = vmul.f32 %v3661, 1.442695
        %v4973 = vmul.f32 %v3663, 1.442695
        %v4974 = vmul.f32 %v3665, 1.442695
        %v4975 = vmul.f32 %v3667, 1.442695
        %v4976 = vmul.f32 %v3669, 1.442695
        %v4977 = vmul.f32 %v3671, 1.442695
        %v4978 = vmul.f32 %v3673, 1.442695
        %v4979 = vmul.f32 %v3675, 1.442695
        %v4980 = vmul.f32 %v3677, 1.442695
        %v4981 = vmul.f32 %v3679, 1.442695
        %v4982 = vmul.f32 %v3681, 1.442695
        %v4983 = vmul.f32 %v3683, 1.442695
        %v4984 = vmul.f32 %v3685, 1.442695
        %v4985 = vmul.f32 %v3687, 1.442695
        %v4986 = vmul.f32 %v3689, 1.442695
        %v4987 = vmul.f32 %v3691, 1.442695
        %v4988 = vmul.f32 %v3693, 1.442695
        %v4989 = vmul.f32 %v3695, 1.442695
        %v4990 = vmul.f32 %v3697, 1.442695
        %v4991 = vmul.f32 %v3699, 1.442695
        %v4992 = vmul.f32 %v3701, 1.442695
        %v4993 = vmul.f32 %v3703, 1.442695
        %v4994 = vmul.f32 %v3705, 1.442695
        %v4995 = vmul.f32 %v3707, 1.442695
        %v4996 = vmul.f32 %v3709, 1.442695
        %v4997 = vmul.f32 %v3711, 1.442695
        %v4998 = vmul.f32 %v3713, 1.442695
        %v4999 = vmul.f32 %v3715, 1.442695
        %v5000 = vmul.f32 %v3717, 1.442695
        %v5001 = vmul.f32 %v3719, 1.442695
        %v5002 = vmul.f32 %v3721, 1.442695
        %v5003 = vmul.f32 %v3723, 1.442695
        %v5004 = vmul.f32 %v3725, 1.442695
        %v5005 = vmul.f32 %v3727, 1.442695
        %v5006 = vmul.f32 %v3729, 1.442695
        %v5007 = vmul.f32 %v3731, 1.442695
        %v5008 = vmul.f32 %v3733, 1.442695
        %v5009 = vmul.f32 %v3735, 1.442695
        %v5010 = vmul.f32 %v3737, 1.442695
        %v5011 = vmul.f32 %v3739, 1.442695
        %v5012 = vmul.f32 %v3741, 1.442695
        %v5013 = vmul.f32 %v3743, 1.442695
        %v5014 = vmul.f32 %v3745, 1.442695
        %v5015 = vmul.f32 %v3747, 1.442695
        %v5016 = vmul.f32 %v3749, 1.442695
        %v5017 = vmul.f32 %v3751, 1.442695
        %v5018 = vmul.f32 %v3753, 1.442695
        %v5019 = vmul.f32 %v3755, 1.442695
        %v5020 = vmul.f32 %v3757, 1.442695
        %v5021 = vmul.f32 %v3759, 1.442695
        %v5022 = vmul.f32 %v3761, 1.442695
        %v5023 = vmul.f32 %v3763, 1.442695
        %v5024 = vmul.f32 %v3765, 1.442695
        %v5025 = vmul.f32 %v3767, 1.442695
        %v5026 = vmul.f32 %v3769, 1.442695
        %v5027 = vmul.f32 %v3771, 1.442695
        %v5028 = vmul.f32 %v3773, 1.442695
        %v5029 = vmul.f32 %v3775, 1.442695
        %v5030 = vmul.f32 %v3777, 1.442695
        %v5031 = vmul.f32 %v3779, 1.442695
        %v5032 = vmul.f32 %v3781, 1.442695
        %v5033 = vmul.f32 %v3783, 1.442695
        %v5034 = vmul.f32 %v3785, 1.442695
        %v5035 = vmul.f32 %v3787, 1.442695
        %v5036 = vmul.f32 %v3789, 1.442695
        %v5037 = vmul.f32 %v3791, 1.442695
        %v5038 = vmul.f32 %v3793, 1.442695
        %v5039 = vmul.f32 %v3795, 1.442695
        %v5040 = vmul.f32 %v3797, 1.442695
        %v5041 = vmul.f32 %v3799, 1.442695
        %v5042 = vmul.f32 %v3801, 1.442695
        %v5043 = vmul.f32 %v3803, 1.442695
        %v5044 = vmul.f32 %v3805, 1.442695
        %v5045 = vmul.f32 %v3807, 1.442695
        %v5046 = vmul.f32 %v3809, 1.442695
        %v5047 = vmul.f32 %v3811, 1.442695
        %v5048 = vmul.f32 %v3813, 1.442695
        %v5049 = vmul.f32 %v3815, 1.442695
        %v5050 = vmul.f32 %v3817, 1.442695
        %v5051 = vmul.f32 %v3819, 1.442695
        %v5052 = vmul.f32 %v3821, 1.442695
        %v5053 = vmul.f32 %v3823, 1.442695
        %v5054 = vmul.f32 %v3825, 1.442695
        %v5055 = vmul.f32 %v3827, 1.442695
        %v5056 = vmul.f32 %v3829, 1.442695
        %v5057 = vmul.f32 %v3831, 1.442695
        %v5058 = vmul.f32 %v3833, 1.442695
        %v5059 = vmul.f32 %v3835, 1.442695
        %v5060 = vmul.f32 %v3837, 1.442695
        %v5061 = vmul.f32 %v3839, 1.442695
        %v5062 = vmul.f32 %v3841, 1.442695
        %v5063 = vmul.f32 %v3843, 1.442695
        %v5064 = vmul.f32 %v3845, 1.442695
        %v5065 = vmul.f32 %v3847, 1.442695
        %v5066 = vmul.f32 %v3849, 1.442695
        %v5067 = vmul.f32 %v3851, 1.442695
        %v5068 = vmul.f32 %v3853, 1.442695
        %v5069 = vmul.f32 %v3855, 1.442695
        %v5070 = vmul.f32 %v3857, 1.442695
        %v5071 = vmul.f32 %v3859, 1.442695
        %v5072 = vmul.f32 %v3861, 1.442695
        %v5073 = vmul.f32 %v3863, 1.442695
        %v5074 = vmul.f32 %v3865, 1.442695
        %v5075 = vmul.f32 %v3867, 1.442695
        %v5076 = vmul.f32 %v3869, 1.442695
        %v5077 = vmul.f32 %v3871, 1.442695
        %v5078 = vmul.f32 %v3873, 1.442695
        %v5079 = vmul.f32 %v3875, 1.442695
        %v5080 = vmul.f32 %v3877, 1.442695
        %v5081 = vmul.f32 %v3879, 1.442695
        %v5082 = vmul.f32 %v3881, 1.442695
        %v5083 = vmul.f32 %v3883, 1.442695
        %v5084 = vmul.f32 %v3885, 1.442695
        %v5085 = vmul.f32 %v3887, 1.442695
        %v5086 = vmul.f32 %v3889, 1.442695
        %v5087 = vmul.f32 %v3891, 1.442695
        %v5088 = vmul.f32 %v3893, 1.442695
        %v5089 = vmul.f32 %v3895, 1.442695
        %v5090 = vmul.f32 %v3897, 1.442695
        %v5091 = vmul.f32 %v3899, 1.442695
        %v5092 = vmul.f32 %v3901, 1.442695
        %v5093 = vmul.f32 %v3903, 1.442695
        %v5094 = vmul.f32 %v3905, 1.442695
        %v5095 = vmul.f32 %v3907, 1.442695
        %v5096 = vmul.f32 %v3909, 1.442695
        %v5097 = vmul.f32 %v3911, 1.442695
        %v5098 = vmul.f32 %v3913, 1.442695
        %v5099 = vmul.f32 %v3915, 1.442695
        %v5100 = vmul.f32 %v3917, 1.442695
        %v5101 = vmul.f32 %v3919, 1.442695
        %v5102 = vmul.f32 %v3921, 1.442695
        %v5103 = vmul.f32 %v3923, 1.442695
        %v5104 = vmul.f32 %v3925, 1.442695
        %v5105 = vmul.f32 %v3927, 1.442695
        %v5106 = vmul.f32 %v3929, 1.442695
        %v5107 = vmul.f32 %v3931, 1.442695
        %v5108 = vmul.f32 %v3933, 1.442695
        %v5109 = vmul.f32 %v3935, 1.442695
        %v5110 = vmul.f32 %v3937, 1.442695
        %v5111 = vmul.f32 %v3939, 1.442695
        %v5112 = vmul.f32 %v3941, 1.442695
        %v5113 = vmul.f32 %v3943, 1.442695
        %v5114 = vmul.f32 %v3945, 1.442695
        %v5115 = vmul.f32 %v3947, 1.442695
        %v5116 = vmul.f32 %v3949, 1.442695
        %v5117 = vmul.f32 %v3951, 1.442695
        %v5118 = vmul.f32 %v3953, 1.442695
        %v5119 = vmul.f32 %v3955, 1.442695
        %v5120 = vmul.f32 %v3957, 1.442695
        %v5121 = vmul.f32 %v3959, 1.442695
        %v5122 = vmul.f32 %v3961, 1.442695
        %v5123 = vmul.f32 %v3963, 1.442695
        %v5124 = vmul.f32 %v3965, 1.442695
        %v5125 = vmul.f32 %v3967, 1.442695
        %v5126 = vmul.f32 %v3969, 1.442695
        %v5127 = vmul.f32 %v3971, 1.442695
        %v5128 = vmul.f32 %v3973, 1.442695
        %v5129 = vmul.f32 %v3975, 1.442695
        %v5130 = vmul.f32 %v3977, 1.442695
        %v5131 = vmul.f32 %v3979, 1.442695
        %v5132 = vmul.f32 %v3981, 1.442695
        %v5133 = vmul.f32 %v3983, 1.442695
        %v5134 = vmul.f32 %v3985, 1.442695
        %v5135 = vmul.f32 %v3987, 1.442695
        %v5136 = vmul.f32 %v3989, 1.442695
        %v5137 = vmul.f32 %v3991, 1.442695
        %v5138 = vmul.f32 %v3993, 1.442695
        %v5139 = vmul.f32 %v3995, 1.442695
        %v5140 = vmul.f32 %v3997, 1.442695
        %v5141 = vmul.f32 %v3999, 1.442695
        %v5142 = vmul.f32 %v4001, 1.442695
        %v5143 = vmul.f32 %v4003, 1.442695
        %v5144 = vmul.f32 %v4005, 1.442695
        %v5145 = vmul.f32 %v4007, 1.442695
        %v5146 = vmul.f32 %v4009, 1.442695
        %v5147 = vmul.f32 %v4011, 1.442695
        %v5148 = vmul.f32 %v4013, 1.442695
        %v5149 = vmul.f32 %v4015, 1.442695
        %v5150 = vmul.f32 %v4017, 1.442695
        %v5151 = vmul.f32 %v4019, 1.442695
        %v5152 = vmul.f32 %v4021, 1.442695
        %v5153 = vmul.f32 %v4023, 1.442695
        %v5154 = vmul.f32 %v4025, 1.442695
        %v5155 = vmul.f32 %v4027, 1.442695
        %v5156 = vmul.f32 %v4029, 1.442695
        %v5157 = vmul.f32 %v4031, 1.442695
        %v5158 = vmul.f32 %v4033, 1.442695
        %v5159 = vmul.f32 %v4035, 1.442695
        %v5160 = vmul.f32 %v4037, 1.442695
        %v5161 = vmul.f32 %v4039, 1.442695
        %v5162 = vmul.f32 %v4041, 1.442695
        %v5163 = vmul.f32 %v4043, 1.442695
        %v5164 = vmul.f32 %v4045, 1.442695
        %v5165 = vmul.f32 %v4047, 1.442695
        %v5166 = vmul.f32 %v4049, 1.442695
        %v5167 = vmul.f32 %v4051, 1.442695
        %v5168 = vmul.f32 %v4053, 1.442695
        %v5169 = vmul.f32 %v4055, 1.442695
        %v5170 = vmul.f32 %v4057, 1.442695
        %v5171 = vmul.f32 %v4059, 1.442695
        %v5172 = vmul.f32 %v4061, 1.442695
        %v5173 = vmul.f32 %v4063, 1.442695
        %v5174 = vmul.f32 %v4065, 1.442695
        %v5175 = vmul.f32 %v4067, 1.442695
        %v5176 = vmul.f32 %v4069, 1.442695
        %v5177 = vmul.f32 %v4071, 1.442695
        %v5178 = vmul.f32 %v4073, 1.442695
        %v5179 = vmul.f32 %v4075, 1.442695
        %v5180 = vmul.f32 %v4077, 1.442695
        %v5181 = vmul.f32 %v4079, 1.442695
        %v5182 = vmul.f32 %v4081, 1.442695
        %v5183 = vmul.f32 %v4083, 1.442695
        %v5184 = vmul.f32 %v4085, 1.442695
        %v5185 = vmul.f32 %v4087, 1.442695
        %v5186 = vmul.f32 %v4089, 1.442695
        %v5187 = vmul.f32 %v4091, 1.442695
        %v5188 = vmul.f32 %v4093, 1.442695
        %v5189 = vmul.f32 %v4095, 1.442695
        %v5190 = vmul.f32 %v4097, 1.442695
        %v5191 = vmul.f32 %v4099, 1.442695
        %v5192 = vmul.f32 %v4101, 1.442695
        %v5193 = vmul.f32 %v4103, 1.442695
        %v5194 = vmul.f32 %v4105, 1.442695
        %v5195 = vmul.f32 %v4107, 1.442695
        %v5196 = vmul.f32 %v4109, 1.442695
        %v5197 = vmul.f32 %v4111, 1.442695
        %v5198 = vmul.f32 %v4113, 1.442695
        %v5199 = vmul.f32 %v4115, 1.442695
        %v5200 = vmul.f32 %v4117, 1.442695
        %v5201 = vmul.f32 %v4119, 1.442695
        %v5202 = vmul.f32 %v4121, 1.442695
        %v5203 = vmul.f32 %v4123, 1.442695
        %v5204 = vmul.f32 %v4125, 1.442695
        %v5205 = vmul.f32 %v4127, 1.442695
        %v5206 = vmul.f32 %v4129, 1.442695
        %v5207 = vmul.f32 %v4131, 1.442695
        %v5208 = vmul.f32 %v4133, 1.442695
        %v5209 = vmul.f32 %v4135, 1.442695
        %v5210 = vmul.f32 %v4137, 1.442695
        %v5211 = vmul.f32 %v4139, 1.442695
        %v5212 = vmul.f32 %v4141, 1.442695
        %v5213 = vmul.f32 %v4143, 1.442695
        %v5214 = vmul.f32 %v4145, 1.442695
        %v5215 = vmul.f32 %v4147, 1.442695
        %v5216 = vmul.f32 %v4149, 1.442695
        %v5217 = vmul.f32 %v4151, 1.442695
        %v5218 = vmul.f32 %v4153, 1.442695
        %v5219 = vmul.f32 %v4155, 1.442695
        %v5220 = vmul.f32 %v4157, 1.442695
        %v5221 = vmul.f32 %v4159, 1.442695
        %v5222 = vmul.f32 %v4161, 1.442695
        %v5223 = vmul.f32 %v4163, 1.442695
        %v5224 = vmul.f32 %v4165, 1.442695
        %v5225 = vmul.f32 %v4167, 1.442695
        %v5226 = vmul.f32 %v4169, 1.442695
        %v5227 = vmul.f32 %v4171, 1.442695
        %v5228 = vmul.f32 %v4173, 1.442695
        %v5229 = vmul.f32 %v4175, 1.442695
        %v5230 = vmul.f32 %v4177, 1.442695
        %v5231 = vmul.f32 %v4179, 1.442695
        %v5232 = vmul.f32 %v4181, 1.442695
        %v5233 = vmul.f32 %v4183, 1.442695
        %v5234 = vmul.f32 %v4185, 1.442695
        %v5235 = vmul.f32 %v4187, 1.442695
        %v5236 = vmul.f32 %v4189, 1.442695
        %v5237 = vmul.f32 %v4191, 1.442695
        %v5238 = vmul.f32 %v4193, 1.442695
        %v5239 = vmul.f32 %v4195, 1.442695
        %v5240 = vmul.f32 %v4197, 1.442695
        %v5241 = vmul.f32 %v4199, 1.442695
        %v5242 = vmul.f32 %v4201, 1.442695
        %v5243 = vmul.f32 %v4203, 1.442695
        %v5244 = vmul.f32 %v4205, 1.442695
        %v5245 = vmul.f32 %v4207, 1.442695
        %v5246 = vmul.f32 %v4209, 1.442695
        %v5247 = vmul.f32 %v4211, 1.442695
        %v5248 = vmul.f32 %v4213, 1.442695
        %v5249 = vmul.f32 %v4215, 1.442695
        %v5250 = vmul.f32 %v4217, 1.442695
        %v5251 = vmul.f32 %v4219, 1.442695
        %v5252 = vmul.f32 %v4221, 1.442695
        %v5253 = vmul.f32 %v4223, 1.442695
        %v5254 = vmul.f32 %v4225, 1.442695
        %v5255 = vmul.f32 %v4227, 1.442695
        %v5256 = vmul.f32 %v4229, 1.442695
        %v5257 = vmul.f32 %v4231, 1.442695
        %v5258 = vmul.f32 %v4233, 1.442695
        %v5259 = vmul.f32 %v4235, 1.442695
        %5260 = vst [vmem:[%s137] sm:$0xff] %v4236
        %5261 = vst [vmem:[%s137 + $0x8] sm:$0xff] %v4237
        %5262 = vst [vmem:[%s137 + $0x10] sm:$0xff] %v4238
        %5263 = vst [vmem:[%s137 + $0x18] sm:$0xff] %v4239
        %5264 = vst [vmem:[%s137 + $0x20] sm:$0xff] %v4240
        %5265 = vst [vmem:[%s137 + $0x28] sm:$0xff] %v4241
        %5266 = vst [vmem:[%s137 + $0x30] sm:$0xff] %v4242
        %5267 = vst [vmem:[%s137 + $0x38] sm:$0xff] %v4243
        %5268 = vst [vmem:[%s137 + $0x40] sm:$0xff] %v4244
        %5269 = vst [vmem:[%s137 + $0x48] sm:$0xff] %v4245
        %5270 = vst [vmem:[%s137 + $0x50] sm:$0xff] %v4246
        %5271 = vst [vmem:[%s137 + $0x58] sm:$0xff] %v4247
        %5272 = vst [vmem:[%s137 + $0x60] sm:$0xff] %v4248
        %5273 = vst [vmem:[%s137 + $0x68] sm:$0xff] %v4249
        %5274 = vst [vmem:[%s137 + $0x70] sm:$0xff] %v4250
        %5275 = vst [vmem:[%s137 + $0x78] sm:$0xff] %v4251
        %5276 = vst [vmem:[%s137 + $0x80] sm:$0xff] %v4252
        %5277 = vst [vmem:[%s137 + $0x88] sm:$0xff] %v4253
        %5278 = vst [vmem:[%s137 + $0x90] sm:$0xff] %v4254
        %5279 = vst [vmem:[%s137 + $0x98] sm:$0xff] %v4255
        %5280 = vst [vmem:[%s137 + $0xa0] sm:$0xff] %v4256
        %5281 = vst [vmem:[%s137 + $0xa8] sm:$0xff] %v4257
        %5282 = vst [vmem:[%s137 + $0xb0] sm:$0xff] %v4258
        %5283 = vst [vmem:[%s137 + $0xb8] sm:$0xff] %v4259
        %5284 = vst [vmem:[%s137 + $0xc0] sm:$0xff] %v4260
        %5285 = vst [vmem:[%s137 + $0xc8] sm:$0xff] %v4261
        %5286 = vst [vmem:[%s137 + $0xd0] sm:$0xff] %v4262
        %5287 = vst [vmem:[%s137 + $0xd8] sm:$0xff] %v4263
        %5288 = vst [vmem:[%s137 + $0xe0] sm:$0xff] %v4264
        %5289 = vst [vmem:[%s137 + $0xe8] sm:$0xff] %v4265
        %5290 = vst [vmem:[%s137 + $0xf0] sm:$0xff] %v4266
        %5291 = vst [vmem:[%s137 + $0xf8] sm:$0xff] %v4267
        %5292 = vst [vmem:[%s137 + $0x100] sm:$0xff] %v4268
        %5293 = vst [vmem:[%s137 + $0x108] sm:$0xff] %v4269
        %5294 = vst [vmem:[%s137 + $0x110] sm:$0xff] %v4270
        %5295 = vst [vmem:[%s137 + $0x118] sm:$0xff] %v4271
        %5296 = vst [vmem:[%s137 + $0x120] sm:$0xff] %v4272
        %5297 = vst [vmem:[%s137 + $0x128] sm:$0xff] %v4273
        %5298 = vst [vmem:[%s137 + $0x130] sm:$0xff] %v4274
        %5299 = vst [vmem:[%s137 + $0x138] sm:$0xff] %v4275
        %5300 = vst [vmem:[%s137 + $0x140] sm:$0xff] %v4276
        %5301 = vst [vmem:[%s137 + $0x148] sm:$0xff] %v4277
        %5302 = vst [vmem:[%s137 + $0x150] sm:$0xff] %v4278
        %5303 = vst [vmem:[%s137 + $0x158] sm:$0xff] %v4279
        %5304 = vst [vmem:[%s137 + $0x160] sm:$0xff] %v4280
        %5305 = vst [vmem:[%s137 + $0x168] sm:$0xff] %v4281
        %5306 = vst [vmem:[%s137 + $0x170] sm:$0xff] %v4282
        %5307 = vst [vmem:[%s137 + $0x178] sm:$0xff] %v4283
        %5308 = vst [vmem:[%s137 + $0x180] sm:$0xff] %v4284
        %5309 = vst [vmem:[%s137 + $0x188] sm:$0xff] %v4285
        %5310 = vst [vmem:[%s137 + $0x190] sm:$0xff] %v4286
        %5311 = vst [vmem:[%s137 + $0x198] sm:$0xff] %v4287
        %5312 = vst [vmem:[%s137 + $0x1a0] sm:$0xff] %v4288
        %5313 = vst [vmem:[%s137 + $0x1a8] sm:$0xff] %v4289
        %5314 = vst [vmem:[%s137 + $0x1b0] sm:$0xff] %v4290
        %5315 = vst [vmem:[%s137 + $0x1b8] sm:$0xff] %v4291
        %5316 = vst [vmem:[%s137 + $0x1c0] sm:$0xff] %v4292
        %5317 = vst [vmem:[%s137 + $0x1c8] sm:$0xff] %v4293
        %5318 = vst [vmem:[%s137 + $0x1d0] sm:$0xff] %v4294
        %5319 = vst [vmem:[%s137 + $0x1d8] sm:$0xff] %v4295
        %5320 = vst [vmem:[%s137 + $0x1e0] sm:$0xff] %v4296
        %5321 = vst [vmem:[%s137 + $0x1e8] sm:$0xff] %v4297
        %5322 = vst [vmem:[%s137 + $0x1f0] sm:$0xff] %v4298
        %5323 = vst [vmem:[%s137 + $0x1f8] sm:$0xff] %v4299
        %5324 = vst [vmem:[%s137 + $0x200] sm:$0xff] %v4300
        %5325 = vst [vmem:[%s137 + $0x208] sm:$0xff] %v4301
        %5326 = vst [vmem:[%s137 + $0x210] sm:$0xff] %v4302
        %5327 = vst [vmem:[%s137 + $0x218] sm:$0xff] %v4303
        %5328 = vst [vmem:[%s137 + $0x220] sm:$0xff] %v4304
        %5329 = vst [vmem:[%s137 + $0x228] sm:$0xff] %v4305
        %5330 = vst [vmem:[%s137 + $0x230] sm:$0xff] %v4306
        %5331 = vst [vmem:[%s137 + $0x238] sm:$0xff] %v4307
        %5332 = vst [vmem:[%s137 + $0x240] sm:$0xff] %v4308
        %5333 = vst [vmem:[%s137 + $0x248] sm:$0xff] %v4309
        %5334 = vst [vmem:[%s137 + $0x250] sm:$0xff] %v4310
        %5335 = vst [vmem:[%s137 + $0x258] sm:$0xff] %v4311
        %5336 = vst [vmem:[%s137 + $0x260] sm:$0xff] %v4312
        %5337 = vst [vmem:[%s137 + $0x268] sm:$0xff] %v4313
        %5338 = vst [vmem:[%s137 + $0x270] sm:$0xff] %v4314
        %5339 = vst [vmem:[%s137 + $0x278] sm:$0xff] %v4315
        %5340 = vst [vmem:[%s137 + $0x280] sm:$0xff] %v4316
        %5341 = vst [vmem:[%s137 + $0x288] sm:$0xff] %v4317
        %5342 = vst [vmem:[%s137 + $0x290] sm:$0xff] %v4318
        %5343 = vst [vmem:[%s137 + $0x298] sm:$0xff] %v4319
        %5344 = vst [vmem:[%s137 + $0x2a0] sm:$0xff] %v4320
        %5345 = vst [vmem:[%s137 + $0x2a8] sm:$0xff] %v4321
        %5346 = vst [vmem:[%s137 + $0x2b0] sm:$0xff] %v4322
        %5347 = vst [vmem:[%s137 + $0x2b8] sm:$0xff] %v4323
        %5348 = vst [vmem:[%s137 + $0x2c0] sm:$0xff] %v4324
        %5349 = vst [vmem:[%s137 + $0x2c8] sm:$0xff] %v4325
        %5350 = vst [vmem:[%s137 + $0x2d0] sm:$0xff] %v4326
        %5351 = vst [vmem:[%s137 + $0x2d8] sm:$0xff] %v4327
        %5352 = vst [vmem:[%s137 + $0x2e0] sm:$0xff] %v4328
        %5353 = vst [vmem:[%s137 + $0x2e8] sm:$0xff] %v4329
        %5354 = vst [vmem:[%s137 + $0x2f0] sm:$0xff] %v4330
        %5355 = vst [vmem:[%s137 + $0x2f8] sm:$0xff] %v4331
        %5356 = vst [vmem:[%s137 + $0x300] sm:$0xff] %v4332
        %5357 = vst [vmem:[%s137 + $0x308] sm:$0xff] %v4333
        %5358 = vst [vmem:[%s137 + $0x310] sm:$0xff] %v4334
        %5359 = vst [vmem:[%s137 + $0x318] sm:$0xff] %v4335
        %5360 = vst [vmem:[%s137 + $0x320] sm:$0xff] %v4336
        %5361 = vst [vmem:[%s137 + $0x328] sm:$0xff] %v4337
        %5362 = vst [vmem:[%s137 + $0x330] sm:$0xff] %v4338
        %5363 = vst [vmem:[%s137 + $0x338] sm:$0xff] %v4339
        %5364 = vst [vmem:[%s137 + $0x340] sm:$0xff] %v4340
        %5365 = vst [vmem:[%s137 + $0x348] sm:$0xff] %v4341
        %5366 = vst [vmem:[%s137 + $0x350] sm:$0xff] %v4342
        %5367 = vst [vmem:[%s137 + $0x358] sm:$0xff] %v4343
        %5368 = vst [vmem:[%s137 + $0x360] sm:$0xff] %v4344
        %5369 = vst [vmem:[%s137 + $0x368] sm:$0xff] %v4345
        %5370 = vst [vmem:[%s137 + $0x370] sm:$0xff] %v4346
        %5371 = vst [vmem:[%s137 + $0x378] sm:$0xff] %v4347
        %5372 = vst [vmem:[%s137 + $0x380] sm:$0xff] %v4348
        %5373 = vst [vmem:[%s137 + $0x388] sm:$0xff] %v4349
        %5374 = vst [vmem:[%s137 + $0x390] sm:$0xff] %v4350
        %5375 = vst [vmem:[%s137 + $0x398] sm:$0xff] %v4351
        %5376 = vst [vmem:[%s137 + $0x3a0] sm:$0xff] %v4352
        %5377 = vst [vmem:[%s137 + $0x3a8] sm:$0xff] %v4353
        %5378 = vst [vmem:[%s137 + $0x3b0] sm:$0xff] %v4354
        %5379 = vst [vmem:[%s137 + $0x3b8] sm:$0xff] %v4355
        %5380 = vst [vmem:[%s137 + $0x3c0] sm:$0xff] %v4356
        %5381 = vst [vmem:[%s137 + $0x3c8] sm:$0xff] %v4357
        %5382 = vst [vmem:[%s137 + $0x3d0] sm:$0xff] %v4358
        %5383 = vst [vmem:[%s137 + $0x3d8] sm:$0xff] %v4359
        %5384 = vst [vmem:[%s137 + $0x3e0] sm:$0xff] %v4360
        %5385 = vst [vmem:[%s137 + $0x3e8] sm:$0xff] %v4361
        %5386 = vst [vmem:[%s137 + $0x3f0] sm:$0xff] %v4362
        %5387 = vst [vmem:[%s137 + $0x3f8] sm:$0xff] %v4363
        %5388 = vst [vmem:[%s137 + $0x400] sm:$0xff] %v4364
        %5389 = vst [vmem:[%s137 + $0x408] sm:$0xff] %v4365
        %5390 = vst [vmem:[%s137 + $0x410] sm:$0xff] %v4366
        %5391 = vst [vmem:[%s137 + $0x418] sm:$0xff] %v4367
        %5392 = vst [vmem:[%s137 + $0x420] sm:$0xff] %v4368
        %5393 = vst [vmem:[%s137 + $0x428] sm:$0xff] %v4369
        %5394 = vst [vmem:[%s137 + $0x430] sm:$0xff] %v4370
        %5395 = vst [vmem:[%s137 + $0x438] sm:$0xff] %v4371
        %5396 = vst [vmem:[%s137 + $0x440] sm:$0xff] %v4372
        %5397 = vst [vmem:[%s137 + $0x448] sm:$0xff] %v4373
        %5398 = vst [vmem:[%s137 + $0x450] sm:$0xff] %v4374
        %5399 = vst [vmem:[%s137 + $0x458] sm:$0xff] %v4375
        %5400 = vst [vmem:[%s137 + $0x460] sm:$0xff] %v4376
        %5401 = vst [vmem:[%s137 + $0x468] sm:$0xff] %v4377
        %5402 = vst [vmem:[%s137 + $0x470] sm:$0xff] %v4378
        %5403 = vst [vmem:[%s137 + $0x478] sm:$0xff] %v4379
        %5404 = vst [vmem:[%s137 + $0x480] sm:$0xff] %v4380
        %5405 = vst [vmem:[%s137 + $0x488] sm:$0xff] %v4381
        %5406 = vst [vmem:[%s137 + $0x490] sm:$0xff] %v4382
        %5407 = vst [vmem:[%s137 + $0x498] sm:$0xff] %v4383
        %5408 = vst [vmem:[%s137 + $0x4a0] sm:$0xff] %v4384
        %5409 = vst [vmem:[%s137 + $0x4a8] sm:$0xff] %v4385
        %5410 = vst [vmem:[%s137 + $0x4b0] sm:$0xff] %v4386
        %5411 = vst [vmem:[%s137 + $0x4b8] sm:$0xff] %v4387
        %5412 = vst [vmem:[%s137 + $0x4c0] sm:$0xff] %v4388
        %5413 = vst [vmem:[%s137 + $0x4c8] sm:$0xff] %v4389
        %5414 = vst [vmem:[%s137 + $0x4d0] sm:$0xff] %v4390
        %5415 = vst [vmem:[%s137 + $0x4d8] sm:$0xff] %v4391
        %5416 = vst [vmem:[%s137 + $0x4e0] sm:$0xff] %v4392
        %5417 = vst [vmem:[%s137 + $0x4e8] sm:$0xff] %v4393
        %5418 = vst [vmem:[%s137 + $0x4f0] sm:$0xff] %v4394
        %5419 = vst [vmem:[%s137 + $0x4f8] sm:$0xff] %v4395
        %5420 = vst [vmem:[%s137 + $0x500] sm:$0xff] %v4396
        %5421 = vst [vmem:[%s137 + $0x508] sm:$0xff] %v4397
        %5422 = vst [vmem:[%s137 + $0x510] sm:$0xff] %v4398
        %5423 = vst [vmem:[%s137 + $0x518] sm:$0xff] %v4399
        %5424 = vst [vmem:[%s137 + $0x520] sm:$0xff] %v4400
        %5425 = vst [vmem:[%s137 + $0x528] sm:$0xff] %v4401
        %5426 = vst [vmem:[%s137 + $0x530] sm:$0xff] %v4402
        %5427 = vst [vmem:[%s137 + $0x538] sm:$0xff] %v4403
        %5428 = vst [vmem:[%s137 + $0x540] sm:$0xff] %v4404
        %5429 = vst [vmem:[%s137 + $0x548] sm:$0xff] %v4405
        %5430 = vst [vmem:[%s137 + $0x550] sm:$0xff] %v4406
        %5431 = vst [vmem:[%s137 + $0x558] sm:$0xff] %v4407
        %5432 = vst [vmem:[%s137 + $0x560] sm:$0xff] %v4408
        %5433 = vst [vmem:[%s137 + $0x568] sm:$0xff] %v4409
        %5434 = vst [vmem:[%s137 + $0x570] sm:$0xff] %v4410
        %5435 = vst [vmem:[%s137 + $0x578] sm:$0xff] %v4411
        %5436 = vst [vmem:[%s137 + $0x580] sm:$0xff] %v4412
        %5437 = vst [vmem:[%s137 + $0x588] sm:$0xff] %v4413
        %5438 = vst [vmem:[%s137 + $0x590] sm:$0xff] %v4414
        %5439 = vst [vmem:[%s137 + $0x598] sm:$0xff] %v4415
        %5440 = vst [vmem:[%s137 + $0x5a0] sm:$0xff] %v4416
        %5441 = vst [vmem:[%s137 + $0x5a8] sm:$0xff] %v4417
        %5442 = vst [vmem:[%s137 + $0x5b0] sm:$0xff] %v4418
        %5443 = vst [vmem:[%s137 + $0x5b8] sm:$0xff] %v4419
        %5444 = vst [vmem:[%s137 + $0x5c0] sm:$0xff] %v4420
        %5445 = vst [vmem:[%s137 + $0x5c8] sm:$0xff] %v4421
        %5446 = vst [vmem:[%s137 + $0x5d0] sm:$0xff] %v4422
        %5447 = vst [vmem:[%s137 + $0x5d8] sm:$0xff] %v4423
        %5448 = vst [vmem:[%s137 + $0x5e0] sm:$0xff] %v4424
        %5449 = vst [vmem:[%s137 + $0x5e8] sm:$0xff] %v4425
        %5450 = vst [vmem:[%s137 + $0x5f0] sm:$0xff] %v4426
        %5451 = vst [vmem:[%s137 + $0x5f8] sm:$0xff] %v4427
        %5452 = vst [vmem:[%s137 + $0x600] sm:$0xff] %v4428
        %5453 = vst [vmem:[%s137 + $0x608] sm:$0xff] %v4429
        %5454 = vst [vmem:[%s137 + $0x610] sm:$0xff] %v4430
        %5455 = vst [vmem:[%s137 + $0x618] sm:$0xff] %v4431
        %5456 = vst [vmem:[%s137 + $0x620] sm:$0xff] %v4432
        %5457 = vst [vmem:[%s137 + $0x628] sm:$0xff] %v4433
        %5458 = vst [vmem:[%s137 + $0x630] sm:$0xff] %v4434
        %5459 = vst [vmem:[%s137 + $0x638] sm:$0xff] %v4435
        %5460 = vst [vmem:[%s137 + $0x640] sm:$0xff] %v4436
        %5461 = vst [vmem:[%s137 + $0x648] sm:$0xff] %v4437
        %5462 = vst [vmem:[%s137 + $0x650] sm:$0xff] %v4438
        %5463 = vst [vmem:[%s137 + $0x658] sm:$0xff] %v4439
        %5464 = vst [vmem:[%s137 + $0x660] sm:$0xff] %v4440
        %5465 = vst [vmem:[%s137 + $0x668] sm:$0xff] %v4441
        %5466 = vst [vmem:[%s137 + $0x670] sm:$0xff] %v4442
        %5467 = vst [vmem:[%s137 + $0x678] sm:$0xff] %v4443
        %5468 = vst [vmem:[%s137 + $0x680] sm:$0xff] %v4444
        %5469 = vst [vmem:[%s137 + $0x688] sm:$0xff] %v4445
        %5470 = vst [vmem:[%s137 + $0x690] sm:$0xff] %v4446
        %5471 = vst [vmem:[%s137 + $0x698] sm:$0xff] %v4447
        %5472 = vst [vmem:[%s137 + $0x6a0] sm:$0xff] %v4448
        %5473 = vst [vmem:[%s137 + $0x6a8] sm:$0xff] %v4449
        %5474 = vst [vmem:[%s137 + $0x6b0] sm:$0xff] %v4450
        %5475 = vst [vmem:[%s137 + $0x6b8] sm:$0xff] %v4451
        %5476 = vst [vmem:[%s137 + $0x6c0] sm:$0xff] %v4452
        %5477 = vst [vmem:[%s137 + $0x6c8] sm:$0xff] %v4453
        %5478 = vst [vmem:[%s137 + $0x6d0] sm:$0xff] %v4454
        %5479 = vst [vmem:[%s137 + $0x6d8] sm:$0xff] %v4455
        %5480 = vst [vmem:[%s137 + $0x6e0] sm:$0xff] %v4456
        %5481 = vst [vmem:[%s137 + $0x6e8] sm:$0xff] %v4457
        %5482 = vst [vmem:[%s137 + $0x6f0] sm:$0xff] %v4458
        %5483 = vst [vmem:[%s137 + $0x6f8] sm:$0xff] %v4459
        %5484 = vst [vmem:[%s137 + $0x700] sm:$0xff] %v4460
        %5485 = vst [vmem:[%s137 + $0x708] sm:$0xff] %v4461
        %5486 = vst [vmem:[%s137 + $0x710] sm:$0xff] %v4462
        %5487 = vst [vmem:[%s137 + $0x718] sm:$0xff] %v4463
        %5488 = vst [vmem:[%s137 + $0x720] sm:$0xff] %v4464
        %5489 = vst [vmem:[%s137 + $0x728] sm:$0xff] %v4465
        %5490 = vst [vmem:[%s137 + $0x730] sm:$0xff] %v4466
        %5491 = vst [vmem:[%s137 + $0x738] sm:$0xff] %v4467
        %5492 = vst [vmem:[%s137 + $0x740] sm:$0xff] %v4468
        %5493 = vst [vmem:[%s137 + $0x748] sm:$0xff] %v4469
        %5494 = vst [vmem:[%s137 + $0x750] sm:$0xff] %v4470
        %5495 = vst [vmem:[%s137 + $0x758] sm:$0xff] %v4471
        %5496 = vst [vmem:[%s137 + $0x760] sm:$0xff] %v4472
        %5497 = vst [vmem:[%s137 + $0x768] sm:$0xff] %v4473
        %5498 = vst [vmem:[%s137 + $0x770] sm:$0xff] %v4474
        %5499 = vst [vmem:[%s137 + $0x778] sm:$0xff] %v4475
        %5500 = vst [vmem:[%s137 + $0x780] sm:$0xff] %v4476
        %5501 = vst [vmem:[%s137 + $0x788] sm:$0xff] %v4477
        %5502 = vst [vmem:[%s137 + $0x790] sm:$0xff] %v4478
        %5503 = vst [vmem:[%s137 + $0x798] sm:$0xff] %v4479
        %5504 = vst [vmem:[%s137 + $0x7a0] sm:$0xff] %v4480
        %5505 = vst [vmem:[%s137 + $0x7a8] sm:$0xff] %v4481
        %5506 = vst [vmem:[%s137 + $0x7b0] sm:$0xff] %v4482
        %5507 = vst [vmem:[%s137 + $0x7b8] sm:$0xff] %v4483
        %5508 = vst [vmem:[%s137 + $0x7c0] sm:$0xff] %v4484
        %5509 = vst [vmem:[%s137 + $0x7c8] sm:$0xff] %v4485
        %5510 = vst [vmem:[%s137 + $0x7d0] sm:$0xff] %v4486
        %5511 = vst [vmem:[%s137 + $0x7d8] sm:$0xff] %v4487
        %5512 = vst [vmem:[%s137 + $0x7e0] sm:$0xff] %v4488
        %5513 = vst [vmem:[%s137 + $0x7e8] sm:$0xff] %v4489
        %5514 = vst [vmem:[%s137 + $0x7f0] sm:$0xff] %v4490
        %5515 = vst [vmem:[%s137 + $0x7f8] sm:$0xff] %v4491
        %5516 = vst [vmem:[%s137 + $0x800] sm:$0xff] %v4492
        %5517 = vst [vmem:[%s137 + $0x808] sm:$0xff] %v4493
        %5518 = vst [vmem:[%s137 + $0x810] sm:$0xff] %v4494
        %5519 = vst [vmem:[%s137 + $0x818] sm:$0xff] %v4495
        %5520 = vst [vmem:[%s137 + $0x820] sm:$0xff] %v4496
        %5521 = vst [vmem:[%s137 + $0x828] sm:$0xff] %v4497
        %5522 = vst [vmem:[%s137 + $0x830] sm:$0xff] %v4498
        %5523 = vst [vmem:[%s137 + $0x838] sm:$0xff] %v4499
        %5524 = vst [vmem:[%s137 + $0x840] sm:$0xff] %v4500
        %5525 = vst [vmem:[%s137 + $0x848] sm:$0xff] %v4501
        %5526 = vst [vmem:[%s137 + $0x850] sm:$0xff] %v4502
        %5527 = vst [vmem:[%s137 + $0x858] sm:$0xff] %v4503
        %5528 = vst [vmem:[%s137 + $0x860] sm:$0xff] %v4504
        %5529 = vst [vmem:[%s137 + $0x868] sm:$0xff] %v4505
        %5530 = vst [vmem:[%s137 + $0x870] sm:$0xff] %v4506
        %5531 = vst [vmem:[%s137 + $0x878] sm:$0xff] %v4507
        %5532 = vst [vmem:[%s137 + $0x880] sm:$0xff] %v4508
        %5533 = vst [vmem:[%s137 + $0x888] sm:$0xff] %v4509
        %5534 = vst [vmem:[%s137 + $0x890] sm:$0xff] %v4510
        %5535 = vst [vmem:[%s137 + $0x898] sm:$0xff] %v4511
        %5536 = vst [vmem:[%s137 + $0x8a0] sm:$0xff] %v4512
        %5537 = vst [vmem:[%s137 + $0x8a8] sm:$0xff] %v4513
        %5538 = vst [vmem:[%s137 + $0x8b0] sm:$0xff] %v4514
        %5539 = vst [vmem:[%s137 + $0x8b8] sm:$0xff] %v4515
        %5540 = vst [vmem:[%s137 + $0x8c0] sm:$0xff] %v4516
        %5541 = vst [vmem:[%s137 + $0x8c8] sm:$0xff] %v4517
        %5542 = vst [vmem:[%s137 + $0x8d0] sm:$0xff] %v4518
        %5543 = vst [vmem:[%s137 + $0x8d8] sm:$0xff] %v4519
        %5544 = vst [vmem:[%s137 + $0x8e0] sm:$0xff] %v4520
        %5545 = vst [vmem:[%s137 + $0x8e8] sm:$0xff] %v4521
        %5546 = vst [vmem:[%s137 + $0x8f0] sm:$0xff] %v4522
        %5547 = vst [vmem:[%s137 + $0x8f8] sm:$0xff] %v4523
        %5548 = vst [vmem:[%s137 + $0x900] sm:$0xff] %v4524
        %5549 = vst [vmem:[%s137 + $0x908] sm:$0xff] %v4525
        %5550 = vst [vmem:[%s137 + $0x910] sm:$0xff] %v4526
        %5551 = vst [vmem:[%s137 + $0x918] sm:$0xff] %v4527
        %5552 = vst [vmem:[%s137 + $0x920] sm:$0xff] %v4528
        %5553 = vst [vmem:[%s137 + $0x928] sm:$0xff] %v4529
        %5554 = vst [vmem:[%s137 + $0x930] sm:$0xff] %v4530
        %5555 = vst [vmem:[%s137 + $0x938] sm:$0xff] %v4531
        %5556 = vst [vmem:[%s137 + $0x940] sm:$0xff] %v4532
        %5557 = vst [vmem:[%s137 + $0x948] sm:$0xff] %v4533
        %5558 = vst [vmem:[%s137 + $0x950] sm:$0xff] %v4534
        %5559 = vst [vmem:[%s137 + $0x958] sm:$0xff] %v4535
        %5560 = vst [vmem:[%s137 + $0x960] sm:$0xff] %v4536
        %5561 = vst [vmem:[%s137 + $0x968] sm:$0xff] %v4537
        %5562 = vst [vmem:[%s137 + $0x970] sm:$0xff] %v4538
        %5563 = vst [vmem:[%s137 + $0x978] sm:$0xff] %v4539
        %5564 = vst [vmem:[%s137 + $0x980] sm:$0xff] %v4540
        %5565 = vst [vmem:[%s137 + $0x988] sm:$0xff] %v4541
        %5566 = vst [vmem:[%s137 + $0x990] sm:$0xff] %v4542
        %5567 = vst [vmem:[%s137 + $0x998] sm:$0xff] %v4543
        %5568 = vst [vmem:[%s137 + $0x9a0] sm:$0xff] %v4544
        %5569 = vst [vmem:[%s137 + $0x9a8] sm:$0xff] %v4545
        %5570 = vst [vmem:[%s137 + $0x9b0] sm:$0xff] %v4546
        %5571 = vst [vmem:[%s137 + $0x9b8] sm:$0xff] %v4547
        %5572 = vst [vmem:[%s137 + $0x9c0] sm:$0xff] %v4548
        %5573 = vst [vmem:[%s137 + $0x9c8] sm:$0xff] %v4549
        %5574 = vst [vmem:[%s137 + $0x9d0] sm:$0xff] %v4550
        %5575 = vst [vmem:[%s137 + $0x9d8] sm:$0xff] %v4551
        %5576 = vst [vmem:[%s137 + $0x9e0] sm:$0xff] %v4552
        %5577 = vst [vmem:[%s137 + $0x9e8] sm:$0xff] %v4553
        %5578 = vst [vmem:[%s137 + $0x9f0] sm:$0xff] %v4554
        %5579 = vst [vmem:[%s137 + $0x9f8] sm:$0xff] %v4555
        %5580 = vst [vmem:[%s137 + $0xa00] sm:$0xff] %v4556
        %5581 = vst [vmem:[%s137 + $0xa08] sm:$0xff] %v4557
        %5582 = vst [vmem:[%s137 + $0xa10] sm:$0xff] %v4558
        %5583 = vst [vmem:[%s137 + $0xa18] sm:$0xff] %v4559
        %5584 = vst [vmem:[%s137 + $0xa20] sm:$0xff] %v4560
        %5585 = vst [vmem:[%s137 + $0xa28] sm:$0xff] %v4561
        %5586 = vst [vmem:[%s137 + $0xa30] sm:$0xff] %v4562
        %5587 = vst [vmem:[%s137 + $0xa38] sm:$0xff] %v4563
        %5588 = vst [vmem:[%s137 + $0xa40] sm:$0xff] %v4564
        %5589 = vst [vmem:[%s137 + $0xa48] sm:$0xff] %v4565
        %5590 = vst [vmem:[%s137 + $0xa50] sm:$0xff] %v4566
        %5591 = vst [vmem:[%s137 + $0xa58] sm:$0xff] %v4567
        %5592 = vst [vmem:[%s137 + $0xa60] sm:$0xff] %v4568
        %5593 = vst [vmem:[%s137 + $0xa68] sm:$0xff] %v4569
        %5594 = vst [vmem:[%s137 + $0xa70] sm:$0xff] %v4570
        %5595 = vst [vmem:[%s137 + $0xa78] sm:$0xff] %v4571
        %5596 = vst [vmem:[%s137 + $0xa80] sm:$0xff] %v4572
        %5597 = vst [vmem:[%s137 + $0xa88] sm:$0xff] %v4573
        %5598 = vst [vmem:[%s137 + $0xa90] sm:$0xff] %v4574
        %5599 = vst [vmem:[%s137 + $0xa98] sm:$0xff] %v4575
        %5600 = vst [vmem:[%s137 + $0xaa0] sm:$0xff] %v4576
        %5601 = vst [vmem:[%s137 + $0xaa8] sm:$0xff] %v4577
        %5602 = vst [vmem:[%s137 + $0xab0] sm:$0xff] %v4578
        %5603 = vst [vmem:[%s137 + $0xab8] sm:$0xff] %v4579
        %5604 = vst [vmem:[%s137 + $0xac0] sm:$0xff] %v4580
        %5605 = vst [vmem:[%s137 + $0xac8] sm:$0xff] %v4581
        %5606 = vst [vmem:[%s137 + $0xad0] sm:$0xff] %v4582
        %5607 = vst [vmem:[%s137 + $0xad8] sm:$0xff] %v4583
        %5608 = vst [vmem:[%s137 + $0xae0] sm:$0xff] %v4584
        %5609 = vst [vmem:[%s137 + $0xae8] sm:$0xff] %v4585
        %5610 = vst [vmem:[%s137 + $0xaf0] sm:$0xff] %v4586
        %5611 = vst [vmem:[%s137 + $0xaf8] sm:$0xff] %v4587
        %5612 = vst [vmem:[%s137 + $0xb00] sm:$0xff] %v4588
        %5613 = vst [vmem:[%s137 + $0xb08] sm:$0xff] %v4589
        %5614 = vst [vmem:[%s137 + $0xb10] sm:$0xff] %v4590
        %5615 = vst [vmem:[%s137 + $0xb18] sm:$0xff] %v4591
        %5616 = vst [vmem:[%s137 + $0xb20] sm:$0xff] %v4592
        %5617 = vst [vmem:[%s137 + $0xb28] sm:$0xff] %v4593
        %5618 = vst [vmem:[%s137 + $0xb30] sm:$0xff] %v4594
        %5619 = vst [vmem:[%s137 + $0xb38] sm:$0xff] %v4595
        %5620 = vst [vmem:[%s137 + $0xb40] sm:$0xff] %v4596
        %5621 = vst [vmem:[%s137 + $0xb48] sm:$0xff] %v4597
        %5622 = vst [vmem:[%s137 + $0xb50] sm:$0xff] %v4598
        %5623 = vst [vmem:[%s137 + $0xb58] sm:$0xff] %v4599
        %5624 = vst [vmem:[%s137 + $0xb60] sm:$0xff] %v4600
        %5625 = vst [vmem:[%s137 + $0xb68] sm:$0xff] %v4601
        %5626 = vst [vmem:[%s137 + $0xb70] sm:$0xff] %v4602
        %5627 = vst [vmem:[%s137 + $0xb78] sm:$0xff] %v4603
        %5628 = vst [vmem:[%s137 + $0xb80] sm:$0xff] %v4604
        %5629 = vst [vmem:[%s137 + $0xb88] sm:$0xff] %v4605
        %5630 = vst [vmem:[%s137 + $0xb90] sm:$0xff] %v4606
        %5631 = vst [vmem:[%s137 + $0xb98] sm:$0xff] %v4607
        %5632 = vst [vmem:[%s137 + $0xba0] sm:$0xff] %v4608
        %5633 = vst [vmem:[%s137 + $0xba8] sm:$0xff] %v4609
        %5634 = vst [vmem:[%s137 + $0xbb0] sm:$0xff] %v4610
        %5635 = vst [vmem:[%s137 + $0xbb8] sm:$0xff] %v4611
        %5636 = vst [vmem:[%s137 + $0xbc0] sm:$0xff] %v4612
        %5637 = vst [vmem:[%s137 + $0xbc8] sm:$0xff] %v4613
        %5638 = vst [vmem:[%s137 + $0xbd0] sm:$0xff] %v4614
        %5639 = vst [vmem:[%s137 + $0xbd8] sm:$0xff] %v4615
        %5640 = vst [vmem:[%s137 + $0xbe0] sm:$0xff] %v4616
        %5641 = vst [vmem:[%s137 + $0xbe8] sm:$0xff] %v4617
        %5642 = vst [vmem:[%s137 + $0xbf0] sm:$0xff] %v4618
        %5643 = vst [vmem:[%s137 + $0xbf8] sm:$0xff] %v4619
        %5644 = vst [vmem:[%s137 + $0xc00] sm:$0xff] %v4620
        %5645 = vst [vmem:[%s137 + $0xc08] sm:$0xff] %v4621
        %5646 = vst [vmem:[%s137 + $0xc10] sm:$0xff] %v4622
        %5647 = vst [vmem:[%s137 + $0xc18] sm:$0xff] %v4623
        %5648 = vst [vmem:[%s137 + $0xc20] sm:$0xff] %v4624
        %5649 = vst [vmem:[%s137 + $0xc28] sm:$0xff] %v4625
        %5650 = vst [vmem:[%s137 + $0xc30] sm:$0xff] %v4626
        %5651 = vst [vmem:[%s137 + $0xc38] sm:$0xff] %v4627
        %5652 = vst [vmem:[%s137 + $0xc40] sm:$0xff] %v4628
        %5653 = vst [vmem:[%s137 + $0xc48] sm:$0xff] %v4629
        %5654 = vst [vmem:[%s137 + $0xc50] sm:$0xff] %v4630
        %5655 = vst [vmem:[%s137 + $0xc58] sm:$0xff] %v4631
        %5656 = vst [vmem:[%s137 + $0xc60] sm:$0xff] %v4632
        %5657 = vst [vmem:[%s137 + $0xc68] sm:$0xff] %v4633
        %5658 = vst [vmem:[%s137 + $0xc70] sm:$0xff] %v4634
        %5659 = vst [vmem:[%s137 + $0xc78] sm:$0xff] %v4635
        %5660 = vst [vmem:[%s137 + $0xc80] sm:$0xff] %v4636
        %5661 = vst [vmem:[%s137 + $0xc88] sm:$0xff] %v4637
        %5662 = vst [vmem:[%s137 + $0xc90] sm:$0xff] %v4638
        %5663 = vst [vmem:[%s137 + $0xc98] sm:$0xff] %v4639
        %5664 = vst [vmem:[%s137 + $0xca0] sm:$0xff] %v4640
        %5665 = vst [vmem:[%s137 + $0xca8] sm:$0xff] %v4641
        %5666 = vst [vmem:[%s137 + $0xcb0] sm:$0xff] %v4642
        %5667 = vst [vmem:[%s137 + $0xcb8] sm:$0xff] %v4643
        %5668 = vst [vmem:[%s137 + $0xcc0] sm:$0xff] %v4644
        %5669 = vst [vmem:[%s137 + $0xcc8] sm:$0xff] %v4645
        %5670 = vst [vmem:[%s137 + $0xcd0] sm:$0xff] %v4646
        %5671 = vst [vmem:[%s137 + $0xcd8] sm:$0xff] %v4647
        %5672 = vst [vmem:[%s137 + $0xce0] sm:$0xff] %v4648
        %5673 = vst [vmem:[%s137 + $0xce8] sm:$0xff] %v4649
        %5674 = vst [vmem:[%s137 + $0xcf0] sm:$0xff] %v4650
        %5675 = vst [vmem:[%s137 + $0xcf8] sm:$0xff] %v4651
        %5676 = vst [vmem:[%s137 + $0xd00] sm:$0xff] %v4652
        %5677 = vst [vmem:[%s137 + $0xd08] sm:$0xff] %v4653
        %5678 = vst [vmem:[%s137 + $0xd10] sm:$0xff] %v4654
        %5679 = vst [vmem:[%s137 + $0xd18] sm:$0xff] %v4655
        %5680 = vst [vmem:[%s137 + $0xd20] sm:$0xff] %v4656
        %5681 = vst [vmem:[%s137 + $0xd28] sm:$0xff] %v4657
        %5682 = vst [vmem:[%s137 + $0xd30] sm:$0xff] %v4658
        %5683 = vst [vmem:[%s137 + $0xd38] sm:$0xff] %v4659
        %5684 = vst [vmem:[%s137 + $0xd40] sm:$0xff] %v4660
        %5685 = vst [vmem:[%s137 + $0xd48] sm:$0xff] %v4661
        %5686 = vst [vmem:[%s137 + $0xd50] sm:$0xff] %v4662
        %5687 = vst [vmem:[%s137 + $0xd58] sm:$0xff] %v4663
        %5688 = vst [vmem:[%s137 + $0xd60] sm:$0xff] %v4664
        %5689 = vst [vmem:[%s137 + $0xd68] sm:$0xff] %v4665
        %5690 = vst [vmem:[%s137 + $0xd70] sm:$0xff] %v4666
        %5691 = vst [vmem:[%s137 + $0xd78] sm:$0xff] %v4667
        %5692 = vst [vmem:[%s137 + $0xd80] sm:$0xff] %v4668
        %5693 = vst [vmem:[%s137 + $0xd88] sm:$0xff] %v4669
        %5694 = vst [vmem:[%s137 + $0xd90] sm:$0xff] %v4670
        %5695 = vst [vmem:[%s137 + $0xd98] sm:$0xff] %v4671
        %5696 = vst [vmem:[%s137 + $0xda0] sm:$0xff] %v4672
        %5697 = vst [vmem:[%s137 + $0xda8] sm:$0xff] %v4673
        %5698 = vst [vmem:[%s137 + $0xdb0] sm:$0xff] %v4674
        %5699 = vst [vmem:[%s137 + $0xdb8] sm:$0xff] %v4675
        %5700 = vst [vmem:[%s137 + $0xdc0] sm:$0xff] %v4676
        %5701 = vst [vmem:[%s137 + $0xdc8] sm:$0xff] %v4677
        %5702 = vst [vmem:[%s137 + $0xdd0] sm:$0xff] %v4678
        %5703 = vst [vmem:[%s137 + $0xdd8] sm:$0xff] %v4679
        %5704 = vst [vmem:[%s137 + $0xde0] sm:$0xff] %v4680
        %5705 = vst [vmem:[%s137 + $0xde8] sm:$0xff] %v4681
        %5706 = vst [vmem:[%s137 + $0xdf0] sm:$0xff] %v4682
        %5707 = vst [vmem:[%s137 + $0xdf8] sm:$0xff] %v4683
        %5708 = vst [vmem:[%s137 + $0xe00] sm:$0xff] %v4684
        %5709 = vst [vmem:[%s137 + $0xe08] sm:$0xff] %v4685
        %5710 = vst [vmem:[%s137 + $0xe10] sm:$0xff] %v4686
        %5711 = vst [vmem:[%s137 + $0xe18] sm:$0xff] %v4687
        %5712 = vst [vmem:[%s137 + $0xe20] sm:$0xff] %v4688
        %5713 = vst [vmem:[%s137 + $0xe28] sm:$0xff] %v4689
        %5714 = vst [vmem:[%s137 + $0xe30] sm:$0xff] %v4690
        %5715 = vst [vmem:[%s137 + $0xe38] sm:$0xff] %v4691
        %5716 = vst [vmem:[%s137 + $0xe40] sm:$0xff] %v4692
        %5717 = vst [vmem:[%s137 + $0xe48] sm:$0xff] %v4693
        %5718 = vst [vmem:[%s137 + $0xe50] sm:$0xff] %v4694
        %5719 = vst [vmem:[%s137 + $0xe58] sm:$0xff] %v4695
        %5720 = vst [vmem:[%s137 + $0xe60] sm:$0xff] %v4696
        %5721 = vst [vmem:[%s137 + $0xe68] sm:$0xff] %v4697
        %5722 = vst [vmem:[%s137 + $0xe70] sm:$0xff] %v4698
        %5723 = vst [vmem:[%s137 + $0xe78] sm:$0xff] %v4699
        %5724 = vst [vmem:[%s137 + $0xe80] sm:$0xff] %v4700
        %5725 = vst [vmem:[%s137 + $0xe88] sm:$0xff] %v4701
        %5726 = vst [vmem:[%s137 + $0xe90] sm:$0xff] %v4702
        %5727 = vst [vmem:[%s137 + $0xe98] sm:$0xff] %v4703
        %5728 = vst [vmem:[%s137 + $0xea0] sm:$0xff] %v4704
        %5729 = vst [vmem:[%s137 + $0xea8] sm:$0xff] %v4705
        %5730 = vst [vmem:[%s137 + $0xeb0] sm:$0xff] %v4706
        %5731 = vst [vmem:[%s137 + $0xeb8] sm:$0xff] %v4707
        %5732 = vst [vmem:[%s137 + $0xec0] sm:$0xff] %v4708
        %5733 = vst [vmem:[%s137 + $0xec8] sm:$0xff] %v4709
        %5734 = vst [vmem:[%s137 + $0xed0] sm:$0xff] %v4710
        %5735 = vst [vmem:[%s137 + $0xed8] sm:$0xff] %v4711
        %5736 = vst [vmem:[%s137 + $0xee0] sm:$0xff] %v4712
        %5737 = vst [vmem:[%s137 + $0xee8] sm:$0xff] %v4713
        %5738 = vst [vmem:[%s137 + $0xef0] sm:$0xff] %v4714
        %5739 = vst [vmem:[%s137 + $0xef8] sm:$0xff] %v4715
        %5740 = vst [vmem:[%s137 + $0xf00] sm:$0xff] %v4716
        %5741 = vst [vmem:[%s137 + $0xf08] sm:$0xff] %v4717
        %5742 = vst [vmem:[%s137 + $0xf10] sm:$0xff] %v4718
        %5743 = vst [vmem:[%s137 + $0xf18] sm:$0xff] %v4719
        %5744 = vst [vmem:[%s137 + $0xf20] sm:$0xff] %v4720
        %5745 = vst [vmem:[%s137 + $0xf28] sm:$0xff] %v4721
        %5746 = vst [vmem:[%s137 + $0xf30] sm:$0xff] %v4722
        %5747 = vst [vmem:[%s137 + $0xf38] sm:$0xff] %v4723
        %5748 = vst [vmem:[%s137 + $0xf40] sm:$0xff] %v4724
        %5749 = vst [vmem:[%s137 + $0xf48] sm:$0xff] %v4725
        %5750 = vst [vmem:[%s137 + $0xf50] sm:$0xff] %v4726
        %5751 = vst [vmem:[%s137 + $0xf58] sm:$0xff] %v4727
        %5752 = vst [vmem:[%s137 + $0xf60] sm:$0xff] %v4728
        %5753 = vst [vmem:[%s137 + $0xf68] sm:$0xff] %v4729
        %5754 = vst [vmem:[%s137 + $0xf70] sm:$0xff] %v4730
        %5755 = vst [vmem:[%s137 + $0xf78] sm:$0xff] %v4731
        %5756 = vst [vmem:[%s137 + $0xf80] sm:$0xff] %v4732
        %5757 = vst [vmem:[%s137 + $0xf88] sm:$0xff] %v4733
        %5758 = vst [vmem:[%s137 + $0xf90] sm:$0xff] %v4734
        %5759 = vst [vmem:[%s137 + $0xf98] sm:$0xff] %v4735
        %5760 = vst [vmem:[%s137 + $0xfa0] sm:$0xff] %v4736
        %5761 = vst [vmem:[%s137 + $0xfa8] sm:$0xff] %v4737
        %5762 = vst [vmem:[%s137 + $0xfb0] sm:$0xff] %v4738
        %5763 = vst [vmem:[%s137 + $0xfb8] sm:$0xff] %v4739
        %5764 = vst [vmem:[%s137 + $0xfc0] sm:$0xff] %v4740
        %5765 = vst [vmem:[%s137 + $0xfc8] sm:$0xff] %v4741
        %5766 = vst [vmem:[%s137 + $0xfd0] sm:$0xff] %v4742
        %5767 = vst [vmem:[%s137 + $0xfd8] sm:$0xff] %v4743
        %5768 = vst [vmem:[%s137 + $0xfe0] sm:$0xff] %v4744
        %5769 = vst [vmem:[%s137 + $0xfe8] sm:$0xff] %v4745
        %5770 = vst [vmem:[%s137 + $0xff0] sm:$0xff] %v4746
        %5771 = vst [vmem:[%s137 + $0xff8] sm:$0xff] %v4747
        %5772 = vst [vmem:[%s137 + $0x1000] sm:$0xff] %v4748
        %5773 = vst [vmem:[%s137 + $0x1008] sm:$0xff] %v4749
        %5774 = vst [vmem:[%s137 + $0x1010] sm:$0xff] %v4750
        %5775 = vst [vmem:[%s137 + $0x1018] sm:$0xff] %v4751
        %5776 = vst [vmem:[%s137 + $0x1020] sm:$0xff] %v4752
        %5777 = vst [vmem:[%s137 + $0x1028] sm:$0xff] %v4753
        %5778 = vst [vmem:[%s137 + $0x1030] sm:$0xff] %v4754
        %5779 = vst [vmem:[%s137 + $0x1038] sm:$0xff] %v4755
        %5780 = vst [vmem:[%s137 + $0x1040] sm:$0xff] %v4756
        %5781 = vst [vmem:[%s137 + $0x1048] sm:$0xff] %v4757
        %5782 = vst [vmem:[%s137 + $0x1050] sm:$0xff] %v4758
        %5783 = vst [vmem:[%s137 + $0x1058] sm:$0xff] %v4759
        %5784 = vst [vmem:[%s137 + $0x1060] sm:$0xff] %v4760
        %5785 = vst [vmem:[%s137 + $0x1068] sm:$0xff] %v4761
        %5786 = vst [vmem:[%s137 + $0x1070] sm:$0xff] %v4762
        %5787 = vst [vmem:[%s137 + $0x1078] sm:$0xff] %v4763
        %5788 = vst [vmem:[%s137 + $0x1080] sm:$0xff] %v4764
        %5789 = vst [vmem:[%s137 + $0x1088] sm:$0xff] %v4765
        %5790 = vst [vmem:[%s137 + $0x1090] sm:$0xff] %v4766
        %5791 = vst [vmem:[%s137 + $0x1098] sm:$0xff] %v4767
        %5792 = vst [vmem:[%s137 + $0x10a0] sm:$0xff] %v4768
        %5793 = vst [vmem:[%s137 + $0x10a8] sm:$0xff] %v4769
        %5794 = vst [vmem:[%s137 + $0x10b0] sm:$0xff] %v4770
        %5795 = vst [vmem:[%s137 + $0x10b8] sm:$0xff] %v4771
        %5796 = vst [vmem:[%s137 + $0x10c0] sm:$0xff] %v4772
        %5797 = vst [vmem:[%s137 + $0x10c8] sm:$0xff] %v4773
        %5798 = vst [vmem:[%s137 + $0x10d0] sm:$0xff] %v4774
        %5799 = vst [vmem:[%s137 + $0x10d8] sm:$0xff] %v4775
        %5800 = vst [vmem:[%s137 + $0x10e0] sm:$0xff] %v4776
        %5801 = vst [vmem:[%s137 + $0x10e8] sm:$0xff] %v4777
        %5802 = vst [vmem:[%s137 + $0x10f0] sm:$0xff] %v4778
        %5803 = vst [vmem:[%s137 + $0x10f8] sm:$0xff] %v4779
        %5804 = vst [vmem:[%s137 + $0x1100] sm:$0xff] %v4780
        %5805 = vst [vmem:[%s137 + $0x1108] sm:$0xff] %v4781
        %5806 = vst [vmem:[%s137 + $0x1110] sm:$0xff] %v4782
        %5807 = vst [vmem:[%s137 + $0x1118] sm:$0xff] %v4783
        %5808 = vst [vmem:[%s137 + $0x1120] sm:$0xff] %v4784
        %5809 = vst [vmem:[%s137 + $0x1128] sm:$0xff] %v4785
        %5810 = vst [vmem:[%s137 + $0x1130] sm:$0xff] %v4786
        %5811 = vst [vmem:[%s137 + $0x1138] sm:$0xff] %v4787
        %5812 = vst [vmem:[%s137 + $0x1140] sm:$0xff] %v4788
        %5813 = vst [vmem:[%s137 + $0x1148] sm:$0xff] %v4789
        %5814 = vst [vmem:[%s137 + $0x1150] sm:$0xff] %v4790
        %5815 = vst [vmem:[%s137 + $0x1158] sm:$0xff] %v4791
        %5816 = vst [vmem:[%s137 + $0x1160] sm:$0xff] %v4792
        %5817 = vst [vmem:[%s137 + $0x1168] sm:$0xff] %v4793
        %5818 = vst [vmem:[%s137 + $0x1170] sm:$0xff] %v4794
        %5819 = vst [vmem:[%s137 + $0x1178] sm:$0xff] %v4795
        %5820 = vst [vmem:[%s137 + $0x1180] sm:$0xff] %v4796
        %5821 = vst [vmem:[%s137 + $0x1188] sm:$0xff] %v4797
        %5822 = vst [vmem:[%s137 + $0x1190] sm:$0xff] %v4798
        %5823 = vst [vmem:[%s137 + $0x1198] sm:$0xff] %v4799
        %5824 = vst [vmem:[%s137 + $0x11a0] sm:$0xff] %v4800
        %5825 = vst [vmem:[%s137 + $0x11a8] sm:$0xff] %v4801
        %5826 = vst [vmem:[%s137 + $0x11b0] sm:$0xff] %v4802
        %5827 = vst [vmem:[%s137 + $0x11b8] sm:$0xff] %v4803
        %5828 = vst [vmem:[%s137 + $0x11c0] sm:$0xff] %v4804
        %5829 = vst [vmem:[%s137 + $0x11c8] sm:$0xff] %v4805
        %5830 = vst [vmem:[%s137 + $0x11d0] sm:$0xff] %v4806
        %5831 = vst [vmem:[%s137 + $0x11d8] sm:$0xff] %v4807
        %5832 = vst [vmem:[%s137 + $0x11e0] sm:$0xff] %v4808
        %5833 = vst [vmem:[%s137 + $0x11e8] sm:$0xff] %v4809
        %5834 = vst [vmem:[%s137 + $0x11f0] sm:$0xff] %v4810
        %5835 = vst [vmem:[%s137 + $0x11f8] sm:$0xff] %v4811
        %5836 = vst [vmem:[%s137 + $0x1200] sm:$0xff] %v4812
        %5837 = vst [vmem:[%s137 + $0x1208] sm:$0xff] %v4813
        %5838 = vst [vmem:[%s137 + $0x1210] sm:$0xff] %v4814
        %5839 = vst [vmem:[%s137 + $0x1218] sm:$0xff] %v4815
        %5840 = vst [vmem:[%s137 + $0x1220] sm:$0xff] %v4816
        %5841 = vst [vmem:[%s137 + $0x1228] sm:$0xff] %v4817
        %5842 = vst [vmem:[%s137 + $0x1230] sm:$0xff] %v4818
        %5843 = vst [vmem:[%s137 + $0x1238] sm:$0xff] %v4819
        %5844 = vst [vmem:[%s137 + $0x1240] sm:$0xff] %v4820
        %5845 = vst [vmem:[%s137 + $0x1248] sm:$0xff] %v4821
        %5846 = vst [vmem:[%s137 + $0x1250] sm:$0xff] %v4822
        %5847 = vst [vmem:[%s137 + $0x1258] sm:$0xff] %v4823
        %5848 = vst [vmem:[%s137 + $0x1260] sm:$0xff] %v4824
        %5849 = vst [vmem:[%s137 + $0x1268] sm:$0xff] %v4825
        %5850 = vst [vmem:[%s137 + $0x1270] sm:$0xff] %v4826
        %5851 = vst [vmem:[%s137 + $0x1278] sm:$0xff] %v4827
        %5852 = vst [vmem:[%s137 + $0x1280] sm:$0xff] %v4828
        %5853 = vst [vmem:[%s137 + $0x1288] sm:$0xff] %v4829
        %5854 = vst [vmem:[%s137 + $0x1290] sm:$0xff] %v4830
        %5855 = vst [vmem:[%s137 + $0x1298] sm:$0xff] %v4831
        %5856 = vst [vmem:[%s137 + $0x12a0] sm:$0xff] %v4832
        %5857 = vst [vmem:[%s137 + $0x12a8] sm:$0xff] %v4833
        %5858 = vst [vmem:[%s137 + $0x12b0] sm:$0xff] %v4834
        %5859 = vst [vmem:[%s137 + $0x12b8] sm:$0xff] %v4835
        %5860 = vst [vmem:[%s137 + $0x12c0] sm:$0xff] %v4836
        %5861 = vst [vmem:[%s137 + $0x12c8] sm:$0xff] %v4837
        %5862 = vst [vmem:[%s137 + $0x12d0] sm:$0xff] %v4838
        %5863 = vst [vmem:[%s137 + $0x12d8] sm:$0xff] %v4839
        %5864 = vst [vmem:[%s137 + $0x12e0] sm:$0xff] %v4840
        %5865 = vst [vmem:[%s137 + $0x12e8] sm:$0xff] %v4841
        %5866 = vst [vmem:[%s137 + $0x12f0] sm:$0xff] %v4842
        %5867 = vst [vmem:[%s137 + $0x12f8] sm:$0xff] %v4843
        %5868 = vst [vmem:[%s137 + $0x1300] sm:$0xff] %v4844
        %5869 = vst [vmem:[%s137 + $0x1308] sm:$0xff] %v4845
        %5870 = vst [vmem:[%s137 + $0x1310] sm:$0xff] %v4846
        %5871 = vst [vmem:[%s137 + $0x1318] sm:$0xff] %v4847
        %5872 = vst [vmem:[%s137 + $0x1320] sm:$0xff] %v4848
        %5873 = vst [vmem:[%s137 + $0x1328] sm:$0xff] %v4849
        %5874 = vst [vmem:[%s137 + $0x1330] sm:$0xff] %v4850
        %5875 = vst [vmem:[%s137 + $0x1338] sm:$0xff] %v4851
        %5876 = vst [vmem:[%s137 + $0x1340] sm:$0xff] %v4852
        %5877 = vst [vmem:[%s137 + $0x1348] sm:$0xff] %v4853
        %5878 = vst [vmem:[%s137 + $0x1350] sm:$0xff] %v4854
        %5879 = vst [vmem:[%s137 + $0x1358] sm:$0xff] %v4855
        %5880 = vst [vmem:[%s137 + $0x1360] sm:$0xff] %v4856
        %5881 = vst [vmem:[%s137 + $0x1368] sm:$0xff] %v4857
        %5882 = vst [vmem:[%s137 + $0x1370] sm:$0xff] %v4858
        %5883 = vst [vmem:[%s137 + $0x1378] sm:$0xff] %v4859
        %5884 = vst [vmem:[%s137 + $0x1380] sm:$0xff] %v4860
        %5885 = vst [vmem:[%s137 + $0x1388] sm:$0xff] %v4861
        %5886 = vst [vmem:[%s137 + $0x1390] sm:$0xff] %v4862
        %5887 = vst [vmem:[%s137 + $0x1398] sm:$0xff] %v4863
        %5888 = vst [vmem:[%s137 + $0x13a0] sm:$0xff] %v4864
        %5889 = vst [vmem:[%s137 + $0x13a8] sm:$0xff] %v4865
        %5890 = vst [vmem:[%s137 + $0x13b0] sm:$0xff] %v4866
        %5891 = vst [vmem:[%s137 + $0x13b8] sm:$0xff] %v4867
        %5892 = vst [vmem:[%s137 + $0x13c0] sm:$0xff] %v4868
        %5893 = vst [vmem:[%s137 + $0x13c8] sm:$0xff] %v4869
        %5894 = vst [vmem:[%s137 + $0x13d0] sm:$0xff] %v4870
        %5895 = vst [vmem:[%s137 + $0x13d8] sm:$0xff] %v4871
        %5896 = vst [vmem:[%s137 + $0x13e0] sm:$0xff] %v4872
        %5897 = vst [vmem:[%s137 + $0x13e8] sm:$0xff] %v4873
        %5898 = vst [vmem:[%s137 + $0x13f0] sm:$0xff] %v4874
        %5899 = vst [vmem:[%s137 + $0x13f8] sm:$0xff] %v4875
        %5900 = vst [vmem:[%s137 + $0x1400] sm:$0xff] %v4876
        %5901 = vst [vmem:[%s137 + $0x1408] sm:$0xff] %v4877
        %5902 = vst [vmem:[%s137 + $0x1410] sm:$0xff] %v4878
        %5903 = vst [vmem:[%s137 + $0x1418] sm:$0xff] %v4879
        %5904 = vst [vmem:[%s137 + $0x1420] sm:$0xff] %v4880
        %5905 = vst [vmem:[%s137 + $0x1428] sm:$0xff] %v4881
        %5906 = vst [vmem:[%s137 + $0x1430] sm:$0xff] %v4882
        %5907 = vst [vmem:[%s137 + $0x1438] sm:$0xff] %v4883
        %5908 = vst [vmem:[%s137 + $0x1440] sm:$0xff] %v4884
        %5909 = vst [vmem:[%s137 + $0x1448] sm:$0xff] %v4885
        %5910 = vst [vmem:[%s137 + $0x1450] sm:$0xff] %v4886
        %5911 = vst [vmem:[%s137 + $0x1458] sm:$0xff] %v4887
        %5912 = vst [vmem:[%s137 + $0x1460] sm:$0xff] %v4888
        %5913 = vst [vmem:[%s137 + $0x1468] sm:$0xff] %v4889
        %5914 = vst [vmem:[%s137 + $0x1470] sm:$0xff] %v4890
        %5915 = vst [vmem:[%s137 + $0x1478] sm:$0xff] %v4891
        %5916 = vst [vmem:[%s137 + $0x1480] sm:$0xff] %v4892
        %5917 = vst [vmem:[%s137 + $0x1488] sm:$0xff] %v4893
        %5918 = vst [vmem:[%s137 + $0x1490] sm:$0xff] %v4894
        %5919 = vst [vmem:[%s137 + $0x1498] sm:$0xff] %v4895
        %5920 = vst [vmem:[%s137 + $0x14a0] sm:$0xff] %v4896
        %5921 = vst [vmem:[%s137 + $0x14a8] sm:$0xff] %v4897
        %5922 = vst [vmem:[%s137 + $0x14b0] sm:$0xff] %v4898
        %5923 = vst [vmem:[%s137 + $0x14b8] sm:$0xff] %v4899
        %5924 = vst [vmem:[%s137 + $0x14c0] sm:$0xff] %v4900
        %5925 = vst [vmem:[%s137 + $0x14c8] sm:$0xff] %v4901
        %5926 = vst [vmem:[%s137 + $0x14d0] sm:$0xff] %v4902
        %5927 = vst [vmem:[%s137 + $0x14d8] sm:$0xff] %v4903
        %5928 = vst [vmem:[%s137 + $0x14e0] sm:$0xff] %v4904
        %5929 = vst [vmem:[%s137 + $0x14e8] sm:$0xff] %v4905
        %5930 = vst [vmem:[%s137 + $0x14f0] sm:$0xff] %v4906
        %5931 = vst [vmem:[%s137 + $0x14f8] sm:$0xff] %v4907
        %5932 = vst [vmem:[%s137 + $0x1500] sm:$0xff] %v4908
        %5933 = vst [vmem:[%s137 + $0x1508] sm:$0xff] %v4909
        %5934 = vst [vmem:[%s137 + $0x1510] sm:$0xff] %v4910
        %5935 = vst [vmem:[%s137 + $0x1518] sm:$0xff] %v4911
        %5936 = vst [vmem:[%s137 + $0x1520] sm:$0xff] %v4912
        %5937 = vst [vmem:[%s137 + $0x1528] sm:$0xff] %v4913
        %5938 = vst [vmem:[%s137 + $0x1530] sm:$0xff] %v4914
        %5939 = vst [vmem:[%s137 + $0x1538] sm:$0xff] %v4915
        %5940 = vst [vmem:[%s137 + $0x1540] sm:$0xff] %v4916
        %5941 = vst [vmem:[%s137 + $0x1548] sm:$0xff] %v4917
        %5942 = vst [vmem:[%s137 + $0x1550] sm:$0xff] %v4918
        %5943 = vst [vmem:[%s137 + $0x1558] sm:$0xff] %v4919
        %5944 = vst [vmem:[%s137 + $0x1560] sm:$0xff] %v4920
        %5945 = vst [vmem:[%s137 + $0x1568] sm:$0xff] %v4921
        %5946 = vst [vmem:[%s137 + $0x1570] sm:$0xff] %v4922
        %5947 = vst [vmem:[%s137 + $0x1578] sm:$0xff] %v4923
        %5948 = vst [vmem:[%s137 + $0x1580] sm:$0xff] %v4924
        %5949 = vst [vmem:[%s137 + $0x1588] sm:$0xff] %v4925
        %5950 = vst [vmem:[%s137 + $0x1590] sm:$0xff] %v4926
        %5951 = vst [vmem:[%s137 + $0x1598] sm:$0xff] %v4927
        %5952 = vst [vmem:[%s137 + $0x15a0] sm:$0xff] %v4928
        %5953 = vst [vmem:[%s137 + $0x15a8] sm:$0xff] %v4929
        %5954 = vst [vmem:[%s137 + $0x15b0] sm:$0xff] %v4930
        %5955 = vst [vmem:[%s137 + $0x15b8] sm:$0xff] %v4931
        %5956 = vst [vmem:[%s137 + $0x15c0] sm:$0xff] %v4932
        %5957 = vst [vmem:[%s137 + $0x15c8] sm:$0xff] %v4933
        %5958 = vst [vmem:[%s137 + $0x15d0] sm:$0xff] %v4934
        %5959 = vst [vmem:[%s137 + $0x15d8] sm:$0xff] %v4935
        %5960 = vst [vmem:[%s137 + $0x15e0] sm:$0xff] %v4936
        %5961 = vst [vmem:[%s137 + $0x15e8] sm:$0xff] %v4937
        %5962 = vst [vmem:[%s137 + $0x15f0] sm:$0xff] %v4938
        %5963 = vst [vmem:[%s137 + $0x15f8] sm:$0xff] %v4939
        %5964 = vst [vmem:[%s137 + $0x1600] sm:$0xff] %v4940
        %5965 = vst [vmem:[%s137 + $0x1608] sm:$0xff] %v4941
        %5966 = vst [vmem:[%s137 + $0x1610] sm:$0xff] %v4942
        %5967 = vst [vmem:[%s137 + $0x1618] sm:$0xff] %v4943
        %5968 = vst [vmem:[%s137 + $0x1620] sm:$0xff] %v4944
        %5969 = vst [vmem:[%s137 + $0x1628] sm:$0xff] %v4945
        %5970 = vst [vmem:[%s137 + $0x1630] sm:$0xff] %v4946
        %5971 = vst [vmem:[%s137 + $0x1638] sm:$0xff] %v4947
        %5972 = vst [vmem:[%s137 + $0x1640] sm:$0xff] %v4948
        %5973 = vst [vmem:[%s137 + $0x1648] sm:$0xff] %v4949
        %5974 = vst [vmem:[%s137 + $0x1650] sm:$0xff] %v4950
        %5975 = vst [vmem:[%s137 + $0x1658] sm:$0xff] %v4951
        %5976 = vst [vmem:[%s137 + $0x1660] sm:$0xff] %v4952
        %5977 = vst [vmem:[%s137 + $0x1668] sm:$0xff] %v4953
        %5978 = vst [vmem:[%s137 + $0x1670] sm:$0xff] %v4954
        %5979 = vst [vmem:[%s137 + $0x1678] sm:$0xff] %v4955
        %5980 = vst [vmem:[%s137 + $0x1680] sm:$0xff] %v4956
        %5981 = vst [vmem:[%s137 + $0x1688] sm:$0xff] %v4957
        %5982 = vst [vmem:[%s137 + $0x1690] sm:$0xff] %v4958
        %5983 = vst [vmem:[%s137 + $0x1698] sm:$0xff] %v4959
        %5984 = vst [vmem:[%s137 + $0x16a0] sm:$0xff] %v4960
        %5985 = vst [vmem:[%s137 + $0x16a8] sm:$0xff] %v4961
        %5986 = vst [vmem:[%s137 + $0x16b0] sm:$0xff] %v4962
        %5987 = vst [vmem:[%s137 + $0x16b8] sm:$0xff] %v4963
        %5988 = vst [vmem:[%s137 + $0x16c0] sm:$0xff] %v4964
        %5989 = vst [vmem:[%s137 + $0x16c8] sm:$0xff] %v4965
        %5990 = vst [vmem:[%s137 + $0x16d0] sm:$0xff] %v4966
        %5991 = vst [vmem:[%s137 + $0x16d8] sm:$0xff] %v4967
        %5992 = vst [vmem:[%s137 + $0x16e0] sm:$0xff] %v4968
        %5993 = vst [vmem:[%s137 + $0x16e8] sm:$0xff] %v4969
        %5994 = vst [vmem:[%s137 + $0x16f0] sm:$0xff] %v4970
        %5995 = vst [vmem:[%s137 + $0x16f8] sm:$0xff] %v4971
        %5996 = vst [vmem:[%s137 + $0x1700] sm:$0xff] %v4972
        %5997 = vst [vmem:[%s137 + $0x1708] sm:$0xff] %v4973
        %5998 = vst [vmem:[%s137 + $0x1710] sm:$0xff] %v4974
        %5999 = vst [vmem:[%s137 + $0x1718] sm:$0xff] %v4975
        %6000 = vst [vmem:[%s137 + $0x1720] sm:$0xff] %v4976
        %6001 = vst [vmem:[%s137 + $0x1728] sm:$0xff] %v4977
        %6002 = vst [vmem:[%s137 + $0x1730] sm:$0xff] %v4978
        %6003 = vst [vmem:[%s137 + $0x1738] sm:$0xff] %v4979
        %6004 = vst [vmem:[%s137 + $0x1740] sm:$0xff] %v4980
        %6005 = vst [vmem:[%s137 + $0x1748] sm:$0xff] %v4981
        %6006 = vst [vmem:[%s137 + $0x1750] sm:$0xff] %v4982
        %6007 = vst [vmem:[%s137 + $0x1758] sm:$0xff] %v4983
        %6008 = vst [vmem:[%s137 + $0x1760] sm:$0xff] %v4984
        %6009 = vst [vmem:[%s137 + $0x1768] sm:$0xff] %v4985
        %6010 = vst [vmem:[%s137 + $0x1770] sm:$0xff] %v4986
        %6011 = vst [vmem:[%s137 + $0x1778] sm:$0xff] %v4987
        %6012 = vst [vmem:[%s137 + $0x1780] sm:$0xff] %v4988
        %6013 = vst [vmem:[%s137 + $0x1788] sm:$0xff] %v4989
        %6014 = vst [vmem:[%s137 + $0x1790] sm:$0xff] %v4990
        %6015 = vst [vmem:[%s137 + $0x1798] sm:$0xff] %v4991
        %6016 = vst [vmem:[%s137 + $0x17a0] sm:$0xff] %v4992
        %6017 = vst [vmem:[%s137 + $0x17a8] sm:$0xff] %v4993
        %6018 = vst [vmem:[%s137 + $0x17b0] sm:$0xff] %v4994
        %6019 = vst [vmem:[%s137 + $0x17b8] sm:$0xff] %v4995
        %6020 = vst [vmem:[%s137 + $0x17c0] sm:$0xff] %v4996
        %6021 = vst [vmem:[%s137 + $0x17c8] sm:$0xff] %v4997
        %6022 = vst [vmem:[%s137 + $0x17d0] sm:$0xff] %v4998
        %6023 = vst [vmem:[%s137 + $0x17d8] sm:$0xff] %v4999
        %6024 = vst [vmem:[%s137 + $0x17e0] sm:$0xff] %v5000
        %6025 = vst [vmem:[%s137 + $0x17e8] sm:$0xff] %v5001
        %6026 = vst [vmem:[%s137 + $0x17f0] sm:$0xff] %v5002
        %6027 = vst [vmem:[%s137 + $0x17f8] sm:$0xff] %v5003
        %6028 = vst [vmem:[%s137 + $0x1800] sm:$0xff] %v5004
        %6029 = vst [vmem:[%s137 + $0x1808] sm:$0xff] %v5005
        %6030 = vst [vmem:[%s137 + $0x1810] sm:$0xff] %v5006
        %6031 = vst [vmem:[%s137 + $0x1818] sm:$0xff] %v5007
        %6032 = vst [vmem:[%s137 + $0x1820] sm:$0xff] %v5008
        %6033 = vst [vmem:[%s137 + $0x1828] sm:$0xff] %v5009
        %6034 = vst [vmem:[%s137 + $0x1830] sm:$0xff] %v5010
        %6035 = vst [vmem:[%s137 + $0x1838] sm:$0xff] %v5011
        %6036 = vst [vmem:[%s137 + $0x1840] sm:$0xff] %v5012
        %6037 = vst [vmem:[%s137 + $0x1848] sm:$0xff] %v5013
        %6038 = vst [vmem:[%s137 + $0x1850] sm:$0xff] %v5014
        %6039 = vst [vmem:[%s137 + $0x1858] sm:$0xff] %v5015
        %6040 = vst [vmem:[%s137 + $0x1860] sm:$0xff] %v5016
        %6041 = vst [vmem:[%s137 + $0x1868] sm:$0xff] %v5017
        %6042 = vst [vmem:[%s137 + $0x1870] sm:$0xff] %v5018
        %6043 = vst [vmem:[%s137 + $0x1878] sm:$0xff] %v5019
        %6044 = vst [vmem:[%s137 + $0x1880] sm:$0xff] %v5020
        %6045 = vst [vmem:[%s137 + $0x1888] sm:$0xff] %v5021
        %6046 = vst [vmem:[%s137 + $0x1890] sm:$0xff] %v5022
        %6047 = vst [vmem:[%s137 + $0x1898] sm:$0xff] %v5023
        %6048 = vst [vmem:[%s137 + $0x18a0] sm:$0xff] %v5024
        %6049 = vst [vmem:[%s137 + $0x18a8] sm:$0xff] %v5025
        %6050 = vst [vmem:[%s137 + $0x18b0] sm:$0xff] %v5026
        %6051 = vst [vmem:[%s137 + $0x18b8] sm:$0xff] %v5027
        %6052 = vst [vmem:[%s137 + $0x18c0] sm:$0xff] %v5028
        %6053 = vst [vmem:[%s137 + $0x18c8] sm:$0xff] %v5029
        %6054 = vst [vmem:[%s137 + $0x18d0] sm:$0xff] %v5030
        %6055 = vst [vmem:[%s137 + $0x18d8] sm:$0xff] %v5031
        %6056 = vst [vmem:[%s137 + $0x18e0] sm:$0xff] %v5032
        %6057 = vst [vmem:[%s137 + $0x18e8] sm:$0xff] %v5033
        %6058 = vst [vmem:[%s137 + $0x18f0] sm:$0xff] %v5034
        %6059 = vst [vmem:[%s137 + $0x18f8] sm:$0xff] %v5035
        %6060 = vst [vmem:[%s137 + $0x1900] sm:$0xff] %v5036
        %6061 = vst [vmem:[%s137 + $0x1908] sm:$0xff] %v5037
        %6062 = vst [vmem:[%s137 + $0x1910] sm:$0xff] %v5038
        %6063 = vst [vmem:[%s137 + $0x1918] sm:$0xff] %v5039
        %6064 = vst [vmem:[%s137 + $0x1920] sm:$0xff] %v5040
        %6065 = vst [vmem:[%s137 + $0x1928] sm:$0xff] %v5041
        %6066 = vst [vmem:[%s137 + $0x1930] sm:$0xff] %v5042
        %6067 = vst [vmem:[%s137 + $0x1938] sm:$0xff] %v5043
        %6068 = vst [vmem:[%s137 + $0x1940] sm:$0xff] %v5044
        %6069 = vst [vmem:[%s137 + $0x1948] sm:$0xff] %v5045
        %6070 = vst [vmem:[%s137 + $0x1950] sm:$0xff] %v5046
        %6071 = vst [vmem:[%s137 + $0x1958] sm:$0xff] %v5047
        %6072 = vst [vmem:[%s137 + $0x1960] sm:$0xff] %v5048
        %6073 = vst [vmem:[%s137 + $0x1968] sm:$0xff] %v5049
        %6074 = vst [vmem:[%s137 + $0x1970] sm:$0xff] %v5050
        %6075 = vst [vmem:[%s137 + $0x1978] sm:$0xff] %v5051
        %6076 = vst [vmem:[%s137 + $0x1980] sm:$0xff] %v5052
        %6077 = vst [vmem:[%s137 + $0x1988] sm:$0xff] %v5053
        %6078 = vst [vmem:[%s137 + $0x1990] sm:$0xff] %v5054
        %6079 = vst [vmem:[%s137 + $0x1998] sm:$0xff] %v5055
        %6080 = vst [vmem:[%s137 + $0x19a0] sm:$0xff] %v5056
        %6081 = vst [vmem:[%s137 + $0x19a8] sm:$0xff] %v5057
        %6082 = vst [vmem:[%s137 + $0x19b0] sm:$0xff] %v5058
        %6083 = vst [vmem:[%s137 + $0x19b8] sm:$0xff] %v5059
        %6084 = vst [vmem:[%s137 + $0x19c0] sm:$0xff] %v5060
        %6085 = vst [vmem:[%s137 + $0x19c8] sm:$0xff] %v5061
        %6086 = vst [vmem:[%s137 + $0x19d0] sm:$0xff] %v5062
        %6087 = vst [vmem:[%s137 + $0x19d8] sm:$0xff] %v5063
        %6088 = vst [vmem:[%s137 + $0x19e0] sm:$0xff] %v5064
        %6089 = vst [vmem:[%s137 + $0x19e8] sm:$0xff] %v5065
        %6090 = vst [vmem:[%s137 + $0x19f0] sm:$0xff] %v5066
        %6091 = vst [vmem:[%s137 + $0x19f8] sm:$0xff] %v5067
        %6092 = vst [vmem:[%s137 + $0x1a00] sm:$0xff] %v5068
        %6093 = vst [vmem:[%s137 + $0x1a08] sm:$0xff] %v5069
        %6094 = vst [vmem:[%s137 + $0x1a10] sm:$0xff] %v5070
        %6095 = vst [vmem:[%s137 + $0x1a18] sm:$0xff] %v5071
        %6096 = vst [vmem:[%s137 + $0x1a20] sm:$0xff] %v5072
        %6097 = vst [vmem:[%s137 + $0x1a28] sm:$0xff] %v5073
        %6098 = vst [vmem:[%s137 + $0x1a30] sm:$0xff] %v5074
        %6099 = vst [vmem:[%s137 + $0x1a38] sm:$0xff] %v5075
        %6100 = vst [vmem:[%s137 + $0x1a40] sm:$0xff] %v5076
        %6101 = vst [vmem:[%s137 + $0x1a48] sm:$0xff] %v5077
        %6102 = vst [vmem:[%s137 + $0x1a50] sm:$0xff] %v5078
        %6103 = vst [vmem:[%s137 + $0x1a58] sm:$0xff] %v5079
        %6104 = vst [vmem:[%s137 + $0x1a60] sm:$0xff] %v5080
        %6105 = vst [vmem:[%s137 + $0x1a68] sm:$0xff] %v5081
        %6106 = vst [vmem:[%s137 + $0x1a70] sm:$0xff] %v5082
        %6107 = vst [vmem:[%s137 + $0x1a78] sm:$0xff] %v5083
        %6108 = vst [vmem:[%s137 + $0x1a80] sm:$0xff] %v5084
        %6109 = vst [vmem:[%s137 + $0x1a88] sm:$0xff] %v5085
        %6110 = vst [vmem:[%s137 + $0x1a90] sm:$0xff] %v5086
        %6111 = vst [vmem:[%s137 + $0x1a98] sm:$0xff] %v5087
        %6112 = vst [vmem:[%s137 + $0x1aa0] sm:$0xff] %v5088
        %6113 = vst [vmem:[%s137 + $0x1aa8] sm:$0xff] %v5089
        %6114 = vst [vmem:[%s137 + $0x1ab0] sm:$0xff] %v5090
        %6115 = vst [vmem:[%s137 + $0x1ab8] sm:$0xff] %v5091
        %6116 = vst [vmem:[%s137 + $0x1ac0] sm:$0xff] %v5092
        %6117 = vst [vmem:[%s137 + $0x1ac8] sm:$0xff] %v5093
        %6118 = vst [vmem:[%s137 + $0x1ad0] sm:$0xff] %v5094
        %6119 = vst [vmem:[%s137 + $0x1ad8] sm:$0xff] %v5095
        %6120 = vst [vmem:[%s137 + $0x1ae0] sm:$0xff] %v5096
        %6121 = vst [vmem:[%s137 + $0x1ae8] sm:$0xff] %v5097
        %6122 = vst [vmem:[%s137 + $0x1af0] sm:$0xff] %v5098
        %6123 = vst [vmem:[%s137 + $0x1af8] sm:$0xff] %v5099
        %6124 = vst [vmem:[%s137 + $0x1b00] sm:$0xff] %v5100
        %6125 = vst [vmem:[%s137 + $0x1b08] sm:$0xff] %v5101
        %6126 = vst [vmem:[%s137 + $0x1b10] sm:$0xff] %v5102
        %6127 = vst [vmem:[%s137 + $0x1b18] sm:$0xff] %v5103
        %6128 = vst [vmem:[%s137 + $0x1b20] sm:$0xff] %v5104
        %6129 = vst [vmem:[%s137 + $0x1b28] sm:$0xff] %v5105
        %6130 = vst [vmem:[%s137 + $0x1b30] sm:$0xff] %v5106
        %6131 = vst [vmem:[%s137 + $0x1b38] sm:$0xff] %v5107
        %6132 = vst [vmem:[%s137 + $0x1b40] sm:$0xff] %v5108
        %6133 = vst [vmem:[%s137 + $0x1b48] sm:$0xff] %v5109
        %6134 = vst [vmem:[%s137 + $0x1b50] sm:$0xff] %v5110
        %6135 = vst [vmem:[%s137 + $0x1b58] sm:$0xff] %v5111
        %6136 = vst [vmem:[%s137 + $0x1b60] sm:$0xff] %v5112
        %6137 = vst [vmem:[%s137 + $0x1b68] sm:$0xff] %v5113
        %6138 = vst [vmem:[%s137 + $0x1b70] sm:$0xff] %v5114
        %6139 = vst [vmem:[%s137 + $0x1b78] sm:$0xff] %v5115
        %6140 = vst [vmem:[%s137 + $0x1b80] sm:$0xff] %v5116
        %6141 = vst [vmem:[%s137 + $0x1b88] sm:$0xff] %v5117
        %6142 = vst [vmem:[%s137 + $0x1b90] sm:$0xff] %v5118
        %6143 = vst [vmem:[%s137 + $0x1b98] sm:$0xff] %v5119
        %6144 = vst [vmem:[%s137 + $0x1ba0] sm:$0xff] %v5120
        %6145 = vst [vmem:[%s137 + $0x1ba8] sm:$0xff] %v5121
        %6146 = vst [vmem:[%s137 + $0x1bb0] sm:$0xff] %v5122
        %6147 = vst [vmem:[%s137 + $0x1bb8] sm:$0xff] %v5123
        %6148 = vst [vmem:[%s137 + $0x1bc0] sm:$0xff] %v5124
        %6149 = vst [vmem:[%s137 + $0x1bc8] sm:$0xff] %v5125
        %6150 = vst [vmem:[%s137 + $0x1bd0] sm:$0xff] %v5126
        %6151 = vst [vmem:[%s137 + $0x1bd8] sm:$0xff] %v5127
        %6152 = vst [vmem:[%s137 + $0x1be0] sm:$0xff] %v5128
        %6153 = vst [vmem:[%s137 + $0x1be8] sm:$0xff] %v5129
        %6154 = vst [vmem:[%s137 + $0x1bf0] sm:$0xff] %v5130
        %6155 = vst [vmem:[%s137 + $0x1bf8] sm:$0xff] %v5131
        %6156 = vst [vmem:[%s137 + $0x1c00] sm:$0xff] %v5132
        %6157 = vst [vmem:[%s137 + $0x1c08] sm:$0xff] %v5133
        %6158 = vst [vmem:[%s137 + $0x1c10] sm:$0xff] %v5134
        %6159 = vst [vmem:[%s137 + $0x1c18] sm:$0xff] %v5135
        %6160 = vst [vmem:[%s137 + $0x1c20] sm:$0xff] %v5136
        %6161 = vst [vmem:[%s137 + $0x1c28] sm:$0xff] %v5137
        %6162 = vst [vmem:[%s137 + $0x1c30] sm:$0xff] %v5138
        %6163 = vst [vmem:[%s137 + $0x1c38] sm:$0xff] %v5139
        %6164 = vst [vmem:[%s137 + $0x1c40] sm:$0xff] %v5140
        %6165 = vst [vmem:[%s137 + $0x1c48] sm:$0xff] %v5141
        %6166 = vst [vmem:[%s137 + $0x1c50] sm:$0xff] %v5142
        %6167 = vst [vmem:[%s137 + $0x1c58] sm:$0xff] %v5143
        %6168 = vst [vmem:[%s137 + $0x1c60] sm:$0xff] %v5144
        %6169 = vst [vmem:[%s137 + $0x1c68] sm:$0xff] %v5145
        %6170 = vst [vmem:[%s137 + $0x1c70] sm:$0xff] %v5146
        %6171 = vst [vmem:[%s137 + $0x1c78] sm:$0xff] %v5147
        %6172 = vst [vmem:[%s137 + $0x1c80] sm:$0xff] %v5148
        %6173 = vst [vmem:[%s137 + $0x1c88] sm:$0xff] %v5149
        %6174 = vst [vmem:[%s137 + $0x1c90] sm:$0xff] %v5150
        %6175 = vst [vmem:[%s137 + $0x1c98] sm:$0xff] %v5151
        %6176 = vst [vmem:[%s137 + $0x1ca0] sm:$0xff] %v5152
        %6177 = vst [vmem:[%s137 + $0x1ca8] sm:$0xff] %v5153
        %6178 = vst [vmem:[%s137 + $0x1cb0] sm:$0xff] %v5154
        %6179 = vst [vmem:[%s137 + $0x1cb8] sm:$0xff] %v5155
        %6180 = vst [vmem:[%s137 + $0x1cc0] sm:$0xff] %v5156
        %6181 = vst [vmem:[%s137 + $0x1cc8] sm:$0xff] %v5157
        %6182 = vst [vmem:[%s137 + $0x1cd0] sm:$0xff] %v5158
        %6183 = vst [vmem:[%s137 + $0x1cd8] sm:$0xff] %v5159
        %6184 = vst [vmem:[%s137 + $0x1ce0] sm:$0xff] %v5160
        %6185 = vst [vmem:[%s137 + $0x1ce8] sm:$0xff] %v5161
        %6186 = vst [vmem:[%s137 + $0x1cf0] sm:$0xff] %v5162
        %6187 = vst [vmem:[%s137 + $0x1cf8] sm:$0xff] %v5163
        %6188 = vst [vmem:[%s137 + $0x1d00] sm:$0xff] %v5164
        %6189 = vst [vmem:[%s137 + $0x1d08] sm:$0xff] %v5165
        %6190 = vst [vmem:[%s137 + $0x1d10] sm:$0xff] %v5166
        %6191 = vst [vmem:[%s137 + $0x1d18] sm:$0xff] %v5167
        %6192 = vst [vmem:[%s137 + $0x1d20] sm:$0xff] %v5168
        %6193 = vst [vmem:[%s137 + $0x1d28] sm:$0xff] %v5169
        %6194 = vst [vmem:[%s137 + $0x1d30] sm:$0xff] %v5170
        %6195 = vst [vmem:[%s137 + $0x1d38] sm:$0xff] %v5171
        %6196 = vst [vmem:[%s137 + $0x1d40] sm:$0xff] %v5172
        %6197 = vst [vmem:[%s137 + $0x1d48] sm:$0xff] %v5173
        %6198 = vst [vmem:[%s137 + $0x1d50] sm:$0xff] %v5174
        %6199 = vst [vmem:[%s137 + $0x1d58] sm:$0xff] %v5175
        %6200 = vst [vmem:[%s137 + $0x1d60] sm:$0xff] %v5176
        %6201 = vst [vmem:[%s137 + $0x1d68] sm:$0xff] %v5177
        %6202 = vst [vmem:[%s137 + $0x1d70] sm:$0xff] %v5178
        %6203 = vst [vmem:[%s137 + $0x1d78] sm:$0xff] %v5179
        %6204 = vst [vmem:[%s137 + $0x1d80] sm:$0xff] %v5180
        %6205 = vst [vmem:[%s137 + $0x1d88] sm:$0xff] %v5181
        %6206 = vst [vmem:[%s137 + $0x1d90] sm:$0xff] %v5182
        %6207 = vst [vmem:[%s137 + $0x1d98] sm:$0xff] %v5183
        %6208 = vst [vmem:[%s137 + $0x1da0] sm:$0xff] %v5184
        %6209 = vst [vmem:[%s137 + $0x1da8] sm:$0xff] %v5185
        %6210 = vst [vmem:[%s137 + $0x1db0] sm:$0xff] %v5186
        %6211 = vst [vmem:[%s137 + $0x1db8] sm:$0xff] %v5187
        %6212 = vst [vmem:[%s137 + $0x1dc0] sm:$0xff] %v5188
        %6213 = vst [vmem:[%s137 + $0x1dc8] sm:$0xff] %v5189
        %6214 = vst [vmem:[%s137 + $0x1dd0] sm:$0xff] %v5190
        %6215 = vst [vmem:[%s137 + $0x1dd8] sm:$0xff] %v5191
        %6216 = vst [vmem:[%s137 + $0x1de0] sm:$0xff] %v5192
        %6217 = vst [vmem:[%s137 + $0x1de8] sm:$0xff] %v5193
        %6218 = vst [vmem:[%s137 + $0x1df0] sm:$0xff] %v5194
        %6219 = vst [vmem:[%s137 + $0x1df8] sm:$0xff] %v5195
        %6220 = vst [vmem:[%s137 + $0x1e00] sm:$0xff] %v5196
        %6221 = vst [vmem:[%s137 + $0x1e08] sm:$0xff] %v5197
        %6222 = vst [vmem:[%s137 + $0x1e10] sm:$0xff] %v5198
        %6223 = vst [vmem:[%s137 + $0x1e18] sm:$0xff] %v5199
        %6224 = vst [vmem:[%s137 + $0x1e20] sm:$0xff] %v5200
        %6225 = vst [vmem:[%s137 + $0x1e28] sm:$0xff] %v5201
        %6226 = vst [vmem:[%s137 + $0x1e30] sm:$0xff] %v5202
        %6227 = vst [vmem:[%s137 + $0x1e38] sm:$0xff] %v5203
        %6228 = vst [vmem:[%s137 + $0x1e40] sm:$0xff] %v5204
        %6229 = vst [vmem:[%s137 + $0x1e48] sm:$0xff] %v5205
        %6230 = vst [vmem:[%s137 + $0x1e50] sm:$0xff] %v5206
        %6231 = vst [vmem:[%s137 + $0x1e58] sm:$0xff] %v5207
        %6232 = vst [vmem:[%s137 + $0x1e60] sm:$0xff] %v5208
        %6233 = vst [vmem:[%s137 + $0x1e68] sm:$0xff] %v5209
        %6234 = vst [vmem:[%s137 + $0x1e70] sm:$0xff] %v5210
        %6235 = vst [vmem:[%s137 + $0x1e78] sm:$0xff] %v5211
        %6236 = vst [vmem:[%s137 + $0x1e80] sm:$0xff] %v5212
        %6237 = vst [vmem:[%s137 + $0x1e88] sm:$0xff] %v5213
        %6238 = vst [vmem:[%s137 + $0x1e90] sm:$0xff] %v5214
        %6239 = vst [vmem:[%s137 + $0x1e98] sm:$0xff] %v5215
        %6240 = vst [vmem:[%s137 + $0x1ea0] sm:$0xff] %v5216
        %6241 = vst [vmem:[%s137 + $0x1ea8] sm:$0xff] %v5217
        %6242 = vst [vmem:[%s137 + $0x1eb0] sm:$0xff] %v5218
        %6243 = vst [vmem:[%s137 + $0x1eb8] sm:$0xff] %v5219
        %6244 = vst [vmem:[%s137 + $0x1ec0] sm:$0xff] %v5220
        %6245 = vst [vmem:[%s137 + $0x1ec8] sm:$0xff] %v5221
        %6246 = vst [vmem:[%s137 + $0x1ed0] sm:$0xff] %v5222
        %6247 = vst [vmem:[%s137 + $0x1ed8] sm:$0xff] %v5223
        %6248 = vst [vmem:[%s137 + $0x1ee0] sm:$0xff] %v5224
        %6249 = vst [vmem:[%s137 + $0x1ee8] sm:$0xff] %v5225
        %6250 = vst [vmem:[%s137 + $0x1ef0] sm:$0xff] %v5226
        %6251 = vst [vmem:[%s137 + $0x1ef8] sm:$0xff] %v5227
        %6252 = vst [vmem:[%s137 + $0x1f00] sm:$0xff] %v5228
        %6253 = vst [vmem:[%s137 + $0x1f08] sm:$0xff] %v5229
        %6254 = vst [vmem:[%s137 + $0x1f10] sm:$0xff] %v5230
        %6255 = vst [vmem:[%s137 + $0x1f18] sm:$0xff] %v5231
        %6256 = vst [vmem:[%s137 + $0x1f20] sm:$0xff] %v5232
        %6257 = vst [vmem:[%s137 + $0x1f28] sm:$0xff] %v5233
        %6258 = vst [vmem:[%s137 + $0x1f30] sm:$0xff] %v5234
        %6259 = vst [vmem:[%s137 + $0x1f38] sm:$0xff] %v5235
        %6260 = vst [vmem:[%s137 + $0x1f40] sm:$0xff] %v5236
        %6261 = vst [vmem:[%s137 + $0x1f48] sm:$0xff] %v5237
        %6262 = vst [vmem:[%s137 + $0x1f50] sm:$0xff] %v5238
        %6263 = vst [vmem:[%s137 + $0x1f58] sm:$0xff] %v5239
        %6264 = vst [vmem:[%s137 + $0x1f60] sm:$0xff] %v5240
        %6265 = vst [vmem:[%s137 + $0x1f68] sm:$0xff] %v5241
        %6266 = vst [vmem:[%s137 + $0x1f70] sm:$0xff] %v5242
        %6267 = vst [vmem:[%s137 + $0x1f78] sm:$0xff] %v5243
        %6268 = vst [vmem:[%s137 + $0x1f80] sm:$0xff] %v5244
        %6269 = vst [vmem:[%s137 + $0x1f88] sm:$0xff] %v5245
        %6270 = vst [vmem:[%s137 + $0x1f90] sm:$0xff] %v5246
        %6271 = vst [vmem:[%s137 + $0x1f98] sm:$0xff] %v5247
        %6272 = vst [vmem:[%s137 + $0x1fa0] sm:$0xff] %v5248
        %6273 = vst [vmem:[%s137 + $0x1fa8] sm:$0xff] %v5249
        %6274 = vst [vmem:[%s137 + $0x1fb0] sm:$0xff] %v5250
        %6275 = vst [vmem:[%s137 + $0x1fb8] sm:$0xff] %v5251
        %6276 = vst [vmem:[%s137 + $0x1fc0] sm:$0xff] %v5252
        %6277 = vst [vmem:[%s137 + $0x1fc8] sm:$0xff] %v5253
        %6278 = vst [vmem:[%s137 + $0x1fd0] sm:$0xff] %v5254
        %6279 = vst [vmem:[%s137 + $0x1fd8] sm:$0xff] %v5255
        %6280 = vst [vmem:[%s137 + $0x1fe0] sm:$0xff] %v5256
        %6281 = vst [vmem:[%s137 + $0x1fe8] sm:$0xff] %v5257
        %6282 = vst [vmem:[%s137 + $0x1ff0] sm:$0xff] %v5258
        %6283 = vst [vmem:[%s137 + $0x1ff8] sm:$0xff] %v5259
        %s6284 = sand.u32 %s52, 1
        %s6285 = scalar_lea.sflag [#allocation4], %s6284
        %s6286 = sand.u32 %s52, 1
        %s6287 = smul.addr %s6286, 8192
        %s6288 = scalar_lea.vmem [#allocation5], %s6287
        // Predicated region
        $region29: #{tpu_custom_call.1} parent=23 // pred_check
          %p6289 = pneg %p62
        $region30: #{tpu_custom_call.1} parent=23 // pred_check_branch
          %6291 = sbr.rel (%p6289) target = $region32
        $region31: #{tpu_custom_call.1} parent=23 // pred_region
          %s6292 = smul.u32 64, %s18
          %6294 = vsyncadd %s6285, 0
          %s6295 = smul.addr %s6292, 16
          %s6296 = smul.addr %s6295, 8
          %s6297 = scalar_lea.hbm %s1, %s6296
          %s6298 = sshll.u32 %s6288, 4
          %s6299 = int_to_ptr.vmem [resolvable:$true] %s6298
          %s6300 = sshll.u32 %s6297, 4
          %s6301 = int_to_ptr.hbm [resolvable:$true] %s6300
          %6306 = dma.vmem_to_hbm [thread:$0]  %s6299, 131072, %s6301, %s6285, 2048, 2048, 128
        $region32: #{tpu_custom_call.1} parent=23 // pred_fallthru
          _
      $region24: #{tpu_custom_call.1} parent=5 // pred_fallthru
        _
      %p6307 = scmp.le.s32.totalorder 2, %s13
      // Predicated region
      $region33: #{tpu_custom_call.1} parent=5 // pred_check
        %p6308 = pneg %p6307
      $region34: #{tpu_custom_call.1} parent=5 // pred_check_branch
        %6310 = sbr.rel (%p6308) target = $region36
      $region35: #{tpu_custom_call.1} parent=5 // pred_region
        %s6311 = ssub.s32 %s13, 2
        // Predicated region
        $region37: #{tpu_custom_call.1} parent=35 // pred_check
          %p6312 = pneg %p68
        $region38: #{tpu_custom_call.1} parent=35 // pred_check_branch
          %6314 = sbr.rel (%p6312) target = $region40
        $region39: #{tpu_custom_call.1} parent=35 // pred_region
          %s6315 = sand.u32 %s53, 1
          %s6316 = scalar_lea.sflag [#allocation4], %s6315
          %s6317 = sand.u32 %s53, 1
          %s6318 = smul.addr %s6317, 8192
          %s6319 = scalar_lea.vmem [#allocation5], %s6318
          %6321 = dma.done %s6316, 131072
        $region40: #{tpu_custom_call.1} parent=35 // pred_fallthru
          _
      $region36: #{tpu_custom_call.1} parent=5 // pred_fallthru
        _
    $region6: #{tpu_custom_call.1} parent=1 // loop_footer
      %s17 = sadd.s32 1, %s13
    $region7: #{tpu_custom_call.1} parent=1 // loop_footer_branch
      %12 = sbr.rel target = $region3
    $region8: #{tpu_custom_call.1} parent=1 // loop_exit
      _
    %6322 = vsyncpa [#allocation3], 1
    %s6323 = scalar_lea.sflag [#allocation3], 1
    %6324 = vsyncpa %s6323, 1
    %6325 = vsyncpa [#allocation4], 1
    %s6326 = scalar_lea.sflag [#allocation4], 1
    %6327 = vsyncpa %s6326, 1

</llo_original>
